<compile_context>
chip_gen: v5e
topology: v5e:2x2
jax: 0.10.0
libtpu: 0.0.40
codegen_flags: <defaults>
</compile_context>

<pallas_src>
import numpy as np
import jax
import jax.numpy as jnp
from jax.experimental import pallas as pl
from jax.experimental.pallas import tpu as pltpu


# Geometry implied by the module (fc1 = 16*5*5 forces a 3x32x32 input).
_K = 5                    # conv kernel size
_C1, _C1P = 6, 8          # conv1 out channels (padded to 8 sublanes)
_K1P = 80                 # conv1 im2col features 3*5*5 = 75, padded to 80
_P1 = 14                  # conv1 pooled spatial size (28 / 2)
_M1P = 256                # per-image conv1-pooled positions, 14*14 padded to 16*16
_C2 = 16                  # conv2 out channels
_Q2 = 5                   # conv2 pooled spatial size (10 / 2)
_F = _C2 * _Q2 * _Q2      # 400 = flattened features fed to fc1
_FP = 512                 # per-pool-corner conv2 column block, 400 padded to 512
_H1P, _H2P = 128, 128     # fc1 / fc2 widths padded 120 -> 128, 84 -> 128
_NOUT = 10


def _corner_max(z, w):
    """Elementwise max of the four lane-aligned pool-corner blocks of width w."""
    return jnp.maximum(jnp.maximum(z[:, 0 * w:1 * w], z[:, 1 * w:2 * w]),
                       jnp.maximum(z[:, 2 * w:3 * w], z[:, 3 * w:4 * w]))


# ---------------------------------------------------------------------------
# The single fused kernel
# ---------------------------------------------------------------------------
def _net_kernel(p1_ref, w1_ref, b1_ref, a2_ref, b2_ref,
                wf1_ref, bf1_ref, wf2_ref, bf2_ref, wf3_ref, bf3_ref,
                out_ref, x1s_ref):
    """Whole Net forward; every intermediate stays in VMEM / vregs."""
    B = x1s_ref.shape[0]
    cw = B * _M1P                         # lane width of one conv1 pool-corner block

    # ---- conv1 + bias + ReLU + 2x2/2 maxpool: ONE matmul, corners along lanes.
    z = jnp.dot(w1_ref[...], p1_ref[...], preferred_element_type=jnp.float32)  # (8, 4*cw)
    x1 = jnp.maximum(_corner_max(z, cw) + b1_ref[...], 0.0)                    # (8, cw) f32

    # ---- relayout (cout1, batch*pos) -> (batch, cout1*pos): B*6 tiny aligned
    #      stores through a VMEM scratch (channel/batch swap sides before conv2).
    for b in range(B):
        for c in range(_C1):
            x1s_ref[pl.ds(b, 1), pl.ds(c * _M1P, _M1P)] = \
                x1[c:c + 1, b * _M1P:(b + 1) * _M1P]

    # ---- conv2 + 2x2/2 maxpool: ONE matmul with the prep-time absorbed-im2col
    #      matrix (columns = 4 pool corners of the flattened (16,5,5) output).
    x1b = x1s_ref[...].astype(jnp.bfloat16)                                    # (B, 1536)
    z2 = jnp.dot(x1b, a2_ref[...], preferred_element_type=jnp.float32)         # (B, 4*512)
    h = jnp.maximum(_corner_max(z2, _FP) + b2_ref[...], 0.0)                   # (B, 512) f32
    h = h.astype(jnp.bfloat16)

    # ---- fc1 -> ReLU -> fc2 -> ReLU -> fc3 (f32 epilogues, bf16 MXU feeds).
    h = jnp.dot(h, wf1_ref[...], preferred_element_type=jnp.float32) + bf1_ref[...]
    h = jnp.maximum(h, 0.0).astype(jnp.bfloat16)
    h = jnp.dot(h, wf2_ref[...], preferred_element_type=jnp.float32) + bf2_ref[...]
    h = jnp.maximum(h, 0.0).astype(jnp.bfloat16)
    out_ref[...] = jnp.dot(h, wf3_ref[...], preferred_element_type=jnp.float32) + bf3_ref[...]


# ---------------------------------------------------------------------------
# Glue: one patch-extraction op + one reshape/transpose/pad chain (XLA fuses it)
# ---------------------------------------------------------------------------
def _conv1_corner_patches(x_bf16):
    """(B,3,32,32) -> (80, 4*B*256) bf16 patch matrix.

    Rows   : conv1 im2col features in (cin, kh, kw) order (matches PyTorch's
             Conv2d weight flatten), padded 75 -> 80.
    Columns: (pool corner dh*2+dw, batch, qh*16+qw) — the four 2x2-maxpool
             corners concatenated along lanes, each batch block 14*14 padded to
             16*16 = 256 lanes (all offsets 128-aligned).
    """
    B = x_bf16.shape[0]
    assert x_bf16.shape[1:] == (3, 32, 32), x_bf16.shape
    pat = jax.lax.conv_general_dilated_patches(
        x_bf16, (_K, _K), (1, 1), "VALID")             # (B, 75, 28, 28)
    pat = pat.reshape(B, 75, _P1, 2, _P1, 2)           # oh -> (qh, dh), ow -> (qw, dw)
    pat = pat.transpose(1, 3, 5, 0, 2, 4)              # (75, dh, dw, B, qh, qw)
    pat = jnp.pad(pat, ((0, _K1P - 75), (0, 0), (0, 0), (0, 0), (0, 2), (0, 2)))
    return pat.reshape(_K1P, 4 * B * _M1P)


# ---------------------------------------------------------------------------
# Forward pass (semantics of PyTorch `Net.forward` on NCHW input)
# ---------------------------------------------------------------------------
@jax.jit
def net_forward(x, pp):
    B = x.shape[0]
    p1 = _conv1_corner_patches(x.astype(jnp.bfloat16))
    vmem = pl.BlockSpec(memory_space=pltpu.MemorySpace.VMEM)
    return pl.pallas_call(
        _net_kernel,
        out_shape=jax.ShapeDtypeStruct((B, _NOUT), jnp.float32),
        in_specs=[vmem] * 11,
        out_specs=vmem,
        scratch_shapes=[pltpu.VMEM((B, _C1 * _M1P), jnp.float32)],
    )(p1, pp["w1"], pp["b1"], pp["a2"], pp["b2"],
      pp["wf1"], pp["bf1"], pp["wf2"], pp["bf2"], pp["wf3"], pp["bf3"])


# ---------------------------------------------------------------------------
# Parameters: PyTorch-style init + one-time preprocessing (hoisted out of fwd)
# ---------------------------------------------------------------------------
def init_params(key):
    keys = jax.random.split(key, 10)

    def u(k, shape, fan_in):
        bound = 1.0 / float(fan_in) ** 0.5
        return jax.random.uniform(k, shape, jnp.float32, -bound, bound)

    return {
        "conv1_w": u(keys[0], (6, 3, 5, 5), 3 * 5 * 5),
        "conv1_b": u(keys[1], (6,), 3 * 5 * 5),
        "conv2_w": u(keys[2], (16, 6, 5, 5), 6 * 5 * 5),
        "conv2_b": u(keys[3], (16,), 6 * 5 * 5),
        "fc1_w": u(keys[4], (120, 400), 400),
        "fc1_b": u(keys[5], (120,), 400),
        "fc2_w": u(keys[6], (84, 120), 120),
        "fc2_b": u(keys[7], (84,), 120),
        "fc3_w": u(keys[8], (10, 84), 84),
        "fc3_b": u(keys[9], (10,), 84),
    }


def prepare_params(params):
    """One-time, non-jit weight preprocessing: reshapes, (8,128)-friendly zero
    padding, bf16 casts, and the conv2 'absorbed im2col' matrix."""
    f32, bf16 = jnp.float32, jnp.bfloat16

    # conv1 weight/bias, Cout padded 6->8, K padded 75->80.
    w1 = np.zeros((_C1P, _K1P), np.float32)
    w1[:_C1, :75] = np.asarray(params["conv1_w"], np.float32).reshape(_C1, 75)
    b1 = np.zeros((_C1P, 1), np.float32)
    b1[:_C1, 0] = np.asarray(params["conv1_b"], np.float32)

    # conv2 as a dense matrix with the im2col gather absorbed:
    #   a2[ci*256 + h*16 + w, corner*512 + co*25 + qh*5 + qw] = conv2_w[co,ci,kh,kw]
    # with h = 2*qh + dh + kh, w = 2*qw + dw + kw, corner = dh*2 + dw.
    w2 = np.asarray(params["conv2_w"], np.float32)
    a2 = np.zeros((_C1 * _M1P, 4 * _FP), np.float32)
    ci, co, dh, dw, qh, qw, kh, kw = np.indices(
        (_C1, _C2, 2, 2, _Q2, _Q2, _K, _K)).reshape(8, -1)
    rows = ci * _M1P + (2 * qh + dh + kh) * 16 + (2 * qw + dw + kw)
    cols = (dh * 2 + dw) * _FP + co * (_Q2 * _Q2) + qh * _Q2 + qw
    a2[rows, cols] = w2[co, ci, kh, kw]
    b2 = np.zeros((1, _FP), np.float32)
    b2[0, :_F] = np.repeat(np.asarray(params["conv2_b"], np.float32), _Q2 * _Q2)

    # fc weights transposed + zero-padded to whole-vreg widths.
    wf1 = np.zeros((_FP, _H1P), np.float32)
    wf1[:_F, :120] = np.asarray(params["fc1_w"], np.float32).T
    bf1 = np.zeros((1, _H1P), np.float32)
    bf1[0, :120] = np.asarray(params["fc1_b"], np.float32)
    wf2 = np.zeros((_H1P, _H2P), np.float32)
    wf2[:120, :84] = np.asarray(params["fc2_w"], np.float32).T
    bf2 = np.zeros((1, _H2P), np.float32)
    bf2[0, :84] = np.asarray(params["fc2_b"], np.float32)
    wf3 = np.zeros((_H2P, _NOUT), np.float32)
    wf3[:84, :] = np.asarray(params["fc3_w"], np.float32).T
    bf3 = np.asarray(params["fc3_b"], np.float32)[None, :]

    return {
        "w1": jnp.asarray(w1, bf16),   "b1": jnp.asarray(b1, f32),
        "a2": jnp.asarray(a2, bf16),   "b2": jnp.asarray(b2, f32),
        "wf1": jnp.asarray(wf1, bf16), "bf1": jnp.asarray(bf1, f32),
        "wf2": jnp.asarray(wf2, bf16), "bf2": jnp.asarray(bf2, f32),
        "wf3": jnp.asarray(wf3, bf16), "bf3": jnp.asarray(bf3, f32),
    }


# ---------------------------------------------------------------------------
# Pure-JAX f32 reference (one-off numeric guard for the kernel construction)
# ---------------------------------------------------------------------------
def _maxpool2(y):
    B, C, H, W = y.shape
    return y.reshape(B, C, H // 2, 2, W // 2, 2).max(axis=(3, 5))


def net_reference(x, params):
    dn = ("NCHW", "OIHW", "NCHW")
    y = jax.lax.conv_general_dilated(x, params["conv1_w"], (1, 1), "VALID",
                                     dimension_numbers=dn)
    y = _maxpool2(jnp.maximum(y + params["conv1_b"][None, :, None, None], 0.0))
    y = jax.lax.conv_general_dilated(y, params["conv2_w"], (1, 1), "VALID",
                                     dimension_numbers=dn)
    y = _maxpool2(jnp.maximum(y + params["conv2_b"][None, :, None, None], 0.0))
    y = y.reshape(y.shape[0], -1)
    y = jnp.maximum(y @ params["fc1_w"].T + params["fc1_b"], 0.0)
    y = jnp.maximum(y @ params["fc2_w"].T + params["fc2_b"], 0.0)
    return y @ params["fc3_w"].T + params["fc3_b"]


if __name__ == "__main__":
    root = jax.random.PRNGKey(0)
    k_params, k_input = jax.random.split(root)

    raw_params = init_params(k_params)
    pp = prepare_params(raw_params)
    # Input must be (B, 3, 32, 32) for the 16*5*5 flatten to hold (LeNet-5).
    x = jax.random.normal(k_input, (2, 3, 32, 32), jnp.float32)

    out = jax.block_until_ready(net_forward(x, pp))
    assert out.shape == (2, _NOUT), out.shape

    # One-off numeric guard (review concern): validates the im2col feature-order
    # assumption and the absorbed-conv2 matrix against a pure-JAX f32 reference.
    ref = jax.block_until_ready(jax.jit(net_reference)(x, raw_params))
    err = float(jnp.max(jnp.abs(out - ref)))
    assert err < 3e-2, f"kernel/reference mismatch: max|diff|={err}"

    print("KERNEL_OK")
</pallas_src>

<mosaic_0001>
module attributes {stable_mosaic.version = 11 : i64} {
  func.func @_net_kernel(%arg0: memref<80x2048xbf16, #tpu.memory_space<vmem>>, %arg1: memref<8x80xbf16, #tpu.memory_space<vmem>>, %arg2: memref<8x1xf32, #tpu.memory_space<vmem>>, %arg3: memref<1536x2048xbf16, #tpu.memory_space<vmem>>, %arg4: memref<1x512xf32, #tpu.memory_space<vmem>>, %arg5: memref<512x128xbf16, #tpu.memory_space<vmem>>, %arg6: memref<1x128xf32, #tpu.memory_space<vmem>>, %arg7: memref<128x128xbf16, #tpu.memory_space<vmem>>, %arg8: memref<1x128xf32, #tpu.memory_space<vmem>>, %arg9: memref<128x10xbf16, #tpu.memory_space<vmem>>, %arg10: memref<1x10xf32, #tpu.memory_space<vmem>>, %arg11: memref<2x10xf32, #tpu.memory_space<vmem>>, %arg12: memref<2x1536xf32, #tpu.memory_space<vmem>>) attributes {dimension_semantics = [], scalar_prefetch = 0 : i64, scratch_operands = 1 : i64, tpu.core_type = #tpu.core_type<tc>} {
    %c0 = arith.constant 0 : index
    %c0_0 = arith.constant 0 : index
    %0 = vector.load %arg1[%c0, %c0_0] : memref<8x80xbf16, #tpu.memory_space<vmem>>, vector<8x80xbf16>
    %c0_1 = arith.constant 0 : index
    %c0_2 = arith.constant 0 : index
    %1 = vector.load %arg0[%c0_1, %c0_2] : memref<80x2048xbf16, #tpu.memory_space<vmem>>, vector<80x2048xbf16>
    %cst = arith.constant dense<0.000000e+00> : vector<8x2048xf32>
    %2 = tpu.matmul %0, %1, %cst {dimension_numbers = #tpu.dot_dimension_numbers<[1], [0], [0], [1], [0, 0, 1, 1], [], []>} : vector<8x80xbf16>, vector<80x2048xbf16>, vector<8x2048xf32> -> vector<8x2048xf32>
    %3 = vector.extract_strided_slice %2 {offsets = [0, 0], sizes = [8, 512], strides = [1, 1]} : vector<8x2048xf32> to vector<8x512xf32>
    %4 = vector.extract_strided_slice %2 {offsets = [0, 512], sizes = [8, 512], strides = [1, 1]} : vector<8x2048xf32> to vector<8x512xf32>
    %5 = arith.maximumf %3, %4 : vector<8x512xf32>
    %6 = vector.extract_strided_slice %2 {offsets = [0, 1024], sizes = [8, 512], strides = [1, 1]} : vector<8x2048xf32> to vector<8x512xf32>
    %7 = vector.extract_strided_slice %2 {offsets = [0, 1536], sizes = [8, 512], strides = [1, 1]} : vector<8x2048xf32> to vector<8x512xf32>
    %8 = arith.maximumf %6, %7 : vector<8x512xf32>
    %9 = arith.maximumf %5, %8 : vector<8x512xf32>
    %c0_3 = arith.constant 0 : index
    %c0_4 = arith.constant 0 : index
    %10 = vector.load %arg2[%c0_3, %c0_4] : memref<8x1xf32, #tpu.memory_space<vmem>>, vector<8x1xf32>
    %11 = vector.broadcast %10 : vector<8x1xf32> to vector<8x512xf32>
    %12 = arith.addf %9, %11 : vector<8x512xf32>
    %cst_5 = arith.constant 0.000000e+00 : f32
    %13 = vector.broadcast %cst_5 : f32 to vector<8x512xf32>
    %14 = arith.maximumf %12, %13 : vector<8x512xf32>
    %15 = vector.extract_strided_slice %14 {offsets = [0, 0], sizes = [1, 256], strides = [1, 1]} : vector<8x512xf32> to vector<1x256xf32>
    %c0_6 = arith.constant 0 : index
    %c0_7 = arith.constant 0 : index
    %16 = vector.load %arg12[%c0_6, %c0_7] : memref<2x1536xf32, #tpu.memory_space<vmem>>, vector<1x256xf32>
    tpu.vector_store %arg12[%c0_6, %c0_7], %15 {strides = array<i32>} : memref<2x1536xf32, #tpu.memory_space<vmem>>, vector<1x256xf32>,
    %17 = vector.extract_strided_slice %14 {offsets = [1, 0], sizes = [1, 256], strides = [1, 1]} : vector<8x512xf32> to vector<1x256xf32>
    %c0_8 = arith.constant 0 : index
    %c256 = arith.constant 256 : index
    %18 = vector.load %arg12[%c0_8, %c256] : memref<2x1536xf32, #tpu.memory_space<vmem>>, vector<1x256xf32>
    tpu.vector_store %arg12[%c0_8, %c256], %17 {strides = array<i32>} : memref<2x1536xf32, #tpu.memory_space<vmem>>, vector<1x256xf32>,
    %19 = vector.extract_strided_slice %14 {offsets = [2, 0], sizes = [1, 256], strides = [1, 1]} : vector<8x512xf32> to vector<1x256xf32>
    %c0_9 = arith.constant 0 : index
    %c512 = arith.constant 512 : index
    %20 = vector.load %arg12[%c0_9, %c512] : memref<2x1536xf32, #tpu.memory_space<vmem>>, vector<1x256xf32>
    tpu.vector_store %arg12[%c0_9, %c512], %19 {strides = array<i32>} : memref<2x1536xf32, #tpu.memory_space<vmem>>, vector<1x256xf32>,
    %21 = vector.extract_strided_slice %14 {offsets = [3, 0], sizes = [1, 256], strides = [1, 1]} : vector<8x512xf32> to vector<1x256xf32>
    %c0_10 = arith.constant 0 : index
    %c768 = arith.constant 768 : index
    %22 = vector.load %arg12[%c0_10, %c768] : memref<2x1536xf32, #tpu.memory_space<vmem>>, vector<1x256xf32>
    tpu.vector_store %arg12[%c0_10, %c768], %21 {strides = array<i32>} : memref<2x1536xf32, #tpu.memory_space<vmem>>, vector<1x256xf32>,
    %23 = vector.extract_strided_slice %14 {offsets = [4, 0], sizes = [1, 256], strides = [1, 1]} : vector<8x512xf32> to vector<1x256xf32>
    %c0_11 = arith.constant 0 : index
    %c1024 = arith.constant 1024 : index
    %24 = vector.load %arg12[%c0_11, %c1024] : memref<2x1536xf32, #tpu.memory_space<vmem>>, vector<1x256xf32>
    tpu.vector_store %arg12[%c0_11, %c1024], %23 {strides = array<i32>} : memref<2x1536xf32, #tpu.memory_space<vmem>>, vector<1x256xf32>,
    %25 = vector.extract_strided_slice %14 {offsets = [5, 0], sizes = [1, 256], strides = [1, 1]} : vector<8x512xf32> to vector<1x256xf32>
    %c0_12 = arith.constant 0 : index
    %c1280 = arith.constant 1280 : index
    %26 = vector.load %arg12[%c0_12, %c1280] : memref<2x1536xf32, #tpu.memory_space<vmem>>, vector<1x256xf32>
    tpu.vector_store %arg12[%c0_12, %c1280], %25 {strides = array<i32>} : memref<2x1536xf32, #tpu.memory_space<vmem>>, vector<1x256xf32>,
    %27 = vector.extract_strided_slice %14 {offsets = [0, 256], sizes = [1, 256], strides = [1, 1]} : vector<8x512xf32> to vector<1x256xf32>
    %c1 = arith.constant 1 : index
    %c0_13 = arith.constant 0 : index
    %28 = vector.load %arg12[%c1, %c0_13] : memref<2x1536xf32, #tpu.memory_space<vmem>>, vector<1x256xf32>
    tpu.vector_store %arg12[%c1, %c0_13], %27 {strides = array<i32>} : memref<2x1536xf32, #tpu.memory_space<vmem>>, vector<1x256xf32>,
    %29 = vector.extract_strided_slice %14 {offsets = [1, 256], sizes = [1, 256], strides = [1, 1]} : vector<8x512xf32> to vector<1x256xf32>
    %c1_14 = arith.constant 1 : index
    %c256_15 = arith.constant 256 : index
    %30 = vector.load %arg12[%c1_14, %c256_15] : memref<2x1536xf32, #tpu.memory_space<vmem>>, vector<1x256xf32>
    tpu.vector_store %arg12[%c1_14, %c256_15], %29 {strides = array<i32>} : memref<2x1536xf32, #tpu.memory_space<vmem>>, vector<1x256xf32>,
    %31 = vector.extract_strided_slice %14 {offsets = [2, 256], sizes = [1, 256], strides = [1, 1]} : vector<8x512xf32> to vector<1x256xf32>
    %c1_16 = arith.constant 1 : index
    %c512_17 = arith.constant 512 : index
    %32 = vector.load %arg12[%c1_16, %c512_17] : memref<2x1536xf32, #tpu.memory_space<vmem>>, vector<1x256xf32>
    tpu.vector_store %arg12[%c1_16, %c512_17], %31 {strides = array<i32>} : memref<2x1536xf32, #tpu.memory_space<vmem>>, vector<1x256xf32>,
    %33 = vector.extract_strided_slice %14 {offsets = [3, 256], sizes = [1, 256], strides = [1, 1]} : vector<8x512xf32> to vector<1x256xf32>
    %c1_18 = arith.constant 1 : index
    %c768_19 = arith.constant 768 : index
    %34 = vector.load %arg12[%c1_18, %c768_19] : memref<2x1536xf32, #tpu.memory_space<vmem>>, vector<1x256xf32>
    tpu.vector_store %arg12[%c1_18, %c768_19], %33 {strides = array<i32>} : memref<2x1536xf32, #tpu.memory_space<vmem>>, vector<1x256xf32>,
    %35 = vector.extract_strided_slice %14 {offsets = [4, 256], sizes = [1, 256], strides = [1, 1]} : vector<8x512xf32> to vector<1x256xf32>
    %c1_20 = arith.constant 1 : index
    %c1024_21 = arith.constant 1024 : index
    %36 = vector.load %arg12[%c1_20, %c1024_21] : memref<2x1536xf32, #tpu.memory_space<vmem>>, vector<1x256xf32>
    tpu.vector_store %arg12[%c1_20, %c1024_21], %35 {strides = array<i32>} : memref<2x1536xf32, #tpu.memory_space<vmem>>, vector<1x256xf32>,
    %37 = vector.extract_strided_slice %14 {offsets = [5, 256], sizes = [1, 256], strides = [1, 1]} : vector<8x512xf32> to vector<1x256xf32>
    %c1_22 = arith.constant 1 : index
    %c1280_23 = arith.constant 1280 : index
    %38 = vector.load %arg12[%c1_22, %c1280_23] : memref<2x1536xf32, #tpu.memory_space<vmem>>, vector<1x256xf32>
    tpu.vector_store %arg12[%c1_22, %c1280_23], %37 {strides = array<i32>} : memref<2x1536xf32, #tpu.memory_space<vmem>>, vector<1x256xf32>,
    %c0_24 = arith.constant 0 : index
    %c0_25 = arith.constant 0 : index
    %39 = vector.load %arg12[%c0_24, %c0_25] : memref<2x1536xf32, #tpu.memory_space<vmem>>, vector<2x1536xf32>
    %40 = arith.truncf %39 : vector<2x1536xf32> to vector<2x1536xbf16>
    %c0_26 = arith.constant 0 : index
    %c0_27 = arith.constant 0 : index
    %41 = vector.load %arg3[%c0_26, %c0_27] : memref<1536x2048xbf16, #tpu.memory_space<vmem>>, vector<1536x2048xbf16>
    %cst_28 = arith.constant dense<0.000000e+00> : vector<2x2048xf32>
    %42 = tpu.matmul %40, %41, %cst_28 {dimension_numbers = #tpu.dot_dimension_numbers<[1], [0], [0], [1], [0, 0, 1, 1], [], []>} : vector<2x1536xbf16>, vector<1536x2048xbf16>, vector<2x2048xf32> -> vector<2x2048xf32>
    %43 = vector.extract_strided_slice %42 {offsets = [0, 0], sizes = [2, 512], strides = [1, 1]} : vector<2x2048xf32> to vector<2x512xf32>
    %44 = vector.extract_strided_slice %42 {offsets = [0, 512], sizes = [2, 512], strides = [1, 1]} : vector<2x2048xf32> to vector<2x512xf32>
    %45 = arith.maximumf %43, %44 : vector<2x512xf32>
    %46 = vector.extract_strided_slice %42 {offsets = [0, 1024], sizes = [2, 512], strides = [1, 1]} : vector<2x2048xf32> to vector<2x512xf32>
    %47 = vector.extract_strided_slice %42 {offsets = [0, 1536], sizes = [2, 512], strides = [1, 1]} : vector<2x2048xf32> to vector<2x512xf32>
    %48 = arith.maximumf %46, %47 : vector<2x512xf32>
    %49 = arith.maximumf %45, %48 : vector<2x512xf32>
    %c0_29 = arith.constant 0 : index
    %c0_30 = arith.constant 0 : index
    %50 = vector.load %arg4[%c0_29, %c0_30] : memref<1x512xf32, #tpu.memory_space<vmem>>, vector<1x512xf32>
    %51 = vector.broadcast %50 : vector<1x512xf32> to vector<2x512xf32>
    %52 = arith.addf %49, %51 : vector<2x512xf32>
    %cst_31 = arith.constant 0.000000e+00 : f32
    %53 = vector.broadcast %cst_31 : f32 to vector<2x512xf32>
    %54 = arith.maximumf %52, %53 : vector<2x512xf32>
    %55 = arith.truncf %54 : vector<2x512xf32> to vector<2x512xbf16>
    %c0_32 = arith.constant 0 : index
    %c0_33 = arith.constant 0 : index
    %56 = vector.load %arg5[%c0_32, %c0_33] : memref<512x128xbf16, #tpu.memory_space<vmem>>, vector<512x128xbf16>
    %cst_34 = arith.constant dense<0.000000e+00> : vector<2x128xf32>
    %57 = tpu.matmul %55, %56, %cst_34 {dimension_numbers = #tpu.dot_dimension_numbers<[1], [0], [0], [1], [0, 0, 1, 1], [], []>} : vector<2x512xbf16>, vector<512x128xbf16>, vector<2x128xf32> -> vector<2x128xf32>
    %c0_35 = arith.constant 0 : index
    %c0_36 = arith.constant 0 : index
    %58 = vector.load %arg6[%c0_35, %c0_36] : memref<1x128xf32, #tpu.memory_space<vmem>>, vector<1x128xf32>
    %59 = vector.broadcast %58 : vector<1x128xf32> to vector<2x128xf32>
    %60 = arith.addf %57, %59 : vector<2x128xf32>
    %cst_37 = arith.constant 0.000000e+00 : f32
    %61 = vector.broadcast %cst_37 : f32 to vector<2x128xf32>
    %62 = arith.maximumf %60, %61 : vector<2x128xf32>
    %63 = arith.truncf %62 : vector<2x128xf32> to vector<2x128xbf16>
    %c0_38 = arith.constant 0 : index
    %c0_39 = arith.constant 0 : index
    %64 = vector.load %arg7[%c0_38, %c0_39] : memref<128x128xbf16, #tpu.memory_space<vmem>>, vector<128x128xbf16>
    %cst_40 = arith.constant dense<0.000000e+00> : vector<2x128xf32>
    %65 = tpu.matmul %63, %64, %cst_40 {dimension_numbers = #tpu.dot_dimension_numbers<[1], [0], [0], [1], [0, 0, 1, 1], [], []>} : vector<2x128xbf16>, vector<128x128xbf16>, vector<2x128xf32> -> vector<2x128xf32>
    %c0_41 = arith.constant 0 : index
    %c0_42 = arith.constant 0 : index
    %66 = vector.load %arg8[%c0_41, %c0_42] : memref<1x128xf32, #tpu.memory_space<vmem>>, vector<1x128xf32>
    %67 = vector.broadcast %66 : vector<1x128xf32> to vector<2x128xf32>
    %68 = arith.addf %65, %67 : vector<2x128xf32>
    %cst_43 = arith.constant 0.000000e+00 : f32
    %69 = vector.broadcast %cst_43 : f32 to vector<2x128xf32>
    %70 = arith.maximumf %68, %69 : vector<2x128xf32>
    %71 = arith.truncf %70 : vector<2x128xf32> to vector<2x128xbf16>
    %c0_44 = arith.constant 0 : index
    %c0_45 = arith.constant 0 : index
    %72 = vector.load %arg9[%c0_44, %c0_45] : memref<128x10xbf16, #tpu.memory_space<vmem>>, vector<128x10xbf16>
    %cst_46 = arith.constant dense<0.000000e+00> : vector<2x10xf32>
    %73 = tpu.matmul %71, %72, %cst_46 {dimension_numbers = #tpu.dot_dimension_numbers<[1], [0], [0], [1], [0, 0, 1, 1], [], []>} : vector<2x128xbf16>, vector<128x10xbf16>, vector<2x10xf32> -> vector<2x10xf32>
    %c0_47 = arith.constant 0 : index
    %c0_48 = arith.constant 0 : index
    %74 = vector.load %arg10[%c0_47, %c0_48] : memref<1x10xf32, #tpu.memory_space<vmem>>, vector<1x10xf32>
    %75 = vector.broadcast %74 : vector<1x10xf32> to vector<2x10xf32>
    %76 = arith.addf %73, %75 : vector<2x10xf32>
    %c0_49 = arith.constant 0 : index
    %c0_50 = arith.constant 0 : index
    %77 = vector.load %arg11[%c0_49, %c0_50] : memref<2x10xf32, #tpu.memory_space<vmem>>, vector<2x10xf32>
    tpu.vector_store %arg11[%c0_49, %c0_50], %76 {strides = array<i32>} : memref<2x10xf32, #tpu.memory_space<vmem>>, vector<2x10xf32>,
    return
  }
}

</mosaic_0001>

<llo_original>
// kernel: net_forward.1
$region0: #{net_forward.1}
  #allocation0 [shape = 'u32[]', space=smem, size = 0x4, offset = 0x4, fixed_abs, tag = 'smem constant byte address 0x4 - core index']
  #allocation1 [shape = 'u32[72,128]{1,0:T(1,128)}', space=vmem, size = 0x9000, scoped, tag = 'internal scratch']
  #allocation2 [shape = 'f32[2,1536]{1,0:T(2,128)}', space=vmem, size = 0x3000, scoped, tag = 'scratch operand']
  %s0 = inlined_call_operand.vmem [shape: bf16[80,2048], index: 0, kind: input, shape index: {}]
  %s1 = inlined_call_operand.hbm [shape: bf16[8,80], index: 1, kind: input, shape index: {}]
  %s2 = inlined_call_operand.vmem [shape: f32[8,1], index: 2, kind: input, shape index: {}]
  %s3 = inlined_call_operand.hbm [shape: bf16[1536,2048], index: 3, kind: input, shape index: {}]
  %s4 = inlined_call_operand.hbm [shape: f32[1,512], index: 4, kind: input, shape index: {}]
  %s5 = inlined_call_operand.hbm [shape: bf16[512,128], index: 5, kind: input, shape index: {}]
  %s6 = inlined_call_operand.hbm [shape: f32[1,128], index: 6, kind: input, shape index: {}]
  %s7 = inlined_call_operand.hbm [shape: bf16[128,128], index: 7, kind: input, shape index: {}]
  %s8 = inlined_call_operand.hbm [shape: f32[1,128], index: 8, kind: input, shape index: {}]
  %s9 = inlined_call_operand.vmem [shape: bf16[128,10], index: 9, kind: input, shape index: {}]
  %s10 = inlined_call_operand.hbm [shape: f32[1,10], index: 10, kind: input, shape index: {}]
  %s11 = inlined_call_operand.hbm [shape: f32[2,10], index: 11, kind: output, shape index: {}]
  %s12 = sld [smem:[#allocation0]]
  $region86: #{net_forward.1} parent=0
    _
  %s14 = ssub.s32 1, %s12
  %s15 = scalar_select 0, %s14, %s12
  $region1: #{net_forward.1} parent=0
    #allocation3 [shape = 'u8[2048]{0}', space=vmem, size = 0x800, scoped, tag = 'input window, operand 1, single buffered']
    #allocation4 [shape = 's32[1]{0}', space=sflag, size = 0x4, scoped, tag = 'scoped memory for net_forward.1']
    #allocation5 [shape = 's32[1]{0}', space=sflag, size = 0x4, scoped, tag = 'scoped memory for net_forward.1']
    #allocation6 [shape = 'u8[6291456]{0}', space=vmem, size = 0x600000, scoped, tag = 'input window, operand 3, single buffered']
    #allocation7 [shape = 's32[1]{0}', space=sflag, size = 0x4, scoped, tag = 'scoped memory for net_forward.1']
    #allocation8 [shape = 'u8[2048]{0}', space=vmem, size = 0x800, scoped, tag = 'input window, operand 4, single buffered']
    #allocation9 [shape = 'u8[131072]{0}', space=vmem, size = 0x20000, scoped, tag = 'input window, operand 5, single buffered']
    #allocation10 [shape = 's32[1]{0}', space=sflag, size = 0x4, scoped, tag = 'scoped memory for net_forward.1']
    #allocation11 [shape = 'u8[512]{0}', space=vmem, size = 0x400, scoped, tag = 'input window, operand 6, single buffered']
    #allocation12 [shape = 'u8[32768]{0}', space=vmem, size = 0x8000, scoped, tag = 'input window, operand 7, single buffered']
    #allocation13 [shape = 's32[1]{0}', space=sflag, size = 0x4, scoped, tag = 'scoped memory for net_forward.1']
    #allocation14 [shape = 'u8[512]{0}', space=vmem, size = 0x400, scoped, tag = 'input window, operand 8, single buffered']
    #allocation15 [shape = 'u8[512]{0}', space=vmem, size = 0x400, scoped, tag = 'input window, operand 10, single buffered']
    #allocation16 [shape = 's32[1]{0}', space=sflag, size = 0x4, scoped, tag = 'scoped memory for net_forward.1']
    #allocation17 [shape = 'u8[1024]{0}', space=vmem, size = 0x400, scoped, tag = 'output window, operand 0, single buffered']
    %16 = vsyncpa [#allocation4], 0
    %17 = vsyncpa [#allocation7], 0
    %18 = vsyncpa [#allocation10], 0
    %19 = vsyncpa [#allocation13], 0
    %20 = vsyncpa [#allocation16], 0
    %21 = vsyncpa [#allocation5], 0
    // Predicated region
    $region2: #{net_forward.1} parent=1 // pred_check
      _
    $region3: #{net_forward.1} parent=1 // pred_check_branch
      %23 = sbr.rel (0) target = $region5
    $region4: #{net_forward.1} parent=1 // pred_region
      _
    $region5: #{net_forward.1} parent=1 // pred_fallthru
      _
    // Predicated region
    $region6: #{net_forward.1} parent=1 // pred_check
      _
    $region7: #{net_forward.1} parent=1 // pred_check_branch
      %25 = sbr.rel (0) target = $region9
    $region8: #{net_forward.1} parent=1 // pred_region
      %27 = vsyncadd [#allocation4], 0
      %s29 = sshll.u32 %s1, 4
      %s30 = int_to_ptr.hbm [resolvable:$true] %s29
      %s31 = sshll.u32 [#allocation3], 4
      %s32 = int_to_ptr.vmem [resolvable:$true] %s31
      %34 = dma.hbm_to_vmem [thread:$0]  %s30, 64, %s32, [#allocation4]
    $region9: #{net_forward.1} parent=1 // pred_fallthru
      _
    // Predicated region
    $region10: #{net_forward.1} parent=1 // pred_check
      _
    $region11: #{net_forward.1} parent=1 // pred_check_branch
      %36 = sbr.rel (0) target = $region13
    $region12: #{net_forward.1} parent=1 // pred_region
      _
    $region13: #{net_forward.1} parent=1 // pred_fallthru
      _
    // Predicated region
    $region14: #{net_forward.1} parent=1 // pred_check
      _
    $region15: #{net_forward.1} parent=1 // pred_check_branch
      %38 = sbr.rel (0) target = $region17
    $region16: #{net_forward.1} parent=1 // pred_region
      %40 = vsyncadd [#allocation7], 0
      %s41 = sshll.u32 %s3, 4
      %s42 = int_to_ptr.hbm [resolvable:$true] %s41
      %s43 = sshll.u32 [#allocation6], 4
      %s44 = int_to_ptr.vmem [resolvable:$true] %s43
      %49 = dma.hbm_to_vmem [thread:$0]  %s42, 196608, %s44, [#allocation7], 1024, 1024, 64
    $region17: #{net_forward.1} parent=1 // pred_fallthru
      _
    // Predicated region
    $region18: #{net_forward.1} parent=1 // pred_check
      _
    $region19: #{net_forward.1} parent=1 // pred_check_branch
      %51 = sbr.rel (0) target = $region21
    $region20: #{net_forward.1} parent=1 // pred_region
      %53 = vsyncadd [#allocation7], 0
      %s55 = sshll.u32 %s4, 4
      %s56 = int_to_ptr.hbm [resolvable:$true] %s55
      %s57 = sshll.u32 [#allocation8], 4
      %s58 = int_to_ptr.vmem [resolvable:$true] %s57
      %60 = dma.hbm_to_vmem [thread:$0]  %s56, 64, %s58, [#allocation7]
    $region21: #{net_forward.1} parent=1 // pred_fallthru
      _
    // Predicated region
    $region22: #{net_forward.1} parent=1 // pred_check
      _
    $region23: #{net_forward.1} parent=1 // pred_check_branch
      %62 = sbr.rel (0) target = $region25
    $region24: #{net_forward.1} parent=1 // pred_region
      %64 = vsyncadd [#allocation10], 0
      %s65 = sshll.u32 %s5, 4
      %s66 = int_to_ptr.hbm [resolvable:$true] %s65
      %s67 = sshll.u32 [#allocation9], 4
      %s68 = int_to_ptr.vmem [resolvable:$true] %s67
      %73 = dma.hbm_to_vmem [thread:$0]  %s66, 4096, %s68, [#allocation10], 64, 64, 4
    $region25: #{net_forward.1} parent=1 // pred_fallthru
      _
    // Predicated region
    $region26: #{net_forward.1} parent=1 // pred_check
      _
    $region27: #{net_forward.1} parent=1 // pred_check_branch
      %75 = sbr.rel (0) target = $region29
    $region28: #{net_forward.1} parent=1 // pred_region
      %77 = vsyncadd [#allocation10], 0
      %s79 = sshll.u32 %s6, 4
      %s80 = int_to_ptr.hbm [resolvable:$true] %s79
      %s81 = sshll.u32 [#allocation11], 4
      %s82 = int_to_ptr.vmem [resolvable:$true] %s81
      %84 = dma.hbm_to_vmem [thread:$0]  %s80, 16, %s82, [#allocation10]
    $region29: #{net_forward.1} parent=1 // pred_fallthru
      _
    // Predicated region
    $region30: #{net_forward.1} parent=1 // pred_check
      _
    $region31: #{net_forward.1} parent=1 // pred_check_branch
      %86 = sbr.rel (0) target = $region33
    $region32: #{net_forward.1} parent=1 // pred_region
      %88 = vsyncadd [#allocation13], 0
      %s89 = sshll.u32 %s7, 4
      %s90 = int_to_ptr.hbm [resolvable:$true] %s89
      %s91 = sshll.u32 [#allocation12], 4
      %s92 = int_to_ptr.vmem [resolvable:$true] %s91
      %97 = dma.hbm_to_vmem [thread:$0]  %s90, 1024, %s92, [#allocation13], 64, 64, 4
    $region33: #{net_forward.1} parent=1 // pred_fallthru
      _
    // Predicated region
    $region34: #{net_forward.1} parent=1 // pred_check
      _
    $region35: #{net_forward.1} parent=1 // pred_check_branch
      %99 = sbr.rel (0) target = $region37
    $region36: #{net_forward.1} parent=1 // pred_region
      %101 = vsyncadd [#allocation13], 0
      %s103 = sshll.u32 %s8, 4
      %s104 = int_to_ptr.hbm [resolvable:$true] %s103
      %s105 = sshll.u32 [#allocation14], 4
      %s106 = int_to_ptr.vmem [resolvable:$true] %s105
      %108 = dma.hbm_to_vmem [thread:$0]  %s104, 16, %s106, [#allocation13]
    $region37: #{net_forward.1} parent=1 // pred_fallthru
      _
    // Predicated region
    $region38: #{net_forward.1} parent=1 // pred_check
      _
    $region39: #{net_forward.1} parent=1 // pred_check_branch
      %110 = sbr.rel (0) target = $region41
    $region40: #{net_forward.1} parent=1 // pred_region
      _
    $region41: #{net_forward.1} parent=1 // pred_fallthru
      _
    // Predicated region
    $region42: #{net_forward.1} parent=1 // pred_check
      _
    $region43: #{net_forward.1} parent=1 // pred_check_branch
      %112 = sbr.rel (0) target = $region45
    $region44: #{net_forward.1} parent=1 // pred_region
      %114 = vsyncadd [#allocation16], 0
      %s116 = sshll.u32 %s10, 4
      %s117 = int_to_ptr.hbm [resolvable:$true] %s116
      %s118 = sshll.u32 [#allocation15], 4
      %s119 = int_to_ptr.vmem [resolvable:$true] %s118
      %121 = dma.hbm_to_vmem [thread:$0]  %s117, 16, %s119, [#allocation16]
    $region45: #{net_forward.1} parent=1 // pred_fallthru
      _
    // Predicated region
    $region46: #{net_forward.1} parent=1 // pred_check
      _
    $region47: #{net_forward.1} parent=1 // pred_check_branch
      %123 = sbr.rel (0) target = $region49
    $region48: #{net_forward.1} parent=1 // pred_region
      %125 = dma.done [#allocation4], 64
    $region49: #{net_forward.1} parent=1 // pred_fallthru
      _
    // Predicated region
    $region50: #{net_forward.1} parent=1 // pred_check
      _
    $region51: #{net_forward.1} parent=1 // pred_check_branch
      %127 = sbr.rel (0) target = $region53
    $region52: #{net_forward.1} parent=1 // pred_region
      %129 = dma.done [#allocation7], 196608
    $region53: #{net_forward.1} parent=1 // pred_fallthru
      _
    // Predicated region
    $region54: #{net_forward.1} parent=1 // pred_check
      _
    $region55: #{net_forward.1} parent=1 // pred_check_branch
      %131 = sbr.rel (0) target = $region57
    $region56: #{net_forward.1} parent=1 // pred_region
      %133 = dma.done [#allocation7], 64
    $region57: #{net_forward.1} parent=1 // pred_fallthru
      _
    // Predicated region
    $region58: #{net_forward.1} parent=1 // pred_check
      _
    $region59: #{net_forward.1} parent=1 // pred_check_branch
      %135 = sbr.rel (0) target = $region61
    $region60: #{net_forward.1} parent=1 // pred_region
      %137 = dma.done [#allocation10], 4096
    $region61: #{net_forward.1} parent=1 // pred_fallthru
      _
    // Predicated region
    $region62: #{net_forward.1} parent=1 // pred_check
      _
    $region63: #{net_forward.1} parent=1 // pred_check_branch
      %139 = sbr.rel (0) target = $region65
    $region64: #{net_forward.1} parent=1 // pred_region
      %141 = dma.done [#allocation10], 16
    $region65: #{net_forward.1} parent=1 // pred_fallthru
      _
    // Predicated region
    $region66: #{net_forward.1} parent=1 // pred_check
      _
    $region67: #{net_forward.1} parent=1 // pred_check_branch
      %143 = sbr.rel (0) target = $region69
    $region68: #{net_forward.1} parent=1 // pred_region
      %145 = dma.done [#allocation13], 1024
    $region69: #{net_forward.1} parent=1 // pred_fallthru
      _
    // Predicated region
    $region70: #{net_forward.1} parent=1 // pred_check
      _
    $region71: #{net_forward.1} parent=1 // pred_check_branch
      %147 = sbr.rel (0) target = $region73
    $region72: #{net_forward.1} parent=1 // pred_region
      %149 = dma.done [#allocation13], 16
    $region73: #{net_forward.1} parent=1 // pred_fallthru
      _
    // Predicated region
    $region74: #{net_forward.1} parent=1 // pred_check
      _
    $region75: #{net_forward.1} parent=1 // pred_check_branch
      %151 = sbr.rel (0) target = $region77
    $region76: #{net_forward.1} parent=1 // pred_region
      %153 = dma.done [#allocation16], 16
    $region77: #{net_forward.1} parent=1 // pred_fallthru
      _
    %v155 = vld [vmem:[#allocation3] sm:$0xf]
    %v156 = vld [vmem:[%s0] sm:$0xff]
    %v157 = vld [vmem:[%s0 + $0x8] sm:$0xff]
    %v158 = vld [vmem:[%s0 + $0x10] sm:$0xff]
    %v159 = vld [vmem:[%s0 + $0x18] sm:$0xff]
    %v160 = vld [vmem:[%s0 + $0x20] sm:$0xff]
    %v161 = vld [vmem:[%s0 + $0x28] sm:$0xff]
    %v162 = vld [vmem:[%s0 + $0x30] sm:$0xff]
    %v163 = vld [vmem:[%s0 + $0x38] sm:$0xff]
    %v164 = vld [vmem:[%s0 + $0x40] sm:$0xff]
    %v165 = vld [vmem:[%s0 + $0x48] sm:$0xff]
    %v166 = vld [vmem:[%s0 + $0x50] sm:$0xff]
    %v167 = vld [vmem:[%s0 + $0x58] sm:$0xff]
    %v168 = vld [vmem:[%s0 + $0x60] sm:$0xff]
    %v169 = vld [vmem:[%s0 + $0x68] sm:$0xff]
    %v170 = vld [vmem:[%s0 + $0x70] sm:$0xff]
    %v171 = vld [vmem:[%s0 + $0x78] sm:$0xff]
    %v172 = vld [vmem:[%s0 + $0x80] sm:$0xff]
    %v173 = vld [vmem:[%s0 + $0x88] sm:$0xff]
    %v174 = vld [vmem:[%s0 + $0x90] sm:$0xff]
    %v175 = vld [vmem:[%s0 + $0x98] sm:$0xff]
    %v176 = vld [vmem:[%s0 + $0xa0] sm:$0xff]
    %v177 = vld [vmem:[%s0 + $0xa8] sm:$0xff]
    %v178 = vld [vmem:[%s0 + $0xb0] sm:$0xff]
    %v179 = vld [vmem:[%s0 + $0xb8] sm:$0xff]
    %v180 = vld [vmem:[%s0 + $0xc0] sm:$0xff]
    %v181 = vld [vmem:[%s0 + $0xc8] sm:$0xff]
    %v182 = vld [vmem:[%s0 + $0xd0] sm:$0xff]
    %v183 = vld [vmem:[%s0 + $0xd8] sm:$0xff]
    %v184 = vld [vmem:[%s0 + $0xe0] sm:$0xff]
    %v185 = vld [vmem:[%s0 + $0xe8] sm:$0xff]
    %v186 = vld [vmem:[%s0 + $0xf0] sm:$0xff]
    %v187 = vld [vmem:[%s0 + $0xf8] sm:$0xff]
    %v188 = vld [vmem:[%s0 + $0x100] sm:$0xff]
    %v189 = vld [vmem:[%s0 + $0x108] sm:$0xff]
    %v190 = vld [vmem:[%s0 + $0x110] sm:$0xff]
    %v191 = vld [vmem:[%s0 + $0x118] sm:$0xff]
    %v192 = vld [vmem:[%s0 + $0x120] sm:$0xff]
    %v193 = vld [vmem:[%s0 + $0x128] sm:$0xff]
    %v194 = vld [vmem:[%s0 + $0x130] sm:$0xff]
    %v195 = vld [vmem:[%s0 + $0x138] sm:$0xff]
    %v196 = vld [vmem:[%s0 + $0x140] sm:$0xff]
    %v197 = vld [vmem:[%s0 + $0x148] sm:$0xff]
    %v198 = vld [vmem:[%s0 + $0x150] sm:$0xff]
    %v199 = vld [vmem:[%s0 + $0x158] sm:$0xff]
    %v200 = vld [vmem:[%s0 + $0x160] sm:$0xff]
    %v201 = vld [vmem:[%s0 + $0x168] sm:$0xff]
    %v202 = vld [vmem:[%s0 + $0x170] sm:$0xff]
    %v203 = vld [vmem:[%s0 + $0x178] sm:$0xff]
    %v204 = vld [vmem:[%s0 + $0x180] sm:$0xff]
    %v205 = vld [vmem:[%s0 + $0x188] sm:$0xff]
    %v206 = vld [vmem:[%s0 + $0x190] sm:$0xff]
    %v207 = vld [vmem:[%s0 + $0x198] sm:$0xff]
    %v208 = vld [vmem:[%s0 + $0x1a0] sm:$0xff]
    %v209 = vld [vmem:[%s0 + $0x1a8] sm:$0xff]
    %v210 = vld [vmem:[%s0 + $0x1b0] sm:$0xff]
    %v211 = vld [vmem:[%s0 + $0x1b8] sm:$0xff]
    %v212 = vld [vmem:[%s0 + $0x1c0] sm:$0xff]
    %v213 = vld [vmem:[%s0 + $0x1c8] sm:$0xff]
    %v214 = vld [vmem:[%s0 + $0x1d0] sm:$0xff]
    %v215 = vld [vmem:[%s0 + $0x1d8] sm:$0xff]
    %v216 = vld [vmem:[%s0 + $0x1e0] sm:$0xff]
    %v217 = vld [vmem:[%s0 + $0x1e8] sm:$0xff]
    %v218 = vld [vmem:[%s0 + $0x1f0] sm:$0xff]
    %v219 = vld [vmem:[%s0 + $0x1f8] sm:$0xff]
    %v220 = vld [vmem:[%s0 + $0x200] sm:$0xff]
    %v221 = vld [vmem:[%s0 + $0x208] sm:$0xff]
    %v222 = vld [vmem:[%s0 + $0x210] sm:$0xff]
    %v223 = vld [vmem:[%s0 + $0x218] sm:$0xff]
    %v224 = vld [vmem:[%s0 + $0x220] sm:$0xff]
    %v225 = vld [vmem:[%s0 + $0x228] sm:$0xff]
    %v226 = vld [vmem:[%s0 + $0x230] sm:$0xff]
    %v227 = vld [vmem:[%s0 + $0x238] sm:$0xff]
    %v228 = vld [vmem:[%s0 + $0x240] sm:$0xff]
    %v229 = vld [vmem:[%s0 + $0x248] sm:$0xff]
    %v230 = vld [vmem:[%s0 + $0x250] sm:$0xff]
    %v231 = vld [vmem:[%s0 + $0x258] sm:$0xff]
    %v232 = vld [vmem:[%s0 + $0x260] sm:$0xff]
    %v233 = vld [vmem:[%s0 + $0x268] sm:$0xff]
    %v234 = vld [vmem:[%s0 + $0x270] sm:$0xff]
    %v235 = vld [vmem:[%s0 + $0x278] sm:$0xff]
    %v316 = vunpack.c.l.b16 %v156
    %v317 = vunpack.c.h.b16 %v156
    %v318 = vunpack.c.l.b16 %v157
    %v319 = vunpack.c.h.b16 %v157
    %v320 = vunpack.c.l.b16 %v158
    %v321 = vunpack.c.h.b16 %v158
    %v322 = vunpack.c.l.b16 %v159
    %v323 = vunpack.c.h.b16 %v159
    %v324 = vunpack.c.l.b16 %v160
    %v325 = vunpack.c.h.b16 %v160
    %v326 = vunpack.c.l.b16 %v161
    %v327 = vunpack.c.h.b16 %v161
    %v328 = vunpack.c.l.b16 %v162
    %v329 = vunpack.c.h.b16 %v162
    %v330 = vunpack.c.l.b16 %v163
    %v331 = vunpack.c.h.b16 %v163
    %v332 = vunpack.c.l.b16 %v164
    %v333 = vunpack.c.h.b16 %v164
    %v334 = vunpack.c.l.b16 %v165
    %v335 = vunpack.c.h.b16 %v165
    %v336 = vunpack.c.l.b16 %v166
    %v337 = vunpack.c.h.b16 %v166
    %v338 = vunpack.c.l.b16 %v167
    %v339 = vunpack.c.h.b16 %v167
    %v340 = vunpack.c.l.b16 %v168
    %v341 = vunpack.c.h.b16 %v168
    %v342 = vunpack.c.l.b16 %v169
    %v343 = vunpack.c.h.b16 %v169
    %v344 = vunpack.c.l.b16 %v170
    %v345 = vunpack.c.h.b16 %v170
    %v346 = vunpack.c.l.b16 %v171
    %v347 = vunpack.c.h.b16 %v171
    %v348 = vunpack.c.l.b16 %v172
    %v349 = vunpack.c.h.b16 %v172
    %v350 = vunpack.c.l.b16 %v173
    %v351 = vunpack.c.h.b16 %v173
    %v352 = vunpack.c.l.b16 %v174
    %v353 = vunpack.c.h.b16 %v174
    %v354 = vunpack.c.l.b16 %v175
    %v355 = vunpack.c.h.b16 %v175
    %v356 = vunpack.c.l.b16 %v176
    %v357 = vunpack.c.h.b16 %v176
    %v358 = vunpack.c.l.b16 %v177
    %v359 = vunpack.c.h.b16 %v177
    %v360 = vunpack.c.l.b16 %v178
    %v361 = vunpack.c.h.b16 %v178
    %v362 = vunpack.c.l.b16 %v179
    %v363 = vunpack.c.h.b16 %v179
    %v364 = vunpack.c.l.b16 %v180
    %v365 = vunpack.c.h.b16 %v180
    %v366 = vunpack.c.l.b16 %v181
    %v367 = vunpack.c.h.b16 %v181
    %v368 = vunpack.c.l.b16 %v182
    %v369 = vunpack.c.h.b16 %v182
    %v370 = vunpack.c.l.b16 %v183
    %v371 = vunpack.c.h.b16 %v183
    %v372 = vunpack.c.l.b16 %v184
    %v373 = vunpack.c.h.b16 %v184
    %v374 = vunpack.c.l.b16 %v185
    %v375 = vunpack.c.h.b16 %v185
    %v376 = vunpack.c.l.b16 %v186
    %v377 = vunpack.c.h.b16 %v186
    %v378 = vunpack.c.l.b16 %v187
    %v379 = vunpack.c.h.b16 %v187
    %v380 = vunpack.c.l.b16 %v188
    %v381 = vunpack.c.h.b16 %v188
    %v382 = vunpack.c.l.b16 %v189
    %v383 = vunpack.c.h.b16 %v189
    %v384 = vunpack.c.l.b16 %v190
    %v385 = vunpack.c.h.b16 %v190
    %v386 = vunpack.c.l.b16 %v191
    %v387 = vunpack.c.h.b16 %v191
    %v388 = vunpack.c.l.b16 %v192
    %v389 = vunpack.c.h.b16 %v192
    %v390 = vunpack.c.l.b16 %v193
    %v391 = vunpack.c.h.b16 %v193
    %v392 = vunpack.c.l.b16 %v194
    %v393 = vunpack.c.h.b16 %v194
    %v394 = vunpack.c.l.b16 %v195
    %v395 = vunpack.c.h.b16 %v195
    %v396 = vunpack.c.l.b16 %v196
    %v397 = vunpack.c.h.b16 %v196
    %v398 = vunpack.c.l.b16 %v197
    %v399 = vunpack.c.h.b16 %v197
    %v400 = vunpack.c.l.b16 %v198
    %v401 = vunpack.c.h.b16 %v198
    %v402 = vunpack.c.l.b16 %v199
    %v403 = vunpack.c.h.b16 %v199
    %v404 = vunpack.c.l.b16 %v200
    %v405 = vunpack.c.h.b16 %v200
    %v406 = vunpack.c.l.b16 %v201
    %v407 = vunpack.c.h.b16 %v201
    %v408 = vunpack.c.l.b16 %v202
    %v409 = vunpack.c.h.b16 %v202
    %v410 = vunpack.c.l.b16 %v203
    %v411 = vunpack.c.h.b16 %v203
    %v412 = vunpack.c.l.b16 %v204
    %v413 = vunpack.c.h.b16 %v204
    %v414 = vunpack.c.l.b16 %v205
    %v415 = vunpack.c.h.b16 %v205
    %v416 = vunpack.c.l.b16 %v206
    %v417 = vunpack.c.h.b16 %v206
    %v418 = vunpack.c.l.b16 %v207
    %v419 = vunpack.c.h.b16 %v207
    %v420 = vunpack.c.l.b16 %v208
    %v421 = vunpack.c.h.b16 %v208
    %v422 = vunpack.c.l.b16 %v209
    %v423 = vunpack.c.h.b16 %v209
    %v424 = vunpack.c.l.b16 %v210
    %v425 = vunpack.c.h.b16 %v210
    %v426 = vunpack.c.l.b16 %v211
    %v427 = vunpack.c.h.b16 %v211
    %v428 = vunpack.c.l.b16 %v212
    %v429 = vunpack.c.h.b16 %v212
    %v430 = vunpack.c.l.b16 %v213
    %v431 = vunpack.c.h.b16 %v213
    %v432 = vunpack.c.l.b16 %v214
    %v433 = vunpack.c.h.b16 %v214
    %v434 = vunpack.c.l.b16 %v215
    %v435 = vunpack.c.h.b16 %v215
    %v436 = vunpack.c.l.b16 %v216
    %v437 = vunpack.c.h.b16 %v216
    %v438 = vunpack.c.l.b16 %v217
    %v439 = vunpack.c.h.b16 %v217
    %v440 = vunpack.c.l.b16 %v218
    %v441 = vunpack.c.h.b16 %v218
    %v442 = vunpack.c.l.b16 %v219
    %v443 = vunpack.c.h.b16 %v219
    %v444 = vunpack.c.l.b16 %v220
    %v445 = vunpack.c.h.b16 %v220
    %v446 = vunpack.c.l.b16 %v221
    %v447 = vunpack.c.h.b16 %v221
    %v448 = vunpack.c.l.b16 %v222
    %v449 = vunpack.c.h.b16 %v222
    %v450 = vunpack.c.l.b16 %v223
    %v451 = vunpack.c.h.b16 %v223
    %v452 = vunpack.c.l.b16 %v224
    %v453 = vunpack.c.h.b16 %v224
    %v454 = vunpack.c.l.b16 %v225
    %v455 = vunpack.c.h.b16 %v225
    %v456 = vunpack.c.l.b16 %v226
    %v457 = vunpack.c.h.b16 %v226
    %v458 = vunpack.c.l.b16 %v227
    %v459 = vunpack.c.h.b16 %v227
    %v460 = vunpack.c.l.b16 %v228
    %v461 = vunpack.c.h.b16 %v228
    %v462 = vunpack.c.l.b16 %v229
    %v463 = vunpack.c.h.b16 %v229
    %v464 = vunpack.c.l.b16 %v230
    %v465 = vunpack.c.h.b16 %v230
    %v466 = vunpack.c.l.b16 %v231
    %v467 = vunpack.c.h.b16 %v231
    %v468 = vunpack.c.l.b16 %v232
    %v469 = vunpack.c.h.b16 %v232
    %v470 = vunpack.c.l.b16 %v233
    %v471 = vunpack.c.h.b16 %v233
    %v472 = vunpack.c.l.b16 %v234
    %v473 = vunpack.c.h.b16 %v234
    %v474 = vunpack.c.l.b16 %v235
    %v475 = vunpack.c.h.b16 %v235
    %v476 = vpack.c.b16 %v332, %v316
    %v477 = vpack.c.b16 %v333, %v317
    %v478 = vpack.c.b16 %v334, %v318
    %v479 = vpack.c.b16 %v335, %v319
    %v480 = vpack.c.b16 %v336, %v320
    %v481 = vpack.c.b16 %v337, %v321
    %v482 = vpack.c.b16 %v338, %v322
    %v483 = vpack.c.b16 %v339, %v323
    %v484 = vpack.c.b16 %v340, %v324
    %v485 = vpack.c.b16 %v341, %v325
    %v486 = vpack.c.b16 %v342, %v326
    %v487 = vpack.c.b16 %v343, %v327
    %v488 = vpack.c.b16 %v344, %v328
    %v489 = vpack.c.b16 %v345, %v329
    %v490 = vpack.c.b16 %v346, %v330
    %v491 = vpack.c.b16 %v347, %v331
    %v492 = vpack.c.b16 %v364, %v348
    %v493 = vpack.c.b16 %v365, %v349
    %v494 = vpack.c.b16 %v366, %v350
    %v495 = vpack.c.b16 %v367, %v351
    %v496 = vpack.c.b16 %v368, %v352
    %v497 = vpack.c.b16 %v369, %v353
    %v498 = vpack.c.b16 %v370, %v354
    %v499 = vpack.c.b16 %v371, %v355
    %v500 = vpack.c.b16 %v372, %v356
    %v501 = vpack.c.b16 %v373, %v357
    %v502 = vpack.c.b16 %v374, %v358
    %v503 = vpack.c.b16 %v375, %v359
    %v504 = vpack.c.b16 %v376, %v360
    %v505 = vpack.c.b16 %v377, %v361
    %v506 = vpack.c.b16 %v378, %v362
    %v507 = vpack.c.b16 %v379, %v363
    %v508 = vpack.c.b16 %v396, %v380
    %v509 = vpack.c.b16 %v397, %v381
    %v510 = vpack.c.b16 %v398, %v382
    %v511 = vpack.c.b16 %v399, %v383
    %v512 = vpack.c.b16 %v400, %v384
    %v513 = vpack.c.b16 %v401, %v385
    %v514 = vpack.c.b16 %v402, %v386
    %v515 = vpack.c.b16 %v403, %v387
    %v516 = vpack.c.b16 %v404, %v388
    %v517 = vpack.c.b16 %v405, %v389
    %v518 = vpack.c.b16 %v406, %v390
    %v519 = vpack.c.b16 %v407, %v391
    %v520 = vpack.c.b16 %v408, %v392
    %v521 = vpack.c.b16 %v409, %v393
    %v522 = vpack.c.b16 %v410, %v394
    %v523 = vpack.c.b16 %v411, %v395
    %v524 = vpack.c.b16 %v428, %v412
    %v525 = vpack.c.b16 %v429, %v413
    %v526 = vpack.c.b16 %v430, %v414
    %v527 = vpack.c.b16 %v431, %v415
    %v528 = vpack.c.b16 %v432, %v416
    %v529 = vpack.c.b16 %v433, %v417
    %v530 = vpack.c.b16 %v434, %v418
    %v531 = vpack.c.b16 %v435, %v419
    %v532 = vpack.c.b16 %v436, %v420
    %v533 = vpack.c.b16 %v437, %v421
    %v534 = vpack.c.b16 %v438, %v422
    %v535 = vpack.c.b16 %v439, %v423
    %v536 = vpack.c.b16 %v440, %v424
    %v537 = vpack.c.b16 %v441, %v425
    %v538 = vpack.c.b16 %v442, %v426
    %v539 = vpack.c.b16 %v443, %v427
    %v540 = vpack.c.b16 %v460, %v444
    %v541 = vpack.c.b16 %v461, %v445
    %v542 = vpack.c.b16 %v462, %v446
    %v543 = vpack.c.b16 %v463, %v447
    %v544 = vpack.c.b16 %v464, %v448
    %v545 = vpack.c.b16 %v465, %v449
    %v546 = vpack.c.b16 %v466, %v450
    %v547 = vpack.c.b16 %v467, %v451
    %v548 = vpack.c.b16 %v468, %v452
    %v549 = vpack.c.b16 %v469, %v453
    %v550 = vpack.c.b16 %v470, %v454
    %v551 = vpack.c.b16 %v471, %v455
    %v552 = vpack.c.b16 %v472, %v456
    %v553 = vpack.c.b16 %v473, %v457
    %v554 = vpack.c.b16 %v474, %v458
    %v555 = vpack.c.b16 %v475, %v459
    %vm636 = vcmask 654336
    %v638 = vsel %vm636, %v155, 0
    %640 = vmatpush.bf16.msra.mxu0 0
    %641 = vmatpush.bf16.msra.mxu0 0
    %642 = vmatpush.bf16.msra.mxu0 0
    %643 = vmatpush.bf16.msra.mxu0 %v540
    %644 = vmatpush.bf16.msra.mxu0 %v524
    %645 = vmatpush.bf16.msra.mxu0 %v508
    %646 = vmatpush.bf16.msra.mxu0 %v492
    %647 = vmatpush.bf16.msra.mxu0 %v476
    %648 = vmatmul.bf16.gmra.mxu0 %v638
    %v649 = vpop.f32.mrf.mxu0
    %v650 = vadd.f32 0.0, %v649
    %v651 = vpop.f32.mrf.mxu0
    %652 = vdwg.mxu0
    %653 = vmatpush.bf16.msra.mxu0 0
    %654 = vmatpush.bf16.msra.mxu0 0
    %655 = vmatpush.bf16.msra.mxu0 0
    %656 = vmatpush.bf16.msra.mxu0 %v541
    %657 = vmatpush.bf16.msra.mxu0 %v525
    %658 = vmatpush.bf16.msra.mxu0 %v509
    %659 = vmatpush.bf16.msra.mxu0 %v493
    %660 = vmatpush.bf16.msra.mxu0 %v477
    %661 = vmatmul.bf16.gmra.mxu0 %v638
    %v662 = vpop.f32.mrf.mxu0
    %v663 = vadd.f32 0.0, %v662
    %v664 = vpop.f32.mrf.mxu0
    %665 = vdwg.mxu0
    %666 = vmatpush.bf16.msra.mxu0 0
    %667 = vmatpush.bf16.msra.mxu0 0
    %668 = vmatpush.bf16.msra.mxu0 0
    %669 = vmatpush.bf16.msra.mxu0 %v542
    %670 = vmatpush.bf16.msra.mxu0 %v526
    %671 = vmatpush.bf16.msra.mxu0 %v510
    %672 = vmatpush.bf16.msra.mxu0 %v494
    %673 = vmatpush.bf16.msra.mxu0 %v478
    %674 = vmatmul.bf16.gmra.mxu0 %v638
    %v675 = vpop.f32.mrf.mxu0
    %v676 = vadd.f32 0.0, %v675
    %v677 = vpop.f32.mrf.mxu0
    %678 = vdwg.mxu0
    %679 = vmatpush.bf16.msra.mxu0 0
    %680 = vmatpush.bf16.msra.mxu0 0
    %681 = vmatpush.bf16.msra.mxu0 0
    %682 = vmatpush.bf16.msra.mxu0 %v543
    %683 = vmatpush.bf16.msra.mxu0 %v527
    %684 = vmatpush.bf16.msra.mxu0 %v511
    %685 = vmatpush.bf16.msra.mxu0 %v495
    %686 = vmatpush.bf16.msra.mxu0 %v479
    %687 = vmatmul.bf16.gmra.mxu0 %v638
    %v688 = vpop.f32.mrf.mxu0
    %v689 = vadd.f32 0.0, %v688
    %v690 = vpop.f32.mrf.mxu0
    %691 = vdwg.mxu0
    %692 = vmatpush.bf16.msra.mxu0 0
    %693 = vmatpush.bf16.msra.mxu0 0
    %694 = vmatpush.bf16.msra.mxu0 0
    %695 = vmatpush.bf16.msra.mxu0 %v544
    %696 = vmatpush.bf16.msra.mxu0 %v528
    %697 = vmatpush.bf16.msra.mxu0 %v512
    %698 = vmatpush.bf16.msra.mxu0 %v496
    %699 = vmatpush.bf16.msra.mxu0 %v480
    %700 = vmatmul.bf16.gmra.mxu0 %v638
    %v701 = vpop.f32.mrf.mxu0
    %v702 = vadd.f32 0.0, %v701
    %v703 = vpop.f32.mrf.mxu0
    %704 = vdwg.mxu0
    %705 = vmatpush.bf16.msra.mxu0 0
    %706 = vmatpush.bf16.msra.mxu0 0
    %707 = vmatpush.bf16.msra.mxu0 0
    %708 = vmatpush.bf16.msra.mxu0 %v545
    %709 = vmatpush.bf16.msra.mxu0 %v529
    %710 = vmatpush.bf16.msra.mxu0 %v513
    %711 = vmatpush.bf16.msra.mxu0 %v497
    %712 = vmatpush.bf16.msra.mxu0 %v481
    %713 = vmatmul.bf16.gmra.mxu0 %v638
    %v714 = vpop.f32.mrf.mxu0
    %v715 = vadd.f32 0.0, %v714
    %v716 = vpop.f32.mrf.mxu0
    %717 = vdwg.mxu0
    %718 = vmatpush.bf16.msra.mxu0 0
    %719 = vmatpush.bf16.msra.mxu0 0
    %720 = vmatpush.bf16.msra.mxu0 0
    %721 = vmatpush.bf16.msra.mxu0 %v546
    %722 = vmatpush.bf16.msra.mxu0 %v530
    %723 = vmatpush.bf16.msra.mxu0 %v514
    %724 = vmatpush.bf16.msra.mxu0 %v498
    %725 = vmatpush.bf16.msra.mxu0 %v482
    %726 = vmatmul.bf16.gmra.mxu0 %v638
    %v727 = vpop.f32.mrf.mxu0
    %v728 = vadd.f32 0.0, %v727
    %v729 = vpop.f32.mrf.mxu0
    %730 = vdwg.mxu0
    %731 = vmatpush.bf16.msra.mxu0 0
    %732 = vmatpush.bf16.msra.mxu0 0
    %733 = vmatpush.bf16.msra.mxu0 0
    %734 = vmatpush.bf16.msra.mxu0 %v547
    %735 = vmatpush.bf16.msra.mxu0 %v531
    %736 = vmatpush.bf16.msra.mxu0 %v515
    %737 = vmatpush.bf16.msra.mxu0 %v499
    %738 = vmatpush.bf16.msra.mxu0 %v483
    %739 = vmatmul.bf16.gmra.mxu0 %v638
    %v740 = vpop.f32.mrf.mxu0
    %v741 = vadd.f32 0.0, %v740
    %v742 = vpop.f32.mrf.mxu0
    %743 = vdwg.mxu0
    %744 = vmatpush.bf16.msra.mxu0 0
    %745 = vmatpush.bf16.msra.mxu0 0
    %746 = vmatpush.bf16.msra.mxu0 0
    %747 = vmatpush.bf16.msra.mxu0 %v548
    %748 = vmatpush.bf16.msra.mxu0 %v532
    %749 = vmatpush.bf16.msra.mxu0 %v516
    %750 = vmatpush.bf16.msra.mxu0 %v500
    %751 = vmatpush.bf16.msra.mxu0 %v484
    %752 = vmatmul.bf16.gmra.mxu0 %v638
    %v753 = vpop.f32.mrf.mxu0
    %v754 = vadd.f32 0.0, %v753
    %v755 = vpop.f32.mrf.mxu0
    %756 = vdwg.mxu0
    %757 = vmatpush.bf16.msra.mxu0 0
    %758 = vmatpush.bf16.msra.mxu0 0
    %759 = vmatpush.bf16.msra.mxu0 0
    %760 = vmatpush.bf16.msra.mxu0 %v549
    %761 = vmatpush.bf16.msra.mxu0 %v533
    %762 = vmatpush.bf16.msra.mxu0 %v517
    %763 = vmatpush.bf16.msra.mxu0 %v501
    %764 = vmatpush.bf16.msra.mxu0 %v485
    %765 = vmatmul.bf16.gmra.mxu0 %v638
    %v766 = vpop.f32.mrf.mxu0
    %v767 = vadd.f32 0.0, %v766
    %v768 = vpop.f32.mrf.mxu0
    %769 = vdwg.mxu0
    %770 = vmatpush.bf16.msra.mxu0 0
    %771 = vmatpush.bf16.msra.mxu0 0
    %772 = vmatpush.bf16.msra.mxu0 0
    %773 = vmatpush.bf16.msra.mxu0 %v550
    %774 = vmatpush.bf16.msra.mxu0 %v534
    %775 = vmatpush.bf16.msra.mxu0 %v518
    %776 = vmatpush.bf16.msra.mxu0 %v502
    %777 = vmatpush.bf16.msra.mxu0 %v486
    %778 = vmatmul.bf16.gmra.mxu0 %v638
    %v779 = vpop.f32.mrf.mxu0
    %v780 = vadd.f32 0.0, %v779
    %v781 = vpop.f32.mrf.mxu0
    %782 = vdwg.mxu0
    %783 = vmatpush.bf16.msra.mxu0 0
    %784 = vmatpush.bf16.msra.mxu0 0
    %785 = vmatpush.bf16.msra.mxu0 0
    %786 = vmatpush.bf16.msra.mxu0 %v551
    %787 = vmatpush.bf16.msra.mxu0 %v535
    %788 = vmatpush.bf16.msra.mxu0 %v519
    %789 = vmatpush.bf16.msra.mxu0 %v503
    %790 = vmatpush.bf16.msra.mxu0 %v487
    %791 = vmatmul.bf16.gmra.mxu0 %v638
    %v792 = vpop.f32.mrf.mxu0
    %v793 = vadd.f32 0.0, %v792
    %v794 = vpop.f32.mrf.mxu0
    %795 = vdwg.mxu0
    %796 = vmatpush.bf16.msra.mxu0 0
    %797 = vmatpush.bf16.msra.mxu0 0
    %798 = vmatpush.bf16.msra.mxu0 0
    %799 = vmatpush.bf16.msra.mxu0 %v552
    %800 = vmatpush.bf16.msra.mxu0 %v536
    %801 = vmatpush.bf16.msra.mxu0 %v520
    %802 = vmatpush.bf16.msra.mxu0 %v504
    %803 = vmatpush.bf16.msra.mxu0 %v488
    %804 = vmatmul.bf16.gmra.mxu0 %v638
    %v805 = vpop.f32.mrf.mxu0
    %v806 = vadd.f32 0.0, %v805
    %v807 = vpop.f32.mrf.mxu0
    %808 = vdwg.mxu0
    %809 = vmatpush.bf16.msra.mxu0 0
    %810 = vmatpush.bf16.msra.mxu0 0
    %811 = vmatpush.bf16.msra.mxu0 0
    %812 = vmatpush.bf16.msra.mxu0 %v553
    %813 = vmatpush.bf16.msra.mxu0 %v537
    %814 = vmatpush.bf16.msra.mxu0 %v521
    %815 = vmatpush.bf16.msra.mxu0 %v505
    %816 = vmatpush.bf16.msra.mxu0 %v489
    %817 = vmatmul.bf16.gmra.mxu0 %v638
    %v818 = vpop.f32.mrf.mxu0
    %v819 = vadd.f32 0.0, %v818
    %v820 = vpop.f32.mrf.mxu0
    %821 = vdwg.mxu0
    %822 = vmatpush.bf16.msra.mxu0 0
    %823 = vmatpush.bf16.msra.mxu0 0
    %824 = vmatpush.bf16.msra.mxu0 0
    %825 = vmatpush.bf16.msra.mxu0 %v554
    %826 = vmatpush.bf16.msra.mxu0 %v538
    %827 = vmatpush.bf16.msra.mxu0 %v522
    %828 = vmatpush.bf16.msra.mxu0 %v506
    %829 = vmatpush.bf16.msra.mxu0 %v490
    %830 = vmatmul.bf16.gmra.mxu0 %v638
    %v831 = vpop.f32.mrf.mxu0
    %v832 = vadd.f32 0.0, %v831
    %v833 = vpop.f32.mrf.mxu0
    %834 = vdwg.mxu0
    %835 = vmatpush.bf16.msra.mxu0 0
    %836 = vmatpush.bf16.msra.mxu0 0
    %837 = vmatpush.bf16.msra.mxu0 0
    %838 = vmatpush.bf16.msra.mxu0 %v555
    %839 = vmatpush.bf16.msra.mxu0 %v539
    %840 = vmatpush.bf16.msra.mxu0 %v523
    %841 = vmatpush.bf16.msra.mxu0 %v507
    %842 = vmatpush.bf16.msra.mxu0 %v491
    %843 = vmatmul.bf16.gmra.mxu0 %v638
    %v844 = vpop.f32.mrf.mxu0
    %v845 = vadd.f32 0.0, %v844
    %v846 = vpop.f32.mrf.mxu0
    %847 = vdwg.mxu0
    %v848 = vmax.f32 %v650, %v702
    %v849 = vmax.f32 %v663, %v715
    %v850 = vmax.f32 %v676, %v728
    %v851 = vmax.f32 %v689, %v741
    %v852 = vmax.f32 %v754, %v806
    %v853 = vmax.f32 %v767, %v819
    %v854 = vmax.f32 %v780, %v832
    %v855 = vmax.f32 %v793, %v845
    %v856 = vmax.f32 %v848, %v852
    %v857 = vmax.f32 %v849, %v853
    %v858 = vmax.f32 %v850, %v854
    %v859 = vmax.f32 %v851, %v855
    %v860 = vld [vmem:[%s2] sm:$0xff]
    %862 = vset.pattern.permute.xlu0 0
    %863 = vperm.xlu0 %862, %v860
    %v864 = vpop.permute.xlu0 %863
    %v866 = vadd.f32 %v856, %v864
    %v867 = vadd.f32 %v857, %v864
    %v868 = vadd.f32 %v858, %v864
    %v869 = vadd.f32 %v859, %v864
    %v870 = vmax.f32 %v866, 0.0
    %v871 = vmax.f32 %v867, 0.0
    %v872 = vmax.f32 %v868, 0.0
    %v873 = vmax.f32 %v869, 0.0
    %v876 = vrot.slane %v871, 7
    %vm877 = vcmask 1040384
    %v878 = vsel %vm877, %v870, %v876
    %v880 = vlaneseq
    %vm881 = vcmp.ge.s32.totalorder %v880, 0
    %vm882 = vcmp.lt.s32.totalorder %v880, 256
    %vm883 = vmand %vm881, %vm882
    %884 = vst.msk [vmem:[#allocation2] ss:$2 sm:$0x3] %vm883, %v878
    %885 = vst [vmem:[#allocation1] sm:$0xff] %v870
    %886 = vst [vmem:[#allocation1 + $0x9] sm:$0xff] %v871
    %s887 = scalar_lea.vmem [#allocation1], 1
    %v888 = vld [vmem:[%s887] ss:$9 sm:$0xff]
    %s890 = scalar_lea.vmem [#allocation2], 4
    %891 = vst.msk [vmem:[%s890] ss:$2 sm:$0x3] %vm883, %v888
    %892 = vst [vmem:[#allocation1] sm:$0xff] %v870
    %893 = vst [vmem:[#allocation1 + $0x9] sm:$0xff] %v871
    %s894 = scalar_lea.vmem [#allocation1], 2
    %v895 = vld [vmem:[%s894] ss:$9 sm:$0xff]
    %s897 = scalar_lea.vmem [#allocation2], 8
    %898 = vst.msk [vmem:[%s897] ss:$2 sm:$0x3] %vm883, %v895
    %899 = vst [vmem:[#allocation1] sm:$0xff] %v870
    %900 = vst [vmem:[#allocation1 + $0x9] sm:$0xff] %v871
    %s901 = scalar_lea.vmem [#allocation1], 3
    %v902 = vld [vmem:[%s901] ss:$9 sm:$0xff]
    %s904 = scalar_lea.vmem [#allocation2], 12
    %905 = vst.msk [vmem:[%s904] ss:$2 sm:$0x3] %vm883, %v902
    %906 = vst [vmem:[#allocation1] sm:$0xff] %v870
    %907 = vst [vmem:[#allocation1 + $0x9] sm:$0xff] %v871
    %s908 = scalar_lea.vmem [#allocation1], 4
    %v909 = vld [vmem:[%s908] ss:$9 sm:$0xff]
    %s911 = scalar_lea.vmem [#allocation2], 16
    %912 = vst.msk [vmem:[%s911] ss:$2 sm:$0x3] %vm883, %v909
    %913 = vst [vmem:[#allocation1] sm:$0xff] %v870
    %914 = vst [vmem:[#allocation1 + $0x9] sm:$0xff] %v871
    %s915 = scalar_lea.vmem [#allocation1], 5
    %v916 = vld [vmem:[%s915] ss:$9 sm:$0xff]
    %s918 = scalar_lea.vmem [#allocation2], 20
    %919 = vst.msk [vmem:[%s918] ss:$2 sm:$0x3] %vm883, %v916
    %v922 = vrot.slane %v873, 7
    %v923 = vsel %vm877, %v872, %v922
    %s925 = scalar_lea.vmem [#allocation2], 1
    %926 = vst.msk [vmem:[%s925] ss:$2 sm:$0x3] %vm883, %v923
    %927 = vst [vmem:[#allocation1] sm:$0xff] %v872
    %928 = vst [vmem:[#allocation1 + $0x9] sm:$0xff] %v873
    %s929 = scalar_lea.vmem [#allocation1], 1
    %v930 = vld [vmem:[%s929] ss:$9 sm:$0xff]
    %s932 = scalar_lea.vmem [#allocation2], 5
    %933 = vst.msk [vmem:[%s932] ss:$2 sm:$0x3] %vm883, %v930
    %934 = vst [vmem:[#allocation1] sm:$0xff] %v872
    %935 = vst [vmem:[#allocation1 + $0x9] sm:$0xff] %v873
    %s936 = scalar_lea.vmem [#allocation1], 2
    %v937 = vld [vmem:[%s936] ss:$9 sm:$0xff]
    %s939 = scalar_lea.vmem [#allocation2], 9
    %940 = vst.msk [vmem:[%s939] ss:$2 sm:$0x3] %vm883, %v937
    %941 = vst [vmem:[#allocation1] sm:$0xff] %v872
    %942 = vst [vmem:[#allocation1 + $0x9] sm:$0xff] %v873
    %s943 = scalar_lea.vmem [#allocation1], 3
    %v944 = vld [vmem:[%s943] ss:$9 sm:$0xff]
    %s946 = scalar_lea.vmem [#allocation2], 13
    %947 = vst.msk [vmem:[%s946] ss:$2 sm:$0x3] %vm883, %v944
    %948 = vst [vmem:[#allocation1] sm:$0xff] %v872
    %949 = vst [vmem:[#allocation1 + $0x9] sm:$0xff] %v873
    %s950 = scalar_lea.vmem [#allocation1], 4
    %v951 = vld [vmem:[%s950] ss:$9 sm:$0xff]
    %s953 = scalar_lea.vmem [#allocation2], 17
    %954 = vst.msk [vmem:[%s953] ss:$2 sm:$0x3] %vm883, %v951
    %955 = vst [vmem:[#allocation1] sm:$0xff] %v872
    %956 = vst [vmem:[#allocation1 + $0x9] sm:$0xff] %v873
    %s957 = scalar_lea.vmem [#allocation1], 5
    %v958 = vld [vmem:[%s957] ss:$9 sm:$0xff]
    %s960 = scalar_lea.vmem [#allocation2], 21
    %961 = vst.msk [vmem:[%s960] ss:$2 sm:$0x3] %vm883, %v958
    %v962 = vld [vmem:[#allocation2] sm:$0xff]
    %v963 = vld [vmem:[#allocation2 + $0x8] sm:$0xff]
    %v964 = vld [vmem:[#allocation2 + $0x10] sm:$0xff]
    %968 = vst [vmem:[#allocation1] ss:$4 sm:$0xff] %v962
    %s969 = scalar_lea.vmem [#allocation1], 32
    %970 = vst [vmem:[%s969] ss:$4 sm:$0xff] %v963
    %v971 = vld.sshfl [vmem:[#allocation1] sm:$0xff pattern:$0x73625140]
    %v972 = vld.sshfl [vmem:[#allocation1 + $0x8] sm:$0xff pattern:$0x73625140]
    %v973 = vld.sshfl [vmem:[#allocation1 + $0x10] sm:$0xff pattern:$0x73625140]
    %v974 = vld.sshfl [vmem:[#allocation1 + $0x18] sm:$0xff pattern:$0x73625140]
    %v975 = vld.sshfl [vmem:[#allocation1 + $0x20] sm:$0xff pattern:$0x73625140]
    %v976 = vld.sshfl [vmem:[#allocation1 + $0x28] sm:$0xff pattern:$0x73625140]
    %v977 = vld.sshfl [vmem:[#allocation1 + $0x30] sm:$0xff pattern:$0x73625140]
    %v978 = vld.sshfl [vmem:[#allocation1 + $0x38] sm:$0xff pattern:$0x73625140]
    %979 = vst [vmem:[#allocation1] ss:$4 sm:$0xff] %v964
    %v980 = vld.sshfl [vmem:[#allocation1] sm:$0xff pattern:$0x73625140]
    %v981 = vld.sshfl [vmem:[#allocation1 + $0x8] sm:$0xff pattern:$0x73625140]
    %v982 = vld.sshfl [vmem:[#allocation1 + $0x10] sm:$0xff pattern:$0x73625140]
    %v983 = vld.sshfl [vmem:[#allocation1 + $0x18] sm:$0xff pattern:$0x73625140]
    %v996 = vpack.c.bf16 %v971, %v971
    %v997 = vpack.c.bf16 %v972, %v972
    %v998 = vpack.c.bf16 %v973, %v973
    %v999 = vpack.c.bf16 %v974, %v974
    %v1000 = vpack.c.bf16 %v975, %v975
    %v1001 = vpack.c.bf16 %v976, %v976
    %v1002 = vpack.c.bf16 %v977, %v977
    %v1003 = vpack.c.bf16 %v978, %v978
    %v1004 = vpack.c.bf16 %v980, %v980
    %v1005 = vpack.c.bf16 %v981, %v981
    %v1006 = vpack.c.bf16 %v982, %v982
    %v1007 = vpack.c.bf16 %v983, %v983
    %v1008 = vld [vmem:[#allocation6] sm:$0xff]
    %v1009 = vld [vmem:[#allocation6 + $0x8] sm:$0xff]
    %v1010 = vld [vmem:[#allocation6 + $0x10] sm:$0xff]
    %v1011 = vld [vmem:[#allocation6 + $0x18] sm:$0xff]
    %v1012 = vld [vmem:[#allocation6 + $0x20] sm:$0xff]
    %v1013 = vld [vmem:[#allocation6 + $0x28] sm:$0xff]
    %v1014 = vld [vmem:[#allocation6 + $0x30] sm:$0xff]
    %v1015 = vld [vmem:[#allocation6 + $0x38] sm:$0xff]
    %v1016 = vld [vmem:[#allocation6 + $0x40] sm:$0xff]
    %v1017 = vld [vmem:[#allocation6 + $0x48] sm:$0xff]
    %v1018 = vld [vmem:[#allocation6 + $0x50] sm:$0xff]
    %v1019 = vld [vmem:[#allocation6 + $0x58] sm:$0xff]
    %v1020 = vld [vmem:[#allocation6 + $0x60] sm:$0xff]
    %v1021 = vld [vmem:[#allocation6 + $0x68] sm:$0xff]
    %v1022 = vld [vmem:[#allocation6 + $0x70] sm:$0xff]
    %v1023 = vld [vmem:[#allocation6 + $0x78] sm:$0xff]
    %v1024 = vld [vmem:[#allocation6 + $0x80] sm:$0xff]
    %v1025 = vld [vmem:[#allocation6 + $0x88] sm:$0xff]
    %v1026 = vld [vmem:[#allocation6 + $0x90] sm:$0xff]
    %v1027 = vld [vmem:[#allocation6 + $0x98] sm:$0xff]
    %v1028 = vld [vmem:[#allocation6 + $0xa0] sm:$0xff]
    %v1029 = vld [vmem:[#allocation6 + $0xa8] sm:$0xff]
    %v1030 = vld [vmem:[#allocation6 + $0xb0] sm:$0xff]
    %v1031 = vld [vmem:[#allocation6 + $0xb8] sm:$0xff]
    %v1032 = vld [vmem:[#allocation6 + $0xc0] sm:$0xff]
    %v1033 = vld [vmem:[#allocation6 + $0xc8] sm:$0xff]
    %v1034 = vld [vmem:[#allocation6 + $0xd0] sm:$0xff]
    %v1035 = vld [vmem:[#allocation6 + $0xd8] sm:$0xff]
    %v1036 = vld [vmem:[#allocation6 + $0xe0] sm:$0xff]
    %v1037 = vld [vmem:[#allocation6 + $0xe8] sm:$0xff]
    %v1038 = vld [vmem:[#allocation6 + $0xf0] sm:$0xff]
    %v1039 = vld [vmem:[#allocation6 + $0xf8] sm:$0xff]
    %v1040 = vld [vmem:[#allocation6 + $0x100] sm:$0xff]
    %v1041 = vld [vmem:[#allocation6 + $0x108] sm:$0xff]
    %v1042 = vld [vmem:[#allocation6 + $0x110] sm:$0xff]
    %v1043 = vld [vmem:[#allocation6 + $0x118] sm:$0xff]
    %v1044 = vld [vmem:[#allocation6 + $0x120] sm:$0xff]
    %v1045 = vld [vmem:[#allocation6 + $0x128] sm:$0xff]
    %v1046 = vld [vmem:[#allocation6 + $0x130] sm:$0xff]
    %v1047 = vld [vmem:[#allocation6 + $0x138] sm:$0xff]
    %v1048 = vld [vmem:[#allocation6 + $0x140] sm:$0xff]
    %v1049 = vld [vmem:[#allocation6 + $0x148] sm:$0xff]
    %v1050 = vld [vmem:[#allocation6 + $0x150] sm:$0xff]
    %v1051 = vld [vmem:[#allocation6 + $0x158] sm:$0xff]
    %v1052 = vld [vmem:[#allocation6 + $0x160] sm:$0xff]
    %v1053 = vld [vmem:[#allocation6 + $0x168] sm:$0xff]
    %v1054 = vld [vmem:[#allocation6 + $0x170] sm:$0xff]
    %v1055 = vld [vmem:[#allocation6 + $0x178] sm:$0xff]
    %v1056 = vld [vmem:[#allocation6 + $0x180] sm:$0xff]
    %v1057 = vld [vmem:[#allocation6 + $0x188] sm:$0xff]
    %v1058 = vld [vmem:[#allocation6 + $0x190] sm:$0xff]
    %v1059 = vld [vmem:[#allocation6 + $0x198] sm:$0xff]
    %v1060 = vld [vmem:[#allocation6 + $0x1a0] sm:$0xff]
    %v1061 = vld [vmem:[#allocation6 + $0x1a8] sm:$0xff]
    %v1062 = vld [vmem:[#allocation6 + $0x1b0] sm:$0xff]
    %v1063 = vld [vmem:[#allocation6 + $0x1b8] sm:$0xff]
    %v1064 = vld [vmem:[#allocation6 + $0x1c0] sm:$0xff]
    %v1065 = vld [vmem:[#allocation6 + $0x1c8] sm:$0xff]
    %v1066 = vld [vmem:[#allocation6 + $0x1d0] sm:$0xff]
    %v1067 = vld [vmem:[#allocation6 + $0x1d8] sm:$0xff]
    %v1068 = vld [vmem:[#allocation6 + $0x1e0] sm:$0xff]
    %v1069 = vld [vmem:[#allocation6 + $0x1e8] sm:$0xff]
    %v1070 = vld [vmem:[#allocation6 + $0x1f0] sm:$0xff]
    %v1071 = vld [vmem:[#allocation6 + $0x1f8] sm:$0xff]
    %v1072 = vld [vmem:[#allocation6 + $0x200] sm:$0xff]
    %v1073 = vld [vmem:[#allocation6 + $0x208] sm:$0xff]
    %v1074 = vld [vmem:[#allocation6 + $0x210] sm:$0xff]
    %v1075 = vld [vmem:[#allocation6 + $0x218] sm:$0xff]
    %v1076 = vld [vmem:[#allocation6 + $0x220] sm:$0xff]
    %v1077 = vld [vmem:[#allocation6 + $0x228] sm:$0xff]
    %v1078 = vld [vmem:[#allocation6 + $0x230] sm:$0xff]
    %v1079 = vld [vmem:[#allocation6 + $0x238] sm:$0xff]
    %v1080 = vld [vmem:[#allocation6 + $0x240] sm:$0xff]
    %v1081 = vld [vmem:[#allocation6 + $0x248] sm:$0xff]
    %v1082 = vld [vmem:[#allocation6 + $0x250] sm:$0xff]
    %v1083 = vld [vmem:[#allocation6 + $0x258] sm:$0xff]
    %v1084 = vld [vmem:[#allocation6 + $0x260] sm:$0xff]
    %v1085 = vld [vmem:[#allocation6 + $0x268] sm:$0xff]
    %v1086 = vld [vmem:[#allocation6 + $0x270] sm:$0xff]
    %v1087 = vld [vmem:[#allocation6 + $0x278] sm:$0xff]
    %v1088 = vld [vmem:[#allocation6 + $0x280] sm:$0xff]
    %v1089 = vld [vmem:[#allocation6 + $0x288] sm:$0xff]
    %v1090 = vld [vmem:[#allocation6 + $0x290] sm:$0xff]
    %v1091 = vld [vmem:[#allocation6 + $0x298] sm:$0xff]
    %v1092 = vld [vmem:[#allocation6 + $0x2a0] sm:$0xff]
    %v1093 = vld [vmem:[#allocation6 + $0x2a8] sm:$0xff]
    %v1094 = vld [vmem:[#allocation6 + $0x2b0] sm:$0xff]
    %v1095 = vld [vmem:[#allocation6 + $0x2b8] sm:$0xff]
    %v1096 = vld [vmem:[#allocation6 + $0x2c0] sm:$0xff]
    %v1097 = vld [vmem:[#allocation6 + $0x2c8] sm:$0xff]
    %v1098 = vld [vmem:[#allocation6 + $0x2d0] sm:$0xff]
    %v1099 = vld [vmem:[#allocation6 + $0x2d8] sm:$0xff]
    %v1100 = vld [vmem:[#allocation6 + $0x2e0] sm:$0xff]
    %v1101 = vld [vmem:[#allocation6 + $0x2e8] sm:$0xff]
    %v1102 = vld [vmem:[#allocation6 + $0x2f0] sm:$0xff]
    %v1103 = vld [vmem:[#allocation6 + $0x2f8] sm:$0xff]
    %v1104 = vld [vmem:[#allocation6 + $0x300] sm:$0xff]
    %v1105 = vld [vmem:[#allocation6 + $0x308] sm:$0xff]
    %v1106 = vld [vmem:[#allocation6 + $0x310] sm:$0xff]
    %v1107 = vld [vmem:[#allocation6 + $0x318] sm:$0xff]
    %v1108 = vld [vmem:[#allocation6 + $0x320] sm:$0xff]
    %v1109 = vld [vmem:[#allocation6 + $0x328] sm:$0xff]
    %v1110 = vld [vmem:[#allocation6 + $0x330] sm:$0xff]
    %v1111 = vld [vmem:[#allocation6 + $0x338] sm:$0xff]
    %v1112 = vld [vmem:[#allocation6 + $0x340] sm:$0xff]
    %v1113 = vld [vmem:[#allocation6 + $0x348] sm:$0xff]
    %v1114 = vld [vmem:[#allocation6 + $0x350] sm:$0xff]
    %v1115 = vld [vmem:[#allocation6 + $0x358] sm:$0xff]
    %v1116 = vld [vmem:[#allocation6 + $0x360] sm:$0xff]
    %v1117 = vld [vmem:[#allocation6 + $0x368] sm:$0xff]
    %v1118 = vld [vmem:[#allocation6 + $0x370] sm:$0xff]
    %v1119 = vld [vmem:[#allocation6 + $0x378] sm:$0xff]
    %v1120 = vld [vmem:[#allocation6 + $0x380] sm:$0xff]
    %v1121 = vld [vmem:[#allocation6 + $0x388] sm:$0xff]
    %v1122 = vld [vmem:[#allocation6 + $0x390] sm:$0xff]
    %v1123 = vld [vmem:[#allocation6 + $0x398] sm:$0xff]
    %v1124 = vld [vmem:[#allocation6 + $0x3a0] sm:$0xff]
    %v1125 = vld [vmem:[#allocation6 + $0x3a8] sm:$0xff]
    %v1126 = vld [vmem:[#allocation6 + $0x3b0] sm:$0xff]
    %v1127 = vld [vmem:[#allocation6 + $0x3b8] sm:$0xff]
    %v1128 = vld [vmem:[#allocation6 + $0x3c0] sm:$0xff]
    %v1129 = vld [vmem:[#allocation6 + $0x3c8] sm:$0xff]
    %v1130 = vld [vmem:[#allocation6 + $0x3d0] sm:$0xff]
    %v1131 = vld [vmem:[#allocation6 + $0x3d8] sm:$0xff]
    %v1132 = vld [vmem:[#allocation6 + $0x3e0] sm:$0xff]
    %v1133 = vld [vmem:[#allocation6 + $0x3e8] sm:$0xff]
    %v1134 = vld [vmem:[#allocation6 + $0x3f0] sm:$0xff]
    %v1135 = vld [vmem:[#allocation6 + $0x3f8] sm:$0xff]
    %v1136 = vld [vmem:[#allocation6 + $0x400] sm:$0xff]
    %v1137 = vld [vmem:[#allocation6 + $0x408] sm:$0xff]
    %v1138 = vld [vmem:[#allocation6 + $0x410] sm:$0xff]
    %v1139 = vld [vmem:[#allocation6 + $0x418] sm:$0xff]
    %v1140 = vld [vmem:[#allocation6 + $0x420] sm:$0xff]
    %v1141 = vld [vmem:[#allocation6 + $0x428] sm:$0xff]
    %v1142 = vld [vmem:[#allocation6 + $0x430] sm:$0xff]
    %v1143 = vld [vmem:[#allocation6 + $0x438] sm:$0xff]
    %v1144 = vld [vmem:[#allocation6 + $0x440] sm:$0xff]
    %v1145 = vld [vmem:[#allocation6 + $0x448] sm:$0xff]
    %v1146 = vld [vmem:[#allocation6 + $0x450] sm:$0xff]
    %v1147 = vld [vmem:[#allocation6 + $0x458] sm:$0xff]
    %v1148 = vld [vmem:[#allocation6 + $0x460] sm:$0xff]
    %v1149 = vld [vmem:[#allocation6 + $0x468] sm:$0xff]
    %v1150 = vld [vmem:[#allocation6 + $0x470] sm:$0xff]
    %v1151 = vld [vmem:[#allocation6 + $0x478] sm:$0xff]
    %v1152 = vld [vmem:[#allocation6 + $0x480] sm:$0xff]
    %v1153 = vld [vmem:[#allocation6 + $0x488] sm:$0xff]
    %v1154 = vld [vmem:[#allocation6 + $0x490] sm:$0xff]
    %v1155 = vld [vmem:[#allocation6 + $0x498] sm:$0xff]
    %v1156 = vld [vmem:[#allocation6 + $0x4a0] sm:$0xff]
    %v1157 = vld [vmem:[#allocation6 + $0x4a8] sm:$0xff]
    %v1158 = vld [vmem:[#allocation6 + $0x4b0] sm:$0xff]
    %v1159 = vld [vmem:[#allocation6 + $0x4b8] sm:$0xff]
    %v1160 = vld [vmem:[#allocation6 + $0x4c0] sm:$0xff]
    %v1161 = vld [vmem:[#allocation6 + $0x4c8] sm:$0xff]
    %v1162 = vld [vmem:[#allocation6 + $0x4d0] sm:$0xff]
    %v1163 = vld [vmem:[#allocation6 + $0x4d8] sm:$0xff]
    %v1164 = vld [vmem:[#allocation6 + $0x4e0] sm:$0xff]
    %v1165 = vld [vmem:[#allocation6 + $0x4e8] sm:$0xff]
    %v1166 = vld [vmem:[#allocation6 + $0x4f0] sm:$0xff]
    %v1167 = vld [vmem:[#allocation6 + $0x4f8] sm:$0xff]
    %v1168 = vld [vmem:[#allocation6 + $0x500] sm:$0xff]
    %v1169 = vld [vmem:[#allocation6 + $0x508] sm:$0xff]
    %v1170 = vld [vmem:[#allocation6 + $0x510] sm:$0xff]
    %v1171 = vld [vmem:[#allocation6 + $0x518] sm:$0xff]
    %v1172 = vld [vmem:[#allocation6 + $0x520] sm:$0xff]
    %v1173 = vld [vmem:[#allocation6 + $0x528] sm:$0xff]
    %v1174 = vld [vmem:[#allocation6 + $0x530] sm:$0xff]
    %v1175 = vld [vmem:[#allocation6 + $0x538] sm:$0xff]
    %v1176 = vld [vmem:[#allocation6 + $0x540] sm:$0xff]
    %v1177 = vld [vmem:[#allocation6 + $0x548] sm:$0xff]
    %v1178 = vld [vmem:[#allocation6 + $0x550] sm:$0xff]
    %v1179 = vld [vmem:[#allocation6 + $0x558] sm:$0xff]
    %v1180 = vld [vmem:[#allocation6 + $0x560] sm:$0xff]
    %v1181 = vld [vmem:[#allocation6 + $0x568] sm:$0xff]
    %v1182 = vld [vmem:[#allocation6 + $0x570] sm:$0xff]
    %v1183 = vld [vmem:[#allocation6 + $0x578] sm:$0xff]
    %v1184 = vld [vmem:[#allocation6 + $0x580] sm:$0xff]
    %v1185 = vld [vmem:[#allocation6 + $0x588] sm:$0xff]
    %v1186 = vld [vmem:[#allocation6 + $0x590] sm:$0xff]
    %v1187 = vld [vmem:[#allocation6 + $0x598] sm:$0xff]
    %v1188 = vld [vmem:[#allocation6 + $0x5a0] sm:$0xff]
    %v1189 = vld [vmem:[#allocation6 + $0x5a8] sm:$0xff]
    %v1190 = vld [vmem:[#allocation6 + $0x5b0] sm:$0xff]
    %v1191 = vld [vmem:[#allocation6 + $0x5b8] sm:$0xff]
    %v1192 = vld [vmem:[#allocation6 + $0x5c0] sm:$0xff]
    %v1193 = vld [vmem:[#allocation6 + $0x5c8] sm:$0xff]
    %v1194 = vld [vmem:[#allocation6 + $0x5d0] sm:$0xff]
    %v1195 = vld [vmem:[#allocation6 + $0x5d8] sm:$0xff]
    %v1196 = vld [vmem:[#allocation6 + $0x5e0] sm:$0xff]
    %v1197 = vld [vmem:[#allocation6 + $0x5e8] sm:$0xff]
    %v1198 = vld [vmem:[#allocation6 + $0x5f0] sm:$0xff]
    %v1199 = vld [vmem:[#allocation6 + $0x5f8] sm:$0xff]
    %v1200 = vld [vmem:[#allocation6 + $0x600] sm:$0xff]
    %v1201 = vld [vmem:[#allocation6 + $0x608] sm:$0xff]
    %v1202 = vld [vmem:[#allocation6 + $0x610] sm:$0xff]
    %v1203 = vld [vmem:[#allocation6 + $0x618] sm:$0xff]
    %v1204 = vld [vmem:[#allocation6 + $0x620] sm:$0xff]
    %v1205 = vld [vmem:[#allocation6 + $0x628] sm:$0xff]
    %v1206 = vld [vmem:[#allocation6 + $0x630] sm:$0xff]
    %v1207 = vld [vmem:[#allocation6 + $0x638] sm:$0xff]
    %v1208 = vld [vmem:[#allocation6 + $0x640] sm:$0xff]
    %v1209 = vld [vmem:[#allocation6 + $0x648] sm:$0xff]
    %v1210 = vld [vmem:[#allocation6 + $0x650] sm:$0xff]
    %v1211 = vld [vmem:[#allocation6 + $0x658] sm:$0xff]
    %v1212 = vld [vmem:[#allocation6 + $0x660] sm:$0xff]
    %v1213 = vld [vmem:[#allocation6 + $0x668] sm:$0xff]
    %v1214 = vld [vmem:[#allocation6 + $0x670] sm:$0xff]
    %v1215 = vld [vmem:[#allocation6 + $0x678] sm:$0xff]
    %v1216 = vld [vmem:[#allocation6 + $0x680] sm:$0xff]
    %v1217 = vld [vmem:[#allocation6 + $0x688] sm:$0xff]
    %v1218 = vld [vmem:[#allocation6 + $0x690] sm:$0xff]
    %v1219 = vld [vmem:[#allocation6 + $0x698] sm:$0xff]
    %v1220 = vld [vmem:[#allocation6 + $0x6a0] sm:$0xff]
    %v1221 = vld [vmem:[#allocation6 + $0x6a8] sm:$0xff]
    %v1222 = vld [vmem:[#allocation6 + $0x6b0] sm:$0xff]
    %v1223 = vld [vmem:[#allocation6 + $0x6b8] sm:$0xff]
    %v1224 = vld [vmem:[#allocation6 + $0x6c0] sm:$0xff]
    %v1225 = vld [vmem:[#allocation6 + $0x6c8] sm:$0xff]
    %v1226 = vld [vmem:[#allocation6 + $0x6d0] sm:$0xff]
    %v1227 = vld [vmem:[#allocation6 + $0x6d8] sm:$0xff]
    %v1228 = vld [vmem:[#allocation6 + $0x6e0] sm:$0xff]
    %v1229 = vld [vmem:[#allocation6 + $0x6e8] sm:$0xff]
    %v1230 = vld [vmem:[#allocation6 + $0x6f0] sm:$0xff]
    %v1231 = vld [vmem:[#allocation6 + $0x6f8] sm:$0xff]
    %v1232 = vld [vmem:[#allocation6 + $0x700] sm:$0xff]
    %v1233 = vld [vmem:[#allocation6 + $0x708] sm:$0xff]
    %v1234 = vld [vmem:[#allocation6 + $0x710] sm:$0xff]
    %v1235 = vld [vmem:[#allocation6 + $0x718] sm:$0xff]
    %v1236 = vld [vmem:[#allocation6 + $0x720] sm:$0xff]
    %v1237 = vld [vmem:[#allocation6 + $0x728] sm:$0xff]
    %v1238 = vld [vmem:[#allocation6 + $0x730] sm:$0xff]
    %v1239 = vld [vmem:[#allocation6 + $0x738] sm:$0xff]
    %v1240 = vld [vmem:[#allocation6 + $0x740] sm:$0xff]
    %v1241 = vld [vmem:[#allocation6 + $0x748] sm:$0xff]
    %v1242 = vld [vmem:[#allocation6 + $0x750] sm:$0xff]
    %v1243 = vld [vmem:[#allocation6 + $0x758] sm:$0xff]
    %v1244 = vld [vmem:[#allocation6 + $0x760] sm:$0xff]
    %v1245 = vld [vmem:[#allocation6 + $0x768] sm:$0xff]
    %v1246 = vld [vmem:[#allocation6 + $0x770] sm:$0xff]
    %v1247 = vld [vmem:[#allocation6 + $0x778] sm:$0xff]
    %v1248 = vld [vmem:[#allocation6 + $0x780] sm:$0xff]
    %v1249 = vld [vmem:[#allocation6 + $0x788] sm:$0xff]
    %v1250 = vld [vmem:[#allocation6 + $0x790] sm:$0xff]
    %v1251 = vld [vmem:[#allocation6 + $0x798] sm:$0xff]
    %v1252 = vld [vmem:[#allocation6 + $0x7a0] sm:$0xff]
    %v1253 = vld [vmem:[#allocation6 + $0x7a8] sm:$0xff]
    %v1254 = vld [vmem:[#allocation6 + $0x7b0] sm:$0xff]
    %v1255 = vld [vmem:[#allocation6 + $0x7b8] sm:$0xff]
    %v1256 = vld [vmem:[#allocation6 + $0x7c0] sm:$0xff]
    %v1257 = vld [vmem:[#allocation6 + $0x7c8] sm:$0xff]
    %v1258 = vld [vmem:[#allocation6 + $0x7d0] sm:$0xff]
    %v1259 = vld [vmem:[#allocation6 + $0x7d8] sm:$0xff]
    %v1260 = vld [vmem:[#allocation6 + $0x7e0] sm:$0xff]
    %v1261 = vld [vmem:[#allocation6 + $0x7e8] sm:$0xff]
    %v1262 = vld [vmem:[#allocation6 + $0x7f0] sm:$0xff]
    %v1263 = vld [vmem:[#allocation6 + $0x7f8] sm:$0xff]
    %v1264 = vld [vmem:[#allocation6 + $0x800] sm:$0xff]
    %v1265 = vld [vmem:[#allocation6 + $0x808] sm:$0xff]
    %v1266 = vld [vmem:[#allocation6 + $0x810] sm:$0xff]
    %v1267 = vld [vmem:[#allocation6 + $0x818] sm:$0xff]
    %v1268 = vld [vmem:[#allocation6 + $0x820] sm:$0xff]
    %v1269 = vld [vmem:[#allocation6 + $0x828] sm:$0xff]
    %v1270 = vld [vmem:[#allocation6 + $0x830] sm:$0xff]
    %v1271 = vld [vmem:[#allocation6 + $0x838] sm:$0xff]
    %v1272 = vld [vmem:[#allocation6 + $0x840] sm:$0xff]
    %v1273 = vld [vmem:[#allocation6 + $0x848] sm:$0xff]
    %v1274 = vld [vmem:[#allocation6 + $0x850] sm:$0xff]
    %v1275 = vld [vmem:[#allocation6 + $0x858] sm:$0xff]
    %v1276 = vld [vmem:[#allocation6 + $0x860] sm:$0xff]
    %v1277 = vld [vmem:[#allocation6 + $0x868] sm:$0xff]
    %v1278 = vld [vmem:[#allocation6 + $0x870] sm:$0xff]
    %v1279 = vld [vmem:[#allocation6 + $0x878] sm:$0xff]
    %v1280 = vld [vmem:[#allocation6 + $0x880] sm:$0xff]
    %v1281 = vld [vmem:[#allocation6 + $0x888] sm:$0xff]
    %v1282 = vld [vmem:[#allocation6 + $0x890] sm:$0xff]
    %v1283 = vld [vmem:[#allocation6 + $0x898] sm:$0xff]
    %v1284 = vld [vmem:[#allocation6 + $0x8a0] sm:$0xff]
    %v1285 = vld [vmem:[#allocation6 + $0x8a8] sm:$0xff]
    %v1286 = vld [vmem:[#allocation6 + $0x8b0] sm:$0xff]
    %v1287 = vld [vmem:[#allocation6 + $0x8b8] sm:$0xff]
    %v1288 = vld [vmem:[#allocation6 + $0x8c0] sm:$0xff]
    %v1289 = vld [vmem:[#allocation6 + $0x8c8] sm:$0xff]
    %v1290 = vld [vmem:[#allocation6 + $0x8d0] sm:$0xff]
    %v1291 = vld [vmem:[#allocation6 + $0x8d8] sm:$0xff]
    %v1292 = vld [vmem:[#allocation6 + $0x8e0] sm:$0xff]
    %v1293 = vld [vmem:[#allocation6 + $0x8e8] sm:$0xff]
    %v1294 = vld [vmem:[#allocation6 + $0x8f0] sm:$0xff]
    %v1295 = vld [vmem:[#allocation6 + $0x8f8] sm:$0xff]
    %v1296 = vld [vmem:[#allocation6 + $0x900] sm:$0xff]
    %v1297 = vld [vmem:[#allocation6 + $0x908] sm:$0xff]
    %v1298 = vld [vmem:[#allocation6 + $0x910] sm:$0xff]
    %v1299 = vld [vmem:[#allocation6 + $0x918] sm:$0xff]
    %v1300 = vld [vmem:[#allocation6 + $0x920] sm:$0xff]
    %v1301 = vld [vmem:[#allocation6 + $0x928] sm:$0xff]
    %v1302 = vld [vmem:[#allocation6 + $0x930] sm:$0xff]
    %v1303 = vld [vmem:[#allocation6 + $0x938] sm:$0xff]
    %v1304 = vld [vmem:[#allocation6 + $0x940] sm:$0xff]
    %v1305 = vld [vmem:[#allocation6 + $0x948] sm:$0xff]
    %v1306 = vld [vmem:[#allocation6 + $0x950] sm:$0xff]
    %v1307 = vld [vmem:[#allocation6 + $0x958] sm:$0xff]
    %v1308 = vld [vmem:[#allocation6 + $0x960] sm:$0xff]
    %v1309 = vld [vmem:[#allocation6 + $0x968] sm:$0xff]
    %v1310 = vld [vmem:[#allocation6 + $0x970] sm:$0xff]
    %v1311 = vld [vmem:[#allocation6 + $0x978] sm:$0xff]
    %v1312 = vld [vmem:[#allocation6 + $0x980] sm:$0xff]
    %v1313 = vld [vmem:[#allocation6 + $0x988] sm:$0xff]
    %v1314 = vld [vmem:[#allocation6 + $0x990] sm:$0xff]
    %v1315 = vld [vmem:[#allocation6 + $0x998] sm:$0xff]
    %v1316 = vld [vmem:[#allocation6 + $0x9a0] sm:$0xff]
    %v1317 = vld [vmem:[#allocation6 + $0x9a8] sm:$0xff]
    %v1318 = vld [vmem:[#allocation6 + $0x9b0] sm:$0xff]
    %v1319 = vld [vmem:[#allocation6 + $0x9b8] sm:$0xff]
    %v1320 = vld [vmem:[#allocation6 + $0x9c0] sm:$0xff]
    %v1321 = vld [vmem:[#allocation6 + $0x9c8] sm:$0xff]
    %v1322 = vld [vmem:[#allocation6 + $0x9d0] sm:$0xff]
    %v1323 = vld [vmem:[#allocation6 + $0x9d8] sm:$0xff]
    %v1324 = vld [vmem:[#allocation6 + $0x9e0] sm:$0xff]
    %v1325 = vld [vmem:[#allocation6 + $0x9e8] sm:$0xff]
    %v1326 = vld [vmem:[#allocation6 + $0x9f0] sm:$0xff]
    %v1327 = vld [vmem:[#allocation6 + $0x9f8] sm:$0xff]
    %v1328 = vld [vmem:[#allocation6 + $0xa00] sm:$0xff]
    %v1329 = vld [vmem:[#allocation6 + $0xa08] sm:$0xff]
    %v1330 = vld [vmem:[#allocation6 + $0xa10] sm:$0xff]
    %v1331 = vld [vmem:[#allocation6 + $0xa18] sm:$0xff]
    %v1332 = vld [vmem:[#allocation6 + $0xa20] sm:$0xff]
    %v1333 = vld [vmem:[#allocation6 + $0xa28] sm:$0xff]
    %v1334 = vld [vmem:[#allocation6 + $0xa30] sm:$0xff]
    %v1335 = vld [vmem:[#allocation6 + $0xa38] sm:$0xff]
    %v1336 = vld [vmem:[#allocation6 + $0xa40] sm:$0xff]
    %v1337 = vld [vmem:[#allocation6 + $0xa48] sm:$0xff]
    %v1338 = vld [vmem:[#allocation6 + $0xa50] sm:$0xff]
    %v1339 = vld [vmem:[#allocation6 + $0xa58] sm:$0xff]
    %v1340 = vld [vmem:[#allocation6 + $0xa60] sm:$0xff]
    %v1341 = vld [vmem:[#allocation6 + $0xa68] sm:$0xff]
    %v1342 = vld [vmem:[#allocation6 + $0xa70] sm:$0xff]
    %v1343 = vld [vmem:[#allocation6 + $0xa78] sm:$0xff]
    %v1344 = vld [vmem:[#allocation6 + $0xa80] sm:$0xff]
    %v1345 = vld [vmem:[#allocation6 + $0xa88] sm:$0xff]
    %v1346 = vld [vmem:[#allocation6 + $0xa90] sm:$0xff]
    %v1347 = vld [vmem:[#allocation6 + $0xa98] sm:$0xff]
    %v1348 = vld [vmem:[#allocation6 + $0xaa0] sm:$0xff]
    %v1349 = vld [vmem:[#allocation6 + $0xaa8] sm:$0xff]
    %v1350 = vld [vmem:[#allocation6 + $0xab0] sm:$0xff]
    %v1351 = vld [vmem:[#allocation6 + $0xab8] sm:$0xff]
    %v1352 = vld [vmem:[#allocation6 + $0xac0] sm:$0xff]
    %v1353 = vld [vmem:[#allocation6 + $0xac8] sm:$0xff]
    %v1354 = vld [vmem:[#allocation6 + $0xad0] sm:$0xff]
    %v1355 = vld [vmem:[#allocation6 + $0xad8] sm:$0xff]
    %v1356 = vld [vmem:[#allocation6 + $0xae0] sm:$0xff]
    %v1357 = vld [vmem:[#allocation6 + $0xae8] sm:$0xff]
    %v1358 = vld [vmem:[#allocation6 + $0xaf0] sm:$0xff]
    %v1359 = vld [vmem:[#allocation6 + $0xaf8] sm:$0xff]
    %v1360 = vld [vmem:[#allocation6 + $0xb00] sm:$0xff]
    %v1361 = vld [vmem:[#allocation6 + $0xb08] sm:$0xff]
    %v1362 = vld [vmem:[#allocation6 + $0xb10] sm:$0xff]
    %v1363 = vld [vmem:[#allocation6 + $0xb18] sm:$0xff]
    %v1364 = vld [vmem:[#allocation6 + $0xb20] sm:$0xff]
    %v1365 = vld [vmem:[#allocation6 + $0xb28] sm:$0xff]
    %v1366 = vld [vmem:[#allocation6 + $0xb30] sm:$0xff]
    %v1367 = vld [vmem:[#allocation6 + $0xb38] sm:$0xff]
    %v1368 = vld [vmem:[#allocation6 + $0xb40] sm:$0xff]
    %v1369 = vld [vmem:[#allocation6 + $0xb48] sm:$0xff]
    %v1370 = vld [vmem:[#allocation6 + $0xb50] sm:$0xff]
    %v1371 = vld [vmem:[#allocation6 + $0xb58] sm:$0xff]
    %v1372 = vld [vmem:[#allocation6 + $0xb60] sm:$0xff]
    %v1373 = vld [vmem:[#allocation6 + $0xb68] sm:$0xff]
    %v1374 = vld [vmem:[#allocation6 + $0xb70] sm:$0xff]
    %v1375 = vld [vmem:[#allocation6 + $0xb78] sm:$0xff]
    %v1376 = vld [vmem:[#allocation6 + $0xb80] sm:$0xff]
    %v1377 = vld [vmem:[#allocation6 + $0xb88] sm:$0xff]
    %v1378 = vld [vmem:[#allocation6 + $0xb90] sm:$0xff]
    %v1379 = vld [vmem:[#allocation6 + $0xb98] sm:$0xff]
    %v1380 = vld [vmem:[#allocation6 + $0xba0] sm:$0xff]
    %v1381 = vld [vmem:[#allocation6 + $0xba8] sm:$0xff]
    %v1382 = vld [vmem:[#allocation6 + $0xbb0] sm:$0xff]
    %v1383 = vld [vmem:[#allocation6 + $0xbb8] sm:$0xff]
    %v1384 = vld [vmem:[#allocation6 + $0xbc0] sm:$0xff]
    %v1385 = vld [vmem:[#allocation6 + $0xbc8] sm:$0xff]
    %v1386 = vld [vmem:[#allocation6 + $0xbd0] sm:$0xff]
    %v1387 = vld [vmem:[#allocation6 + $0xbd8] sm:$0xff]
    %v1388 = vld [vmem:[#allocation6 + $0xbe0] sm:$0xff]
    %v1389 = vld [vmem:[#allocation6 + $0xbe8] sm:$0xff]
    %v1390 = vld [vmem:[#allocation6 + $0xbf0] sm:$0xff]
    %v1391 = vld [vmem:[#allocation6 + $0xbf8] sm:$0xff]
    %v1392 = vld [vmem:[#allocation6 + $0xc00] sm:$0xff]
    %v1393 = vld [vmem:[#allocation6 + $0xc08] sm:$0xff]
    %v1394 = vld [vmem:[#allocation6 + $0xc10] sm:$0xff]
    %v1395 = vld [vmem:[#allocation6 + $0xc18] sm:$0xff]
    %v1396 = vld [vmem:[#allocation6 + $0xc20] sm:$0xff]
    %v1397 = vld [vmem:[#allocation6 + $0xc28] sm:$0xff]
    %v1398 = vld [vmem:[#allocation6 + $0xc30] sm:$0xff]
    %v1399 = vld [vmem:[#allocation6 + $0xc38] sm:$0xff]
    %v1400 = vld [vmem:[#allocation6 + $0xc40] sm:$0xff]
    %v1401 = vld [vmem:[#allocation6 + $0xc48] sm:$0xff]
    %v1402 = vld [vmem:[#allocation6 + $0xc50] sm:$0xff]
    %v1403 = vld [vmem:[#allocation6 + $0xc58] sm:$0xff]
    %v1404 = vld [vmem:[#allocation6 + $0xc60] sm:$0xff]
    %v1405 = vld [vmem:[#allocation6 + $0xc68] sm:$0xff]
    %v1406 = vld [vmem:[#allocation6 + $0xc70] sm:$0xff]
    %v1407 = vld [vmem:[#allocation6 + $0xc78] sm:$0xff]
    %v1408 = vld [vmem:[#allocation6 + $0xc80] sm:$0xff]
    %v1409 = vld [vmem:[#allocation6 + $0xc88] sm:$0xff]
    %v1410 = vld [vmem:[#allocation6 + $0xc90] sm:$0xff]
    %v1411 = vld [vmem:[#allocation6 + $0xc98] sm:$0xff]
    %v1412 = vld [vmem:[#allocation6 + $0xca0] sm:$0xff]
    %v1413 = vld [vmem:[#allocation6 + $0xca8] sm:$0xff]
    %v1414 = vld [vmem:[#allocation6 + $0xcb0] sm:$0xff]
    %v1415 = vld [vmem:[#allocation6 + $0xcb8] sm:$0xff]
    %v1416 = vld [vmem:[#allocation6 + $0xcc0] sm:$0xff]
    %v1417 = vld [vmem:[#allocation6 + $0xcc8] sm:$0xff]
    %v1418 = vld [vmem:[#allocation6 + $0xcd0] sm:$0xff]
    %v1419 = vld [vmem:[#allocation6 + $0xcd8] sm:$0xff]
    %v1420 = vld [vmem:[#allocation6 + $0xce0] sm:$0xff]
    %v1421 = vld [vmem:[#allocation6 + $0xce8] sm:$0xff]
    %v1422 = vld [vmem:[#allocation6 + $0xcf0] sm:$0xff]
    %v1423 = vld [vmem:[#allocation6 + $0xcf8] sm:$0xff]
    %v1424 = vld [vmem:[#allocation6 + $0xd00] sm:$0xff]
    %v1425 = vld [vmem:[#allocation6 + $0xd08] sm:$0xff]
    %v1426 = vld [vmem:[#allocation6 + $0xd10] sm:$0xff]
    %v1427 = vld [vmem:[#allocation6 + $0xd18] sm:$0xff]
    %v1428 = vld [vmem:[#allocation6 + $0xd20] sm:$0xff]
    %v1429 = vld [vmem:[#allocation6 + $0xd28] sm:$0xff]
    %v1430 = vld [vmem:[#allocation6 + $0xd30] sm:$0xff]
    %v1431 = vld [vmem:[#allocation6 + $0xd38] sm:$0xff]
    %v1432 = vld [vmem:[#allocation6 + $0xd40] sm:$0xff]
    %v1433 = vld [vmem:[#allocation6 + $0xd48] sm:$0xff]
    %v1434 = vld [vmem:[#allocation6 + $0xd50] sm:$0xff]
    %v1435 = vld [vmem:[#allocation6 + $0xd58] sm:$0xff]
    %v1436 = vld [vmem:[#allocation6 + $0xd60] sm:$0xff]
    %v1437 = vld [vmem:[#allocation6 + $0xd68] sm:$0xff]
    %v1438 = vld [vmem:[#allocation6 + $0xd70] sm:$0xff]
    %v1439 = vld [vmem:[#allocation6 + $0xd78] sm:$0xff]
    %v1440 = vld [vmem:[#allocation6 + $0xd80] sm:$0xff]
    %v1441 = vld [vmem:[#allocation6 + $0xd88] sm:$0xff]
    %v1442 = vld [vmem:[#allocation6 + $0xd90] sm:$0xff]
    %v1443 = vld [vmem:[#allocation6 + $0xd98] sm:$0xff]
    %v1444 = vld [vmem:[#allocation6 + $0xda0] sm:$0xff]
    %v1445 = vld [vmem:[#allocation6 + $0xda8] sm:$0xff]
    %v1446 = vld [vmem:[#allocation6 + $0xdb0] sm:$0xff]
    %v1447 = vld [vmem:[#allocation6 + $0xdb8] sm:$0xff]
    %v1448 = vld [vmem:[#allocation6 + $0xdc0] sm:$0xff]
    %v1449 = vld [vmem:[#allocation6 + $0xdc8] sm:$0xff]
    %v1450 = vld [vmem:[#allocation6 + $0xdd0] sm:$0xff]
    %v1451 = vld [vmem:[#allocation6 + $0xdd8] sm:$0xff]
    %v1452 = vld [vmem:[#allocation6 + $0xde0] sm:$0xff]
    %v1453 = vld [vmem:[#allocation6 + $0xde8] sm:$0xff]
    %v1454 = vld [vmem:[#allocation6 + $0xdf0] sm:$0xff]
    %v1455 = vld [vmem:[#allocation6 + $0xdf8] sm:$0xff]
    %v1456 = vld [vmem:[#allocation6 + $0xe00] sm:$0xff]
    %v1457 = vld [vmem:[#allocation6 + $0xe08] sm:$0xff]
    %v1458 = vld [vmem:[#allocation6 + $0xe10] sm:$0xff]
    %v1459 = vld [vmem:[#allocation6 + $0xe18] sm:$0xff]
    %v1460 = vld [vmem:[#allocation6 + $0xe20] sm:$0xff]
    %v1461 = vld [vmem:[#allocation6 + $0xe28] sm:$0xff]
    %v1462 = vld [vmem:[#allocation6 + $0xe30] sm:$0xff]
    %v1463 = vld [vmem:[#allocation6 + $0xe38] sm:$0xff]
    %v1464 = vld [vmem:[#allocation6 + $0xe40] sm:$0xff]
    %v1465 = vld [vmem:[#allocation6 + $0xe48] sm:$0xff]
    %v1466 = vld [vmem:[#allocation6 + $0xe50] sm:$0xff]
    %v1467 = vld [vmem:[#allocation6 + $0xe58] sm:$0xff]
    %v1468 = vld [vmem:[#allocation6 + $0xe60] sm:$0xff]
    %v1469 = vld [vmem:[#allocation6 + $0xe68] sm:$0xff]
    %v1470 = vld [vmem:[#allocation6 + $0xe70] sm:$0xff]
    %v1471 = vld [vmem:[#allocation6 + $0xe78] sm:$0xff]
    %v1472 = vld [vmem:[#allocation6 + $0xe80] sm:$0xff]
    %v1473 = vld [vmem:[#allocation6 + $0xe88] sm:$0xff]
    %v1474 = vld [vmem:[#allocation6 + $0xe90] sm:$0xff]
    %v1475 = vld [vmem:[#allocation6 + $0xe98] sm:$0xff]
    %v1476 = vld [vmem:[#allocation6 + $0xea0] sm:$0xff]
    %v1477 = vld [vmem:[#allocation6 + $0xea8] sm:$0xff]
    %v1478 = vld [vmem:[#allocation6 + $0xeb0] sm:$0xff]
    %v1479 = vld [vmem:[#allocation6 + $0xeb8] sm:$0xff]
    %v1480 = vld [vmem:[#allocation6 + $0xec0] sm:$0xff]
    %v1481 = vld [vmem:[#allocation6 + $0xec8] sm:$0xff]
    %v1482 = vld [vmem:[#allocation6 + $0xed0] sm:$0xff]
    %v1483 = vld [vmem:[#allocation6 + $0xed8] sm:$0xff]
    %v1484 = vld [vmem:[#allocation6 + $0xee0] sm:$0xff]
    %v1485 = vld [vmem:[#allocation6 + $0xee8] sm:$0xff]
    %v1486 = vld [vmem:[#allocation6 + $0xef0] sm:$0xff]
    %v1487 = vld [vmem:[#allocation6 + $0xef8] sm:$0xff]
    %v1488 = vld [vmem:[#allocation6 + $0xf00] sm:$0xff]
    %v1489 = vld [vmem:[#allocation6 + $0xf08] sm:$0xff]
    %v1490 = vld [vmem:[#allocation6 + $0xf10] sm:$0xff]
    %v1491 = vld [vmem:[#allocation6 + $0xf18] sm:$0xff]
    %v1492 = vld [vmem:[#allocation6 + $0xf20] sm:$0xff]
    %v1493 = vld [vmem:[#allocation6 + $0xf28] sm:$0xff]
    %v1494 = vld [vmem:[#allocation6 + $0xf30] sm:$0xff]
    %v1495 = vld [vmem:[#allocation6 + $0xf38] sm:$0xff]
    %v1496 = vld [vmem:[#allocation6 + $0xf40] sm:$0xff]
    %v1497 = vld [vmem:[#allocation6 + $0xf48] sm:$0xff]
    %v1498 = vld [vmem:[#allocation6 + $0xf50] sm:$0xff]
    %v1499 = vld [vmem:[#allocation6 + $0xf58] sm:$0xff]
    %v1500 = vld [vmem:[#allocation6 + $0xf60] sm:$0xff]
    %v1501 = vld [vmem:[#allocation6 + $0xf68] sm:$0xff]
    %v1502 = vld [vmem:[#allocation6 + $0xf70] sm:$0xff]
    %v1503 = vld [vmem:[#allocation6 + $0xf78] sm:$0xff]
    %v1504 = vld [vmem:[#allocation6 + $0xf80] sm:$0xff]
    %v1505 = vld [vmem:[#allocation6 + $0xf88] sm:$0xff]
    %v1506 = vld [vmem:[#allocation6 + $0xf90] sm:$0xff]
    %v1507 = vld [vmem:[#allocation6 + $0xf98] sm:$0xff]
    %v1508 = vld [vmem:[#allocation6 + $0xfa0] sm:$0xff]
    %v1509 = vld [vmem:[#allocation6 + $0xfa8] sm:$0xff]
    %v1510 = vld [vmem:[#allocation6 + $0xfb0] sm:$0xff]
    %v1511 = vld [vmem:[#allocation6 + $0xfb8] sm:$0xff]
    %v1512 = vld [vmem:[#allocation6 + $0xfc0] sm:$0xff]
    %v1513 = vld [vmem:[#allocation6 + $0xfc8] sm:$0xff]
    %v1514 = vld [vmem:[#allocation6 + $0xfd0] sm:$0xff]
    %v1515 = vld [vmem:[#allocation6 + $0xfd8] sm:$0xff]
    %v1516 = vld [vmem:[#allocation6 + $0xfe0] sm:$0xff]
    %v1517 = vld [vmem:[#allocation6 + $0xfe8] sm:$0xff]
    %v1518 = vld [vmem:[#allocation6 + $0xff0] sm:$0xff]
    %v1519 = vld [vmem:[#allocation6 + $0xff8] sm:$0xff]
    %v1520 = vld [vmem:[#allocation6 + $0x1000] sm:$0xff]
    %v1521 = vld [vmem:[#allocation6 + $0x1008] sm:$0xff]
    %v1522 = vld [vmem:[#allocation6 + $0x1010] sm:$0xff]
    %v1523 = vld [vmem:[#allocation6 + $0x1018] sm:$0xff]
    %v1524 = vld [vmem:[#allocation6 + $0x1020] sm:$0xff]
    %v1525 = vld [vmem:[#allocation6 + $0x1028] sm:$0xff]
    %v1526 = vld [vmem:[#allocation6 + $0x1030] sm:$0xff]
    %v1527 = vld [vmem:[#allocation6 + $0x1038] sm:$0xff]
    %v1528 = vld [vmem:[#allocation6 + $0x1040] sm:$0xff]
    %v1529 = vld [vmem:[#allocation6 + $0x1048] sm:$0xff]
    %v1530 = vld [vmem:[#allocation6 + $0x1050] sm:$0xff]
    %v1531 = vld [vmem:[#allocation6 + $0x1058] sm:$0xff]
    %v1532 = vld [vmem:[#allocation6 + $0x1060] sm:$0xff]
    %v1533 = vld [vmem:[#allocation6 + $0x1068] sm:$0xff]
    %v1534 = vld [vmem:[#allocation6 + $0x1070] sm:$0xff]
    %v1535 = vld [vmem:[#allocation6 + $0x1078] sm:$0xff]
    %v1536 = vld [vmem:[#allocation6 + $0x1080] sm:$0xff]
    %v1537 = vld [vmem:[#allocation6 + $0x1088] sm:$0xff]
    %v1538 = vld [vmem:[#allocation6 + $0x1090] sm:$0xff]
    %v1539 = vld [vmem:[#allocation6 + $0x1098] sm:$0xff]
    %v1540 = vld [vmem:[#allocation6 + $0x10a0] sm:$0xff]
    %v1541 = vld [vmem:[#allocation6 + $0x10a8] sm:$0xff]
    %v1542 = vld [vmem:[#allocation6 + $0x10b0] sm:$0xff]
    %v1543 = vld [vmem:[#allocation6 + $0x10b8] sm:$0xff]
    %v1544 = vld [vmem:[#allocation6 + $0x10c0] sm:$0xff]
    %v1545 = vld [vmem:[#allocation6 + $0x10c8] sm:$0xff]
    %v1546 = vld [vmem:[#allocation6 + $0x10d0] sm:$0xff]
    %v1547 = vld [vmem:[#allocation6 + $0x10d8] sm:$0xff]
    %v1548 = vld [vmem:[#allocation6 + $0x10e0] sm:$0xff]
    %v1549 = vld [vmem:[#allocation6 + $0x10e8] sm:$0xff]
    %v1550 = vld [vmem:[#allocation6 + $0x10f0] sm:$0xff]
    %v1551 = vld [vmem:[#allocation6 + $0x10f8] sm:$0xff]
    %v1552 = vld [vmem:[#allocation6 + $0x1100] sm:$0xff]
    %v1553 = vld [vmem:[#allocation6 + $0x1108] sm:$0xff]
    %v1554 = vld [vmem:[#allocation6 + $0x1110] sm:$0xff]
    %v1555 = vld [vmem:[#allocation6 + $0x1118] sm:$0xff]
    %v1556 = vld [vmem:[#allocation6 + $0x1120] sm:$0xff]
    %v1557 = vld [vmem:[#allocation6 + $0x1128] sm:$0xff]
    %v1558 = vld [vmem:[#allocation6 + $0x1130] sm:$0xff]
    %v1559 = vld [vmem:[#allocation6 + $0x1138] sm:$0xff]
    %v1560 = vld [vmem:[#allocation6 + $0x1140] sm:$0xff]
    %v1561 = vld [vmem:[#allocation6 + $0x1148] sm:$0xff]
    %v1562 = vld [vmem:[#allocation6 + $0x1150] sm:$0xff]
    %v1563 = vld [vmem:[#allocation6 + $0x1158] sm:$0xff]
    %v1564 = vld [vmem:[#allocation6 + $0x1160] sm:$0xff]
    %v1565 = vld [vmem:[#allocation6 + $0x1168] sm:$0xff]
    %v1566 = vld [vmem:[#allocation6 + $0x1170] sm:$0xff]
    %v1567 = vld [vmem:[#allocation6 + $0x1178] sm:$0xff]
    %v1568 = vld [vmem:[#allocation6 + $0x1180] sm:$0xff]
    %v1569 = vld [vmem:[#allocation6 + $0x1188] sm:$0xff]
    %v1570 = vld [vmem:[#allocation6 + $0x1190] sm:$0xff]
    %v1571 = vld [vmem:[#allocation6 + $0x1198] sm:$0xff]
    %v1572 = vld [vmem:[#allocation6 + $0x11a0] sm:$0xff]
    %v1573 = vld [vmem:[#allocation6 + $0x11a8] sm:$0xff]
    %v1574 = vld [vmem:[#allocation6 + $0x11b0] sm:$0xff]
    %v1575 = vld [vmem:[#allocation6 + $0x11b8] sm:$0xff]
    %v1576 = vld [vmem:[#allocation6 + $0x11c0] sm:$0xff]
    %v1577 = vld [vmem:[#allocation6 + $0x11c8] sm:$0xff]
    %v1578 = vld [vmem:[#allocation6 + $0x11d0] sm:$0xff]
    %v1579 = vld [vmem:[#allocation6 + $0x11d8] sm:$0xff]
    %v1580 = vld [vmem:[#allocation6 + $0x11e0] sm:$0xff]
    %v1581 = vld [vmem:[#allocation6 + $0x11e8] sm:$0xff]
    %v1582 = vld [vmem:[#allocation6 + $0x11f0] sm:$0xff]
    %v1583 = vld [vmem:[#allocation6 + $0x11f8] sm:$0xff]
    %v1584 = vld [vmem:[#allocation6 + $0x1200] sm:$0xff]
    %v1585 = vld [vmem:[#allocation6 + $0x1208] sm:$0xff]
    %v1586 = vld [vmem:[#allocation6 + $0x1210] sm:$0xff]
    %v1587 = vld [vmem:[#allocation6 + $0x1218] sm:$0xff]
    %v1588 = vld [vmem:[#allocation6 + $0x1220] sm:$0xff]
    %v1589 = vld [vmem:[#allocation6 + $0x1228] sm:$0xff]
    %v1590 = vld [vmem:[#allocation6 + $0x1230] sm:$0xff]
    %v1591 = vld [vmem:[#allocation6 + $0x1238] sm:$0xff]
    %v1592 = vld [vmem:[#allocation6 + $0x1240] sm:$0xff]
    %v1593 = vld [vmem:[#allocation6 + $0x1248] sm:$0xff]
    %v1594 = vld [vmem:[#allocation6 + $0x1250] sm:$0xff]
    %v1595 = vld [vmem:[#allocation6 + $0x1258] sm:$0xff]
    %v1596 = vld [vmem:[#allocation6 + $0x1260] sm:$0xff]
    %v1597 = vld [vmem:[#allocation6 + $0x1268] sm:$0xff]
    %v1598 = vld [vmem:[#allocation6 + $0x1270] sm:$0xff]
    %v1599 = vld [vmem:[#allocation6 + $0x1278] sm:$0xff]
    %v1600 = vld [vmem:[#allocation6 + $0x1280] sm:$0xff]
    %v1601 = vld [vmem:[#allocation6 + $0x1288] sm:$0xff]
    %v1602 = vld [vmem:[#allocation6 + $0x1290] sm:$0xff]
    %v1603 = vld [vmem:[#allocation6 + $0x1298] sm:$0xff]
    %v1604 = vld [vmem:[#allocation6 + $0x12a0] sm:$0xff]
    %v1605 = vld [vmem:[#allocation6 + $0x12a8] sm:$0xff]
    %v1606 = vld [vmem:[#allocation6 + $0x12b0] sm:$0xff]
    %v1607 = vld [vmem:[#allocation6 + $0x12b8] sm:$0xff]
    %v1608 = vld [vmem:[#allocation6 + $0x12c0] sm:$0xff]
    %v1609 = vld [vmem:[#allocation6 + $0x12c8] sm:$0xff]
    %v1610 = vld [vmem:[#allocation6 + $0x12d0] sm:$0xff]
    %v1611 = vld [vmem:[#allocation6 + $0x12d8] sm:$0xff]
    %v1612 = vld [vmem:[#allocation6 + $0x12e0] sm:$0xff]
    %v1613 = vld [vmem:[#allocation6 + $0x12e8] sm:$0xff]
    %v1614 = vld [vmem:[#allocation6 + $0x12f0] sm:$0xff]
    %v1615 = vld [vmem:[#allocation6 + $0x12f8] sm:$0xff]
    %v1616 = vld [vmem:[#allocation6 + $0x1300] sm:$0xff]
    %v1617 = vld [vmem:[#allocation6 + $0x1308] sm:$0xff]
    %v1618 = vld [vmem:[#allocation6 + $0x1310] sm:$0xff]
    %v1619 = vld [vmem:[#allocation6 + $0x1318] sm:$0xff]
    %v1620 = vld [vmem:[#allocation6 + $0x1320] sm:$0xff]
    %v1621 = vld [vmem:[#allocation6 + $0x1328] sm:$0xff]
    %v1622 = vld [vmem:[#allocation6 + $0x1330] sm:$0xff]
    %v1623 = vld [vmem:[#allocation6 + $0x1338] sm:$0xff]
    %v1624 = vld [vmem:[#allocation6 + $0x1340] sm:$0xff]
    %v1625 = vld [vmem:[#allocation6 + $0x1348] sm:$0xff]
    %v1626 = vld [vmem:[#allocation6 + $0x1350] sm:$0xff]
    %v1627 = vld [vmem:[#allocation6 + $0x1358] sm:$0xff]
    %v1628 = vld [vmem:[#allocation6 + $0x1360] sm:$0xff]
    %v1629 = vld [vmem:[#allocation6 + $0x1368] sm:$0xff]
    %v1630 = vld [vmem:[#allocation6 + $0x1370] sm:$0xff]
    %v1631 = vld [vmem:[#allocation6 + $0x1378] sm:$0xff]
    %v1632 = vld [vmem:[#allocation6 + $0x1380] sm:$0xff]
    %v1633 = vld [vmem:[#allocation6 + $0x1388] sm:$0xff]
    %v1634 = vld [vmem:[#allocation6 + $0x1390] sm:$0xff]
    %v1635 = vld [vmem:[#allocation6 + $0x1398] sm:$0xff]
    %v1636 = vld [vmem:[#allocation6 + $0x13a0] sm:$0xff]
    %v1637 = vld [vmem:[#allocation6 + $0x13a8] sm:$0xff]
    %v1638 = vld [vmem:[#allocation6 + $0x13b0] sm:$0xff]
    %v1639 = vld [vmem:[#allocation6 + $0x13b8] sm:$0xff]
    %v1640 = vld [vmem:[#allocation6 + $0x13c0] sm:$0xff]
    %v1641 = vld [vmem:[#allocation6 + $0x13c8] sm:$0xff]
    %v1642 = vld [vmem:[#allocation6 + $0x13d0] sm:$0xff]
    %v1643 = vld [vmem:[#allocation6 + $0x13d8] sm:$0xff]
    %v1644 = vld [vmem:[#allocation6 + $0x13e0] sm:$0xff]
    %v1645 = vld [vmem:[#allocation6 + $0x13e8] sm:$0xff]
    %v1646 = vld [vmem:[#allocation6 + $0x13f0] sm:$0xff]
    %v1647 = vld [vmem:[#allocation6 + $0x13f8] sm:$0xff]
    %v1648 = vld [vmem:[#allocation6 + $0x1400] sm:$0xff]
    %v1649 = vld [vmem:[#allocation6 + $0x1408] sm:$0xff]
    %v1650 = vld [vmem:[#allocation6 + $0x1410] sm:$0xff]
    %v1651 = vld [vmem:[#allocation6 + $0x1418] sm:$0xff]
    %v1652 = vld [vmem:[#allocation6 + $0x1420] sm:$0xff]
    %v1653 = vld [vmem:[#allocation6 + $0x1428] sm:$0xff]
    %v1654 = vld [vmem:[#allocation6 + $0x1430] sm:$0xff]
    %v1655 = vld [vmem:[#allocation6 + $0x1438] sm:$0xff]
    %v1656 = vld [vmem:[#allocation6 + $0x1440] sm:$0xff]
    %v1657 = vld [vmem:[#allocation6 + $0x1448] sm:$0xff]
    %v1658 = vld [vmem:[#allocation6 + $0x1450] sm:$0xff]
    %v1659 = vld [vmem:[#allocation6 + $0x1458] sm:$0xff]
    %v1660 = vld [vmem:[#allocation6 + $0x1460] sm:$0xff]
    %v1661 = vld [vmem:[#allocation6 + $0x1468] sm:$0xff]
    %v1662 = vld [vmem:[#allocation6 + $0x1470] sm:$0xff]
    %v1663 = vld [vmem:[#allocation6 + $0x1478] sm:$0xff]
    %v1664 = vld [vmem:[#allocation6 + $0x1480] sm:$0xff]
    %v1665 = vld [vmem:[#allocation6 + $0x1488] sm:$0xff]
    %v1666 = vld [vmem:[#allocation6 + $0x1490] sm:$0xff]
    %v1667 = vld [vmem:[#allocation6 + $0x1498] sm:$0xff]
    %v1668 = vld [vmem:[#allocation6 + $0x14a0] sm:$0xff]
    %v1669 = vld [vmem:[#allocation6 + $0x14a8] sm:$0xff]
    %v1670 = vld [vmem:[#allocation6 + $0x14b0] sm:$0xff]
    %v1671 = vld [vmem:[#allocation6 + $0x14b8] sm:$0xff]
    %v1672 = vld [vmem:[#allocation6 + $0x14c0] sm:$0xff]
    %v1673 = vld [vmem:[#allocation6 + $0x14c8] sm:$0xff]
    %v1674 = vld [vmem:[#allocation6 + $0x14d0] sm:$0xff]
    %v1675 = vld [vmem:[#allocation6 + $0x14d8] sm:$0xff]
    %v1676 = vld [vmem:[#allocation6 + $0x14e0] sm:$0xff]
    %v1677 = vld [vmem:[#allocation6 + $0x14e8] sm:$0xff]
    %v1678 = vld [vmem:[#allocation6 + $0x14f0] sm:$0xff]
    %v1679 = vld [vmem:[#allocation6 + $0x14f8] sm:$0xff]
    %v1680 = vld [vmem:[#allocation6 + $0x1500] sm:$0xff]
    %v1681 = vld [vmem:[#allocation6 + $0x1508] sm:$0xff]
    %v1682 = vld [vmem:[#allocation6 + $0x1510] sm:$0xff]
    %v1683 = vld [vmem:[#allocation6 + $0x1518] sm:$0xff]
    %v1684 = vld [vmem:[#allocation6 + $0x1520] sm:$0xff]
    %v1685 = vld [vmem:[#allocation6 + $0x1528] sm:$0xff]
    %v1686 = vld [vmem:[#allocation6 + $0x1530] sm:$0xff]
    %v1687 = vld [vmem:[#allocation6 + $0x1538] sm:$0xff]
    %v1688 = vld [vmem:[#allocation6 + $0x1540] sm:$0xff]
    %v1689 = vld [vmem:[#allocation6 + $0x1548] sm:$0xff]
    %v1690 = vld [vmem:[#allocation6 + $0x1550] sm:$0xff]
    %v1691 = vld [vmem:[#allocation6 + $0x1558] sm:$0xff]
    %v1692 = vld [vmem:[#allocation6 + $0x1560] sm:$0xff]
    %v1693 = vld [vmem:[#allocation6 + $0x1568] sm:$0xff]
    %v1694 = vld [vmem:[#allocation6 + $0x1570] sm:$0xff]
    %v1695 = vld [vmem:[#allocation6 + $0x1578] sm:$0xff]
    %v1696 = vld [vmem:[#allocation6 + $0x1580] sm:$0xff]
    %v1697 = vld [vmem:[#allocation6 + $0x1588] sm:$0xff]
    %v1698 = vld [vmem:[#allocation6 + $0x1590] sm:$0xff]
    %v1699 = vld [vmem:[#allocation6 + $0x1598] sm:$0xff]
    %v1700 = vld [vmem:[#allocation6 + $0x15a0] sm:$0xff]
    %v1701 = vld [vmem:[#allocation6 + $0x15a8] sm:$0xff]
    %v1702 = vld [vmem:[#allocation6 + $0x15b0] sm:$0xff]
    %v1703 = vld [vmem:[#allocation6 + $0x15b8] sm:$0xff]
    %v1704 = vld [vmem:[#allocation6 + $0x15c0] sm:$0xff]
    %v1705 = vld [vmem:[#allocation6 + $0x15c8] sm:$0xff]
    %v1706 = vld [vmem:[#allocation6 + $0x15d0] sm:$0xff]
    %v1707 = vld [vmem:[#allocation6 + $0x15d8] sm:$0xff]
    %v1708 = vld [vmem:[#allocation6 + $0x15e0] sm:$0xff]
    %v1709 = vld [vmem:[#allocation6 + $0x15e8] sm:$0xff]
    %v1710 = vld [vmem:[#allocation6 + $0x15f0] sm:$0xff]
    %v1711 = vld [vmem:[#allocation6 + $0x15f8] sm:$0xff]
    %v1712 = vld [vmem:[#allocation6 + $0x1600] sm:$0xff]
    %v1713 = vld [vmem:[#allocation6 + $0x1608] sm:$0xff]
    %v1714 = vld [vmem:[#allocation6 + $0x1610] sm:$0xff]
    %v1715 = vld [vmem:[#allocation6 + $0x1618] sm:$0xff]
    %v1716 = vld [vmem:[#allocation6 + $0x1620] sm:$0xff]
    %v1717 = vld [vmem:[#allocation6 + $0x1628] sm:$0xff]
    %v1718 = vld [vmem:[#allocation6 + $0x1630] sm:$0xff]
    %v1719 = vld [vmem:[#allocation6 + $0x1638] sm:$0xff]
    %v1720 = vld [vmem:[#allocation6 + $0x1640] sm:$0xff]
    %v1721 = vld [vmem:[#allocation6 + $0x1648] sm:$0xff]
    %v1722 = vld [vmem:[#allocation6 + $0x1650] sm:$0xff]
    %v1723 = vld [vmem:[#allocation6 + $0x1658] sm:$0xff]
    %v1724 = vld [vmem:[#allocation6 + $0x1660] sm:$0xff]
    %v1725 = vld [vmem:[#allocation6 + $0x1668] sm:$0xff]
    %v1726 = vld [vmem:[#allocation6 + $0x1670] sm:$0xff]
    %v1727 = vld [vmem:[#allocation6 + $0x1678] sm:$0xff]
    %v1728 = vld [vmem:[#allocation6 + $0x1680] sm:$0xff]
    %v1729 = vld [vmem:[#allocation6 + $0x1688] sm:$0xff]
    %v1730 = vld [vmem:[#allocation6 + $0x1690] sm:$0xff]
    %v1731 = vld [vmem:[#allocation6 + $0x1698] sm:$0xff]
    %v1732 = vld [vmem:[#allocation6 + $0x16a0] sm:$0xff]
    %v1733 = vld [vmem:[#allocation6 + $0x16a8] sm:$0xff]
    %v1734 = vld [vmem:[#allocation6 + $0x16b0] sm:$0xff]
    %v1735 = vld [vmem:[#allocation6 + $0x16b8] sm:$0xff]
    %v1736 = vld [vmem:[#allocation6 + $0x16c0] sm:$0xff]
    %v1737 = vld [vmem:[#allocation6 + $0x16c8] sm:$0xff]
    %v1738 = vld [vmem:[#allocation6 + $0x16d0] sm:$0xff]
    %v1739 = vld [vmem:[#allocation6 + $0x16d8] sm:$0xff]
    %v1740 = vld [vmem:[#allocation6 + $0x16e0] sm:$0xff]
    %v1741 = vld [vmem:[#allocation6 + $0x16e8] sm:$0xff]
    %v1742 = vld [vmem:[#allocation6 + $0x16f0] sm:$0xff]
    %v1743 = vld [vmem:[#allocation6 + $0x16f8] sm:$0xff]
    %v1744 = vld [vmem:[#allocation6 + $0x1700] sm:$0xff]
    %v1745 = vld [vmem:[#allocation6 + $0x1708] sm:$0xff]
    %v1746 = vld [vmem:[#allocation6 + $0x1710] sm:$0xff]
    %v1747 = vld [vmem:[#allocation6 + $0x1718] sm:$0xff]
    %v1748 = vld [vmem:[#allocation6 + $0x1720] sm:$0xff]
    %v1749 = vld [vmem:[#allocation6 + $0x1728] sm:$0xff]
    %v1750 = vld [vmem:[#allocation6 + $0x1730] sm:$0xff]
    %v1751 = vld [vmem:[#allocation6 + $0x1738] sm:$0xff]
    %v1752 = vld [vmem:[#allocation6 + $0x1740] sm:$0xff]
    %v1753 = vld [vmem:[#allocation6 + $0x1748] sm:$0xff]
    %v1754 = vld [vmem:[#allocation6 + $0x1750] sm:$0xff]
    %v1755 = vld [vmem:[#allocation6 + $0x1758] sm:$0xff]
    %v1756 = vld [vmem:[#allocation6 + $0x1760] sm:$0xff]
    %v1757 = vld [vmem:[#allocation6 + $0x1768] sm:$0xff]
    %v1758 = vld [vmem:[#allocation6 + $0x1770] sm:$0xff]
    %v1759 = vld [vmem:[#allocation6 + $0x1778] sm:$0xff]
    %v1760 = vld [vmem:[#allocation6 + $0x1780] sm:$0xff]
    %v1761 = vld [vmem:[#allocation6 + $0x1788] sm:$0xff]
    %v1762 = vld [vmem:[#allocation6 + $0x1790] sm:$0xff]
    %v1763 = vld [vmem:[#allocation6 + $0x1798] sm:$0xff]
    %v1764 = vld [vmem:[#allocation6 + $0x17a0] sm:$0xff]
    %v1765 = vld [vmem:[#allocation6 + $0x17a8] sm:$0xff]
    %v1766 = vld [vmem:[#allocation6 + $0x17b0] sm:$0xff]
    %v1767 = vld [vmem:[#allocation6 + $0x17b8] sm:$0xff]
    %v1768 = vld [vmem:[#allocation6 + $0x17c0] sm:$0xff]
    %v1769 = vld [vmem:[#allocation6 + $0x17c8] sm:$0xff]
    %v1770 = vld [vmem:[#allocation6 + $0x17d0] sm:$0xff]
    %v1771 = vld [vmem:[#allocation6 + $0x17d8] sm:$0xff]
    %v1772 = vld [vmem:[#allocation6 + $0x17e0] sm:$0xff]
    %v1773 = vld [vmem:[#allocation6 + $0x17e8] sm:$0xff]
    %v1774 = vld [vmem:[#allocation6 + $0x17f0] sm:$0xff]
    %v1775 = vld [vmem:[#allocation6 + $0x17f8] sm:$0xff]
    %v1776 = vld [vmem:[#allocation6 + $0x1800] sm:$0xff]
    %v1777 = vld [vmem:[#allocation6 + $0x1808] sm:$0xff]
    %v1778 = vld [vmem:[#allocation6 + $0x1810] sm:$0xff]
    %v1779 = vld [vmem:[#allocation6 + $0x1818] sm:$0xff]
    %v1780 = vld [vmem:[#allocation6 + $0x1820] sm:$0xff]
    %v1781 = vld [vmem:[#allocation6 + $0x1828] sm:$0xff]
    %v1782 = vld [vmem:[#allocation6 + $0x1830] sm:$0xff]
    %v1783 = vld [vmem:[#allocation6 + $0x1838] sm:$0xff]
    %v1784 = vld [vmem:[#allocation6 + $0x1840] sm:$0xff]
    %v1785 = vld [vmem:[#allocation6 + $0x1848] sm:$0xff]
    %v1786 = vld [vmem:[#allocation6 + $0x1850] sm:$0xff]
    %v1787 = vld [vmem:[#allocation6 + $0x1858] sm:$0xff]
    %v1788 = vld [vmem:[#allocation6 + $0x1860] sm:$0xff]
    %v1789 = vld [vmem:[#allocation6 + $0x1868] sm:$0xff]
    %v1790 = vld [vmem:[#allocation6 + $0x1870] sm:$0xff]
    %v1791 = vld [vmem:[#allocation6 + $0x1878] sm:$0xff]
    %v1792 = vld [vmem:[#allocation6 + $0x1880] sm:$0xff]
    %v1793 = vld [vmem:[#allocation6 + $0x1888] sm:$0xff]
    %v1794 = vld [vmem:[#allocation6 + $0x1890] sm:$0xff]
    %v1795 = vld [vmem:[#allocation6 + $0x1898] sm:$0xff]
    %v1796 = vld [vmem:[#allocation6 + $0x18a0] sm:$0xff]
    %v1797 = vld [vmem:[#allocation6 + $0x18a8] sm:$0xff]
    %v1798 = vld [vmem:[#allocation6 + $0x18b0] sm:$0xff]
    %v1799 = vld [vmem:[#allocation6 + $0x18b8] sm:$0xff]
    %v1800 = vld [vmem:[#allocation6 + $0x18c0] sm:$0xff]
    %v1801 = vld [vmem:[#allocation6 + $0x18c8] sm:$0xff]
    %v1802 = vld [vmem:[#allocation6 + $0x18d0] sm:$0xff]
    %v1803 = vld [vmem:[#allocation6 + $0x18d8] sm:$0xff]
    %v1804 = vld [vmem:[#allocation6 + $0x18e0] sm:$0xff]
    %v1805 = vld [vmem:[#allocation6 + $0x18e8] sm:$0xff]
    %v1806 = vld [vmem:[#allocation6 + $0x18f0] sm:$0xff]
    %v1807 = vld [vmem:[#allocation6 + $0x18f8] sm:$0xff]
    %v1808 = vld [vmem:[#allocation6 + $0x1900] sm:$0xff]
    %v1809 = vld [vmem:[#allocation6 + $0x1908] sm:$0xff]
    %v1810 = vld [vmem:[#allocation6 + $0x1910] sm:$0xff]
    %v1811 = vld [vmem:[#allocation6 + $0x1918] sm:$0xff]
    %v1812 = vld [vmem:[#allocation6 + $0x1920] sm:$0xff]
    %v1813 = vld [vmem:[#allocation6 + $0x1928] sm:$0xff]
    %v1814 = vld [vmem:[#allocation6 + $0x1930] sm:$0xff]
    %v1815 = vld [vmem:[#allocation6 + $0x1938] sm:$0xff]
    %v1816 = vld [vmem:[#allocation6 + $0x1940] sm:$0xff]
    %v1817 = vld [vmem:[#allocation6 + $0x1948] sm:$0xff]
    %v1818 = vld [vmem:[#allocation6 + $0x1950] sm:$0xff]
    %v1819 = vld [vmem:[#allocation6 + $0x1958] sm:$0xff]
    %v1820 = vld [vmem:[#allocation6 + $0x1960] sm:$0xff]
    %v1821 = vld [vmem:[#allocation6 + $0x1968] sm:$0xff]
    %v1822 = vld [vmem:[#allocation6 + $0x1970] sm:$0xff]
    %v1823 = vld [vmem:[#allocation6 + $0x1978] sm:$0xff]
    %v1824 = vld [vmem:[#allocation6 + $0x1980] sm:$0xff]
    %v1825 = vld [vmem:[#allocation6 + $0x1988] sm:$0xff]
    %v1826 = vld [vmem:[#allocation6 + $0x1990] sm:$0xff]
    %v1827 = vld [vmem:[#allocation6 + $0x1998] sm:$0xff]
    %v1828 = vld [vmem:[#allocation6 + $0x19a0] sm:$0xff]
    %v1829 = vld [vmem:[#allocation6 + $0x19a8] sm:$0xff]
    %v1830 = vld [vmem:[#allocation6 + $0x19b0] sm:$0xff]
    %v1831 = vld [vmem:[#allocation6 + $0x19b8] sm:$0xff]
    %v1832 = vld [vmem:[#allocation6 + $0x19c0] sm:$0xff]
    %v1833 = vld [vmem:[#allocation6 + $0x19c8] sm:$0xff]
    %v1834 = vld [vmem:[#allocation6 + $0x19d0] sm:$0xff]
    %v1835 = vld [vmem:[#allocation6 + $0x19d8] sm:$0xff]
    %v1836 = vld [vmem:[#allocation6 + $0x19e0] sm:$0xff]
    %v1837 = vld [vmem:[#allocation6 + $0x19e8] sm:$0xff]
    %v1838 = vld [vmem:[#allocation6 + $0x19f0] sm:$0xff]
    %v1839 = vld [vmem:[#allocation6 + $0x19f8] sm:$0xff]
    %v1840 = vld [vmem:[#allocation6 + $0x1a00] sm:$0xff]
    %v1841 = vld [vmem:[#allocation6 + $0x1a08] sm:$0xff]
    %v1842 = vld [vmem:[#allocation6 + $0x1a10] sm:$0xff]
    %v1843 = vld [vmem:[#allocation6 + $0x1a18] sm:$0xff]
    %v1844 = vld [vmem:[#allocation6 + $0x1a20] sm:$0xff]
    %v1845 = vld [vmem:[#allocation6 + $0x1a28] sm:$0xff]
    %v1846 = vld [vmem:[#allocation6 + $0x1a30] sm:$0xff]
    %v1847 = vld [vmem:[#allocation6 + $0x1a38] sm:$0xff]
    %v1848 = vld [vmem:[#allocation6 + $0x1a40] sm:$0xff]
    %v1849 = vld [vmem:[#allocation6 + $0x1a48] sm:$0xff]
    %v1850 = vld [vmem:[#allocation6 + $0x1a50] sm:$0xff]
    %v1851 = vld [vmem:[#allocation6 + $0x1a58] sm:$0xff]
    %v1852 = vld [vmem:[#allocation6 + $0x1a60] sm:$0xff]
    %v1853 = vld [vmem:[#allocation6 + $0x1a68] sm:$0xff]
    %v1854 = vld [vmem:[#allocation6 + $0x1a70] sm:$0xff]
    %v1855 = vld [vmem:[#allocation6 + $0x1a78] sm:$0xff]
    %v1856 = vld [vmem:[#allocation6 + $0x1a80] sm:$0xff]
    %v1857 = vld [vmem:[#allocation6 + $0x1a88] sm:$0xff]
    %v1858 = vld [vmem:[#allocation6 + $0x1a90] sm:$0xff]
    %v1859 = vld [vmem:[#allocation6 + $0x1a98] sm:$0xff]
    %v1860 = vld [vmem:[#allocation6 + $0x1aa0] sm:$0xff]
    %v1861 = vld [vmem:[#allocation6 + $0x1aa8] sm:$0xff]
    %v1862 = vld [vmem:[#allocation6 + $0x1ab0] sm:$0xff]
    %v1863 = vld [vmem:[#allocation6 + $0x1ab8] sm:$0xff]
    %v1864 = vld [vmem:[#allocation6 + $0x1ac0] sm:$0xff]
    %v1865 = vld [vmem:[#allocation6 + $0x1ac8] sm:$0xff]
    %v1866 = vld [vmem:[#allocation6 + $0x1ad0] sm:$0xff]
    %v1867 = vld [vmem:[#allocation6 + $0x1ad8] sm:$0xff]
    %v1868 = vld [vmem:[#allocation6 + $0x1ae0] sm:$0xff]
    %v1869 = vld [vmem:[#allocation6 + $0x1ae8] sm:$0xff]
    %v1870 = vld [vmem:[#allocation6 + $0x1af0] sm:$0xff]
    %v1871 = vld [vmem:[#allocation6 + $0x1af8] sm:$0xff]
    %v1872 = vld [vmem:[#allocation6 + $0x1b00] sm:$0xff]
    %v1873 = vld [vmem:[#allocation6 + $0x1b08] sm:$0xff]
    %v1874 = vld [vmem:[#allocation6 + $0x1b10] sm:$0xff]
    %v1875 = vld [vmem:[#allocation6 + $0x1b18] sm:$0xff]
    %v1876 = vld [vmem:[#allocation6 + $0x1b20] sm:$0xff]
    %v1877 = vld [vmem:[#allocation6 + $0x1b28] sm:$0xff]
    %v1878 = vld [vmem:[#allocation6 + $0x1b30] sm:$0xff]
    %v1879 = vld [vmem:[#allocation6 + $0x1b38] sm:$0xff]
    %v1880 = vld [vmem:[#allocation6 + $0x1b40] sm:$0xff]
    %v1881 = vld [vmem:[#allocation6 + $0x1b48] sm:$0xff]
    %v1882 = vld [vmem:[#allocation6 + $0x1b50] sm:$0xff]
    %v1883 = vld [vmem:[#allocation6 + $0x1b58] sm:$0xff]
    %v1884 = vld [vmem:[#allocation6 + $0x1b60] sm:$0xff]
    %v1885 = vld [vmem:[#allocation6 + $0x1b68] sm:$0xff]
    %v1886 = vld [vmem:[#allocation6 + $0x1b70] sm:$0xff]
    %v1887 = vld [vmem:[#allocation6 + $0x1b78] sm:$0xff]
    %v1888 = vld [vmem:[#allocation6 + $0x1b80] sm:$0xff]
    %v1889 = vld [vmem:[#allocation6 + $0x1b88] sm:$0xff]
    %v1890 = vld [vmem:[#allocation6 + $0x1b90] sm:$0xff]
    %v1891 = vld [vmem:[#allocation6 + $0x1b98] sm:$0xff]
    %v1892 = vld [vmem:[#allocation6 + $0x1ba0] sm:$0xff]
    %v1893 = vld [vmem:[#allocation6 + $0x1ba8] sm:$0xff]
    %v1894 = vld [vmem:[#allocation6 + $0x1bb0] sm:$0xff]
    %v1895 = vld [vmem:[#allocation6 + $0x1bb8] sm:$0xff]
    %v1896 = vld [vmem:[#allocation6 + $0x1bc0] sm:$0xff]
    %v1897 = vld [vmem:[#allocation6 + $0x1bc8] sm:$0xff]
    %v1898 = vld [vmem:[#allocation6 + $0x1bd0] sm:$0xff]
    %v1899 = vld [vmem:[#allocation6 + $0x1bd8] sm:$0xff]
    %v1900 = vld [vmem:[#allocation6 + $0x1be0] sm:$0xff]
    %v1901 = vld [vmem:[#allocation6 + $0x1be8] sm:$0xff]
    %v1902 = vld [vmem:[#allocation6 + $0x1bf0] sm:$0xff]
    %v1903 = vld [vmem:[#allocation6 + $0x1bf8] sm:$0xff]
    %v1904 = vld [vmem:[#allocation6 + $0x1c00] sm:$0xff]
    %v1905 = vld [vmem:[#allocation6 + $0x1c08] sm:$0xff]
    %v1906 = vld [vmem:[#allocation6 + $0x1c10] sm:$0xff]
    %v1907 = vld [vmem:[#allocation6 + $0x1c18] sm:$0xff]
    %v1908 = vld [vmem:[#allocation6 + $0x1c20] sm:$0xff]
    %v1909 = vld [vmem:[#allocation6 + $0x1c28] sm:$0xff]
    %v1910 = vld [vmem:[#allocation6 + $0x1c30] sm:$0xff]
    %v1911 = vld [vmem:[#allocation6 + $0x1c38] sm:$0xff]
    %v1912 = vld [vmem:[#allocation6 + $0x1c40] sm:$0xff]
    %v1913 = vld [vmem:[#allocation6 + $0x1c48] sm:$0xff]
    %v1914 = vld [vmem:[#allocation6 + $0x1c50] sm:$0xff]
    %v1915 = vld [vmem:[#allocation6 + $0x1c58] sm:$0xff]
    %v1916 = vld [vmem:[#allocation6 + $0x1c60] sm:$0xff]
    %v1917 = vld [vmem:[#allocation6 + $0x1c68] sm:$0xff]
    %v1918 = vld [vmem:[#allocation6 + $0x1c70] sm:$0xff]
    %v1919 = vld [vmem:[#allocation6 + $0x1c78] sm:$0xff]
    %v1920 = vld [vmem:[#allocation6 + $0x1c80] sm:$0xff]
    %v1921 = vld [vmem:[#allocation6 + $0x1c88] sm:$0xff]
    %v1922 = vld [vmem:[#allocation6 + $0x1c90] sm:$0xff]
    %v1923 = vld [vmem:[#allocation6 + $0x1c98] sm:$0xff]
    %v1924 = vld [vmem:[#allocation6 + $0x1ca0] sm:$0xff]
    %v1925 = vld [vmem:[#allocation6 + $0x1ca8] sm:$0xff]
    %v1926 = vld [vmem:[#allocation6 + $0x1cb0] sm:$0xff]
    %v1927 = vld [vmem:[#allocation6 + $0x1cb8] sm:$0xff]
    %v1928 = vld [vmem:[#allocation6 + $0x1cc0] sm:$0xff]
    %v1929 = vld [vmem:[#allocation6 + $0x1cc8] sm:$0xff]
    %v1930 = vld [vmem:[#allocation6 + $0x1cd0] sm:$0xff]
    %v1931 = vld [vmem:[#allocation6 + $0x1cd8] sm:$0xff]
    %v1932 = vld [vmem:[#allocation6 + $0x1ce0] sm:$0xff]
    %v1933 = vld [vmem:[#allocation6 + $0x1ce8] sm:$0xff]
    %v1934 = vld [vmem:[#allocation6 + $0x1cf0] sm:$0xff]
    %v1935 = vld [vmem:[#allocation6 + $0x1cf8] sm:$0xff]
    %v1936 = vld [vmem:[#allocation6 + $0x1d00] sm:$0xff]
    %v1937 = vld [vmem:[#allocation6 + $0x1d08] sm:$0xff]
    %v1938 = vld [vmem:[#allocation6 + $0x1d10] sm:$0xff]
    %v1939 = vld [vmem:[#allocation6 + $0x1d18] sm:$0xff]
    %v1940 = vld [vmem:[#allocation6 + $0x1d20] sm:$0xff]
    %v1941 = vld [vmem:[#allocation6 + $0x1d28] sm:$0xff]
    %v1942 = vld [vmem:[#allocation6 + $0x1d30] sm:$0xff]
    %v1943 = vld [vmem:[#allocation6 + $0x1d38] sm:$0xff]
    %v1944 = vld [vmem:[#allocation6 + $0x1d40] sm:$0xff]
    %v1945 = vld [vmem:[#allocation6 + $0x1d48] sm:$0xff]
    %v1946 = vld [vmem:[#allocation6 + $0x1d50] sm:$0xff]
    %v1947 = vld [vmem:[#allocation6 + $0x1d58] sm:$0xff]
    %v1948 = vld [vmem:[#allocation6 + $0x1d60] sm:$0xff]
    %v1949 = vld [vmem:[#allocation6 + $0x1d68] sm:$0xff]
    %v1950 = vld [vmem:[#allocation6 + $0x1d70] sm:$0xff]
    %v1951 = vld [vmem:[#allocation6 + $0x1d78] sm:$0xff]
    %v1952 = vld [vmem:[#allocation6 + $0x1d80] sm:$0xff]
    %v1953 = vld [vmem:[#allocation6 + $0x1d88] sm:$0xff]
    %v1954 = vld [vmem:[#allocation6 + $0x1d90] sm:$0xff]
    %v1955 = vld [vmem:[#allocation6 + $0x1d98] sm:$0xff]
    %v1956 = vld [vmem:[#allocation6 + $0x1da0] sm:$0xff]
    %v1957 = vld [vmem:[#allocation6 + $0x1da8] sm:$0xff]
    %v1958 = vld [vmem:[#allocation6 + $0x1db0] sm:$0xff]
    %v1959 = vld [vmem:[#allocation6 + $0x1db8] sm:$0xff]
    %v1960 = vld [vmem:[#allocation6 + $0x1dc0] sm:$0xff]
    %v1961 = vld [vmem:[#allocation6 + $0x1dc8] sm:$0xff]
    %v1962 = vld [vmem:[#allocation6 + $0x1dd0] sm:$0xff]
    %v1963 = vld [vmem:[#allocation6 + $0x1dd8] sm:$0xff]
    %v1964 = vld [vmem:[#allocation6 + $0x1de0] sm:$0xff]
    %v1965 = vld [vmem:[#allocation6 + $0x1de8] sm:$0xff]
    %v1966 = vld [vmem:[#allocation6 + $0x1df0] sm:$0xff]
    %v1967 = vld [vmem:[#allocation6 + $0x1df8] sm:$0xff]
    %v1968 = vld [vmem:[#allocation6 + $0x1e00] sm:$0xff]
    %v1969 = vld [vmem:[#allocation6 + $0x1e08] sm:$0xff]
    %v1970 = vld [vmem:[#allocation6 + $0x1e10] sm:$0xff]
    %v1971 = vld [vmem:[#allocation6 + $0x1e18] sm:$0xff]
    %v1972 = vld [vmem:[#allocation6 + $0x1e20] sm:$0xff]
    %v1973 = vld [vmem:[#allocation6 + $0x1e28] sm:$0xff]
    %v1974 = vld [vmem:[#allocation6 + $0x1e30] sm:$0xff]
    %v1975 = vld [vmem:[#allocation6 + $0x1e38] sm:$0xff]
    %v1976 = vld [vmem:[#allocation6 + $0x1e40] sm:$0xff]
    %v1977 = vld [vmem:[#allocation6 + $0x1e48] sm:$0xff]
    %v1978 = vld [vmem:[#allocation6 + $0x1e50] sm:$0xff]
    %v1979 = vld [vmem:[#allocation6 + $0x1e58] sm:$0xff]
    %v1980 = vld [vmem:[#allocation6 + $0x1e60] sm:$0xff]
    %v1981 = vld [vmem:[#allocation6 + $0x1e68] sm:$0xff]
    %v1982 = vld [vmem:[#allocation6 + $0x1e70] sm:$0xff]
    %v1983 = vld [vmem:[#allocation6 + $0x1e78] sm:$0xff]
    %v1984 = vld [vmem:[#allocation6 + $0x1e80] sm:$0xff]
    %v1985 = vld [vmem:[#allocation6 + $0x1e88] sm:$0xff]
    %v1986 = vld [vmem:[#allocation6 + $0x1e90] sm:$0xff]
    %v1987 = vld [vmem:[#allocation6 + $0x1e98] sm:$0xff]
    %v1988 = vld [vmem:[#allocation6 + $0x1ea0] sm:$0xff]
    %v1989 = vld [vmem:[#allocation6 + $0x1ea8] sm:$0xff]
    %v1990 = vld [vmem:[#allocation6 + $0x1eb0] sm:$0xff]
    %v1991 = vld [vmem:[#allocation6 + $0x1eb8] sm:$0xff]
    %v1992 = vld [vmem:[#allocation6 + $0x1ec0] sm:$0xff]
    %v1993 = vld [vmem:[#allocation6 + $0x1ec8] sm:$0xff]
    %v1994 = vld [vmem:[#allocation6 + $0x1ed0] sm:$0xff]
    %v1995 = vld [vmem:[#allocation6 + $0x1ed8] sm:$0xff]
    %v1996 = vld [vmem:[#allocation6 + $0x1ee0] sm:$0xff]
    %v1997 = vld [vmem:[#allocation6 + $0x1ee8] sm:$0xff]
    %v1998 = vld [vmem:[#allocation6 + $0x1ef0] sm:$0xff]
    %v1999 = vld [vmem:[#allocation6 + $0x1ef8] sm:$0xff]
    %v2000 = vld [vmem:[#allocation6 + $0x1f00] sm:$0xff]
    %v2001 = vld [vmem:[#allocation6 + $0x1f08] sm:$0xff]
    %v2002 = vld [vmem:[#allocation6 + $0x1f10] sm:$0xff]
    %v2003 = vld [vmem:[#allocation6 + $0x1f18] sm:$0xff]
    %v2004 = vld [vmem:[#allocation6 + $0x1f20] sm:$0xff]
    %v2005 = vld [vmem:[#allocation6 + $0x1f28] sm:$0xff]
    %v2006 = vld [vmem:[#allocation6 + $0x1f30] sm:$0xff]
    %v2007 = vld [vmem:[#allocation6 + $0x1f38] sm:$0xff]
    %v2008 = vld [vmem:[#allocation6 + $0x1f40] sm:$0xff]
    %v2009 = vld [vmem:[#allocation6 + $0x1f48] sm:$0xff]
    %v2010 = vld [vmem:[#allocation6 + $0x1f50] sm:$0xff]
    %v2011 = vld [vmem:[#allocation6 + $0x1f58] sm:$0xff]
    %v2012 = vld [vmem:[#allocation6 + $0x1f60] sm:$0xff]
    %v2013 = vld [vmem:[#allocation6 + $0x1f68] sm:$0xff]
    %v2014 = vld [vmem:[#allocation6 + $0x1f70] sm:$0xff]
    %v2015 = vld [vmem:[#allocation6 + $0x1f78] sm:$0xff]
    %v2016 = vld [vmem:[#allocation6 + $0x1f80] sm:$0xff]
    %v2017 = vld [vmem:[#allocation6 + $0x1f88] sm:$0xff]
    %v2018 = vld [vmem:[#allocation6 + $0x1f90] sm:$0xff]
    %v2019 = vld [vmem:[#allocation6 + $0x1f98] sm:$0xff]
    %v2020 = vld [vmem:[#allocation6 + $0x1fa0] sm:$0xff]
    %v2021 = vld [vmem:[#allocation6 + $0x1fa8] sm:$0xff]
    %v2022 = vld [vmem:[#allocation6 + $0x1fb0] sm:$0xff]
    %v2023 = vld [vmem:[#allocation6 + $0x1fb8] sm:$0xff]
    %v2024 = vld [vmem:[#allocation6 + $0x1fc0] sm:$0xff]
    %v2025 = vld [vmem:[#allocation6 + $0x1fc8] sm:$0xff]
    %v2026 = vld [vmem:[#allocation6 + $0x1fd0] sm:$0xff]
    %v2027 = vld [vmem:[#allocation6 + $0x1fd8] sm:$0xff]
    %v2028 = vld [vmem:[#allocation6 + $0x1fe0] sm:$0xff]
    %v2029 = vld [vmem:[#allocation6 + $0x1fe8] sm:$0xff]
    %v2030 = vld [vmem:[#allocation6 + $0x1ff0] sm:$0xff]
    %v2031 = vld [vmem:[#allocation6 + $0x1ff8] sm:$0xff]
    %v2032 = vld [vmem:[#allocation6 + $0x2000] sm:$0xff]
    %v2033 = vld [vmem:[#allocation6 + $0x2008] sm:$0xff]
    %v2034 = vld [vmem:[#allocation6 + $0x2010] sm:$0xff]
    %v2035 = vld [vmem:[#allocation6 + $0x2018] sm:$0xff]
    %v2036 = vld [vmem:[#allocation6 + $0x2020] sm:$0xff]
    %v2037 = vld [vmem:[#allocation6 + $0x2028] sm:$0xff]
    %v2038 = vld [vmem:[#allocation6 + $0x2030] sm:$0xff]
    %v2039 = vld [vmem:[#allocation6 + $0x2038] sm:$0xff]
    %v2040 = vld [vmem:[#allocation6 + $0x2040] sm:$0xff]
    %v2041 = vld [vmem:[#allocation6 + $0x2048] sm:$0xff]
    %v2042 = vld [vmem:[#allocation6 + $0x2050] sm:$0xff]
    %v2043 = vld [vmem:[#allocation6 + $0x2058] sm:$0xff]
    %v2044 = vld [vmem:[#allocation6 + $0x2060] sm:$0xff]
    %v2045 = vld [vmem:[#allocation6 + $0x2068] sm:$0xff]
    %v2046 = vld [vmem:[#allocation6 + $0x2070] sm:$0xff]
    %v2047 = vld [vmem:[#allocation6 + $0x2078] sm:$0xff]
    %v2048 = vld [vmem:[#allocation6 + $0x2080] sm:$0xff]
    %v2049 = vld [vmem:[#allocation6 + $0x2088] sm:$0xff]
    %v2050 = vld [vmem:[#allocation6 + $0x2090] sm:$0xff]
    %v2051 = vld [vmem:[#allocation6 + $0x2098] sm:$0xff]
    %v2052 = vld [vmem:[#allocation6 + $0x20a0] sm:$0xff]
    %v2053 = vld [vmem:[#allocation6 + $0x20a8] sm:$0xff]
    %v2054 = vld [vmem:[#allocation6 + $0x20b0] sm:$0xff]
    %v2055 = vld [vmem:[#allocation6 + $0x20b8] sm:$0xff]
    %v2056 = vld [vmem:[#allocation6 + $0x20c0] sm:$0xff]
    %v2057 = vld [vmem:[#allocation6 + $0x20c8] sm:$0xff]
    %v2058 = vld [vmem:[#allocation6 + $0x20d0] sm:$0xff]
    %v2059 = vld [vmem:[#allocation6 + $0x20d8] sm:$0xff]
    %v2060 = vld [vmem:[#allocation6 + $0x20e0] sm:$0xff]
    %v2061 = vld [vmem:[#allocation6 + $0x20e8] sm:$0xff]
    %v2062 = vld [vmem:[#allocation6 + $0x20f0] sm:$0xff]
    %v2063 = vld [vmem:[#allocation6 + $0x20f8] sm:$0xff]
    %v2064 = vld [vmem:[#allocation6 + $0x2100] sm:$0xff]
    %v2065 = vld [vmem:[#allocation6 + $0x2108] sm:$0xff]
    %v2066 = vld [vmem:[#allocation6 + $0x2110] sm:$0xff]
    %v2067 = vld [vmem:[#allocation6 + $0x2118] sm:$0xff]
    %v2068 = vld [vmem:[#allocation6 + $0x2120] sm:$0xff]
    %v2069 = vld [vmem:[#allocation6 + $0x2128] sm:$0xff]
    %v2070 = vld [vmem:[#allocation6 + $0x2130] sm:$0xff]
    %v2071 = vld [vmem:[#allocation6 + $0x2138] sm:$0xff]
    %v2072 = vld [vmem:[#allocation6 + $0x2140] sm:$0xff]
    %v2073 = vld [vmem:[#allocation6 + $0x2148] sm:$0xff]
    %v2074 = vld [vmem:[#allocation6 + $0x2150] sm:$0xff]
    %v2075 = vld [vmem:[#allocation6 + $0x2158] sm:$0xff]
    %v2076 = vld [vmem:[#allocation6 + $0x2160] sm:$0xff]
    %v2077 = vld [vmem:[#allocation6 + $0x2168] sm:$0xff]
    %v2078 = vld [vmem:[#allocation6 + $0x2170] sm:$0xff]
    %v2079 = vld [vmem:[#allocation6 + $0x2178] sm:$0xff]
    %v2080 = vld [vmem:[#allocation6 + $0x2180] sm:$0xff]
    %v2081 = vld [vmem:[#allocation6 + $0x2188] sm:$0xff]
    %v2082 = vld [vmem:[#allocation6 + $0x2190] sm:$0xff]
    %v2083 = vld [vmem:[#allocation6 + $0x2198] sm:$0xff]
    %v2084 = vld [vmem:[#allocation6 + $0x21a0] sm:$0xff]
    %v2085 = vld [vmem:[#allocation6 + $0x21a8] sm:$0xff]
    %v2086 = vld [vmem:[#allocation6 + $0x21b0] sm:$0xff]
    %v2087 = vld [vmem:[#allocation6 + $0x21b8] sm:$0xff]
    %v2088 = vld [vmem:[#allocation6 + $0x21c0] sm:$0xff]
    %v2089 = vld [vmem:[#allocation6 + $0x21c8] sm:$0xff]
    %v2090 = vld [vmem:[#allocation6 + $0x21d0] sm:$0xff]
    %v2091 = vld [vmem:[#allocation6 + $0x21d8] sm:$0xff]
    %v2092 = vld [vmem:[#allocation6 + $0x21e0] sm:$0xff]
    %v2093 = vld [vmem:[#allocation6 + $0x21e8] sm:$0xff]
    %v2094 = vld [vmem:[#allocation6 + $0x21f0] sm:$0xff]
    %v2095 = vld [vmem:[#allocation6 + $0x21f8] sm:$0xff]
    %v2096 = vld [vmem:[#allocation6 + $0x2200] sm:$0xff]
    %v2097 = vld [vmem:[#allocation6 + $0x2208] sm:$0xff]
    %v2098 = vld [vmem:[#allocation6 + $0x2210] sm:$0xff]
    %v2099 = vld [vmem:[#allocation6 + $0x2218] sm:$0xff]
    %v2100 = vld [vmem:[#allocation6 + $0x2220] sm:$0xff]
    %v2101 = vld [vmem:[#allocation6 + $0x2228] sm:$0xff]
    %v2102 = vld [vmem:[#allocation6 + $0x2230] sm:$0xff]
    %v2103 = vld [vmem:[#allocation6 + $0x2238] sm:$0xff]
    %v2104 = vld [vmem:[#allocation6 + $0x2240] sm:$0xff]
    %v2105 = vld [vmem:[#allocation6 + $0x2248] sm:$0xff]
    %v2106 = vld [vmem:[#allocation6 + $0x2250] sm:$0xff]
    %v2107 = vld [vmem:[#allocation6 + $0x2258] sm:$0xff]
    %v2108 = vld [vmem:[#allocation6 + $0x2260] sm:$0xff]
    %v2109 = vld [vmem:[#allocation6 + $0x2268] sm:$0xff]
    %v2110 = vld [vmem:[#allocation6 + $0x2270] sm:$0xff]
    %v2111 = vld [vmem:[#allocation6 + $0x2278] sm:$0xff]
    %v2112 = vld [vmem:[#allocation6 + $0x2280] sm:$0xff]
    %v2113 = vld [vmem:[#allocation6 + $0x2288] sm:$0xff]
    %v2114 = vld [vmem:[#allocation6 + $0x2290] sm:$0xff]
    %v2115 = vld [vmem:[#allocation6 + $0x2298] sm:$0xff]
    %v2116 = vld [vmem:[#allocation6 + $0x22a0] sm:$0xff]
    %v2117 = vld [vmem:[#allocation6 + $0x22a8] sm:$0xff]
    %v2118 = vld [vmem:[#allocation6 + $0x22b0] sm:$0xff]
    %v2119 = vld [vmem:[#allocation6 + $0x22b8] sm:$0xff]
    %v2120 = vld [vmem:[#allocation6 + $0x22c0] sm:$0xff]
    %v2121 = vld [vmem:[#allocation6 + $0x22c8] sm:$0xff]
    %v2122 = vld [vmem:[#allocation6 + $0x22d0] sm:$0xff]
    %v2123 = vld [vmem:[#allocation6 + $0x22d8] sm:$0xff]
    %v2124 = vld [vmem:[#allocation6 + $0x22e0] sm:$0xff]
    %v2125 = vld [vmem:[#allocation6 + $0x22e8] sm:$0xff]
    %v2126 = vld [vmem:[#allocation6 + $0x22f0] sm:$0xff]
    %v2127 = vld [vmem:[#allocation6 + $0x22f8] sm:$0xff]
    %v2128 = vld [vmem:[#allocation6 + $0x2300] sm:$0xff]
    %v2129 = vld [vmem:[#allocation6 + $0x2308] sm:$0xff]
    %v2130 = vld [vmem:[#allocation6 + $0x2310] sm:$0xff]
    %v2131 = vld [vmem:[#allocation6 + $0x2318] sm:$0xff]
    %v2132 = vld [vmem:[#allocation6 + $0x2320] sm:$0xff]
    %v2133 = vld [vmem:[#allocation6 + $0x2328] sm:$0xff]
    %v2134 = vld [vmem:[#allocation6 + $0x2330] sm:$0xff]
    %v2135 = vld [vmem:[#allocation6 + $0x2338] sm:$0xff]
    %v2136 = vld [vmem:[#allocation6 + $0x2340] sm:$0xff]
    %v2137 = vld [vmem:[#allocation6 + $0x2348] sm:$0xff]
    %v2138 = vld [vmem:[#allocation6 + $0x2350] sm:$0xff]
    %v2139 = vld [vmem:[#allocation6 + $0x2358] sm:$0xff]
    %v2140 = vld [vmem:[#allocation6 + $0x2360] sm:$0xff]
    %v2141 = vld [vmem:[#allocation6 + $0x2368] sm:$0xff]
    %v2142 = vld [vmem:[#allocation6 + $0x2370] sm:$0xff]
    %v2143 = vld [vmem:[#allocation6 + $0x2378] sm:$0xff]
    %v2144 = vld [vmem:[#allocation6 + $0x2380] sm:$0xff]
    %v2145 = vld [vmem:[#allocation6 + $0x2388] sm:$0xff]
    %v2146 = vld [vmem:[#allocation6 + $0x2390] sm:$0xff]
    %v2147 = vld [vmem:[#allocation6 + $0x2398] sm:$0xff]
    %v2148 = vld [vmem:[#allocation6 + $0x23a0] sm:$0xff]
    %v2149 = vld [vmem:[#allocation6 + $0x23a8] sm:$0xff]
    %v2150 = vld [vmem:[#allocation6 + $0x23b0] sm:$0xff]
    %v2151 = vld [vmem:[#allocation6 + $0x23b8] sm:$0xff]
    %v2152 = vld [vmem:[#allocation6 + $0x23c0] sm:$0xff]
    %v2153 = vld [vmem:[#allocation6 + $0x23c8] sm:$0xff]
    %v2154 = vld [vmem:[#allocation6 + $0x23d0] sm:$0xff]
    %v2155 = vld [vmem:[#allocation6 + $0x23d8] sm:$0xff]
    %v2156 = vld [vmem:[#allocation6 + $0x23e0] sm:$0xff]
    %v2157 = vld [vmem:[#allocation6 + $0x23e8] sm:$0xff]
    %v2158 = vld [vmem:[#allocation6 + $0x23f0] sm:$0xff]
    %v2159 = vld [vmem:[#allocation6 + $0x23f8] sm:$0xff]
    %v2160 = vld [vmem:[#allocation6 + $0x2400] sm:$0xff]
    %v2161 = vld [vmem:[#allocation6 + $0x2408] sm:$0xff]
    %v2162 = vld [vmem:[#allocation6 + $0x2410] sm:$0xff]
    %v2163 = vld [vmem:[#allocation6 + $0x2418] sm:$0xff]
    %v2164 = vld [vmem:[#allocation6 + $0x2420] sm:$0xff]
    %v2165 = vld [vmem:[#allocation6 + $0x2428] sm:$0xff]
    %v2166 = vld [vmem:[#allocation6 + $0x2430] sm:$0xff]
    %v2167 = vld [vmem:[#allocation6 + $0x2438] sm:$0xff]
    %v2168 = vld [vmem:[#allocation6 + $0x2440] sm:$0xff]
    %v2169 = vld [vmem:[#allocation6 + $0x2448] sm:$0xff]
    %v2170 = vld [vmem:[#allocation6 + $0x2450] sm:$0xff]
    %v2171 = vld [vmem:[#allocation6 + $0x2458] sm:$0xff]
    %v2172 = vld [vmem:[#allocation6 + $0x2460] sm:$0xff]
    %v2173 = vld [vmem:[#allocation6 + $0x2468] sm:$0xff]
    %v2174 = vld [vmem:[#allocation6 + $0x2470] sm:$0xff]
    %v2175 = vld [vmem:[#allocation6 + $0x2478] sm:$0xff]
    %v2176 = vld [vmem:[#allocation6 + $0x2480] sm:$0xff]
    %v2177 = vld [vmem:[#allocation6 + $0x2488] sm:$0xff]
    %v2178 = vld [vmem:[#allocation6 + $0x2490] sm:$0xff]
    %v2179 = vld [vmem:[#allocation6 + $0x2498] sm:$0xff]
    %v2180 = vld [vmem:[#allocation6 + $0x24a0] sm:$0xff]
    %v2181 = vld [vmem:[#allocation6 + $0x24a8] sm:$0xff]
    %v2182 = vld [vmem:[#allocation6 + $0x24b0] sm:$0xff]
    %v2183 = vld [vmem:[#allocation6 + $0x24b8] sm:$0xff]
    %v2184 = vld [vmem:[#allocation6 + $0x24c0] sm:$0xff]
    %v2185 = vld [vmem:[#allocation6 + $0x24c8] sm:$0xff]
    %v2186 = vld [vmem:[#allocation6 + $0x24d0] sm:$0xff]
    %v2187 = vld [vmem:[#allocation6 + $0x24d8] sm:$0xff]
    %v2188 = vld [vmem:[#allocation6 + $0x24e0] sm:$0xff]
    %v2189 = vld [vmem:[#allocation6 + $0x24e8] sm:$0xff]
    %v2190 = vld [vmem:[#allocation6 + $0x24f0] sm:$0xff]
    %v2191 = vld [vmem:[#allocation6 + $0x24f8] sm:$0xff]
    %v2192 = vld [vmem:[#allocation6 + $0x2500] sm:$0xff]
    %v2193 = vld [vmem:[#allocation6 + $0x2508] sm:$0xff]
    %v2194 = vld [vmem:[#allocation6 + $0x2510] sm:$0xff]
    %v2195 = vld [vmem:[#allocation6 + $0x2518] sm:$0xff]
    %v2196 = vld [vmem:[#allocation6 + $0x2520] sm:$0xff]
    %v2197 = vld [vmem:[#allocation6 + $0x2528] sm:$0xff]
    %v2198 = vld [vmem:[#allocation6 + $0x2530] sm:$0xff]
    %v2199 = vld [vmem:[#allocation6 + $0x2538] sm:$0xff]
    %v2200 = vld [vmem:[#allocation6 + $0x2540] sm:$0xff]
    %v2201 = vld [vmem:[#allocation6 + $0x2548] sm:$0xff]
    %v2202 = vld [vmem:[#allocation6 + $0x2550] sm:$0xff]
    %v2203 = vld [vmem:[#allocation6 + $0x2558] sm:$0xff]
    %v2204 = vld [vmem:[#allocation6 + $0x2560] sm:$0xff]
    %v2205 = vld [vmem:[#allocation6 + $0x2568] sm:$0xff]
    %v2206 = vld [vmem:[#allocation6 + $0x2570] sm:$0xff]
    %v2207 = vld [vmem:[#allocation6 + $0x2578] sm:$0xff]
    %v2208 = vld [vmem:[#allocation6 + $0x2580] sm:$0xff]
    %v2209 = vld [vmem:[#allocation6 + $0x2588] sm:$0xff]
    %v2210 = vld [vmem:[#allocation6 + $0x2590] sm:$0xff]
    %v2211 = vld [vmem:[#allocation6 + $0x2598] sm:$0xff]
    %v2212 = vld [vmem:[#allocation6 + $0x25a0] sm:$0xff]
    %v2213 = vld [vmem:[#allocation6 + $0x25a8] sm:$0xff]
    %v2214 = vld [vmem:[#allocation6 + $0x25b0] sm:$0xff]
    %v2215 = vld [vmem:[#allocation6 + $0x25b8] sm:$0xff]
    %v2216 = vld [vmem:[#allocation6 + $0x25c0] sm:$0xff]
    %v2217 = vld [vmem:[#allocation6 + $0x25c8] sm:$0xff]
    %v2218 = vld [vmem:[#allocation6 + $0x25d0] sm:$0xff]
    %v2219 = vld [vmem:[#allocation6 + $0x25d8] sm:$0xff]
    %v2220 = vld [vmem:[#allocation6 + $0x25e0] sm:$0xff]
    %v2221 = vld [vmem:[#allocation6 + $0x25e8] sm:$0xff]
    %v2222 = vld [vmem:[#allocation6 + $0x25f0] sm:$0xff]
    %v2223 = vld [vmem:[#allocation6 + $0x25f8] sm:$0xff]
    %v2224 = vld [vmem:[#allocation6 + $0x2600] sm:$0xff]
    %v2225 = vld [vmem:[#allocation6 + $0x2608] sm:$0xff]
    %v2226 = vld [vmem:[#allocation6 + $0x2610] sm:$0xff]
    %v2227 = vld [vmem:[#allocation6 + $0x2618] sm:$0xff]
    %v2228 = vld [vmem:[#allocation6 + $0x2620] sm:$0xff]
    %v2229 = vld [vmem:[#allocation6 + $0x2628] sm:$0xff]
    %v2230 = vld [vmem:[#allocation6 + $0x2630] sm:$0xff]
    %v2231 = vld [vmem:[#allocation6 + $0x2638] sm:$0xff]
    %v2232 = vld [vmem:[#allocation6 + $0x2640] sm:$0xff]
    %v2233 = vld [vmem:[#allocation6 + $0x2648] sm:$0xff]
    %v2234 = vld [vmem:[#allocation6 + $0x2650] sm:$0xff]
    %v2235 = vld [vmem:[#allocation6 + $0x2658] sm:$0xff]
    %v2236 = vld [vmem:[#allocation6 + $0x2660] sm:$0xff]
    %v2237 = vld [vmem:[#allocation6 + $0x2668] sm:$0xff]
    %v2238 = vld [vmem:[#allocation6 + $0x2670] sm:$0xff]
    %v2239 = vld [vmem:[#allocation6 + $0x2678] sm:$0xff]
    %v2240 = vld [vmem:[#allocation6 + $0x2680] sm:$0xff]
    %v2241 = vld [vmem:[#allocation6 + $0x2688] sm:$0xff]
    %v2242 = vld [vmem:[#allocation6 + $0x2690] sm:$0xff]
    %v2243 = vld [vmem:[#allocation6 + $0x2698] sm:$0xff]
    %v2244 = vld [vmem:[#allocation6 + $0x26a0] sm:$0xff]
    %v2245 = vld [vmem:[#allocation6 + $0x26a8] sm:$0xff]
    %v2246 = vld [vmem:[#allocation6 + $0x26b0] sm:$0xff]
    %v2247 = vld [vmem:[#allocation6 + $0x26b8] sm:$0xff]
    %v2248 = vld [vmem:[#allocation6 + $0x26c0] sm:$0xff]
    %v2249 = vld [vmem:[#allocation6 + $0x26c8] sm:$0xff]
    %v2250 = vld [vmem:[#allocation6 + $0x26d0] sm:$0xff]
    %v2251 = vld [vmem:[#allocation6 + $0x26d8] sm:$0xff]
    %v2252 = vld [vmem:[#allocation6 + $0x26e0] sm:$0xff]
    %v2253 = vld [vmem:[#allocation6 + $0x26e8] sm:$0xff]
    %v2254 = vld [vmem:[#allocation6 + $0x26f0] sm:$0xff]
    %v2255 = vld [vmem:[#allocation6 + $0x26f8] sm:$0xff]
    %v2256 = vld [vmem:[#allocation6 + $0x2700] sm:$0xff]
    %v2257 = vld [vmem:[#allocation6 + $0x2708] sm:$0xff]
    %v2258 = vld [vmem:[#allocation6 + $0x2710] sm:$0xff]
    %v2259 = vld [vmem:[#allocation6 + $0x2718] sm:$0xff]
    %v2260 = vld [vmem:[#allocation6 + $0x2720] sm:$0xff]
    %v2261 = vld [vmem:[#allocation6 + $0x2728] sm:$0xff]
    %v2262 = vld [vmem:[#allocation6 + $0x2730] sm:$0xff]
    %v2263 = vld [vmem:[#allocation6 + $0x2738] sm:$0xff]
    %v2264 = vld [vmem:[#allocation6 + $0x2740] sm:$0xff]
    %v2265 = vld [vmem:[#allocation6 + $0x2748] sm:$0xff]
    %v2266 = vld [vmem:[#allocation6 + $0x2750] sm:$0xff]
    %v2267 = vld [vmem:[#allocation6 + $0x2758] sm:$0xff]
    %v2268 = vld [vmem:[#allocation6 + $0x2760] sm:$0xff]
    %v2269 = vld [vmem:[#allocation6 + $0x2768] sm:$0xff]
    %v2270 = vld [vmem:[#allocation6 + $0x2770] sm:$0xff]
    %v2271 = vld [vmem:[#allocation6 + $0x2778] sm:$0xff]
    %v2272 = vld [vmem:[#allocation6 + $0x2780] sm:$0xff]
    %v2273 = vld [vmem:[#allocation6 + $0x2788] sm:$0xff]
    %v2274 = vld [vmem:[#allocation6 + $0x2790] sm:$0xff]
    %v2275 = vld [vmem:[#allocation6 + $0x2798] sm:$0xff]
    %v2276 = vld [vmem:[#allocation6 + $0x27a0] sm:$0xff]
    %v2277 = vld [vmem:[#allocation6 + $0x27a8] sm:$0xff]
    %v2278 = vld [vmem:[#allocation6 + $0x27b0] sm:$0xff]
    %v2279 = vld [vmem:[#allocation6 + $0x27b8] sm:$0xff]
    %v2280 = vld [vmem:[#allocation6 + $0x27c0] sm:$0xff]
    %v2281 = vld [vmem:[#allocation6 + $0x27c8] sm:$0xff]
    %v2282 = vld [vmem:[#allocation6 + $0x27d0] sm:$0xff]
    %v2283 = vld [vmem:[#allocation6 + $0x27d8] sm:$0xff]
    %v2284 = vld [vmem:[#allocation6 + $0x27e0] sm:$0xff]
    %v2285 = vld [vmem:[#allocation6 + $0x27e8] sm:$0xff]
    %v2286 = vld [vmem:[#allocation6 + $0x27f0] sm:$0xff]
    %v2287 = vld [vmem:[#allocation6 + $0x27f8] sm:$0xff]
    %v2288 = vld [vmem:[#allocation6 + $0x2800] sm:$0xff]
    %v2289 = vld [vmem:[#allocation6 + $0x2808] sm:$0xff]
    %v2290 = vld [vmem:[#allocation6 + $0x2810] sm:$0xff]
    %v2291 = vld [vmem:[#allocation6 + $0x2818] sm:$0xff]
    %v2292 = vld [vmem:[#allocation6 + $0x2820] sm:$0xff]
    %v2293 = vld [vmem:[#allocation6 + $0x2828] sm:$0xff]
    %v2294 = vld [vmem:[#allocation6 + $0x2830] sm:$0xff]
    %v2295 = vld [vmem:[#allocation6 + $0x2838] sm:$0xff]
    %v2296 = vld [vmem:[#allocation6 + $0x2840] sm:$0xff]
    %v2297 = vld [vmem:[#allocation6 + $0x2848] sm:$0xff]
    %v2298 = vld [vmem:[#allocation6 + $0x2850] sm:$0xff]
    %v2299 = vld [vmem:[#allocation6 + $0x2858] sm:$0xff]
    %v2300 = vld [vmem:[#allocation6 + $0x2860] sm:$0xff]
    %v2301 = vld [vmem:[#allocation6 + $0x2868] sm:$0xff]
    %v2302 = vld [vmem:[#allocation6 + $0x2870] sm:$0xff]
    %v2303 = vld [vmem:[#allocation6 + $0x2878] sm:$0xff]
    %v2304 = vld [vmem:[#allocation6 + $0x2880] sm:$0xff]
    %v2305 = vld [vmem:[#allocation6 + $0x2888] sm:$0xff]
    %v2306 = vld [vmem:[#allocation6 + $0x2890] sm:$0xff]
    %v2307 = vld [vmem:[#allocation6 + $0x2898] sm:$0xff]
    %v2308 = vld [vmem:[#allocation6 + $0x28a0] sm:$0xff]
    %v2309 = vld [vmem:[#allocation6 + $0x28a8] sm:$0xff]
    %v2310 = vld [vmem:[#allocation6 + $0x28b0] sm:$0xff]
    %v2311 = vld [vmem:[#allocation6 + $0x28b8] sm:$0xff]
    %v2312 = vld [vmem:[#allocation6 + $0x28c0] sm:$0xff]
    %v2313 = vld [vmem:[#allocation6 + $0x28c8] sm:$0xff]
    %v2314 = vld [vmem:[#allocation6 + $0x28d0] sm:$0xff]
    %v2315 = vld [vmem:[#allocation6 + $0x28d8] sm:$0xff]
    %v2316 = vld [vmem:[#allocation6 + $0x28e0] sm:$0xff]
    %v2317 = vld [vmem:[#allocation6 + $0x28e8] sm:$0xff]
    %v2318 = vld [vmem:[#allocation6 + $0x28f0] sm:$0xff]
    %v2319 = vld [vmem:[#allocation6 + $0x28f8] sm:$0xff]
    %v2320 = vld [vmem:[#allocation6 + $0x2900] sm:$0xff]
    %v2321 = vld [vmem:[#allocation6 + $0x2908] sm:$0xff]
    %v2322 = vld [vmem:[#allocation6 + $0x2910] sm:$0xff]
    %v2323 = vld [vmem:[#allocation6 + $0x2918] sm:$0xff]
    %v2324 = vld [vmem:[#allocation6 + $0x2920] sm:$0xff]
    %v2325 = vld [vmem:[#allocation6 + $0x2928] sm:$0xff]
    %v2326 = vld [vmem:[#allocation6 + $0x2930] sm:$0xff]
    %v2327 = vld [vmem:[#allocation6 + $0x2938] sm:$0xff]
    %v2328 = vld [vmem:[#allocation6 + $0x2940] sm:$0xff]
    %v2329 = vld [vmem:[#allocation6 + $0x2948] sm:$0xff]
    %v2330 = vld [vmem:[#allocation6 + $0x2950] sm:$0xff]
    %v2331 = vld [vmem:[#allocation6 + $0x2958] sm:$0xff]
    %v2332 = vld [vmem:[#allocation6 + $0x2960] sm:$0xff]
    %v2333 = vld [vmem:[#allocation6 + $0x2968] sm:$0xff]
    %v2334 = vld [vmem:[#allocation6 + $0x2970] sm:$0xff]
    %v2335 = vld [vmem:[#allocation6 + $0x2978] sm:$0xff]
    %v2336 = vld [vmem:[#allocation6 + $0x2980] sm:$0xff]
    %v2337 = vld [vmem:[#allocation6 + $0x2988] sm:$0xff]
    %v2338 = vld [vmem:[#allocation6 + $0x2990] sm:$0xff]
    %v2339 = vld [vmem:[#allocation6 + $0x2998] sm:$0xff]
    %v2340 = vld [vmem:[#allocation6 + $0x29a0] sm:$0xff]
    %v2341 = vld [vmem:[#allocation6 + $0x29a8] sm:$0xff]
    %v2342 = vld [vmem:[#allocation6 + $0x29b0] sm:$0xff]
    %v2343 = vld [vmem:[#allocation6 + $0x29b8] sm:$0xff]
    %v2344 = vld [vmem:[#allocation6 + $0x29c0] sm:$0xff]
    %v2345 = vld [vmem:[#allocation6 + $0x29c8] sm:$0xff]
    %v2346 = vld [vmem:[#allocation6 + $0x29d0] sm:$0xff]
    %v2347 = vld [vmem:[#allocation6 + $0x29d8] sm:$0xff]
    %v2348 = vld [vmem:[#allocation6 + $0x29e0] sm:$0xff]
    %v2349 = vld [vmem:[#allocation6 + $0x29e8] sm:$0xff]
    %v2350 = vld [vmem:[#allocation6 + $0x29f0] sm:$0xff]
    %v2351 = vld [vmem:[#allocation6 + $0x29f8] sm:$0xff]
    %v2352 = vld [vmem:[#allocation6 + $0x2a00] sm:$0xff]
    %v2353 = vld [vmem:[#allocation6 + $0x2a08] sm:$0xff]
    %v2354 = vld [vmem:[#allocation6 + $0x2a10] sm:$0xff]
    %v2355 = vld [vmem:[#allocation6 + $0x2a18] sm:$0xff]
    %v2356 = vld [vmem:[#allocation6 + $0x2a20] sm:$0xff]
    %v2357 = vld [vmem:[#allocation6 + $0x2a28] sm:$0xff]
    %v2358 = vld [vmem:[#allocation6 + $0x2a30] sm:$0xff]
    %v2359 = vld [vmem:[#allocation6 + $0x2a38] sm:$0xff]
    %v2360 = vld [vmem:[#allocation6 + $0x2a40] sm:$0xff]
    %v2361 = vld [vmem:[#allocation6 + $0x2a48] sm:$0xff]
    %v2362 = vld [vmem:[#allocation6 + $0x2a50] sm:$0xff]
    %v2363 = vld [vmem:[#allocation6 + $0x2a58] sm:$0xff]
    %v2364 = vld [vmem:[#allocation6 + $0x2a60] sm:$0xff]
    %v2365 = vld [vmem:[#allocation6 + $0x2a68] sm:$0xff]
    %v2366 = vld [vmem:[#allocation6 + $0x2a70] sm:$0xff]
    %v2367 = vld [vmem:[#allocation6 + $0x2a78] sm:$0xff]
    %v2368 = vld [vmem:[#allocation6 + $0x2a80] sm:$0xff]
    %v2369 = vld [vmem:[#allocation6 + $0x2a88] sm:$0xff]
    %v2370 = vld [vmem:[#allocation6 + $0x2a90] sm:$0xff]
    %v2371 = vld [vmem:[#allocation6 + $0x2a98] sm:$0xff]
    %v2372 = vld [vmem:[#allocation6 + $0x2aa0] sm:$0xff]
    %v2373 = vld [vmem:[#allocation6 + $0x2aa8] sm:$0xff]
    %v2374 = vld [vmem:[#allocation6 + $0x2ab0] sm:$0xff]
    %v2375 = vld [vmem:[#allocation6 + $0x2ab8] sm:$0xff]
    %v2376 = vld [vmem:[#allocation6 + $0x2ac0] sm:$0xff]
    %v2377 = vld [vmem:[#allocation6 + $0x2ac8] sm:$0xff]
    %v2378 = vld [vmem:[#allocation6 + $0x2ad0] sm:$0xff]
    %v2379 = vld [vmem:[#allocation6 + $0x2ad8] sm:$0xff]
    %v2380 = vld [vmem:[#allocation6 + $0x2ae0] sm:$0xff]
    %v2381 = vld [vmem:[#allocation6 + $0x2ae8] sm:$0xff]
    %v2382 = vld [vmem:[#allocation6 + $0x2af0] sm:$0xff]
    %v2383 = vld [vmem:[#allocation6 + $0x2af8] sm:$0xff]
    %v2384 = vld [vmem:[#allocation6 + $0x2b00] sm:$0xff]
    %v2385 = vld [vmem:[#allocation6 + $0x2b08] sm:$0xff]
    %v2386 = vld [vmem:[#allocation6 + $0x2b10] sm:$0xff]
    %v2387 = vld [vmem:[#allocation6 + $0x2b18] sm:$0xff]
    %v2388 = vld [vmem:[#allocation6 + $0x2b20] sm:$0xff]
    %v2389 = vld [vmem:[#allocation6 + $0x2b28] sm:$0xff]
    %v2390 = vld [vmem:[#allocation6 + $0x2b30] sm:$0xff]
    %v2391 = vld [vmem:[#allocation6 + $0x2b38] sm:$0xff]
    %v2392 = vld [vmem:[#allocation6 + $0x2b40] sm:$0xff]
    %v2393 = vld [vmem:[#allocation6 + $0x2b48] sm:$0xff]
    %v2394 = vld [vmem:[#allocation6 + $0x2b50] sm:$0xff]
    %v2395 = vld [vmem:[#allocation6 + $0x2b58] sm:$0xff]
    %v2396 = vld [vmem:[#allocation6 + $0x2b60] sm:$0xff]
    %v2397 = vld [vmem:[#allocation6 + $0x2b68] sm:$0xff]
    %v2398 = vld [vmem:[#allocation6 + $0x2b70] sm:$0xff]
    %v2399 = vld [vmem:[#allocation6 + $0x2b78] sm:$0xff]
    %v2400 = vld [vmem:[#allocation6 + $0x2b80] sm:$0xff]
    %v2401 = vld [vmem:[#allocation6 + $0x2b88] sm:$0xff]
    %v2402 = vld [vmem:[#allocation6 + $0x2b90] sm:$0xff]
    %v2403 = vld [vmem:[#allocation6 + $0x2b98] sm:$0xff]
    %v2404 = vld [vmem:[#allocation6 + $0x2ba0] sm:$0xff]
    %v2405 = vld [vmem:[#allocation6 + $0x2ba8] sm:$0xff]
    %v2406 = vld [vmem:[#allocation6 + $0x2bb0] sm:$0xff]
    %v2407 = vld [vmem:[#allocation6 + $0x2bb8] sm:$0xff]
    %v2408 = vld [vmem:[#allocation6 + $0x2bc0] sm:$0xff]
    %v2409 = vld [vmem:[#allocation6 + $0x2bc8] sm:$0xff]
    %v2410 = vld [vmem:[#allocation6 + $0x2bd0] sm:$0xff]
    %v2411 = vld [vmem:[#allocation6 + $0x2bd8] sm:$0xff]
    %v2412 = vld [vmem:[#allocation6 + $0x2be0] sm:$0xff]
    %v2413 = vld [vmem:[#allocation6 + $0x2be8] sm:$0xff]
    %v2414 = vld [vmem:[#allocation6 + $0x2bf0] sm:$0xff]
    %v2415 = vld [vmem:[#allocation6 + $0x2bf8] sm:$0xff]
    %v2416 = vld [vmem:[#allocation6 + $0x2c00] sm:$0xff]
    %v2417 = vld [vmem:[#allocation6 + $0x2c08] sm:$0xff]
    %v2418 = vld [vmem:[#allocation6 + $0x2c10] sm:$0xff]
    %v2419 = vld [vmem:[#allocation6 + $0x2c18] sm:$0xff]
    %v2420 = vld [vmem:[#allocation6 + $0x2c20] sm:$0xff]
    %v2421 = vld [vmem:[#allocation6 + $0x2c28] sm:$0xff]
    %v2422 = vld [vmem:[#allocation6 + $0x2c30] sm:$0xff]
    %v2423 = vld [vmem:[#allocation6 + $0x2c38] sm:$0xff]
    %v2424 = vld [vmem:[#allocation6 + $0x2c40] sm:$0xff]
    %v2425 = vld [vmem:[#allocation6 + $0x2c48] sm:$0xff]
    %v2426 = vld [vmem:[#allocation6 + $0x2c50] sm:$0xff]
    %v2427 = vld [vmem:[#allocation6 + $0x2c58] sm:$0xff]
    %v2428 = vld [vmem:[#allocation6 + $0x2c60] sm:$0xff]
    %v2429 = vld [vmem:[#allocation6 + $0x2c68] sm:$0xff]
    %v2430 = vld [vmem:[#allocation6 + $0x2c70] sm:$0xff]
    %v2431 = vld [vmem:[#allocation6 + $0x2c78] sm:$0xff]
    %v2432 = vld [vmem:[#allocation6 + $0x2c80] sm:$0xff]
    %v2433 = vld [vmem:[#allocation6 + $0x2c88] sm:$0xff]
    %v2434 = vld [vmem:[#allocation6 + $0x2c90] sm:$0xff]
    %v2435 = vld [vmem:[#allocation6 + $0x2c98] sm:$0xff]
    %v2436 = vld [vmem:[#allocation6 + $0x2ca0] sm:$0xff]
    %v2437 = vld [vmem:[#allocation6 + $0x2ca8] sm:$0xff]
    %v2438 = vld [vmem:[#allocation6 + $0x2cb0] sm:$0xff]
    %v2439 = vld [vmem:[#allocation6 + $0x2cb8] sm:$0xff]
    %v2440 = vld [vmem:[#allocation6 + $0x2cc0] sm:$0xff]
    %v2441 = vld [vmem:[#allocation6 + $0x2cc8] sm:$0xff]
    %v2442 = vld [vmem:[#allocation6 + $0x2cd0] sm:$0xff]
    %v2443 = vld [vmem:[#allocation6 + $0x2cd8] sm:$0xff]
    %v2444 = vld [vmem:[#allocation6 + $0x2ce0] sm:$0xff]
    %v2445 = vld [vmem:[#allocation6 + $0x2ce8] sm:$0xff]
    %v2446 = vld [vmem:[#allocation6 + $0x2cf0] sm:$0xff]
    %v2447 = vld [vmem:[#allocation6 + $0x2cf8] sm:$0xff]
    %v2448 = vld [vmem:[#allocation6 + $0x2d00] sm:$0xff]
    %v2449 = vld [vmem:[#allocation6 + $0x2d08] sm:$0xff]
    %v2450 = vld [vmem:[#allocation6 + $0x2d10] sm:$0xff]
    %v2451 = vld [vmem:[#allocation6 + $0x2d18] sm:$0xff]
    %v2452 = vld [vmem:[#allocation6 + $0x2d20] sm:$0xff]
    %v2453 = vld [vmem:[#allocation6 + $0x2d28] sm:$0xff]
    %v2454 = vld [vmem:[#allocation6 + $0x2d30] sm:$0xff]
    %v2455 = vld [vmem:[#allocation6 + $0x2d38] sm:$0xff]
    %v2456 = vld [vmem:[#allocation6 + $0x2d40] sm:$0xff]
    %v2457 = vld [vmem:[#allocation6 + $0x2d48] sm:$0xff]
    %v2458 = vld [vmem:[#allocation6 + $0x2d50] sm:$0xff]
    %v2459 = vld [vmem:[#allocation6 + $0x2d58] sm:$0xff]
    %v2460 = vld [vmem:[#allocation6 + $0x2d60] sm:$0xff]
    %v2461 = vld [vmem:[#allocation6 + $0x2d68] sm:$0xff]
    %v2462 = vld [vmem:[#allocation6 + $0x2d70] sm:$0xff]
    %v2463 = vld [vmem:[#allocation6 + $0x2d78] sm:$0xff]
    %v2464 = vld [vmem:[#allocation6 + $0x2d80] sm:$0xff]
    %v2465 = vld [vmem:[#allocation6 + $0x2d88] sm:$0xff]
    %v2466 = vld [vmem:[#allocation6 + $0x2d90] sm:$0xff]
    %v2467 = vld [vmem:[#allocation6 + $0x2d98] sm:$0xff]
    %v2468 = vld [vmem:[#allocation6 + $0x2da0] sm:$0xff]
    %v2469 = vld [vmem:[#allocation6 + $0x2da8] sm:$0xff]
    %v2470 = vld [vmem:[#allocation6 + $0x2db0] sm:$0xff]
    %v2471 = vld [vmem:[#allocation6 + $0x2db8] sm:$0xff]
    %v2472 = vld [vmem:[#allocation6 + $0x2dc0] sm:$0xff]
    %v2473 = vld [vmem:[#allocation6 + $0x2dc8] sm:$0xff]
    %v2474 = vld [vmem:[#allocation6 + $0x2dd0] sm:$0xff]
    %v2475 = vld [vmem:[#allocation6 + $0x2dd8] sm:$0xff]
    %v2476 = vld [vmem:[#allocation6 + $0x2de0] sm:$0xff]
    %v2477 = vld [vmem:[#allocation6 + $0x2de8] sm:$0xff]
    %v2478 = vld [vmem:[#allocation6 + $0x2df0] sm:$0xff]
    %v2479 = vld [vmem:[#allocation6 + $0x2df8] sm:$0xff]
    %v2480 = vld [vmem:[#allocation6 + $0x2e00] sm:$0xff]
    %v2481 = vld [vmem:[#allocation6 + $0x2e08] sm:$0xff]
    %v2482 = vld [vmem:[#allocation6 + $0x2e10] sm:$0xff]
    %v2483 = vld [vmem:[#allocation6 + $0x2e18] sm:$0xff]
    %v2484 = vld [vmem:[#allocation6 + $0x2e20] sm:$0xff]
    %v2485 = vld [vmem:[#allocation6 + $0x2e28] sm:$0xff]
    %v2486 = vld [vmem:[#allocation6 + $0x2e30] sm:$0xff]
    %v2487 = vld [vmem:[#allocation6 + $0x2e38] sm:$0xff]
    %v2488 = vld [vmem:[#allocation6 + $0x2e40] sm:$0xff]
    %v2489 = vld [vmem:[#allocation6 + $0x2e48] sm:$0xff]
    %v2490 = vld [vmem:[#allocation6 + $0x2e50] sm:$0xff]
    %v2491 = vld [vmem:[#allocation6 + $0x2e58] sm:$0xff]
    %v2492 = vld [vmem:[#allocation6 + $0x2e60] sm:$0xff]
    %v2493 = vld [vmem:[#allocation6 + $0x2e68] sm:$0xff]
    %v2494 = vld [vmem:[#allocation6 + $0x2e70] sm:$0xff]
    %v2495 = vld [vmem:[#allocation6 + $0x2e78] sm:$0xff]
    %v2496 = vld [vmem:[#allocation6 + $0x2e80] sm:$0xff]
    %v2497 = vld [vmem:[#allocation6 + $0x2e88] sm:$0xff]
    %v2498 = vld [vmem:[#allocation6 + $0x2e90] sm:$0xff]
    %v2499 = vld [vmem:[#allocation6 + $0x2e98] sm:$0xff]
    %v2500 = vld [vmem:[#allocation6 + $0x2ea0] sm:$0xff]
    %v2501 = vld [vmem:[#allocation6 + $0x2ea8] sm:$0xff]
    %v2502 = vld [vmem:[#allocation6 + $0x2eb0] sm:$0xff]
    %v2503 = vld [vmem:[#allocation6 + $0x2eb8] sm:$0xff]
    %v2504 = vld [vmem:[#allocation6 + $0x2ec0] sm:$0xff]
    %v2505 = vld [vmem:[#allocation6 + $0x2ec8] sm:$0xff]
    %v2506 = vld [vmem:[#allocation6 + $0x2ed0] sm:$0xff]
    %v2507 = vld [vmem:[#allocation6 + $0x2ed8] sm:$0xff]
    %v2508 = vld [vmem:[#allocation6 + $0x2ee0] sm:$0xff]
    %v2509 = vld [vmem:[#allocation6 + $0x2ee8] sm:$0xff]
    %v2510 = vld [vmem:[#allocation6 + $0x2ef0] sm:$0xff]
    %v2511 = vld [vmem:[#allocation6 + $0x2ef8] sm:$0xff]
    %v2512 = vld [vmem:[#allocation6 + $0x2f00] sm:$0xff]
    %v2513 = vld [vmem:[#allocation6 + $0x2f08] sm:$0xff]
    %v2514 = vld [vmem:[#allocation6 + $0x2f10] sm:$0xff]
    %v2515 = vld [vmem:[#allocation6 + $0x2f18] sm:$0xff]
    %v2516 = vld [vmem:[#allocation6 + $0x2f20] sm:$0xff]
    %v2517 = vld [vmem:[#allocation6 + $0x2f28] sm:$0xff]
    %v2518 = vld [vmem:[#allocation6 + $0x2f30] sm:$0xff]
    %v2519 = vld [vmem:[#allocation6 + $0x2f38] sm:$0xff]
    %v2520 = vld [vmem:[#allocation6 + $0x2f40] sm:$0xff]
    %v2521 = vld [vmem:[#allocation6 + $0x2f48] sm:$0xff]
    %v2522 = vld [vmem:[#allocation6 + $0x2f50] sm:$0xff]
    %v2523 = vld [vmem:[#allocation6 + $0x2f58] sm:$0xff]
    %v2524 = vld [vmem:[#allocation6 + $0x2f60] sm:$0xff]
    %v2525 = vld [vmem:[#allocation6 + $0x2f68] sm:$0xff]
    %v2526 = vld [vmem:[#allocation6 + $0x2f70] sm:$0xff]
    %v2527 = vld [vmem:[#allocation6 + $0x2f78] sm:$0xff]
    %v2528 = vld [vmem:[#allocation6 + $0x2f80] sm:$0xff]
    %v2529 = vld [vmem:[#allocation6 + $0x2f88] sm:$0xff]
    %v2530 = vld [vmem:[#allocation6 + $0x2f90] sm:$0xff]
    %v2531 = vld [vmem:[#allocation6 + $0x2f98] sm:$0xff]
    %v2532 = vld [vmem:[#allocation6 + $0x2fa0] sm:$0xff]
    %v2533 = vld [vmem:[#allocation6 + $0x2fa8] sm:$0xff]
    %v2534 = vld [vmem:[#allocation6 + $0x2fb0] sm:$0xff]
    %v2535 = vld [vmem:[#allocation6 + $0x2fb8] sm:$0xff]
    %v2536 = vld [vmem:[#allocation6 + $0x2fc0] sm:$0xff]
    %v2537 = vld [vmem:[#allocation6 + $0x2fc8] sm:$0xff]
    %v2538 = vld [vmem:[#allocation6 + $0x2fd0] sm:$0xff]
    %v2539 = vld [vmem:[#allocation6 + $0x2fd8] sm:$0xff]
    %v2540 = vld [vmem:[#allocation6 + $0x2fe0] sm:$0xff]
    %v2541 = vld [vmem:[#allocation6 + $0x2fe8] sm:$0xff]
    %v2542 = vld [vmem:[#allocation6 + $0x2ff0] sm:$0xff]
    %v2543 = vld [vmem:[#allocation6 + $0x2ff8] sm:$0xff]
    %v4080 = vunpack.c.l.b16 %v1008
    %v4081 = vunpack.c.h.b16 %v1008
    %v4082 = vunpack.c.l.b16 %v1009
    %v4083 = vunpack.c.h.b16 %v1009
    %v4084 = vunpack.c.l.b16 %v1010
    %v4085 = vunpack.c.h.b16 %v1010
    %v4086 = vunpack.c.l.b16 %v1011
    %v4087 = vunpack.c.h.b16 %v1011
    %v4088 = vunpack.c.l.b16 %v1012
    %v4089 = vunpack.c.h.b16 %v1012
    %v4090 = vunpack.c.l.b16 %v1013
    %v4091 = vunpack.c.h.b16 %v1013
    %v4092 = vunpack.c.l.b16 %v1014
    %v4093 = vunpack.c.h.b16 %v1014
    %v4094 = vunpack.c.l.b16 %v1015
    %v4095 = vunpack.c.h.b16 %v1015
    %v4096 = vunpack.c.l.b16 %v1016
    %v4097 = vunpack.c.h.b16 %v1016
    %v4098 = vunpack.c.l.b16 %v1017
    %v4099 = vunpack.c.h.b16 %v1017
    %v4100 = vunpack.c.l.b16 %v1018
    %v4101 = vunpack.c.h.b16 %v1018
    %v4102 = vunpack.c.l.b16 %v1019
    %v4103 = vunpack.c.h.b16 %v1019
    %v4104 = vunpack.c.l.b16 %v1020
    %v4105 = vunpack.c.h.b16 %v1020
    %v4106 = vunpack.c.l.b16 %v1021
    %v4107 = vunpack.c.h.b16 %v1021
    %v4108 = vunpack.c.l.b16 %v1022
    %v4109 = vunpack.c.h.b16 %v1022
    %v4110 = vunpack.c.l.b16 %v1023
    %v4111 = vunpack.c.h.b16 %v1023
    %v4112 = vunpack.c.l.b16 %v1024
    %v4113 = vunpack.c.h.b16 %v1024
    %v4114 = vunpack.c.l.b16 %v1025
    %v4115 = vunpack.c.h.b16 %v1025
    %v4116 = vunpack.c.l.b16 %v1026
    %v4117 = vunpack.c.h.b16 %v1026
    %v4118 = vunpack.c.l.b16 %v1027
    %v4119 = vunpack.c.h.b16 %v1027
    %v4120 = vunpack.c.l.b16 %v1028
    %v4121 = vunpack.c.h.b16 %v1028
    %v4122 = vunpack.c.l.b16 %v1029
    %v4123 = vunpack.c.h.b16 %v1029
    %v4124 = vunpack.c.l.b16 %v1030
    %v4125 = vunpack.c.h.b16 %v1030
    %v4126 = vunpack.c.l.b16 %v1031
    %v4127 = vunpack.c.h.b16 %v1031
    %v4128 = vunpack.c.l.b16 %v1032
    %v4129 = vunpack.c.h.b16 %v1032
    %v4130 = vunpack.c.l.b16 %v1033
    %v4131 = vunpack.c.h.b16 %v1033
    %v4132 = vunpack.c.l.b16 %v1034
    %v4133 = vunpack.c.h.b16 %v1034
    %v4134 = vunpack.c.l.b16 %v1035
    %v4135 = vunpack.c.h.b16 %v1035
    %v4136 = vunpack.c.l.b16 %v1036
    %v4137 = vunpack.c.h.b16 %v1036
    %v4138 = vunpack.c.l.b16 %v1037
    %v4139 = vunpack.c.h.b16 %v1037
    %v4140 = vunpack.c.l.b16 %v1038
    %v4141 = vunpack.c.h.b16 %v1038
    %v4142 = vunpack.c.l.b16 %v1039
    %v4143 = vunpack.c.h.b16 %v1039
    %v4144 = vunpack.c.l.b16 %v1040
    %v4145 = vunpack.c.h.b16 %v1040
    %v4146 = vunpack.c.l.b16 %v1041
    %v4147 = vunpack.c.h.b16 %v1041
    %v4148 = vunpack.c.l.b16 %v1042
    %v4149 = vunpack.c.h.b16 %v1042
    %v4150 = vunpack.c.l.b16 %v1043
    %v4151 = vunpack.c.h.b16 %v1043
    %v4152 = vunpack.c.l.b16 %v1044
    %v4153 = vunpack.c.h.b16 %v1044
    %v4154 = vunpack.c.l.b16 %v1045
    %v4155 = vunpack.c.h.b16 %v1045
    %v4156 = vunpack.c.l.b16 %v1046
    %v4157 = vunpack.c.h.b16 %v1046
    %v4158 = vunpack.c.l.b16 %v1047
    %v4159 = vunpack.c.h.b16 %v1047
    %v4160 = vunpack.c.l.b16 %v1048
    %v4161 = vunpack.c.h.b16 %v1048
    %v4162 = vunpack.c.l.b16 %v1049
    %v4163 = vunpack.c.h.b16 %v1049
    %v4164 = vunpack.c.l.b16 %v1050
    %v4165 = vunpack.c.h.b16 %v1050
    %v4166 = vunpack.c.l.b16 %v1051
    %v4167 = vunpack.c.h.b16 %v1051
    %v4168 = vunpack.c.l.b16 %v1052
    %v4169 = vunpack.c.h.b16 %v1052
    %v4170 = vunpack.c.l.b16 %v1053
    %v4171 = vunpack.c.h.b16 %v1053
    %v4172 = vunpack.c.l.b16 %v1054
    %v4173 = vunpack.c.h.b16 %v1054
    %v4174 = vunpack.c.l.b16 %v1055
    %v4175 = vunpack.c.h.b16 %v1055
    %v4176 = vunpack.c.l.b16 %v1056
    %v4177 = vunpack.c.h.b16 %v1056
    %v4178 = vunpack.c.l.b16 %v1057
    %v4179 = vunpack.c.h.b16 %v1057
    %v4180 = vunpack.c.l.b16 %v1058
    %v4181 = vunpack.c.h.b16 %v1058
    %v4182 = vunpack.c.l.b16 %v1059
    %v4183 = vunpack.c.h.b16 %v1059
    %v4184 = vunpack.c.l.b16 %v1060
    %v4185 = vunpack.c.h.b16 %v1060
    %v4186 = vunpack.c.l.b16 %v1061
    %v4187 = vunpack.c.h.b16 %v1061
    %v4188 = vunpack.c.l.b16 %v1062
    %v4189 = vunpack.c.h.b16 %v1062
    %v4190 = vunpack.c.l.b16 %v1063
    %v4191 = vunpack.c.h.b16 %v1063
    %v4192 = vunpack.c.l.b16 %v1064
    %v4193 = vunpack.c.h.b16 %v1064
    %v4194 = vunpack.c.l.b16 %v1065
    %v4195 = vunpack.c.h.b16 %v1065
    %v4196 = vunpack.c.l.b16 %v1066
    %v4197 = vunpack.c.h.b16 %v1066
    %v4198 = vunpack.c.l.b16 %v1067
    %v4199 = vunpack.c.h.b16 %v1067
    %v4200 = vunpack.c.l.b16 %v1068
    %v4201 = vunpack.c.h.b16 %v1068
    %v4202 = vunpack.c.l.b16 %v1069
    %v4203 = vunpack.c.h.b16 %v1069
    %v4204 = vunpack.c.l.b16 %v1070
    %v4205 = vunpack.c.h.b16 %v1070
    %v4206 = vunpack.c.l.b16 %v1071
    %v4207 = vunpack.c.h.b16 %v1071
    %v4208 = vunpack.c.l.b16 %v1072
    %v4209 = vunpack.c.h.b16 %v1072
    %v4210 = vunpack.c.l.b16 %v1073
    %v4211 = vunpack.c.h.b16 %v1073
    %v4212 = vunpack.c.l.b16 %v1074
    %v4213 = vunpack.c.h.b16 %v1074
    %v4214 = vunpack.c.l.b16 %v1075
    %v4215 = vunpack.c.h.b16 %v1075
    %v4216 = vunpack.c.l.b16 %v1076
    %v4217 = vunpack.c.h.b16 %v1076
    %v4218 = vunpack.c.l.b16 %v1077
    %v4219 = vunpack.c.h.b16 %v1077
    %v4220 = vunpack.c.l.b16 %v1078
    %v4221 = vunpack.c.h.b16 %v1078
    %v4222 = vunpack.c.l.b16 %v1079
    %v4223 = vunpack.c.h.b16 %v1079
    %v4224 = vunpack.c.l.b16 %v1080
    %v4225 = vunpack.c.h.b16 %v1080
    %v4226 = vunpack.c.l.b16 %v1081
    %v4227 = vunpack.c.h.b16 %v1081
    %v4228 = vunpack.c.l.b16 %v1082
    %v4229 = vunpack.c.h.b16 %v1082
    %v4230 = vunpack.c.l.b16 %v1083
    %v4231 = vunpack.c.h.b16 %v1083
    %v4232 = vunpack.c.l.b16 %v1084
    %v4233 = vunpack.c.h.b16 %v1084
    %v4234 = vunpack.c.l.b16 %v1085
    %v4235 = vunpack.c.h.b16 %v1085
    %v4236 = vunpack.c.l.b16 %v1086
    %v4237 = vunpack.c.h.b16 %v1086
    %v4238 = vunpack.c.l.b16 %v1087
    %v4239 = vunpack.c.h.b16 %v1087
    %v4240 = vunpack.c.l.b16 %v1088
    %v4241 = vunpack.c.h.b16 %v1088
    %v4242 = vunpack.c.l.b16 %v1089
    %v4243 = vunpack.c.h.b16 %v1089
    %v4244 = vunpack.c.l.b16 %v1090
    %v4245 = vunpack.c.h.b16 %v1090
    %v4246 = vunpack.c.l.b16 %v1091
    %v4247 = vunpack.c.h.b16 %v1091
    %v4248 = vunpack.c.l.b16 %v1092
    %v4249 = vunpack.c.h.b16 %v1092
    %v4250 = vunpack.c.l.b16 %v1093
    %v4251 = vunpack.c.h.b16 %v1093
    %v4252 = vunpack.c.l.b16 %v1094
    %v4253 = vunpack.c.h.b16 %v1094
    %v4254 = vunpack.c.l.b16 %v1095
    %v4255 = vunpack.c.h.b16 %v1095
    %v4256 = vunpack.c.l.b16 %v1096
    %v4257 = vunpack.c.h.b16 %v1096
    %v4258 = vunpack.c.l.b16 %v1097
    %v4259 = vunpack.c.h.b16 %v1097
    %v4260 = vunpack.c.l.b16 %v1098
    %v4261 = vunpack.c.h.b16 %v1098
    %v4262 = vunpack.c.l.b16 %v1099
    %v4263 = vunpack.c.h.b16 %v1099
    %v4264 = vunpack.c.l.b16 %v1100
    %v4265 = vunpack.c.h.b16 %v1100
    %v4266 = vunpack.c.l.b16 %v1101
    %v4267 = vunpack.c.h.b16 %v1101
    %v4268 = vunpack.c.l.b16 %v1102
    %v4269 = vunpack.c.h.b16 %v1102
    %v4270 = vunpack.c.l.b16 %v1103
    %v4271 = vunpack.c.h.b16 %v1103
    %v4272 = vunpack.c.l.b16 %v1104
    %v4273 = vunpack.c.h.b16 %v1104
    %v4274 = vunpack.c.l.b16 %v1105
    %v4275 = vunpack.c.h.b16 %v1105
    %v4276 = vunpack.c.l.b16 %v1106
    %v4277 = vunpack.c.h.b16 %v1106
    %v4278 = vunpack.c.l.b16 %v1107
    %v4279 = vunpack.c.h.b16 %v1107
    %v4280 = vunpack.c.l.b16 %v1108
    %v4281 = vunpack.c.h.b16 %v1108
    %v4282 = vunpack.c.l.b16 %v1109
    %v4283 = vunpack.c.h.b16 %v1109
    %v4284 = vunpack.c.l.b16 %v1110
    %v4285 = vunpack.c.h.b16 %v1110
    %v4286 = vunpack.c.l.b16 %v1111
    %v4287 = vunpack.c.h.b16 %v1111
    %v4288 = vunpack.c.l.b16 %v1112
    %v4289 = vunpack.c.h.b16 %v1112
    %v4290 = vunpack.c.l.b16 %v1113
    %v4291 = vunpack.c.h.b16 %v1113
    %v4292 = vunpack.c.l.b16 %v1114
    %v4293 = vunpack.c.h.b16 %v1114
    %v4294 = vunpack.c.l.b16 %v1115
    %v4295 = vunpack.c.h.b16 %v1115
    %v4296 = vunpack.c.l.b16 %v1116
    %v4297 = vunpack.c.h.b16 %v1116
    %v4298 = vunpack.c.l.b16 %v1117
    %v4299 = vunpack.c.h.b16 %v1117
    %v4300 = vunpack.c.l.b16 %v1118
    %v4301 = vunpack.c.h.b16 %v1118
    %v4302 = vunpack.c.l.b16 %v1119
    %v4303 = vunpack.c.h.b16 %v1119
    %v4304 = vunpack.c.l.b16 %v1120
    %v4305 = vunpack.c.h.b16 %v1120
    %v4306 = vunpack.c.l.b16 %v1121
    %v4307 = vunpack.c.h.b16 %v1121
    %v4308 = vunpack.c.l.b16 %v1122
    %v4309 = vunpack.c.h.b16 %v1122
    %v4310 = vunpack.c.l.b16 %v1123
    %v4311 = vunpack.c.h.b16 %v1123
    %v4312 = vunpack.c.l.b16 %v1124
    %v4313 = vunpack.c.h.b16 %v1124
    %v4314 = vunpack.c.l.b16 %v1125
    %v4315 = vunpack.c.h.b16 %v1125
    %v4316 = vunpack.c.l.b16 %v1126
    %v4317 = vunpack.c.h.b16 %v1126
    %v4318 = vunpack.c.l.b16 %v1127
    %v4319 = vunpack.c.h.b16 %v1127
    %v4320 = vunpack.c.l.b16 %v1128
    %v4321 = vunpack.c.h.b16 %v1128
    %v4322 = vunpack.c.l.b16 %v1129
    %v4323 = vunpack.c.h.b16 %v1129
    %v4324 = vunpack.c.l.b16 %v1130
    %v4325 = vunpack.c.h.b16 %v1130
    %v4326 = vunpack.c.l.b16 %v1131
    %v4327 = vunpack.c.h.b16 %v1131
    %v4328 = vunpack.c.l.b16 %v1132
    %v4329 = vunpack.c.h.b16 %v1132
    %v4330 = vunpack.c.l.b16 %v1133
    %v4331 = vunpack.c.h.b16 %v1133
    %v4332 = vunpack.c.l.b16 %v1134
    %v4333 = vunpack.c.h.b16 %v1134
    %v4334 = vunpack.c.l.b16 %v1135
    %v4335 = vunpack.c.h.b16 %v1135
    %v4336 = vunpack.c.l.b16 %v1136
    %v4337 = vunpack.c.h.b16 %v1136
    %v4338 = vunpack.c.l.b16 %v1137
    %v4339 = vunpack.c.h.b16 %v1137
    %v4340 = vunpack.c.l.b16 %v1138
    %v4341 = vunpack.c.h.b16 %v1138
    %v4342 = vunpack.c.l.b16 %v1139
    %v4343 = vunpack.c.h.b16 %v1139
    %v4344 = vunpack.c.l.b16 %v1140
    %v4345 = vunpack.c.h.b16 %v1140
    %v4346 = vunpack.c.l.b16 %v1141
    %v4347 = vunpack.c.h.b16 %v1141
    %v4348 = vunpack.c.l.b16 %v1142
    %v4349 = vunpack.c.h.b16 %v1142
    %v4350 = vunpack.c.l.b16 %v1143
    %v4351 = vunpack.c.h.b16 %v1143
    %v4352 = vunpack.c.l.b16 %v1144
    %v4353 = vunpack.c.h.b16 %v1144
    %v4354 = vunpack.c.l.b16 %v1145
    %v4355 = vunpack.c.h.b16 %v1145
    %v4356 = vunpack.c.l.b16 %v1146
    %v4357 = vunpack.c.h.b16 %v1146
    %v4358 = vunpack.c.l.b16 %v1147
    %v4359 = vunpack.c.h.b16 %v1147
    %v4360 = vunpack.c.l.b16 %v1148
    %v4361 = vunpack.c.h.b16 %v1148
    %v4362 = vunpack.c.l.b16 %v1149
    %v4363 = vunpack.c.h.b16 %v1149
    %v4364 = vunpack.c.l.b16 %v1150
    %v4365 = vunpack.c.h.b16 %v1150
    %v4366 = vunpack.c.l.b16 %v1151
    %v4367 = vunpack.c.h.b16 %v1151
    %v4368 = vunpack.c.l.b16 %v1152
    %v4369 = vunpack.c.h.b16 %v1152
    %v4370 = vunpack.c.l.b16 %v1153
    %v4371 = vunpack.c.h.b16 %v1153
    %v4372 = vunpack.c.l.b16 %v1154
    %v4373 = vunpack.c.h.b16 %v1154
    %v4374 = vunpack.c.l.b16 %v1155
    %v4375 = vunpack.c.h.b16 %v1155
    %v4376 = vunpack.c.l.b16 %v1156
    %v4377 = vunpack.c.h.b16 %v1156
    %v4378 = vunpack.c.l.b16 %v1157
    %v4379 = vunpack.c.h.b16 %v1157
    %v4380 = vunpack.c.l.b16 %v1158
    %v4381 = vunpack.c.h.b16 %v1158
    %v4382 = vunpack.c.l.b16 %v1159
    %v4383 = vunpack.c.h.b16 %v1159
    %v4384 = vunpack.c.l.b16 %v1160
    %v4385 = vunpack.c.h.b16 %v1160
    %v4386 = vunpack.c.l.b16 %v1161
    %v4387 = vunpack.c.h.b16 %v1161
    %v4388 = vunpack.c.l.b16 %v1162
    %v4389 = vunpack.c.h.b16 %v1162
    %v4390 = vunpack.c.l.b16 %v1163
    %v4391 = vunpack.c.h.b16 %v1163
    %v4392 = vunpack.c.l.b16 %v1164
    %v4393 = vunpack.c.h.b16 %v1164
    %v4394 = vunpack.c.l.b16 %v1165
    %v4395 = vunpack.c.h.b16 %v1165
    %v4396 = vunpack.c.l.b16 %v1166
    %v4397 = vunpack.c.h.b16 %v1166
    %v4398 = vunpack.c.l.b16 %v1167
    %v4399 = vunpack.c.h.b16 %v1167
    %v4400 = vunpack.c.l.b16 %v1168
    %v4401 = vunpack.c.h.b16 %v1168
    %v4402 = vunpack.c.l.b16 %v1169
    %v4403 = vunpack.c.h.b16 %v1169
    %v4404 = vunpack.c.l.b16 %v1170
    %v4405 = vunpack.c.h.b16 %v1170
    %v4406 = vunpack.c.l.b16 %v1171
    %v4407 = vunpack.c.h.b16 %v1171
    %v4408 = vunpack.c.l.b16 %v1172
    %v4409 = vunpack.c.h.b16 %v1172
    %v4410 = vunpack.c.l.b16 %v1173
    %v4411 = vunpack.c.h.b16 %v1173
    %v4412 = vunpack.c.l.b16 %v1174
    %v4413 = vunpack.c.h.b16 %v1174
    %v4414 = vunpack.c.l.b16 %v1175
    %v4415 = vunpack.c.h.b16 %v1175
    %v4416 = vunpack.c.l.b16 %v1176
    %v4417 = vunpack.c.h.b16 %v1176
    %v4418 = vunpack.c.l.b16 %v1177
    %v4419 = vunpack.c.h.b16 %v1177
    %v4420 = vunpack.c.l.b16 %v1178
    %v4421 = vunpack.c.h.b16 %v1178
    %v4422 = vunpack.c.l.b16 %v1179
    %v4423 = vunpack.c.h.b16 %v1179
    %v4424 = vunpack.c.l.b16 %v1180
    %v4425 = vunpack.c.h.b16 %v1180
    %v4426 = vunpack.c.l.b16 %v1181
    %v4427 = vunpack.c.h.b16 %v1181
    %v4428 = vunpack.c.l.b16 %v1182
    %v4429 = vunpack.c.h.b16 %v1182
    %v4430 = vunpack.c.l.b16 %v1183
    %v4431 = vunpack.c.h.b16 %v1183
    %v4432 = vunpack.c.l.b16 %v1184
    %v4433 = vunpack.c.h.b16 %v1184
    %v4434 = vunpack.c.l.b16 %v1185
    %v4435 = vunpack.c.h.b16 %v1185
    %v4436 = vunpack.c.l.b16 %v1186
    %v4437 = vunpack.c.h.b16 %v1186
    %v4438 = vunpack.c.l.b16 %v1187
    %v4439 = vunpack.c.h.b16 %v1187
    %v4440 = vunpack.c.l.b16 %v1188
    %v4441 = vunpack.c.h.b16 %v1188
    %v4442 = vunpack.c.l.b16 %v1189
    %v4443 = vunpack.c.h.b16 %v1189
    %v4444 = vunpack.c.l.b16 %v1190
    %v4445 = vunpack.c.h.b16 %v1190
    %v4446 = vunpack.c.l.b16 %v1191
    %v4447 = vunpack.c.h.b16 %v1191
    %v4448 = vunpack.c.l.b16 %v1192
    %v4449 = vunpack.c.h.b16 %v1192
    %v4450 = vunpack.c.l.b16 %v1193
    %v4451 = vunpack.c.h.b16 %v1193
    %v4452 = vunpack.c.l.b16 %v1194
    %v4453 = vunpack.c.h.b16 %v1194
    %v4454 = vunpack.c.l.b16 %v1195
    %v4455 = vunpack.c.h.b16 %v1195
    %v4456 = vunpack.c.l.b16 %v1196
    %v4457 = vunpack.c.h.b16 %v1196
    %v4458 = vunpack.c.l.b16 %v1197
    %v4459 = vunpack.c.h.b16 %v1197
    %v4460 = vunpack.c.l.b16 %v1198
    %v4461 = vunpack.c.h.b16 %v1198
    %v4462 = vunpack.c.l.b16 %v1199
    %v4463 = vunpack.c.h.b16 %v1199
    %v4464 = vunpack.c.l.b16 %v1200
    %v4465 = vunpack.c.h.b16 %v1200
    %v4466 = vunpack.c.l.b16 %v1201
    %v4467 = vunpack.c.h.b16 %v1201
    %v4468 = vunpack.c.l.b16 %v1202
    %v4469 = vunpack.c.h.b16 %v1202
    %v4470 = vunpack.c.l.b16 %v1203
    %v4471 = vunpack.c.h.b16 %v1203
    %v4472 = vunpack.c.l.b16 %v1204
    %v4473 = vunpack.c.h.b16 %v1204
    %v4474 = vunpack.c.l.b16 %v1205
    %v4475 = vunpack.c.h.b16 %v1205
    %v4476 = vunpack.c.l.b16 %v1206
    %v4477 = vunpack.c.h.b16 %v1206
    %v4478 = vunpack.c.l.b16 %v1207
    %v4479 = vunpack.c.h.b16 %v1207
    %v4480 = vunpack.c.l.b16 %v1208
    %v4481 = vunpack.c.h.b16 %v1208
    %v4482 = vunpack.c.l.b16 %v1209
    %v4483 = vunpack.c.h.b16 %v1209
    %v4484 = vunpack.c.l.b16 %v1210
    %v4485 = vunpack.c.h.b16 %v1210
    %v4486 = vunpack.c.l.b16 %v1211
    %v4487 = vunpack.c.h.b16 %v1211
    %v4488 = vunpack.c.l.b16 %v1212
    %v4489 = vunpack.c.h.b16 %v1212
    %v4490 = vunpack.c.l.b16 %v1213
    %v4491 = vunpack.c.h.b16 %v1213
    %v4492 = vunpack.c.l.b16 %v1214
    %v4493 = vunpack.c.h.b16 %v1214
    %v4494 = vunpack.c.l.b16 %v1215
    %v4495 = vunpack.c.h.b16 %v1215
    %v4496 = vunpack.c.l.b16 %v1216
    %v4497 = vunpack.c.h.b16 %v1216
    %v4498 = vunpack.c.l.b16 %v1217
    %v4499 = vunpack.c.h.b16 %v1217
    %v4500 = vunpack.c.l.b16 %v1218
    %v4501 = vunpack.c.h.b16 %v1218
    %v4502 = vunpack.c.l.b16 %v1219
    %v4503 = vunpack.c.h.b16 %v1219
    %v4504 = vunpack.c.l.b16 %v1220
    %v4505 = vunpack.c.h.b16 %v1220
    %v4506 = vunpack.c.l.b16 %v1221
    %v4507 = vunpack.c.h.b16 %v1221
    %v4508 = vunpack.c.l.b16 %v1222
    %v4509 = vunpack.c.h.b16 %v1222
    %v4510 = vunpack.c.l.b16 %v1223
    %v4511 = vunpack.c.h.b16 %v1223
    %v4512 = vunpack.c.l.b16 %v1224
    %v4513 = vunpack.c.h.b16 %v1224
    %v4514 = vunpack.c.l.b16 %v1225
    %v4515 = vunpack.c.h.b16 %v1225
    %v4516 = vunpack.c.l.b16 %v1226
    %v4517 = vunpack.c.h.b16 %v1226
    %v4518 = vunpack.c.l.b16 %v1227
    %v4519 = vunpack.c.h.b16 %v1227
    %v4520 = vunpack.c.l.b16 %v1228
    %v4521 = vunpack.c.h.b16 %v1228
    %v4522 = vunpack.c.l.b16 %v1229
    %v4523 = vunpack.c.h.b16 %v1229
    %v4524 = vunpack.c.l.b16 %v1230
    %v4525 = vunpack.c.h.b16 %v1230
    %v4526 = vunpack.c.l.b16 %v1231
    %v4527 = vunpack.c.h.b16 %v1231
    %v4528 = vunpack.c.l.b16 %v1232
    %v4529 = vunpack.c.h.b16 %v1232
    %v4530 = vunpack.c.l.b16 %v1233
    %v4531 = vunpack.c.h.b16 %v1233
    %v4532 = vunpack.c.l.b16 %v1234
    %v4533 = vunpack.c.h.b16 %v1234
    %v4534 = vunpack.c.l.b16 %v1235
    %v4535 = vunpack.c.h.b16 %v1235
    %v4536 = vunpack.c.l.b16 %v1236
    %v4537 = vunpack.c.h.b16 %v1236
    %v4538 = vunpack.c.l.b16 %v1237
    %v4539 = vunpack.c.h.b16 %v1237
    %v4540 = vunpack.c.l.b16 %v1238
    %v4541 = vunpack.c.h.b16 %v1238
    %v4542 = vunpack.c.l.b16 %v1239
    %v4543 = vunpack.c.h.b16 %v1239
    %v4544 = vunpack.c.l.b16 %v1240
    %v4545 = vunpack.c.h.b16 %v1240
    %v4546 = vunpack.c.l.b16 %v1241
    %v4547 = vunpack.c.h.b16 %v1241
    %v4548 = vunpack.c.l.b16 %v1242
    %v4549 = vunpack.c.h.b16 %v1242
    %v4550 = vunpack.c.l.b16 %v1243
    %v4551 = vunpack.c.h.b16 %v1243
    %v4552 = vunpack.c.l.b16 %v1244
    %v4553 = vunpack.c.h.b16 %v1244
    %v4554 = vunpack.c.l.b16 %v1245
    %v4555 = vunpack.c.h.b16 %v1245
    %v4556 = vunpack.c.l.b16 %v1246
    %v4557 = vunpack.c.h.b16 %v1246
    %v4558 = vunpack.c.l.b16 %v1247
    %v4559 = vunpack.c.h.b16 %v1247
    %v4560 = vunpack.c.l.b16 %v1248
    %v4561 = vunpack.c.h.b16 %v1248
    %v4562 = vunpack.c.l.b16 %v1249
    %v4563 = vunpack.c.h.b16 %v1249
    %v4564 = vunpack.c.l.b16 %v1250
    %v4565 = vunpack.c.h.b16 %v1250
    %v4566 = vunpack.c.l.b16 %v1251
    %v4567 = vunpack.c.h.b16 %v1251
    %v4568 = vunpack.c.l.b16 %v1252
    %v4569 = vunpack.c.h.b16 %v1252
    %v4570 = vunpack.c.l.b16 %v1253
    %v4571 = vunpack.c.h.b16 %v1253
    %v4572 = vunpack.c.l.b16 %v1254
    %v4573 = vunpack.c.h.b16 %v1254
    %v4574 = vunpack.c.l.b16 %v1255
    %v4575 = vunpack.c.h.b16 %v1255
    %v4576 = vunpack.c.l.b16 %v1256
    %v4577 = vunpack.c.h.b16 %v1256
    %v4578 = vunpack.c.l.b16 %v1257
    %v4579 = vunpack.c.h.b16 %v1257
    %v4580 = vunpack.c.l.b16 %v1258
    %v4581 = vunpack.c.h.b16 %v1258
    %v4582 = vunpack.c.l.b16 %v1259
    %v4583 = vunpack.c.h.b16 %v1259
    %v4584 = vunpack.c.l.b16 %v1260
    %v4585 = vunpack.c.h.b16 %v1260
    %v4586 = vunpack.c.l.b16 %v1261
    %v4587 = vunpack.c.h.b16 %v1261
    %v4588 = vunpack.c.l.b16 %v1262
    %v4589 = vunpack.c.h.b16 %v1262
    %v4590 = vunpack.c.l.b16 %v1263
    %v4591 = vunpack.c.h.b16 %v1263
    %v4592 = vunpack.c.l.b16 %v1264
    %v4593 = vunpack.c.h.b16 %v1264
    %v4594 = vunpack.c.l.b16 %v1265
    %v4595 = vunpack.c.h.b16 %v1265
    %v4596 = vunpack.c.l.b16 %v1266
    %v4597 = vunpack.c.h.b16 %v1266
    %v4598 = vunpack.c.l.b16 %v1267
    %v4599 = vunpack.c.h.b16 %v1267
    %v4600 = vunpack.c.l.b16 %v1268
    %v4601 = vunpack.c.h.b16 %v1268
    %v4602 = vunpack.c.l.b16 %v1269
    %v4603 = vunpack.c.h.b16 %v1269
    %v4604 = vunpack.c.l.b16 %v1270
    %v4605 = vunpack.c.h.b16 %v1270
    %v4606 = vunpack.c.l.b16 %v1271
    %v4607 = vunpack.c.h.b16 %v1271
    %v4608 = vunpack.c.l.b16 %v1272
    %v4609 = vunpack.c.h.b16 %v1272
    %v4610 = vunpack.c.l.b16 %v1273
    %v4611 = vunpack.c.h.b16 %v1273
    %v4612 = vunpack.c.l.b16 %v1274
    %v4613 = vunpack.c.h.b16 %v1274
    %v4614 = vunpack.c.l.b16 %v1275
    %v4615 = vunpack.c.h.b16 %v1275
    %v4616 = vunpack.c.l.b16 %v1276
    %v4617 = vunpack.c.h.b16 %v1276
    %v4618 = vunpack.c.l.b16 %v1277
    %v4619 = vunpack.c.h.b16 %v1277
    %v4620 = vunpack.c.l.b16 %v1278
    %v4621 = vunpack.c.h.b16 %v1278
    %v4622 = vunpack.c.l.b16 %v1279
    %v4623 = vunpack.c.h.b16 %v1279
    %v4624 = vunpack.c.l.b16 %v1280
    %v4625 = vunpack.c.h.b16 %v1280
    %v4626 = vunpack.c.l.b16 %v1281
    %v4627 = vunpack.c.h.b16 %v1281
    %v4628 = vunpack.c.l.b16 %v1282
    %v4629 = vunpack.c.h.b16 %v1282
    %v4630 = vunpack.c.l.b16 %v1283
    %v4631 = vunpack.c.h.b16 %v1283
    %v4632 = vunpack.c.l.b16 %v1284
    %v4633 = vunpack.c.h.b16 %v1284
    %v4634 = vunpack.c.l.b16 %v1285
    %v4635 = vunpack.c.h.b16 %v1285
    %v4636 = vunpack.c.l.b16 %v1286
    %v4637 = vunpack.c.h.b16 %v1286
    %v4638 = vunpack.c.l.b16 %v1287
    %v4639 = vunpack.c.h.b16 %v1287
    %v4640 = vunpack.c.l.b16 %v1288
    %v4641 = vunpack.c.h.b16 %v1288
    %v4642 = vunpack.c.l.b16 %v1289
    %v4643 = vunpack.c.h.b16 %v1289
    %v4644 = vunpack.c.l.b16 %v1290
    %v4645 = vunpack.c.h.b16 %v1290
    %v4646 = vunpack.c.l.b16 %v1291
    %v4647 = vunpack.c.h.b16 %v1291
    %v4648 = vunpack.c.l.b16 %v1292
    %v4649 = vunpack.c.h.b16 %v1292
    %v4650 = vunpack.c.l.b16 %v1293
    %v4651 = vunpack.c.h.b16 %v1293
    %v4652 = vunpack.c.l.b16 %v1294
    %v4653 = vunpack.c.h.b16 %v1294
    %v4654 = vunpack.c.l.b16 %v1295
    %v4655 = vunpack.c.h.b16 %v1295
    %v4656 = vunpack.c.l.b16 %v1296
    %v4657 = vunpack.c.h.b16 %v1296
    %v4658 = vunpack.c.l.b16 %v1297
    %v4659 = vunpack.c.h.b16 %v1297
    %v4660 = vunpack.c.l.b16 %v1298
    %v4661 = vunpack.c.h.b16 %v1298
    %v4662 = vunpack.c.l.b16 %v1299
    %v4663 = vunpack.c.h.b16 %v1299
    %v4664 = vunpack.c.l.b16 %v1300
    %v4665 = vunpack.c.h.b16 %v1300
    %v4666 = vunpack.c.l.b16 %v1301
    %v4667 = vunpack.c.h.b16 %v1301
    %v4668 = vunpack.c.l.b16 %v1302
    %v4669 = vunpack.c.h.b16 %v1302
    %v4670 = vunpack.c.l.b16 %v1303
    %v4671 = vunpack.c.h.b16 %v1303
    %v4672 = vunpack.c.l.b16 %v1304
    %v4673 = vunpack.c.h.b16 %v1304
    %v4674 = vunpack.c.l.b16 %v1305
    %v4675 = vunpack.c.h.b16 %v1305
    %v4676 = vunpack.c.l.b16 %v1306
    %v4677 = vunpack.c.h.b16 %v1306
    %v4678 = vunpack.c.l.b16 %v1307
    %v4679 = vunpack.c.h.b16 %v1307
    %v4680 = vunpack.c.l.b16 %v1308
    %v4681 = vunpack.c.h.b16 %v1308
    %v4682 = vunpack.c.l.b16 %v1309
    %v4683 = vunpack.c.h.b16 %v1309
    %v4684 = vunpack.c.l.b16 %v1310
    %v4685 = vunpack.c.h.b16 %v1310
    %v4686 = vunpack.c.l.b16 %v1311
    %v4687 = vunpack.c.h.b16 %v1311
    %v4688 = vunpack.c.l.b16 %v1312
    %v4689 = vunpack.c.h.b16 %v1312
    %v4690 = vunpack.c.l.b16 %v1313
    %v4691 = vunpack.c.h.b16 %v1313
    %v4692 = vunpack.c.l.b16 %v1314
    %v4693 = vunpack.c.h.b16 %v1314
    %v4694 = vunpack.c.l.b16 %v1315
    %v4695 = vunpack.c.h.b16 %v1315
    %v4696 = vunpack.c.l.b16 %v1316
    %v4697 = vunpack.c.h.b16 %v1316
    %v4698 = vunpack.c.l.b16 %v1317
    %v4699 = vunpack.c.h.b16 %v1317
    %v4700 = vunpack.c.l.b16 %v1318
    %v4701 = vunpack.c.h.b16 %v1318
    %v4702 = vunpack.c.l.b16 %v1319
    %v4703 = vunpack.c.h.b16 %v1319
    %v4704 = vunpack.c.l.b16 %v1320
    %v4705 = vunpack.c.h.b16 %v1320
    %v4706 = vunpack.c.l.b16 %v1321
    %v4707 = vunpack.c.h.b16 %v1321
    %v4708 = vunpack.c.l.b16 %v1322
    %v4709 = vunpack.c.h.b16 %v1322
    %v4710 = vunpack.c.l.b16 %v1323
    %v4711 = vunpack.c.h.b16 %v1323
    %v4712 = vunpack.c.l.b16 %v1324
    %v4713 = vunpack.c.h.b16 %v1324
    %v4714 = vunpack.c.l.b16 %v1325
    %v4715 = vunpack.c.h.b16 %v1325
    %v4716 = vunpack.c.l.b16 %v1326
    %v4717 = vunpack.c.h.b16 %v1326
    %v4718 = vunpack.c.l.b16 %v1327
    %v4719 = vunpack.c.h.b16 %v1327
    %v4720 = vunpack.c.l.b16 %v1328
    %v4721 = vunpack.c.h.b16 %v1328
    %v4722 = vunpack.c.l.b16 %v1329
    %v4723 = vunpack.c.h.b16 %v1329
    %v4724 = vunpack.c.l.b16 %v1330
    %v4725 = vunpack.c.h.b16 %v1330
    %v4726 = vunpack.c.l.b16 %v1331
    %v4727 = vunpack.c.h.b16 %v1331
    %v4728 = vunpack.c.l.b16 %v1332
    %v4729 = vunpack.c.h.b16 %v1332
    %v4730 = vunpack.c.l.b16 %v1333
    %v4731 = vunpack.c.h.b16 %v1333
    %v4732 = vunpack.c.l.b16 %v1334
    %v4733 = vunpack.c.h.b16 %v1334
    %v4734 = vunpack.c.l.b16 %v1335
    %v4735 = vunpack.c.h.b16 %v1335
    %v4736 = vunpack.c.l.b16 %v1336
    %v4737 = vunpack.c.h.b16 %v1336
    %v4738 = vunpack.c.l.b16 %v1337
    %v4739 = vunpack.c.h.b16 %v1337
    %v4740 = vunpack.c.l.b16 %v1338
    %v4741 = vunpack.c.h.b16 %v1338
    %v4742 = vunpack.c.l.b16 %v1339
    %v4743 = vunpack.c.h.b16 %v1339
    %v4744 = vunpack.c.l.b16 %v1340
    %v4745 = vunpack.c.h.b16 %v1340
    %v4746 = vunpack.c.l.b16 %v1341
    %v4747 = vunpack.c.h.b16 %v1341
    %v4748 = vunpack.c.l.b16 %v1342
    %v4749 = vunpack.c.h.b16 %v1342
    %v4750 = vunpack.c.l.b16 %v1343
    %v4751 = vunpack.c.h.b16 %v1343
    %v4752 = vunpack.c.l.b16 %v1344
    %v4753 = vunpack.c.h.b16 %v1344
    %v4754 = vunpack.c.l.b16 %v1345
    %v4755 = vunpack.c.h.b16 %v1345
    %v4756 = vunpack.c.l.b16 %v1346
    %v4757 = vunpack.c.h.b16 %v1346
    %v4758 = vunpack.c.l.b16 %v1347
    %v4759 = vunpack.c.h.b16 %v1347
    %v4760 = vunpack.c.l.b16 %v1348
    %v4761 = vunpack.c.h.b16 %v1348
    %v4762 = vunpack.c.l.b16 %v1349
    %v4763 = vunpack.c.h.b16 %v1349
    %v4764 = vunpack.c.l.b16 %v1350
    %v4765 = vunpack.c.h.b16 %v1350
    %v4766 = vunpack.c.l.b16 %v1351
    %v4767 = vunpack.c.h.b16 %v1351
    %v4768 = vunpack.c.l.b16 %v1352
    %v4769 = vunpack.c.h.b16 %v1352
    %v4770 = vunpack.c.l.b16 %v1353
    %v4771 = vunpack.c.h.b16 %v1353
    %v4772 = vunpack.c.l.b16 %v1354
    %v4773 = vunpack.c.h.b16 %v1354
    %v4774 = vunpack.c.l.b16 %v1355
    %v4775 = vunpack.c.h.b16 %v1355
    %v4776 = vunpack.c.l.b16 %v1356
    %v4777 = vunpack.c.h.b16 %v1356
    %v4778 = vunpack.c.l.b16 %v1357
    %v4779 = vunpack.c.h.b16 %v1357
    %v4780 = vunpack.c.l.b16 %v1358
    %v4781 = vunpack.c.h.b16 %v1358
    %v4782 = vunpack.c.l.b16 %v1359
    %v4783 = vunpack.c.h.b16 %v1359
    %v4784 = vunpack.c.l.b16 %v1360
    %v4785 = vunpack.c.h.b16 %v1360
    %v4786 = vunpack.c.l.b16 %v1361
    %v4787 = vunpack.c.h.b16 %v1361
    %v4788 = vunpack.c.l.b16 %v1362
    %v4789 = vunpack.c.h.b16 %v1362
    %v4790 = vunpack.c.l.b16 %v1363
    %v4791 = vunpack.c.h.b16 %v1363
    %v4792 = vunpack.c.l.b16 %v1364
    %v4793 = vunpack.c.h.b16 %v1364
    %v4794 = vunpack.c.l.b16 %v1365
    %v4795 = vunpack.c.h.b16 %v1365
    %v4796 = vunpack.c.l.b16 %v1366
    %v4797 = vunpack.c.h.b16 %v1366
    %v4798 = vunpack.c.l.b16 %v1367
    %v4799 = vunpack.c.h.b16 %v1367
    %v4800 = vunpack.c.l.b16 %v1368
    %v4801 = vunpack.c.h.b16 %v1368
    %v4802 = vunpack.c.l.b16 %v1369
    %v4803 = vunpack.c.h.b16 %v1369
    %v4804 = vunpack.c.l.b16 %v1370
    %v4805 = vunpack.c.h.b16 %v1370
    %v4806 = vunpack.c.l.b16 %v1371
    %v4807 = vunpack.c.h.b16 %v1371
    %v4808 = vunpack.c.l.b16 %v1372
    %v4809 = vunpack.c.h.b16 %v1372
    %v4810 = vunpack.c.l.b16 %v1373
    %v4811 = vunpack.c.h.b16 %v1373
    %v4812 = vunpack.c.l.b16 %v1374
    %v4813 = vunpack.c.h.b16 %v1374
    %v4814 = vunpack.c.l.b16 %v1375
    %v4815 = vunpack.c.h.b16 %v1375
    %v4816 = vunpack.c.l.b16 %v1376
    %v4817 = vunpack.c.h.b16 %v1376
    %v4818 = vunpack.c.l.b16 %v1377
    %v4819 = vunpack.c.h.b16 %v1377
    %v4820 = vunpack.c.l.b16 %v1378
    %v4821 = vunpack.c.h.b16 %v1378
    %v4822 = vunpack.c.l.b16 %v1379
    %v4823 = vunpack.c.h.b16 %v1379
    %v4824 = vunpack.c.l.b16 %v1380
    %v4825 = vunpack.c.h.b16 %v1380
    %v4826 = vunpack.c.l.b16 %v1381
    %v4827 = vunpack.c.h.b16 %v1381
    %v4828 = vunpack.c.l.b16 %v1382
    %v4829 = vunpack.c.h.b16 %v1382
    %v4830 = vunpack.c.l.b16 %v1383
    %v4831 = vunpack.c.h.b16 %v1383
    %v4832 = vunpack.c.l.b16 %v1384
    %v4833 = vunpack.c.h.b16 %v1384
    %v4834 = vunpack.c.l.b16 %v1385
    %v4835 = vunpack.c.h.b16 %v1385
    %v4836 = vunpack.c.l.b16 %v1386
    %v4837 = vunpack.c.h.b16 %v1386
    %v4838 = vunpack.c.l.b16 %v1387
    %v4839 = vunpack.c.h.b16 %v1387
    %v4840 = vunpack.c.l.b16 %v1388
    %v4841 = vunpack.c.h.b16 %v1388
    %v4842 = vunpack.c.l.b16 %v1389
    %v4843 = vunpack.c.h.b16 %v1389
    %v4844 = vunpack.c.l.b16 %v1390
    %v4845 = vunpack.c.h.b16 %v1390
    %v4846 = vunpack.c.l.b16 %v1391
    %v4847 = vunpack.c.h.b16 %v1391
    %v4848 = vunpack.c.l.b16 %v1392
    %v4849 = vunpack.c.h.b16 %v1392
    %v4850 = vunpack.c.l.b16 %v1393
    %v4851 = vunpack.c.h.b16 %v1393
    %v4852 = vunpack.c.l.b16 %v1394
    %v4853 = vunpack.c.h.b16 %v1394
    %v4854 = vunpack.c.l.b16 %v1395
    %v4855 = vunpack.c.h.b16 %v1395
    %v4856 = vunpack.c.l.b16 %v1396
    %v4857 = vunpack.c.h.b16 %v1396
    %v4858 = vunpack.c.l.b16 %v1397
    %v4859 = vunpack.c.h.b16 %v1397
    %v4860 = vunpack.c.l.b16 %v1398
    %v4861 = vunpack.c.h.b16 %v1398
    %v4862 = vunpack.c.l.b16 %v1399
    %v4863 = vunpack.c.h.b16 %v1399
    %v4864 = vunpack.c.l.b16 %v1400
    %v4865 = vunpack.c.h.b16 %v1400
    %v4866 = vunpack.c.l.b16 %v1401
    %v4867 = vunpack.c.h.b16 %v1401
    %v4868 = vunpack.c.l.b16 %v1402
    %v4869 = vunpack.c.h.b16 %v1402
    %v4870 = vunpack.c.l.b16 %v1403
    %v4871 = vunpack.c.h.b16 %v1403
    %v4872 = vunpack.c.l.b16 %v1404
    %v4873 = vunpack.c.h.b16 %v1404
    %v4874 = vunpack.c.l.b16 %v1405
    %v4875 = vunpack.c.h.b16 %v1405
    %v4876 = vunpack.c.l.b16 %v1406
    %v4877 = vunpack.c.h.b16 %v1406
    %v4878 = vunpack.c.l.b16 %v1407
    %v4879 = vunpack.c.h.b16 %v1407
    %v4880 = vunpack.c.l.b16 %v1408
    %v4881 = vunpack.c.h.b16 %v1408
    %v4882 = vunpack.c.l.b16 %v1409
    %v4883 = vunpack.c.h.b16 %v1409
    %v4884 = vunpack.c.l.b16 %v1410
    %v4885 = vunpack.c.h.b16 %v1410
    %v4886 = vunpack.c.l.b16 %v1411
    %v4887 = vunpack.c.h.b16 %v1411
    %v4888 = vunpack.c.l.b16 %v1412
    %v4889 = vunpack.c.h.b16 %v1412
    %v4890 = vunpack.c.l.b16 %v1413
    %v4891 = vunpack.c.h.b16 %v1413
    %v4892 = vunpack.c.l.b16 %v1414
    %v4893 = vunpack.c.h.b16 %v1414
    %v4894 = vunpack.c.l.b16 %v1415
    %v4895 = vunpack.c.h.b16 %v1415
    %v4896 = vunpack.c.l.b16 %v1416
    %v4897 = vunpack.c.h.b16 %v1416
    %v4898 = vunpack.c.l.b16 %v1417
    %v4899 = vunpack.c.h.b16 %v1417
    %v4900 = vunpack.c.l.b16 %v1418
    %v4901 = vunpack.c.h.b16 %v1418
    %v4902 = vunpack.c.l.b16 %v1419
    %v4903 = vunpack.c.h.b16 %v1419
    %v4904 = vunpack.c.l.b16 %v1420
    %v4905 = vunpack.c.h.b16 %v1420
    %v4906 = vunpack.c.l.b16 %v1421
    %v4907 = vunpack.c.h.b16 %v1421
    %v4908 = vunpack.c.l.b16 %v1422
    %v4909 = vunpack.c.h.b16 %v1422
    %v4910 = vunpack.c.l.b16 %v1423
    %v4911 = vunpack.c.h.b16 %v1423
    %v4912 = vunpack.c.l.b16 %v1424
    %v4913 = vunpack.c.h.b16 %v1424
    %v4914 = vunpack.c.l.b16 %v1425
    %v4915 = vunpack.c.h.b16 %v1425
    %v4916 = vunpack.c.l.b16 %v1426
    %v4917 = vunpack.c.h.b16 %v1426
    %v4918 = vunpack.c.l.b16 %v1427
    %v4919 = vunpack.c.h.b16 %v1427
    %v4920 = vunpack.c.l.b16 %v1428
    %v4921 = vunpack.c.h.b16 %v1428
    %v4922 = vunpack.c.l.b16 %v1429
    %v4923 = vunpack.c.h.b16 %v1429
    %v4924 = vunpack.c.l.b16 %v1430
    %v4925 = vunpack.c.h.b16 %v1430
    %v4926 = vunpack.c.l.b16 %v1431
    %v4927 = vunpack.c.h.b16 %v1431
    %v4928 = vunpack.c.l.b16 %v1432
    %v4929 = vunpack.c.h.b16 %v1432
    %v4930 = vunpack.c.l.b16 %v1433
    %v4931 = vunpack.c.h.b16 %v1433
    %v4932 = vunpack.c.l.b16 %v1434
    %v4933 = vunpack.c.h.b16 %v1434
    %v4934 = vunpack.c.l.b16 %v1435
    %v4935 = vunpack.c.h.b16 %v1435
    %v4936 = vunpack.c.l.b16 %v1436
    %v4937 = vunpack.c.h.b16 %v1436
    %v4938 = vunpack.c.l.b16 %v1437
    %v4939 = vunpack.c.h.b16 %v1437
    %v4940 = vunpack.c.l.b16 %v1438
    %v4941 = vunpack.c.h.b16 %v1438
    %v4942 = vunpack.c.l.b16 %v1439
    %v4943 = vunpack.c.h.b16 %v1439
    %v4944 = vunpack.c.l.b16 %v1440
    %v4945 = vunpack.c.h.b16 %v1440
    %v4946 = vunpack.c.l.b16 %v1441
    %v4947 = vunpack.c.h.b16 %v1441
    %v4948 = vunpack.c.l.b16 %v1442
    %v4949 = vunpack.c.h.b16 %v1442
    %v4950 = vunpack.c.l.b16 %v1443
    %v4951 = vunpack.c.h.b16 %v1443
    %v4952 = vunpack.c.l.b16 %v1444
    %v4953 = vunpack.c.h.b16 %v1444
    %v4954 = vunpack.c.l.b16 %v1445
    %v4955 = vunpack.c.h.b16 %v1445
    %v4956 = vunpack.c.l.b16 %v1446
    %v4957 = vunpack.c.h.b16 %v1446
    %v4958 = vunpack.c.l.b16 %v1447
    %v4959 = vunpack.c.h.b16 %v1447
    %v4960 = vunpack.c.l.b16 %v1448
    %v4961 = vunpack.c.h.b16 %v1448
    %v4962 = vunpack.c.l.b16 %v1449
    %v4963 = vunpack.c.h.b16 %v1449
    %v4964 = vunpack.c.l.b16 %v1450
    %v4965 = vunpack.c.h.b16 %v1450
    %v4966 = vunpack.c.l.b16 %v1451
    %v4967 = vunpack.c.h.b16 %v1451
    %v4968 = vunpack.c.l.b16 %v1452
    %v4969 = vunpack.c.h.b16 %v1452
    %v4970 = vunpack.c.l.b16 %v1453
    %v4971 = vunpack.c.h.b16 %v1453
    %v4972 = vunpack.c.l.b16 %v1454
    %v4973 = vunpack.c.h.b16 %v1454
    %v4974 = vunpack.c.l.b16 %v1455
    %v4975 = vunpack.c.h.b16 %v1455
    %v4976 = vunpack.c.l.b16 %v1456
    %v4977 = vunpack.c.h.b16 %v1456
    %v4978 = vunpack.c.l.b16 %v1457
    %v4979 = vunpack.c.h.b16 %v1457
    %v4980 = vunpack.c.l.b16 %v1458
    %v4981 = vunpack.c.h.b16 %v1458
    %v4982 = vunpack.c.l.b16 %v1459
    %v4983 = vunpack.c.h.b16 %v1459
    %v4984 = vunpack.c.l.b16 %v1460
    %v4985 = vunpack.c.h.b16 %v1460
    %v4986 = vunpack.c.l.b16 %v1461
    %v4987 = vunpack.c.h.b16 %v1461
    %v4988 = vunpack.c.l.b16 %v1462
    %v4989 = vunpack.c.h.b16 %v1462
    %v4990 = vunpack.c.l.b16 %v1463
    %v4991 = vunpack.c.h.b16 %v1463
    %v4992 = vunpack.c.l.b16 %v1464
    %v4993 = vunpack.c.h.b16 %v1464
    %v4994 = vunpack.c.l.b16 %v1465
    %v4995 = vunpack.c.h.b16 %v1465
    %v4996 = vunpack.c.l.b16 %v1466
    %v4997 = vunpack.c.h.b16 %v1466
    %v4998 = vunpack.c.l.b16 %v1467
    %v4999 = vunpack.c.h.b16 %v1467
    %v5000 = vunpack.c.l.b16 %v1468
    %v5001 = vunpack.c.h.b16 %v1468
    %v5002 = vunpack.c.l.b16 %v1469
    %v5003 = vunpack.c.h.b16 %v1469
    %v5004 = vunpack.c.l.b16 %v1470
    %v5005 = vunpack.c.h.b16 %v1470
    %v5006 = vunpack.c.l.b16 %v1471
    %v5007 = vunpack.c.h.b16 %v1471
    %v5008 = vunpack.c.l.b16 %v1472
    %v5009 = vunpack.c.h.b16 %v1472
    %v5010 = vunpack.c.l.b16 %v1473
    %v5011 = vunpack.c.h.b16 %v1473
    %v5012 = vunpack.c.l.b16 %v1474
    %v5013 = vunpack.c.h.b16 %v1474
    %v5014 = vunpack.c.l.b16 %v1475
    %v5015 = vunpack.c.h.b16 %v1475
    %v5016 = vunpack.c.l.b16 %v1476
    %v5017 = vunpack.c.h.b16 %v1476
    %v5018 = vunpack.c.l.b16 %v1477
    %v5019 = vunpack.c.h.b16 %v1477
    %v5020 = vunpack.c.l.b16 %v1478
    %v5021 = vunpack.c.h.b16 %v1478
    %v5022 = vunpack.c.l.b16 %v1479
    %v5023 = vunpack.c.h.b16 %v1479
    %v5024 = vunpack.c.l.b16 %v1480
    %v5025 = vunpack.c.h.b16 %v1480
    %v5026 = vunpack.c.l.b16 %v1481
    %v5027 = vunpack.c.h.b16 %v1481
    %v5028 = vunpack.c.l.b16 %v1482
    %v5029 = vunpack.c.h.b16 %v1482
    %v5030 = vunpack.c.l.b16 %v1483
    %v5031 = vunpack.c.h.b16 %v1483
    %v5032 = vunpack.c.l.b16 %v1484
    %v5033 = vunpack.c.h.b16 %v1484
    %v5034 = vunpack.c.l.b16 %v1485
    %v5035 = vunpack.c.h.b16 %v1485
    %v5036 = vunpack.c.l.b16 %v1486
    %v5037 = vunpack.c.h.b16 %v1486
    %v5038 = vunpack.c.l.b16 %v1487
    %v5039 = vunpack.c.h.b16 %v1487
    %v5040 = vunpack.c.l.b16 %v1488
    %v5041 = vunpack.c.h.b16 %v1488
    %v5042 = vunpack.c.l.b16 %v1489
    %v5043 = vunpack.c.h.b16 %v1489
    %v5044 = vunpack.c.l.b16 %v1490
    %v5045 = vunpack.c.h.b16 %v1490
    %v5046 = vunpack.c.l.b16 %v1491
    %v5047 = vunpack.c.h.b16 %v1491
    %v5048 = vunpack.c.l.b16 %v1492
    %v5049 = vunpack.c.h.b16 %v1492
    %v5050 = vunpack.c.l.b16 %v1493
    %v5051 = vunpack.c.h.b16 %v1493
    %v5052 = vunpack.c.l.b16 %v1494
    %v5053 = vunpack.c.h.b16 %v1494
    %v5054 = vunpack.c.l.b16 %v1495
    %v5055 = vunpack.c.h.b16 %v1495
    %v5056 = vunpack.c.l.b16 %v1496
    %v5057 = vunpack.c.h.b16 %v1496
    %v5058 = vunpack.c.l.b16 %v1497
    %v5059 = vunpack.c.h.b16 %v1497
    %v5060 = vunpack.c.l.b16 %v1498
    %v5061 = vunpack.c.h.b16 %v1498
    %v5062 = vunpack.c.l.b16 %v1499
    %v5063 = vunpack.c.h.b16 %v1499
    %v5064 = vunpack.c.l.b16 %v1500
    %v5065 = vunpack.c.h.b16 %v1500
    %v5066 = vunpack.c.l.b16 %v1501
    %v5067 = vunpack.c.h.b16 %v1501
    %v5068 = vunpack.c.l.b16 %v1502
    %v5069 = vunpack.c.h.b16 %v1502
    %v5070 = vunpack.c.l.b16 %v1503
    %v5071 = vunpack.c.h.b16 %v1503
    %v5072 = vunpack.c.l.b16 %v1504
    %v5073 = vunpack.c.h.b16 %v1504
    %v5074 = vunpack.c.l.b16 %v1505
    %v5075 = vunpack.c.h.b16 %v1505
    %v5076 = vunpack.c.l.b16 %v1506
    %v5077 = vunpack.c.h.b16 %v1506
    %v5078 = vunpack.c.l.b16 %v1507
    %v5079 = vunpack.c.h.b16 %v1507
    %v5080 = vunpack.c.l.b16 %v1508
    %v5081 = vunpack.c.h.b16 %v1508
    %v5082 = vunpack.c.l.b16 %v1509
    %v5083 = vunpack.c.h.b16 %v1509
    %v5084 = vunpack.c.l.b16 %v1510
    %v5085 = vunpack.c.h.b16 %v1510
    %v5086 = vunpack.c.l.b16 %v1511
    %v5087 = vunpack.c.h.b16 %v1511
    %v5088 = vunpack.c.l.b16 %v1512
    %v5089 = vunpack.c.h.b16 %v1512
    %v5090 = vunpack.c.l.b16 %v1513
    %v5091 = vunpack.c.h.b16 %v1513
    %v5092 = vunpack.c.l.b16 %v1514
    %v5093 = vunpack.c.h.b16 %v1514
    %v5094 = vunpack.c.l.b16 %v1515
    %v5095 = vunpack.c.h.b16 %v1515
    %v5096 = vunpack.c.l.b16 %v1516
    %v5097 = vunpack.c.h.b16 %v1516
    %v5098 = vunpack.c.l.b16 %v1517
    %v5099 = vunpack.c.h.b16 %v1517
    %v5100 = vunpack.c.l.b16 %v1518
    %v5101 = vunpack.c.h.b16 %v1518
    %v5102 = vunpack.c.l.b16 %v1519
    %v5103 = vunpack.c.h.b16 %v1519
    %v5104 = vunpack.c.l.b16 %v1520
    %v5105 = vunpack.c.h.b16 %v1520
    %v5106 = vunpack.c.l.b16 %v1521
    %v5107 = vunpack.c.h.b16 %v1521
    %v5108 = vunpack.c.l.b16 %v1522
    %v5109 = vunpack.c.h.b16 %v1522
    %v5110 = vunpack.c.l.b16 %v1523
    %v5111 = vunpack.c.h.b16 %v1523
    %v5112 = vunpack.c.l.b16 %v1524
    %v5113 = vunpack.c.h.b16 %v1524
    %v5114 = vunpack.c.l.b16 %v1525
    %v5115 = vunpack.c.h.b16 %v1525
    %v5116 = vunpack.c.l.b16 %v1526
    %v5117 = vunpack.c.h.b16 %v1526
    %v5118 = vunpack.c.l.b16 %v1527
    %v5119 = vunpack.c.h.b16 %v1527
    %v5120 = vunpack.c.l.b16 %v1528
    %v5121 = vunpack.c.h.b16 %v1528
    %v5122 = vunpack.c.l.b16 %v1529
    %v5123 = vunpack.c.h.b16 %v1529
    %v5124 = vunpack.c.l.b16 %v1530
    %v5125 = vunpack.c.h.b16 %v1530
    %v5126 = vunpack.c.l.b16 %v1531
    %v5127 = vunpack.c.h.b16 %v1531
    %v5128 = vunpack.c.l.b16 %v1532
    %v5129 = vunpack.c.h.b16 %v1532
    %v5130 = vunpack.c.l.b16 %v1533
    %v5131 = vunpack.c.h.b16 %v1533
    %v5132 = vunpack.c.l.b16 %v1534
    %v5133 = vunpack.c.h.b16 %v1534
    %v5134 = vunpack.c.l.b16 %v1535
    %v5135 = vunpack.c.h.b16 %v1535
    %v5136 = vunpack.c.l.b16 %v1536
    %v5137 = vunpack.c.h.b16 %v1536
    %v5138 = vunpack.c.l.b16 %v1537
    %v5139 = vunpack.c.h.b16 %v1537
    %v5140 = vunpack.c.l.b16 %v1538
    %v5141 = vunpack.c.h.b16 %v1538
    %v5142 = vunpack.c.l.b16 %v1539
    %v5143 = vunpack.c.h.b16 %v1539
    %v5144 = vunpack.c.l.b16 %v1540
    %v5145 = vunpack.c.h.b16 %v1540
    %v5146 = vunpack.c.l.b16 %v1541
    %v5147 = vunpack.c.h.b16 %v1541
    %v5148 = vunpack.c.l.b16 %v1542
    %v5149 = vunpack.c.h.b16 %v1542
    %v5150 = vunpack.c.l.b16 %v1543
    %v5151 = vunpack.c.h.b16 %v1543
    %v5152 = vunpack.c.l.b16 %v1544
    %v5153 = vunpack.c.h.b16 %v1544
    %v5154 = vunpack.c.l.b16 %v1545
    %v5155 = vunpack.c.h.b16 %v1545
    %v5156 = vunpack.c.l.b16 %v1546
    %v5157 = vunpack.c.h.b16 %v1546
    %v5158 = vunpack.c.l.b16 %v1547
    %v5159 = vunpack.c.h.b16 %v1547
    %v5160 = vunpack.c.l.b16 %v1548
    %v5161 = vunpack.c.h.b16 %v1548
    %v5162 = vunpack.c.l.b16 %v1549
    %v5163 = vunpack.c.h.b16 %v1549
    %v5164 = vunpack.c.l.b16 %v1550
    %v5165 = vunpack.c.h.b16 %v1550
    %v5166 = vunpack.c.l.b16 %v1551
    %v5167 = vunpack.c.h.b16 %v1551
    %v5168 = vunpack.c.l.b16 %v1552
    %v5169 = vunpack.c.h.b16 %v1552
    %v5170 = vunpack.c.l.b16 %v1553
    %v5171 = vunpack.c.h.b16 %v1553
    %v5172 = vunpack.c.l.b16 %v1554
    %v5173 = vunpack.c.h.b16 %v1554
    %v5174 = vunpack.c.l.b16 %v1555
    %v5175 = vunpack.c.h.b16 %v1555
    %v5176 = vunpack.c.l.b16 %v1556
    %v5177 = vunpack.c.h.b16 %v1556
    %v5178 = vunpack.c.l.b16 %v1557
    %v5179 = vunpack.c.h.b16 %v1557
    %v5180 = vunpack.c.l.b16 %v1558
    %v5181 = vunpack.c.h.b16 %v1558
    %v5182 = vunpack.c.l.b16 %v1559
    %v5183 = vunpack.c.h.b16 %v1559
    %v5184 = vunpack.c.l.b16 %v1560
    %v5185 = vunpack.c.h.b16 %v1560
    %v5186 = vunpack.c.l.b16 %v1561
    %v5187 = vunpack.c.h.b16 %v1561
    %v5188 = vunpack.c.l.b16 %v1562
    %v5189 = vunpack.c.h.b16 %v1562
    %v5190 = vunpack.c.l.b16 %v1563
    %v5191 = vunpack.c.h.b16 %v1563
    %v5192 = vunpack.c.l.b16 %v1564
    %v5193 = vunpack.c.h.b16 %v1564
    %v5194 = vunpack.c.l.b16 %v1565
    %v5195 = vunpack.c.h.b16 %v1565
    %v5196 = vunpack.c.l.b16 %v1566
    %v5197 = vunpack.c.h.b16 %v1566
    %v5198 = vunpack.c.l.b16 %v1567
    %v5199 = vunpack.c.h.b16 %v1567
    %v5200 = vunpack.c.l.b16 %v1568
    %v5201 = vunpack.c.h.b16 %v1568
    %v5202 = vunpack.c.l.b16 %v1569
    %v5203 = vunpack.c.h.b16 %v1569
    %v5204 = vunpack.c.l.b16 %v1570
    %v5205 = vunpack.c.h.b16 %v1570
    %v5206 = vunpack.c.l.b16 %v1571
    %v5207 = vunpack.c.h.b16 %v1571
    %v5208 = vunpack.c.l.b16 %v1572
    %v5209 = vunpack.c.h.b16 %v1572
    %v5210 = vunpack.c.l.b16 %v1573
    %v5211 = vunpack.c.h.b16 %v1573
    %v5212 = vunpack.c.l.b16 %v1574
    %v5213 = vunpack.c.h.b16 %v1574
    %v5214 = vunpack.c.l.b16 %v1575
    %v5215 = vunpack.c.h.b16 %v1575
    %v5216 = vunpack.c.l.b16 %v1576
    %v5217 = vunpack.c.h.b16 %v1576
    %v5218 = vunpack.c.l.b16 %v1577
    %v5219 = vunpack.c.h.b16 %v1577
    %v5220 = vunpack.c.l.b16 %v1578
    %v5221 = vunpack.c.h.b16 %v1578
    %v5222 = vunpack.c.l.b16 %v1579
    %v5223 = vunpack.c.h.b16 %v1579
    %v5224 = vunpack.c.l.b16 %v1580
    %v5225 = vunpack.c.h.b16 %v1580
    %v5226 = vunpack.c.l.b16 %v1581
    %v5227 = vunpack.c.h.b16 %v1581
    %v5228 = vunpack.c.l.b16 %v1582
    %v5229 = vunpack.c.h.b16 %v1582
    %v5230 = vunpack.c.l.b16 %v1583
    %v5231 = vunpack.c.h.b16 %v1583
    %v5232 = vunpack.c.l.b16 %v1584
    %v5233 = vunpack.c.h.b16 %v1584
    %v5234 = vunpack.c.l.b16 %v1585
    %v5235 = vunpack.c.h.b16 %v1585
    %v5236 = vunpack.c.l.b16 %v1586
    %v5237 = vunpack.c.h.b16 %v1586
    %v5238 = vunpack.c.l.b16 %v1587
    %v5239 = vunpack.c.h.b16 %v1587
    %v5240 = vunpack.c.l.b16 %v1588
    %v5241 = vunpack.c.h.b16 %v1588
    %v5242 = vunpack.c.l.b16 %v1589
    %v5243 = vunpack.c.h.b16 %v1589
    %v5244 = vunpack.c.l.b16 %v1590
    %v5245 = vunpack.c.h.b16 %v1590
    %v5246 = vunpack.c.l.b16 %v1591
    %v5247 = vunpack.c.h.b16 %v1591
    %v5248 = vunpack.c.l.b16 %v1592
    %v5249 = vunpack.c.h.b16 %v1592
    %v5250 = vunpack.c.l.b16 %v1593
    %v5251 = vunpack.c.h.b16 %v1593
    %v5252 = vunpack.c.l.b16 %v1594
    %v5253 = vunpack.c.h.b16 %v1594
    %v5254 = vunpack.c.l.b16 %v1595
    %v5255 = vunpack.c.h.b16 %v1595
    %v5256 = vunpack.c.l.b16 %v1596
    %v5257 = vunpack.c.h.b16 %v1596
    %v5258 = vunpack.c.l.b16 %v1597
    %v5259 = vunpack.c.h.b16 %v1597
    %v5260 = vunpack.c.l.b16 %v1598
    %v5261 = vunpack.c.h.b16 %v1598
    %v5262 = vunpack.c.l.b16 %v1599
    %v5263 = vunpack.c.h.b16 %v1599
    %v5264 = vunpack.c.l.b16 %v1600
    %v5265 = vunpack.c.h.b16 %v1600
    %v5266 = vunpack.c.l.b16 %v1601
    %v5267 = vunpack.c.h.b16 %v1601
    %v5268 = vunpack.c.l.b16 %v1602
    %v5269 = vunpack.c.h.b16 %v1602
    %v5270 = vunpack.c.l.b16 %v1603
    %v5271 = vunpack.c.h.b16 %v1603
    %v5272 = vunpack.c.l.b16 %v1604
    %v5273 = vunpack.c.h.b16 %v1604
    %v5274 = vunpack.c.l.b16 %v1605
    %v5275 = vunpack.c.h.b16 %v1605
    %v5276 = vunpack.c.l.b16 %v1606
    %v5277 = vunpack.c.h.b16 %v1606
    %v5278 = vunpack.c.l.b16 %v1607
    %v5279 = vunpack.c.h.b16 %v1607
    %v5280 = vunpack.c.l.b16 %v1608
    %v5281 = vunpack.c.h.b16 %v1608
    %v5282 = vunpack.c.l.b16 %v1609
    %v5283 = vunpack.c.h.b16 %v1609
    %v5284 = vunpack.c.l.b16 %v1610
    %v5285 = vunpack.c.h.b16 %v1610
    %v5286 = vunpack.c.l.b16 %v1611
    %v5287 = vunpack.c.h.b16 %v1611
    %v5288 = vunpack.c.l.b16 %v1612
    %v5289 = vunpack.c.h.b16 %v1612
    %v5290 = vunpack.c.l.b16 %v1613
    %v5291 = vunpack.c.h.b16 %v1613
    %v5292 = vunpack.c.l.b16 %v1614
    %v5293 = vunpack.c.h.b16 %v1614
    %v5294 = vunpack.c.l.b16 %v1615
    %v5295 = vunpack.c.h.b16 %v1615
    %v5296 = vunpack.c.l.b16 %v1616
    %v5297 = vunpack.c.h.b16 %v1616
    %v5298 = vunpack.c.l.b16 %v1617
    %v5299 = vunpack.c.h.b16 %v1617
    %v5300 = vunpack.c.l.b16 %v1618
    %v5301 = vunpack.c.h.b16 %v1618
    %v5302 = vunpack.c.l.b16 %v1619
    %v5303 = vunpack.c.h.b16 %v1619
    %v5304 = vunpack.c.l.b16 %v1620
    %v5305 = vunpack.c.h.b16 %v1620
    %v5306 = vunpack.c.l.b16 %v1621
    %v5307 = vunpack.c.h.b16 %v1621
    %v5308 = vunpack.c.l.b16 %v1622
    %v5309 = vunpack.c.h.b16 %v1622
    %v5310 = vunpack.c.l.b16 %v1623
    %v5311 = vunpack.c.h.b16 %v1623
    %v5312 = vunpack.c.l.b16 %v1624
    %v5313 = vunpack.c.h.b16 %v1624
    %v5314 = vunpack.c.l.b16 %v1625
    %v5315 = vunpack.c.h.b16 %v1625
    %v5316 = vunpack.c.l.b16 %v1626
    %v5317 = vunpack.c.h.b16 %v1626
    %v5318 = vunpack.c.l.b16 %v1627
    %v5319 = vunpack.c.h.b16 %v1627
    %v5320 = vunpack.c.l.b16 %v1628
    %v5321 = vunpack.c.h.b16 %v1628
    %v5322 = vunpack.c.l.b16 %v1629
    %v5323 = vunpack.c.h.b16 %v1629
    %v5324 = vunpack.c.l.b16 %v1630
    %v5325 = vunpack.c.h.b16 %v1630
    %v5326 = vunpack.c.l.b16 %v1631
    %v5327 = vunpack.c.h.b16 %v1631
    %v5328 = vunpack.c.l.b16 %v1632
    %v5329 = vunpack.c.h.b16 %v1632
    %v5330 = vunpack.c.l.b16 %v1633
    %v5331 = vunpack.c.h.b16 %v1633
    %v5332 = vunpack.c.l.b16 %v1634
    %v5333 = vunpack.c.h.b16 %v1634
    %v5334 = vunpack.c.l.b16 %v1635
    %v5335 = vunpack.c.h.b16 %v1635
    %v5336 = vunpack.c.l.b16 %v1636
    %v5337 = vunpack.c.h.b16 %v1636
    %v5338 = vunpack.c.l.b16 %v1637
    %v5339 = vunpack.c.h.b16 %v1637
    %v5340 = vunpack.c.l.b16 %v1638
    %v5341 = vunpack.c.h.b16 %v1638
    %v5342 = vunpack.c.l.b16 %v1639
    %v5343 = vunpack.c.h.b16 %v1639
    %v5344 = vunpack.c.l.b16 %v1640
    %v5345 = vunpack.c.h.b16 %v1640
    %v5346 = vunpack.c.l.b16 %v1641
    %v5347 = vunpack.c.h.b16 %v1641
    %v5348 = vunpack.c.l.b16 %v1642
    %v5349 = vunpack.c.h.b16 %v1642
    %v5350 = vunpack.c.l.b16 %v1643
    %v5351 = vunpack.c.h.b16 %v1643
    %v5352 = vunpack.c.l.b16 %v1644
    %v5353 = vunpack.c.h.b16 %v1644
    %v5354 = vunpack.c.l.b16 %v1645
    %v5355 = vunpack.c.h.b16 %v1645
    %v5356 = vunpack.c.l.b16 %v1646
    %v5357 = vunpack.c.h.b16 %v1646
    %v5358 = vunpack.c.l.b16 %v1647
    %v5359 = vunpack.c.h.b16 %v1647
    %v5360 = vunpack.c.l.b16 %v1648
    %v5361 = vunpack.c.h.b16 %v1648
    %v5362 = vunpack.c.l.b16 %v1649
    %v5363 = vunpack.c.h.b16 %v1649
    %v5364 = vunpack.c.l.b16 %v1650
    %v5365 = vunpack.c.h.b16 %v1650
    %v5366 = vunpack.c.l.b16 %v1651
    %v5367 = vunpack.c.h.b16 %v1651
    %v5368 = vunpack.c.l.b16 %v1652
    %v5369 = vunpack.c.h.b16 %v1652
    %v5370 = vunpack.c.l.b16 %v1653
    %v5371 = vunpack.c.h.b16 %v1653
    %v5372 = vunpack.c.l.b16 %v1654
    %v5373 = vunpack.c.h.b16 %v1654
    %v5374 = vunpack.c.l.b16 %v1655
    %v5375 = vunpack.c.h.b16 %v1655
    %v5376 = vunpack.c.l.b16 %v1656
    %v5377 = vunpack.c.h.b16 %v1656
    %v5378 = vunpack.c.l.b16 %v1657
    %v5379 = vunpack.c.h.b16 %v1657
    %v5380 = vunpack.c.l.b16 %v1658
    %v5381 = vunpack.c.h.b16 %v1658
    %v5382 = vunpack.c.l.b16 %v1659
    %v5383 = vunpack.c.h.b16 %v1659
    %v5384 = vunpack.c.l.b16 %v1660
    %v5385 = vunpack.c.h.b16 %v1660
    %v5386 = vunpack.c.l.b16 %v1661
    %v5387 = vunpack.c.h.b16 %v1661
    %v5388 = vunpack.c.l.b16 %v1662
    %v5389 = vunpack.c.h.b16 %v1662
    %v5390 = vunpack.c.l.b16 %v1663
    %v5391 = vunpack.c.h.b16 %v1663
    %v5392 = vunpack.c.l.b16 %v1664
    %v5393 = vunpack.c.h.b16 %v1664
    %v5394 = vunpack.c.l.b16 %v1665
    %v5395 = vunpack.c.h.b16 %v1665
    %v5396 = vunpack.c.l.b16 %v1666
    %v5397 = vunpack.c.h.b16 %v1666
    %v5398 = vunpack.c.l.b16 %v1667
    %v5399 = vunpack.c.h.b16 %v1667
    %v5400 = vunpack.c.l.b16 %v1668
    %v5401 = vunpack.c.h.b16 %v1668
    %v5402 = vunpack.c.l.b16 %v1669
    %v5403 = vunpack.c.h.b16 %v1669
    %v5404 = vunpack.c.l.b16 %v1670
    %v5405 = vunpack.c.h.b16 %v1670
    %v5406 = vunpack.c.l.b16 %v1671
    %v5407 = vunpack.c.h.b16 %v1671
    %v5408 = vunpack.c.l.b16 %v1672
    %v5409 = vunpack.c.h.b16 %v1672
    %v5410 = vunpack.c.l.b16 %v1673
    %v5411 = vunpack.c.h.b16 %v1673
    %v5412 = vunpack.c.l.b16 %v1674
    %v5413 = vunpack.c.h.b16 %v1674
    %v5414 = vunpack.c.l.b16 %v1675
    %v5415 = vunpack.c.h.b16 %v1675
    %v5416 = vunpack.c.l.b16 %v1676
    %v5417 = vunpack.c.h.b16 %v1676
    %v5418 = vunpack.c.l.b16 %v1677
    %v5419 = vunpack.c.h.b16 %v1677
    %v5420 = vunpack.c.l.b16 %v1678
    %v5421 = vunpack.c.h.b16 %v1678
    %v5422 = vunpack.c.l.b16 %v1679
    %v5423 = vunpack.c.h.b16 %v1679
    %v5424 = vunpack.c.l.b16 %v1680
    %v5425 = vunpack.c.h.b16 %v1680
    %v5426 = vunpack.c.l.b16 %v1681
    %v5427 = vunpack.c.h.b16 %v1681
    %v5428 = vunpack.c.l.b16 %v1682
    %v5429 = vunpack.c.h.b16 %v1682
    %v5430 = vunpack.c.l.b16 %v1683
    %v5431 = vunpack.c.h.b16 %v1683
    %v5432 = vunpack.c.l.b16 %v1684
    %v5433 = vunpack.c.h.b16 %v1684
    %v5434 = vunpack.c.l.b16 %v1685
    %v5435 = vunpack.c.h.b16 %v1685
    %v5436 = vunpack.c.l.b16 %v1686
    %v5437 = vunpack.c.h.b16 %v1686
    %v5438 = vunpack.c.l.b16 %v1687
    %v5439 = vunpack.c.h.b16 %v1687
    %v5440 = vunpack.c.l.b16 %v1688
    %v5441 = vunpack.c.h.b16 %v1688
    %v5442 = vunpack.c.l.b16 %v1689
    %v5443 = vunpack.c.h.b16 %v1689
    %v5444 = vunpack.c.l.b16 %v1690
    %v5445 = vunpack.c.h.b16 %v1690
    %v5446 = vunpack.c.l.b16 %v1691
    %v5447 = vunpack.c.h.b16 %v1691
    %v5448 = vunpack.c.l.b16 %v1692
    %v5449 = vunpack.c.h.b16 %v1692
    %v5450 = vunpack.c.l.b16 %v1693
    %v5451 = vunpack.c.h.b16 %v1693
    %v5452 = vunpack.c.l.b16 %v1694
    %v5453 = vunpack.c.h.b16 %v1694
    %v5454 = vunpack.c.l.b16 %v1695
    %v5455 = vunpack.c.h.b16 %v1695
    %v5456 = vunpack.c.l.b16 %v1696
    %v5457 = vunpack.c.h.b16 %v1696
    %v5458 = vunpack.c.l.b16 %v1697
    %v5459 = vunpack.c.h.b16 %v1697
    %v5460 = vunpack.c.l.b16 %v1698
    %v5461 = vunpack.c.h.b16 %v1698
    %v5462 = vunpack.c.l.b16 %v1699
    %v5463 = vunpack.c.h.b16 %v1699
    %v5464 = vunpack.c.l.b16 %v1700
    %v5465 = vunpack.c.h.b16 %v1700
    %v5466 = vunpack.c.l.b16 %v1701
    %v5467 = vunpack.c.h.b16 %v1701
    %v5468 = vunpack.c.l.b16 %v1702
    %v5469 = vunpack.c.h.b16 %v1702
    %v5470 = vunpack.c.l.b16 %v1703
    %v5471 = vunpack.c.h.b16 %v1703
    %v5472 = vunpack.c.l.b16 %v1704
    %v5473 = vunpack.c.h.b16 %v1704
    %v5474 = vunpack.c.l.b16 %v1705
    %v5475 = vunpack.c.h.b16 %v1705
    %v5476 = vunpack.c.l.b16 %v1706
    %v5477 = vunpack.c.h.b16 %v1706
    %v5478 = vunpack.c.l.b16 %v1707
    %v5479 = vunpack.c.h.b16 %v1707
    %v5480 = vunpack.c.l.b16 %v1708
    %v5481 = vunpack.c.h.b16 %v1708
    %v5482 = vunpack.c.l.b16 %v1709
    %v5483 = vunpack.c.h.b16 %v1709
    %v5484 = vunpack.c.l.b16 %v1710
    %v5485 = vunpack.c.h.b16 %v1710
    %v5486 = vunpack.c.l.b16 %v1711
    %v5487 = vunpack.c.h.b16 %v1711
    %v5488 = vunpack.c.l.b16 %v1712
    %v5489 = vunpack.c.h.b16 %v1712
    %v5490 = vunpack.c.l.b16 %v1713
    %v5491 = vunpack.c.h.b16 %v1713
    %v5492 = vunpack.c.l.b16 %v1714
    %v5493 = vunpack.c.h.b16 %v1714
    %v5494 = vunpack.c.l.b16 %v1715
    %v5495 = vunpack.c.h.b16 %v1715
    %v5496 = vunpack.c.l.b16 %v1716
    %v5497 = vunpack.c.h.b16 %v1716
    %v5498 = vunpack.c.l.b16 %v1717
    %v5499 = vunpack.c.h.b16 %v1717
    %v5500 = vunpack.c.l.b16 %v1718
    %v5501 = vunpack.c.h.b16 %v1718
    %v5502 = vunpack.c.l.b16 %v1719
    %v5503 = vunpack.c.h.b16 %v1719
    %v5504 = vunpack.c.l.b16 %v1720
    %v5505 = vunpack.c.h.b16 %v1720
    %v5506 = vunpack.c.l.b16 %v1721
    %v5507 = vunpack.c.h.b16 %v1721
    %v5508 = vunpack.c.l.b16 %v1722
    %v5509 = vunpack.c.h.b16 %v1722
    %v5510 = vunpack.c.l.b16 %v1723
    %v5511 = vunpack.c.h.b16 %v1723
    %v5512 = vunpack.c.l.b16 %v1724
    %v5513 = vunpack.c.h.b16 %v1724
    %v5514 = vunpack.c.l.b16 %v1725
    %v5515 = vunpack.c.h.b16 %v1725
    %v5516 = vunpack.c.l.b16 %v1726
    %v5517 = vunpack.c.h.b16 %v1726
    %v5518 = vunpack.c.l.b16 %v1727
    %v5519 = vunpack.c.h.b16 %v1727
    %v5520 = vunpack.c.l.b16 %v1728
    %v5521 = vunpack.c.h.b16 %v1728
    %v5522 = vunpack.c.l.b16 %v1729
    %v5523 = vunpack.c.h.b16 %v1729
    %v5524 = vunpack.c.l.b16 %v1730
    %v5525 = vunpack.c.h.b16 %v1730
    %v5526 = vunpack.c.l.b16 %v1731
    %v5527 = vunpack.c.h.b16 %v1731
    %v5528 = vunpack.c.l.b16 %v1732
    %v5529 = vunpack.c.h.b16 %v1732
    %v5530 = vunpack.c.l.b16 %v1733
    %v5531 = vunpack.c.h.b16 %v1733
    %v5532 = vunpack.c.l.b16 %v1734
    %v5533 = vunpack.c.h.b16 %v1734
    %v5534 = vunpack.c.l.b16 %v1735
    %v5535 = vunpack.c.h.b16 %v1735
    %v5536 = vunpack.c.l.b16 %v1736
    %v5537 = vunpack.c.h.b16 %v1736
    %v5538 = vunpack.c.l.b16 %v1737
    %v5539 = vunpack.c.h.b16 %v1737
    %v5540 = vunpack.c.l.b16 %v1738
    %v5541 = vunpack.c.h.b16 %v1738
    %v5542 = vunpack.c.l.b16 %v1739
    %v5543 = vunpack.c.h.b16 %v1739
    %v5544 = vunpack.c.l.b16 %v1740
    %v5545 = vunpack.c.h.b16 %v1740
    %v5546 = vunpack.c.l.b16 %v1741
    %v5547 = vunpack.c.h.b16 %v1741
    %v5548 = vunpack.c.l.b16 %v1742
    %v5549 = vunpack.c.h.b16 %v1742
    %v5550 = vunpack.c.l.b16 %v1743
    %v5551 = vunpack.c.h.b16 %v1743
    %v5552 = vunpack.c.l.b16 %v1744
    %v5553 = vunpack.c.h.b16 %v1744
    %v5554 = vunpack.c.l.b16 %v1745
    %v5555 = vunpack.c.h.b16 %v1745
    %v5556 = vunpack.c.l.b16 %v1746
    %v5557 = vunpack.c.h.b16 %v1746
    %v5558 = vunpack.c.l.b16 %v1747
    %v5559 = vunpack.c.h.b16 %v1747
    %v5560 = vunpack.c.l.b16 %v1748
    %v5561 = vunpack.c.h.b16 %v1748
    %v5562 = vunpack.c.l.b16 %v1749
    %v5563 = vunpack.c.h.b16 %v1749
    %v5564 = vunpack.c.l.b16 %v1750
    %v5565 = vunpack.c.h.b16 %v1750
    %v5566 = vunpack.c.l.b16 %v1751
    %v5567 = vunpack.c.h.b16 %v1751
    %v5568 = vunpack.c.l.b16 %v1752
    %v5569 = vunpack.c.h.b16 %v1752
    %v5570 = vunpack.c.l.b16 %v1753
    %v5571 = vunpack.c.h.b16 %v1753
    %v5572 = vunpack.c.l.b16 %v1754
    %v5573 = vunpack.c.h.b16 %v1754
    %v5574 = vunpack.c.l.b16 %v1755
    %v5575 = vunpack.c.h.b16 %v1755
    %v5576 = vunpack.c.l.b16 %v1756
    %v5577 = vunpack.c.h.b16 %v1756
    %v5578 = vunpack.c.l.b16 %v1757
    %v5579 = vunpack.c.h.b16 %v1757
    %v5580 = vunpack.c.l.b16 %v1758
    %v5581 = vunpack.c.h.b16 %v1758
    %v5582 = vunpack.c.l.b16 %v1759
    %v5583 = vunpack.c.h.b16 %v1759
    %v5584 = vunpack.c.l.b16 %v1760
    %v5585 = vunpack.c.h.b16 %v1760
    %v5586 = vunpack.c.l.b16 %v1761
    %v5587 = vunpack.c.h.b16 %v1761
    %v5588 = vunpack.c.l.b16 %v1762
    %v5589 = vunpack.c.h.b16 %v1762
    %v5590 = vunpack.c.l.b16 %v1763
    %v5591 = vunpack.c.h.b16 %v1763
    %v5592 = vunpack.c.l.b16 %v1764
    %v5593 = vunpack.c.h.b16 %v1764
    %v5594 = vunpack.c.l.b16 %v1765
    %v5595 = vunpack.c.h.b16 %v1765
    %v5596 = vunpack.c.l.b16 %v1766
    %v5597 = vunpack.c.h.b16 %v1766
    %v5598 = vunpack.c.l.b16 %v1767
    %v5599 = vunpack.c.h.b16 %v1767
    %v5600 = vunpack.c.l.b16 %v1768
    %v5601 = vunpack.c.h.b16 %v1768
    %v5602 = vunpack.c.l.b16 %v1769
    %v5603 = vunpack.c.h.b16 %v1769
    %v5604 = vunpack.c.l.b16 %v1770
    %v5605 = vunpack.c.h.b16 %v1770
    %v5606 = vunpack.c.l.b16 %v1771
    %v5607 = vunpack.c.h.b16 %v1771
    %v5608 = vunpack.c.l.b16 %v1772
    %v5609 = vunpack.c.h.b16 %v1772
    %v5610 = vunpack.c.l.b16 %v1773
    %v5611 = vunpack.c.h.b16 %v1773
    %v5612 = vunpack.c.l.b16 %v1774
    %v5613 = vunpack.c.h.b16 %v1774
    %v5614 = vunpack.c.l.b16 %v1775
    %v5615 = vunpack.c.h.b16 %v1775
    %v5616 = vunpack.c.l.b16 %v1776
    %v5617 = vunpack.c.h.b16 %v1776
    %v5618 = vunpack.c.l.b16 %v1777
    %v5619 = vunpack.c.h.b16 %v1777
    %v5620 = vunpack.c.l.b16 %v1778
    %v5621 = vunpack.c.h.b16 %v1778
    %v5622 = vunpack.c.l.b16 %v1779
    %v5623 = vunpack.c.h.b16 %v1779
    %v5624 = vunpack.c.l.b16 %v1780
    %v5625 = vunpack.c.h.b16 %v1780
    %v5626 = vunpack.c.l.b16 %v1781
    %v5627 = vunpack.c.h.b16 %v1781
    %v5628 = vunpack.c.l.b16 %v1782
    %v5629 = vunpack.c.h.b16 %v1782
    %v5630 = vunpack.c.l.b16 %v1783
    %v5631 = vunpack.c.h.b16 %v1783
    %v5632 = vunpack.c.l.b16 %v1784
    %v5633 = vunpack.c.h.b16 %v1784
    %v5634 = vunpack.c.l.b16 %v1785
    %v5635 = vunpack.c.h.b16 %v1785
    %v5636 = vunpack.c.l.b16 %v1786
    %v5637 = vunpack.c.h.b16 %v1786
    %v5638 = vunpack.c.l.b16 %v1787
    %v5639 = vunpack.c.h.b16 %v1787
    %v5640 = vunpack.c.l.b16 %v1788
    %v5641 = vunpack.c.h.b16 %v1788
    %v5642 = vunpack.c.l.b16 %v1789
    %v5643 = vunpack.c.h.b16 %v1789
    %v5644 = vunpack.c.l.b16 %v1790
    %v5645 = vunpack.c.h.b16 %v1790
    %v5646 = vunpack.c.l.b16 %v1791
    %v5647 = vunpack.c.h.b16 %v1791
    %v5648 = vunpack.c.l.b16 %v1792
    %v5649 = vunpack.c.h.b16 %v1792
    %v5650 = vunpack.c.l.b16 %v1793
    %v5651 = vunpack.c.h.b16 %v1793
    %v5652 = vunpack.c.l.b16 %v1794
    %v5653 = vunpack.c.h.b16 %v1794
    %v5654 = vunpack.c.l.b16 %v1795
    %v5655 = vunpack.c.h.b16 %v1795
    %v5656 = vunpack.c.l.b16 %v1796
    %v5657 = vunpack.c.h.b16 %v1796
    %v5658 = vunpack.c.l.b16 %v1797
    %v5659 = vunpack.c.h.b16 %v1797
    %v5660 = vunpack.c.l.b16 %v1798
    %v5661 = vunpack.c.h.b16 %v1798
    %v5662 = vunpack.c.l.b16 %v1799
    %v5663 = vunpack.c.h.b16 %v1799
    %v5664 = vunpack.c.l.b16 %v1800
    %v5665 = vunpack.c.h.b16 %v1800
    %v5666 = vunpack.c.l.b16 %v1801
    %v5667 = vunpack.c.h.b16 %v1801
    %v5668 = vunpack.c.l.b16 %v1802
    %v5669 = vunpack.c.h.b16 %v1802
    %v5670 = vunpack.c.l.b16 %v1803
    %v5671 = vunpack.c.h.b16 %v1803
    %v5672 = vunpack.c.l.b16 %v1804
    %v5673 = vunpack.c.h.b16 %v1804
    %v5674 = vunpack.c.l.b16 %v1805
    %v5675 = vunpack.c.h.b16 %v1805
    %v5676 = vunpack.c.l.b16 %v1806
    %v5677 = vunpack.c.h.b16 %v1806
    %v5678 = vunpack.c.l.b16 %v1807
    %v5679 = vunpack.c.h.b16 %v1807
    %v5680 = vunpack.c.l.b16 %v1808
    %v5681 = vunpack.c.h.b16 %v1808
    %v5682 = vunpack.c.l.b16 %v1809
    %v5683 = vunpack.c.h.b16 %v1809
    %v5684 = vunpack.c.l.b16 %v1810
    %v5685 = vunpack.c.h.b16 %v1810
    %v5686 = vunpack.c.l.b16 %v1811
    %v5687 = vunpack.c.h.b16 %v1811
    %v5688 = vunpack.c.l.b16 %v1812
    %v5689 = vunpack.c.h.b16 %v1812
    %v5690 = vunpack.c.l.b16 %v1813
    %v5691 = vunpack.c.h.b16 %v1813
    %v5692 = vunpack.c.l.b16 %v1814
    %v5693 = vunpack.c.h.b16 %v1814
    %v5694 = vunpack.c.l.b16 %v1815
    %v5695 = vunpack.c.h.b16 %v1815
    %v5696 = vunpack.c.l.b16 %v1816
    %v5697 = vunpack.c.h.b16 %v1816
    %v5698 = vunpack.c.l.b16 %v1817
    %v5699 = vunpack.c.h.b16 %v1817
    %v5700 = vunpack.c.l.b16 %v1818
    %v5701 = vunpack.c.h.b16 %v1818
    %v5702 = vunpack.c.l.b16 %v1819
    %v5703 = vunpack.c.h.b16 %v1819
    %v5704 = vunpack.c.l.b16 %v1820
    %v5705 = vunpack.c.h.b16 %v1820
    %v5706 = vunpack.c.l.b16 %v1821
    %v5707 = vunpack.c.h.b16 %v1821
    %v5708 = vunpack.c.l.b16 %v1822
    %v5709 = vunpack.c.h.b16 %v1822
    %v5710 = vunpack.c.l.b16 %v1823
    %v5711 = vunpack.c.h.b16 %v1823
    %v5712 = vunpack.c.l.b16 %v1824
    %v5713 = vunpack.c.h.b16 %v1824
    %v5714 = vunpack.c.l.b16 %v1825
    %v5715 = vunpack.c.h.b16 %v1825
    %v5716 = vunpack.c.l.b16 %v1826
    %v5717 = vunpack.c.h.b16 %v1826
    %v5718 = vunpack.c.l.b16 %v1827
    %v5719 = vunpack.c.h.b16 %v1827
    %v5720 = vunpack.c.l.b16 %v1828
    %v5721 = vunpack.c.h.b16 %v1828
    %v5722 = vunpack.c.l.b16 %v1829
    %v5723 = vunpack.c.h.b16 %v1829
    %v5724 = vunpack.c.l.b16 %v1830
    %v5725 = vunpack.c.h.b16 %v1830
    %v5726 = vunpack.c.l.b16 %v1831
    %v5727 = vunpack.c.h.b16 %v1831
    %v5728 = vunpack.c.l.b16 %v1832
    %v5729 = vunpack.c.h.b16 %v1832
    %v5730 = vunpack.c.l.b16 %v1833
    %v5731 = vunpack.c.h.b16 %v1833
    %v5732 = vunpack.c.l.b16 %v1834
    %v5733 = vunpack.c.h.b16 %v1834
    %v5734 = vunpack.c.l.b16 %v1835
    %v5735 = vunpack.c.h.b16 %v1835
    %v5736 = vunpack.c.l.b16 %v1836
    %v5737 = vunpack.c.h.b16 %v1836
    %v5738 = vunpack.c.l.b16 %v1837
    %v5739 = vunpack.c.h.b16 %v1837
    %v5740 = vunpack.c.l.b16 %v1838
    %v5741 = vunpack.c.h.b16 %v1838
    %v5742 = vunpack.c.l.b16 %v1839
    %v5743 = vunpack.c.h.b16 %v1839
    %v5744 = vunpack.c.l.b16 %v1840
    %v5745 = vunpack.c.h.b16 %v1840
    %v5746 = vunpack.c.l.b16 %v1841
    %v5747 = vunpack.c.h.b16 %v1841
    %v5748 = vunpack.c.l.b16 %v1842
    %v5749 = vunpack.c.h.b16 %v1842
    %v5750 = vunpack.c.l.b16 %v1843
    %v5751 = vunpack.c.h.b16 %v1843
    %v5752 = vunpack.c.l.b16 %v1844
    %v5753 = vunpack.c.h.b16 %v1844
    %v5754 = vunpack.c.l.b16 %v1845
    %v5755 = vunpack.c.h.b16 %v1845
    %v5756 = vunpack.c.l.b16 %v1846
    %v5757 = vunpack.c.h.b16 %v1846
    %v5758 = vunpack.c.l.b16 %v1847
    %v5759 = vunpack.c.h.b16 %v1847
    %v5760 = vunpack.c.l.b16 %v1848
    %v5761 = vunpack.c.h.b16 %v1848
    %v5762 = vunpack.c.l.b16 %v1849
    %v5763 = vunpack.c.h.b16 %v1849
    %v5764 = vunpack.c.l.b16 %v1850
    %v5765 = vunpack.c.h.b16 %v1850
    %v5766 = vunpack.c.l.b16 %v1851
    %v5767 = vunpack.c.h.b16 %v1851
    %v5768 = vunpack.c.l.b16 %v1852
    %v5769 = vunpack.c.h.b16 %v1852
    %v5770 = vunpack.c.l.b16 %v1853
    %v5771 = vunpack.c.h.b16 %v1853
    %v5772 = vunpack.c.l.b16 %v1854
    %v5773 = vunpack.c.h.b16 %v1854
    %v5774 = vunpack.c.l.b16 %v1855
    %v5775 = vunpack.c.h.b16 %v1855
    %v5776 = vunpack.c.l.b16 %v1856
    %v5777 = vunpack.c.h.b16 %v1856
    %v5778 = vunpack.c.l.b16 %v1857
    %v5779 = vunpack.c.h.b16 %v1857
    %v5780 = vunpack.c.l.b16 %v1858
    %v5781 = vunpack.c.h.b16 %v1858
    %v5782 = vunpack.c.l.b16 %v1859
    %v5783 = vunpack.c.h.b16 %v1859
    %v5784 = vunpack.c.l.b16 %v1860
    %v5785 = vunpack.c.h.b16 %v1860
    %v5786 = vunpack.c.l.b16 %v1861
    %v5787 = vunpack.c.h.b16 %v1861
    %v5788 = vunpack.c.l.b16 %v1862
    %v5789 = vunpack.c.h.b16 %v1862
    %v5790 = vunpack.c.l.b16 %v1863
    %v5791 = vunpack.c.h.b16 %v1863
    %v5792 = vunpack.c.l.b16 %v1864
    %v5793 = vunpack.c.h.b16 %v1864
    %v5794 = vunpack.c.l.b16 %v1865
    %v5795 = vunpack.c.h.b16 %v1865
    %v5796 = vunpack.c.l.b16 %v1866
    %v5797 = vunpack.c.h.b16 %v1866
    %v5798 = vunpack.c.l.b16 %v1867
    %v5799 = vunpack.c.h.b16 %v1867
    %v5800 = vunpack.c.l.b16 %v1868
    %v5801 = vunpack.c.h.b16 %v1868
    %v5802 = vunpack.c.l.b16 %v1869
    %v5803 = vunpack.c.h.b16 %v1869
    %v5804 = vunpack.c.l.b16 %v1870
    %v5805 = vunpack.c.h.b16 %v1870
    %v5806 = vunpack.c.l.b16 %v1871
    %v5807 = vunpack.c.h.b16 %v1871
    %v5808 = vunpack.c.l.b16 %v1872
    %v5809 = vunpack.c.h.b16 %v1872
    %v5810 = vunpack.c.l.b16 %v1873
    %v5811 = vunpack.c.h.b16 %v1873
    %v5812 = vunpack.c.l.b16 %v1874
    %v5813 = vunpack.c.h.b16 %v1874
    %v5814 = vunpack.c.l.b16 %v1875
    %v5815 = vunpack.c.h.b16 %v1875
    %v5816 = vunpack.c.l.b16 %v1876
    %v5817 = vunpack.c.h.b16 %v1876
    %v5818 = vunpack.c.l.b16 %v1877
    %v5819 = vunpack.c.h.b16 %v1877
    %v5820 = vunpack.c.l.b16 %v1878
    %v5821 = vunpack.c.h.b16 %v1878
    %v5822 = vunpack.c.l.b16 %v1879
    %v5823 = vunpack.c.h.b16 %v1879
    %v5824 = vunpack.c.l.b16 %v1880
    %v5825 = vunpack.c.h.b16 %v1880
    %v5826 = vunpack.c.l.b16 %v1881
    %v5827 = vunpack.c.h.b16 %v1881
    %v5828 = vunpack.c.l.b16 %v1882
    %v5829 = vunpack.c.h.b16 %v1882
    %v5830 = vunpack.c.l.b16 %v1883
    %v5831 = vunpack.c.h.b16 %v1883
    %v5832 = vunpack.c.l.b16 %v1884
    %v5833 = vunpack.c.h.b16 %v1884
    %v5834 = vunpack.c.l.b16 %v1885
    %v5835 = vunpack.c.h.b16 %v1885
    %v5836 = vunpack.c.l.b16 %v1886
    %v5837 = vunpack.c.h.b16 %v1886
    %v5838 = vunpack.c.l.b16 %v1887
    %v5839 = vunpack.c.h.b16 %v1887
    %v5840 = vunpack.c.l.b16 %v1888
    %v5841 = vunpack.c.h.b16 %v1888
    %v5842 = vunpack.c.l.b16 %v1889
    %v5843 = vunpack.c.h.b16 %v1889
    %v5844 = vunpack.c.l.b16 %v1890
    %v5845 = vunpack.c.h.b16 %v1890
    %v5846 = vunpack.c.l.b16 %v1891
    %v5847 = vunpack.c.h.b16 %v1891
    %v5848 = vunpack.c.l.b16 %v1892
    %v5849 = vunpack.c.h.b16 %v1892
    %v5850 = vunpack.c.l.b16 %v1893
    %v5851 = vunpack.c.h.b16 %v1893
    %v5852 = vunpack.c.l.b16 %v1894
    %v5853 = vunpack.c.h.b16 %v1894
    %v5854 = vunpack.c.l.b16 %v1895
    %v5855 = vunpack.c.h.b16 %v1895
    %v5856 = vunpack.c.l.b16 %v1896
    %v5857 = vunpack.c.h.b16 %v1896
    %v5858 = vunpack.c.l.b16 %v1897
    %v5859 = vunpack.c.h.b16 %v1897
    %v5860 = vunpack.c.l.b16 %v1898
    %v5861 = vunpack.c.h.b16 %v1898
    %v5862 = vunpack.c.l.b16 %v1899
    %v5863 = vunpack.c.h.b16 %v1899
    %v5864 = vunpack.c.l.b16 %v1900
    %v5865 = vunpack.c.h.b16 %v1900
    %v5866 = vunpack.c.l.b16 %v1901
    %v5867 = vunpack.c.h.b16 %v1901
    %v5868 = vunpack.c.l.b16 %v1902
    %v5869 = vunpack.c.h.b16 %v1902
    %v5870 = vunpack.c.l.b16 %v1903
    %v5871 = vunpack.c.h.b16 %v1903
    %v5872 = vunpack.c.l.b16 %v1904
    %v5873 = vunpack.c.h.b16 %v1904
    %v5874 = vunpack.c.l.b16 %v1905
    %v5875 = vunpack.c.h.b16 %v1905
    %v5876 = vunpack.c.l.b16 %v1906
    %v5877 = vunpack.c.h.b16 %v1906
    %v5878 = vunpack.c.l.b16 %v1907
    %v5879 = vunpack.c.h.b16 %v1907
    %v5880 = vunpack.c.l.b16 %v1908
    %v5881 = vunpack.c.h.b16 %v1908
    %v5882 = vunpack.c.l.b16 %v1909
    %v5883 = vunpack.c.h.b16 %v1909
    %v5884 = vunpack.c.l.b16 %v1910
    %v5885 = vunpack.c.h.b16 %v1910
    %v5886 = vunpack.c.l.b16 %v1911
    %v5887 = vunpack.c.h.b16 %v1911
    %v5888 = vunpack.c.l.b16 %v1912
    %v5889 = vunpack.c.h.b16 %v1912
    %v5890 = vunpack.c.l.b16 %v1913
    %v5891 = vunpack.c.h.b16 %v1913
    %v5892 = vunpack.c.l.b16 %v1914
    %v5893 = vunpack.c.h.b16 %v1914
    %v5894 = vunpack.c.l.b16 %v1915
    %v5895 = vunpack.c.h.b16 %v1915
    %v5896 = vunpack.c.l.b16 %v1916
    %v5897 = vunpack.c.h.b16 %v1916
    %v5898 = vunpack.c.l.b16 %v1917
    %v5899 = vunpack.c.h.b16 %v1917
    %v5900 = vunpack.c.l.b16 %v1918
    %v5901 = vunpack.c.h.b16 %v1918
    %v5902 = vunpack.c.l.b16 %v1919
    %v5903 = vunpack.c.h.b16 %v1919
    %v5904 = vunpack.c.l.b16 %v1920
    %v5905 = vunpack.c.h.b16 %v1920
    %v5906 = vunpack.c.l.b16 %v1921
    %v5907 = vunpack.c.h.b16 %v1921
    %v5908 = vunpack.c.l.b16 %v1922
    %v5909 = vunpack.c.h.b16 %v1922
    %v5910 = vunpack.c.l.b16 %v1923
    %v5911 = vunpack.c.h.b16 %v1923
    %v5912 = vunpack.c.l.b16 %v1924
    %v5913 = vunpack.c.h.b16 %v1924
    %v5914 = vunpack.c.l.b16 %v1925
    %v5915 = vunpack.c.h.b16 %v1925
    %v5916 = vunpack.c.l.b16 %v1926
    %v5917 = vunpack.c.h.b16 %v1926
    %v5918 = vunpack.c.l.b16 %v1927
    %v5919 = vunpack.c.h.b16 %v1927
    %v5920 = vunpack.c.l.b16 %v1928
    %v5921 = vunpack.c.h.b16 %v1928
    %v5922 = vunpack.c.l.b16 %v1929
    %v5923 = vunpack.c.h.b16 %v1929
    %v5924 = vunpack.c.l.b16 %v1930
    %v5925 = vunpack.c.h.b16 %v1930
    %v5926 = vunpack.c.l.b16 %v1931
    %v5927 = vunpack.c.h.b16 %v1931
    %v5928 = vunpack.c.l.b16 %v1932
    %v5929 = vunpack.c.h.b16 %v1932
    %v5930 = vunpack.c.l.b16 %v1933
    %v5931 = vunpack.c.h.b16 %v1933
    %v5932 = vunpack.c.l.b16 %v1934
    %v5933 = vunpack.c.h.b16 %v1934
    %v5934 = vunpack.c.l.b16 %v1935
    %v5935 = vunpack.c.h.b16 %v1935
    %v5936 = vunpack.c.l.b16 %v1936
    %v5937 = vunpack.c.h.b16 %v1936
    %v5938 = vunpack.c.l.b16 %v1937
    %v5939 = vunpack.c.h.b16 %v1937
    %v5940 = vunpack.c.l.b16 %v1938
    %v5941 = vunpack.c.h.b16 %v1938
    %v5942 = vunpack.c.l.b16 %v1939
    %v5943 = vunpack.c.h.b16 %v1939
    %v5944 = vunpack.c.l.b16 %v1940
    %v5945 = vunpack.c.h.b16 %v1940
    %v5946 = vunpack.c.l.b16 %v1941
    %v5947 = vunpack.c.h.b16 %v1941
    %v5948 = vunpack.c.l.b16 %v1942
    %v5949 = vunpack.c.h.b16 %v1942
    %v5950 = vunpack.c.l.b16 %v1943
    %v5951 = vunpack.c.h.b16 %v1943
    %v5952 = vunpack.c.l.b16 %v1944
    %v5953 = vunpack.c.h.b16 %v1944
    %v5954 = vunpack.c.l.b16 %v1945
    %v5955 = vunpack.c.h.b16 %v1945
    %v5956 = vunpack.c.l.b16 %v1946
    %v5957 = vunpack.c.h.b16 %v1946
    %v5958 = vunpack.c.l.b16 %v1947
    %v5959 = vunpack.c.h.b16 %v1947
    %v5960 = vunpack.c.l.b16 %v1948
    %v5961 = vunpack.c.h.b16 %v1948
    %v5962 = vunpack.c.l.b16 %v1949
    %v5963 = vunpack.c.h.b16 %v1949
    %v5964 = vunpack.c.l.b16 %v1950
    %v5965 = vunpack.c.h.b16 %v1950
    %v5966 = vunpack.c.l.b16 %v1951
    %v5967 = vunpack.c.h.b16 %v1951
    %v5968 = vunpack.c.l.b16 %v1952
    %v5969 = vunpack.c.h.b16 %v1952
    %v5970 = vunpack.c.l.b16 %v1953
    %v5971 = vunpack.c.h.b16 %v1953
    %v5972 = vunpack.c.l.b16 %v1954
    %v5973 = vunpack.c.h.b16 %v1954
    %v5974 = vunpack.c.l.b16 %v1955
    %v5975 = vunpack.c.h.b16 %v1955
    %v5976 = vunpack.c.l.b16 %v1956
    %v5977 = vunpack.c.h.b16 %v1956
    %v5978 = vunpack.c.l.b16 %v1957
    %v5979 = vunpack.c.h.b16 %v1957
    %v5980 = vunpack.c.l.b16 %v1958
    %v5981 = vunpack.c.h.b16 %v1958
    %v5982 = vunpack.c.l.b16 %v1959
    %v5983 = vunpack.c.h.b16 %v1959
    %v5984 = vunpack.c.l.b16 %v1960
    %v5985 = vunpack.c.h.b16 %v1960
    %v5986 = vunpack.c.l.b16 %v1961
    %v5987 = vunpack.c.h.b16 %v1961
    %v5988 = vunpack.c.l.b16 %v1962
    %v5989 = vunpack.c.h.b16 %v1962
    %v5990 = vunpack.c.l.b16 %v1963
    %v5991 = vunpack.c.h.b16 %v1963
    %v5992 = vunpack.c.l.b16 %v1964
    %v5993 = vunpack.c.h.b16 %v1964
    %v5994 = vunpack.c.l.b16 %v1965
    %v5995 = vunpack.c.h.b16 %v1965
    %v5996 = vunpack.c.l.b16 %v1966
    %v5997 = vunpack.c.h.b16 %v1966
    %v5998 = vunpack.c.l.b16 %v1967
    %v5999 = vunpack.c.h.b16 %v1967
    %v6000 = vunpack.c.l.b16 %v1968
    %v6001 = vunpack.c.h.b16 %v1968
    %v6002 = vunpack.c.l.b16 %v1969
    %v6003 = vunpack.c.h.b16 %v1969
    %v6004 = vunpack.c.l.b16 %v1970
    %v6005 = vunpack.c.h.b16 %v1970
    %v6006 = vunpack.c.l.b16 %v1971
    %v6007 = vunpack.c.h.b16 %v1971
    %v6008 = vunpack.c.l.b16 %v1972
    %v6009 = vunpack.c.h.b16 %v1972
    %v6010 = vunpack.c.l.b16 %v1973
    %v6011 = vunpack.c.h.b16 %v1973
    %v6012 = vunpack.c.l.b16 %v1974
    %v6013 = vunpack.c.h.b16 %v1974
    %v6014 = vunpack.c.l.b16 %v1975
    %v6015 = vunpack.c.h.b16 %v1975
    %v6016 = vunpack.c.l.b16 %v1976
    %v6017 = vunpack.c.h.b16 %v1976
    %v6018 = vunpack.c.l.b16 %v1977
    %v6019 = vunpack.c.h.b16 %v1977
    %v6020 = vunpack.c.l.b16 %v1978
    %v6021 = vunpack.c.h.b16 %v1978
    %v6022 = vunpack.c.l.b16 %v1979
    %v6023 = vunpack.c.h.b16 %v1979
    %v6024 = vunpack.c.l.b16 %v1980
    %v6025 = vunpack.c.h.b16 %v1980
    %v6026 = vunpack.c.l.b16 %v1981
    %v6027 = vunpack.c.h.b16 %v1981
    %v6028 = vunpack.c.l.b16 %v1982
    %v6029 = vunpack.c.h.b16 %v1982
    %v6030 = vunpack.c.l.b16 %v1983
    %v6031 = vunpack.c.h.b16 %v1983
    %v6032 = vunpack.c.l.b16 %v1984
    %v6033 = vunpack.c.h.b16 %v1984
    %v6034 = vunpack.c.l.b16 %v1985
    %v6035 = vunpack.c.h.b16 %v1985
    %v6036 = vunpack.c.l.b16 %v1986
    %v6037 = vunpack.c.h.b16 %v1986
    %v6038 = vunpack.c.l.b16 %v1987
    %v6039 = vunpack.c.h.b16 %v1987
    %v6040 = vunpack.c.l.b16 %v1988
    %v6041 = vunpack.c.h.b16 %v1988
    %v6042 = vunpack.c.l.b16 %v1989
    %v6043 = vunpack.c.h.b16 %v1989
    %v6044 = vunpack.c.l.b16 %v1990
    %v6045 = vunpack.c.h.b16 %v1990
    %v6046 = vunpack.c.l.b16 %v1991
    %v6047 = vunpack.c.h.b16 %v1991
    %v6048 = vunpack.c.l.b16 %v1992
    %v6049 = vunpack.c.h.b16 %v1992
    %v6050 = vunpack.c.l.b16 %v1993
    %v6051 = vunpack.c.h.b16 %v1993
    %v6052 = vunpack.c.l.b16 %v1994
    %v6053 = vunpack.c.h.b16 %v1994
    %v6054 = vunpack.c.l.b16 %v1995
    %v6055 = vunpack.c.h.b16 %v1995
    %v6056 = vunpack.c.l.b16 %v1996
    %v6057 = vunpack.c.h.b16 %v1996
    %v6058 = vunpack.c.l.b16 %v1997
    %v6059 = vunpack.c.h.b16 %v1997
    %v6060 = vunpack.c.l.b16 %v1998
    %v6061 = vunpack.c.h.b16 %v1998
    %v6062 = vunpack.c.l.b16 %v1999
    %v6063 = vunpack.c.h.b16 %v1999
    %v6064 = vunpack.c.l.b16 %v2000
    %v6065 = vunpack.c.h.b16 %v2000
    %v6066 = vunpack.c.l.b16 %v2001
    %v6067 = vunpack.c.h.b16 %v2001
    %v6068 = vunpack.c.l.b16 %v2002
    %v6069 = vunpack.c.h.b16 %v2002
    %v6070 = vunpack.c.l.b16 %v2003
    %v6071 = vunpack.c.h.b16 %v2003
    %v6072 = vunpack.c.l.b16 %v2004
    %v6073 = vunpack.c.h.b16 %v2004
    %v6074 = vunpack.c.l.b16 %v2005
    %v6075 = vunpack.c.h.b16 %v2005
    %v6076 = vunpack.c.l.b16 %v2006
    %v6077 = vunpack.c.h.b16 %v2006
    %v6078 = vunpack.c.l.b16 %v2007
    %v6079 = vunpack.c.h.b16 %v2007
    %v6080 = vunpack.c.l.b16 %v2008
    %v6081 = vunpack.c.h.b16 %v2008
    %v6082 = vunpack.c.l.b16 %v2009
    %v6083 = vunpack.c.h.b16 %v2009
    %v6084 = vunpack.c.l.b16 %v2010
    %v6085 = vunpack.c.h.b16 %v2010
    %v6086 = vunpack.c.l.b16 %v2011
    %v6087 = vunpack.c.h.b16 %v2011
    %v6088 = vunpack.c.l.b16 %v2012
    %v6089 = vunpack.c.h.b16 %v2012
    %v6090 = vunpack.c.l.b16 %v2013
    %v6091 = vunpack.c.h.b16 %v2013
    %v6092 = vunpack.c.l.b16 %v2014
    %v6093 = vunpack.c.h.b16 %v2014
    %v6094 = vunpack.c.l.b16 %v2015
    %v6095 = vunpack.c.h.b16 %v2015
    %v6096 = vunpack.c.l.b16 %v2016
    %v6097 = vunpack.c.h.b16 %v2016
    %v6098 = vunpack.c.l.b16 %v2017
    %v6099 = vunpack.c.h.b16 %v2017
    %v6100 = vunpack.c.l.b16 %v2018
    %v6101 = vunpack.c.h.b16 %v2018
    %v6102 = vunpack.c.l.b16 %v2019
    %v6103 = vunpack.c.h.b16 %v2019
    %v6104 = vunpack.c.l.b16 %v2020
    %v6105 = vunpack.c.h.b16 %v2020
    %v6106 = vunpack.c.l.b16 %v2021
    %v6107 = vunpack.c.h.b16 %v2021
    %v6108 = vunpack.c.l.b16 %v2022
    %v6109 = vunpack.c.h.b16 %v2022
    %v6110 = vunpack.c.l.b16 %v2023
    %v6111 = vunpack.c.h.b16 %v2023
    %v6112 = vunpack.c.l.b16 %v2024
    %v6113 = vunpack.c.h.b16 %v2024
    %v6114 = vunpack.c.l.b16 %v2025
    %v6115 = vunpack.c.h.b16 %v2025
    %v6116 = vunpack.c.l.b16 %v2026
    %v6117 = vunpack.c.h.b16 %v2026
    %v6118 = vunpack.c.l.b16 %v2027
    %v6119 = vunpack.c.h.b16 %v2027
    %v6120 = vunpack.c.l.b16 %v2028
    %v6121 = vunpack.c.h.b16 %v2028
    %v6122 = vunpack.c.l.b16 %v2029
    %v6123 = vunpack.c.h.b16 %v2029
    %v6124 = vunpack.c.l.b16 %v2030
    %v6125 = vunpack.c.h.b16 %v2030
    %v6126 = vunpack.c.l.b16 %v2031
    %v6127 = vunpack.c.h.b16 %v2031
    %v6128 = vunpack.c.l.b16 %v2032
    %v6129 = vunpack.c.h.b16 %v2032
    %v6130 = vunpack.c.l.b16 %v2033
    %v6131 = vunpack.c.h.b16 %v2033
    %v6132 = vunpack.c.l.b16 %v2034
    %v6133 = vunpack.c.h.b16 %v2034
    %v6134 = vunpack.c.l.b16 %v2035
    %v6135 = vunpack.c.h.b16 %v2035
    %v6136 = vunpack.c.l.b16 %v2036
    %v6137 = vunpack.c.h.b16 %v2036
    %v6138 = vunpack.c.l.b16 %v2037
    %v6139 = vunpack.c.h.b16 %v2037
    %v6140 = vunpack.c.l.b16 %v2038
    %v6141 = vunpack.c.h.b16 %v2038
    %v6142 = vunpack.c.l.b16 %v2039
    %v6143 = vunpack.c.h.b16 %v2039
    %v6144 = vunpack.c.l.b16 %v2040
    %v6145 = vunpack.c.h.b16 %v2040
    %v6146 = vunpack.c.l.b16 %v2041
    %v6147 = vunpack.c.h.b16 %v2041
    %v6148 = vunpack.c.l.b16 %v2042
    %v6149 = vunpack.c.h.b16 %v2042
    %v6150 = vunpack.c.l.b16 %v2043
    %v6151 = vunpack.c.h.b16 %v2043
    %v6152 = vunpack.c.l.b16 %v2044
    %v6153 = vunpack.c.h.b16 %v2044
    %v6154 = vunpack.c.l.b16 %v2045
    %v6155 = vunpack.c.h.b16 %v2045
    %v6156 = vunpack.c.l.b16 %v2046
    %v6157 = vunpack.c.h.b16 %v2046
    %v6158 = vunpack.c.l.b16 %v2047
    %v6159 = vunpack.c.h.b16 %v2047
    %v6160 = vunpack.c.l.b16 %v2048
    %v6161 = vunpack.c.h.b16 %v2048
    %v6162 = vunpack.c.l.b16 %v2049
    %v6163 = vunpack.c.h.b16 %v2049
    %v6164 = vunpack.c.l.b16 %v2050
    %v6165 = vunpack.c.h.b16 %v2050
    %v6166 = vunpack.c.l.b16 %v2051
    %v6167 = vunpack.c.h.b16 %v2051
    %v6168 = vunpack.c.l.b16 %v2052
    %v6169 = vunpack.c.h.b16 %v2052
    %v6170 = vunpack.c.l.b16 %v2053
    %v6171 = vunpack.c.h.b16 %v2053
    %v6172 = vunpack.c.l.b16 %v2054
    %v6173 = vunpack.c.h.b16 %v2054
    %v6174 = vunpack.c.l.b16 %v2055
    %v6175 = vunpack.c.h.b16 %v2055
    %v6176 = vunpack.c.l.b16 %v2056
    %v6177 = vunpack.c.h.b16 %v2056
    %v6178 = vunpack.c.l.b16 %v2057
    %v6179 = vunpack.c.h.b16 %v2057
    %v6180 = vunpack.c.l.b16 %v2058
    %v6181 = vunpack.c.h.b16 %v2058
    %v6182 = vunpack.c.l.b16 %v2059
    %v6183 = vunpack.c.h.b16 %v2059
    %v6184 = vunpack.c.l.b16 %v2060
    %v6185 = vunpack.c.h.b16 %v2060
    %v6186 = vunpack.c.l.b16 %v2061
    %v6187 = vunpack.c.h.b16 %v2061
    %v6188 = vunpack.c.l.b16 %v2062
    %v6189 = vunpack.c.h.b16 %v2062
    %v6190 = vunpack.c.l.b16 %v2063
    %v6191 = vunpack.c.h.b16 %v2063
    %v6192 = vunpack.c.l.b16 %v2064
    %v6193 = vunpack.c.h.b16 %v2064
    %v6194 = vunpack.c.l.b16 %v2065
    %v6195 = vunpack.c.h.b16 %v2065
    %v6196 = vunpack.c.l.b16 %v2066
    %v6197 = vunpack.c.h.b16 %v2066
    %v6198 = vunpack.c.l.b16 %v2067
    %v6199 = vunpack.c.h.b16 %v2067
    %v6200 = vunpack.c.l.b16 %v2068
    %v6201 = vunpack.c.h.b16 %v2068
    %v6202 = vunpack.c.l.b16 %v2069
    %v6203 = vunpack.c.h.b16 %v2069
    %v6204 = vunpack.c.l.b16 %v2070
    %v6205 = vunpack.c.h.b16 %v2070
    %v6206 = vunpack.c.l.b16 %v2071
    %v6207 = vunpack.c.h.b16 %v2071
    %v6208 = vunpack.c.l.b16 %v2072
    %v6209 = vunpack.c.h.b16 %v2072
    %v6210 = vunpack.c.l.b16 %v2073
    %v6211 = vunpack.c.h.b16 %v2073
    %v6212 = vunpack.c.l.b16 %v2074
    %v6213 = vunpack.c.h.b16 %v2074
    %v6214 = vunpack.c.l.b16 %v2075
    %v6215 = vunpack.c.h.b16 %v2075
    %v6216 = vunpack.c.l.b16 %v2076
    %v6217 = vunpack.c.h.b16 %v2076
    %v6218 = vunpack.c.l.b16 %v2077
    %v6219 = vunpack.c.h.b16 %v2077
    %v6220 = vunpack.c.l.b16 %v2078
    %v6221 = vunpack.c.h.b16 %v2078
    %v6222 = vunpack.c.l.b16 %v2079
    %v6223 = vunpack.c.h.b16 %v2079
    %v6224 = vunpack.c.l.b16 %v2080
    %v6225 = vunpack.c.h.b16 %v2080
    %v6226 = vunpack.c.l.b16 %v2081
    %v6227 = vunpack.c.h.b16 %v2081
    %v6228 = vunpack.c.l.b16 %v2082
    %v6229 = vunpack.c.h.b16 %v2082
    %v6230 = vunpack.c.l.b16 %v2083
    %v6231 = vunpack.c.h.b16 %v2083
    %v6232 = vunpack.c.l.b16 %v2084
    %v6233 = vunpack.c.h.b16 %v2084
    %v6234 = vunpack.c.l.b16 %v2085
    %v6235 = vunpack.c.h.b16 %v2085
    %v6236 = vunpack.c.l.b16 %v2086
    %v6237 = vunpack.c.h.b16 %v2086
    %v6238 = vunpack.c.l.b16 %v2087
    %v6239 = vunpack.c.h.b16 %v2087
    %v6240 = vunpack.c.l.b16 %v2088
    %v6241 = vunpack.c.h.b16 %v2088
    %v6242 = vunpack.c.l.b16 %v2089
    %v6243 = vunpack.c.h.b16 %v2089
    %v6244 = vunpack.c.l.b16 %v2090
    %v6245 = vunpack.c.h.b16 %v2090
    %v6246 = vunpack.c.l.b16 %v2091
    %v6247 = vunpack.c.h.b16 %v2091
    %v6248 = vunpack.c.l.b16 %v2092
    %v6249 = vunpack.c.h.b16 %v2092
    %v6250 = vunpack.c.l.b16 %v2093
    %v6251 = vunpack.c.h.b16 %v2093
    %v6252 = vunpack.c.l.b16 %v2094
    %v6253 = vunpack.c.h.b16 %v2094
    %v6254 = vunpack.c.l.b16 %v2095
    %v6255 = vunpack.c.h.b16 %v2095
    %v6256 = vunpack.c.l.b16 %v2096
    %v6257 = vunpack.c.h.b16 %v2096
    %v6258 = vunpack.c.l.b16 %v2097
    %v6259 = vunpack.c.h.b16 %v2097
    %v6260 = vunpack.c.l.b16 %v2098
    %v6261 = vunpack.c.h.b16 %v2098
    %v6262 = vunpack.c.l.b16 %v2099
    %v6263 = vunpack.c.h.b16 %v2099
    %v6264 = vunpack.c.l.b16 %v2100
    %v6265 = vunpack.c.h.b16 %v2100
    %v6266 = vunpack.c.l.b16 %v2101
    %v6267 = vunpack.c.h.b16 %v2101
    %v6268 = vunpack.c.l.b16 %v2102
    %v6269 = vunpack.c.h.b16 %v2102
    %v6270 = vunpack.c.l.b16 %v2103
    %v6271 = vunpack.c.h.b16 %v2103
    %v6272 = vunpack.c.l.b16 %v2104
    %v6273 = vunpack.c.h.b16 %v2104
    %v6274 = vunpack.c.l.b16 %v2105
    %v6275 = vunpack.c.h.b16 %v2105
    %v6276 = vunpack.c.l.b16 %v2106
    %v6277 = vunpack.c.h.b16 %v2106
    %v6278 = vunpack.c.l.b16 %v2107
    %v6279 = vunpack.c.h.b16 %v2107
    %v6280 = vunpack.c.l.b16 %v2108
    %v6281 = vunpack.c.h.b16 %v2108
    %v6282 = vunpack.c.l.b16 %v2109
    %v6283 = vunpack.c.h.b16 %v2109
    %v6284 = vunpack.c.l.b16 %v2110
    %v6285 = vunpack.c.h.b16 %v2110
    %v6286 = vunpack.c.l.b16 %v2111
    %v6287 = vunpack.c.h.b16 %v2111
    %v6288 = vunpack.c.l.b16 %v2112
    %v6289 = vunpack.c.h.b16 %v2112
    %v6290 = vunpack.c.l.b16 %v2113
    %v6291 = vunpack.c.h.b16 %v2113
    %v6292 = vunpack.c.l.b16 %v2114
    %v6293 = vunpack.c.h.b16 %v2114
    %v6294 = vunpack.c.l.b16 %v2115
    %v6295 = vunpack.c.h.b16 %v2115
    %v6296 = vunpack.c.l.b16 %v2116
    %v6297 = vunpack.c.h.b16 %v2116
    %v6298 = vunpack.c.l.b16 %v2117
    %v6299 = vunpack.c.h.b16 %v2117
    %v6300 = vunpack.c.l.b16 %v2118
    %v6301 = vunpack.c.h.b16 %v2118
    %v6302 = vunpack.c.l.b16 %v2119
    %v6303 = vunpack.c.h.b16 %v2119
    %v6304 = vunpack.c.l.b16 %v2120
    %v6305 = vunpack.c.h.b16 %v2120
    %v6306 = vunpack.c.l.b16 %v2121
    %v6307 = vunpack.c.h.b16 %v2121
    %v6308 = vunpack.c.l.b16 %v2122
    %v6309 = vunpack.c.h.b16 %v2122
    %v6310 = vunpack.c.l.b16 %v2123
    %v6311 = vunpack.c.h.b16 %v2123
    %v6312 = vunpack.c.l.b16 %v2124
    %v6313 = vunpack.c.h.b16 %v2124
    %v6314 = vunpack.c.l.b16 %v2125
    %v6315 = vunpack.c.h.b16 %v2125
    %v6316 = vunpack.c.l.b16 %v2126
    %v6317 = vunpack.c.h.b16 %v2126
    %v6318 = vunpack.c.l.b16 %v2127
    %v6319 = vunpack.c.h.b16 %v2127
    %v6320 = vunpack.c.l.b16 %v2128
    %v6321 = vunpack.c.h.b16 %v2128
    %v6322 = vunpack.c.l.b16 %v2129
    %v6323 = vunpack.c.h.b16 %v2129
    %v6324 = vunpack.c.l.b16 %v2130
    %v6325 = vunpack.c.h.b16 %v2130
    %v6326 = vunpack.c.l.b16 %v2131
    %v6327 = vunpack.c.h.b16 %v2131
    %v6328 = vunpack.c.l.b16 %v2132
    %v6329 = vunpack.c.h.b16 %v2132
    %v6330 = vunpack.c.l.b16 %v2133
    %v6331 = vunpack.c.h.b16 %v2133
    %v6332 = vunpack.c.l.b16 %v2134
    %v6333 = vunpack.c.h.b16 %v2134
    %v6334 = vunpack.c.l.b16 %v2135
    %v6335 = vunpack.c.h.b16 %v2135
    %v6336 = vunpack.c.l.b16 %v2136
    %v6337 = vunpack.c.h.b16 %v2136
    %v6338 = vunpack.c.l.b16 %v2137
    %v6339 = vunpack.c.h.b16 %v2137
    %v6340 = vunpack.c.l.b16 %v2138
    %v6341 = vunpack.c.h.b16 %v2138
    %v6342 = vunpack.c.l.b16 %v2139
    %v6343 = vunpack.c.h.b16 %v2139
    %v6344 = vunpack.c.l.b16 %v2140
    %v6345 = vunpack.c.h.b16 %v2140
    %v6346 = vunpack.c.l.b16 %v2141
    %v6347 = vunpack.c.h.b16 %v2141
    %v6348 = vunpack.c.l.b16 %v2142
    %v6349 = vunpack.c.h.b16 %v2142
    %v6350 = vunpack.c.l.b16 %v2143
    %v6351 = vunpack.c.h.b16 %v2143
    %v6352 = vunpack.c.l.b16 %v2144
    %v6353 = vunpack.c.h.b16 %v2144
    %v6354 = vunpack.c.l.b16 %v2145
    %v6355 = vunpack.c.h.b16 %v2145
    %v6356 = vunpack.c.l.b16 %v2146
    %v6357 = vunpack.c.h.b16 %v2146
    %v6358 = vunpack.c.l.b16 %v2147
    %v6359 = vunpack.c.h.b16 %v2147
    %v6360 = vunpack.c.l.b16 %v2148
    %v6361 = vunpack.c.h.b16 %v2148
    %v6362 = vunpack.c.l.b16 %v2149
    %v6363 = vunpack.c.h.b16 %v2149
    %v6364 = vunpack.c.l.b16 %v2150
    %v6365 = vunpack.c.h.b16 %v2150
    %v6366 = vunpack.c.l.b16 %v2151
    %v6367 = vunpack.c.h.b16 %v2151
    %v6368 = vunpack.c.l.b16 %v2152
    %v6369 = vunpack.c.h.b16 %v2152
    %v6370 = vunpack.c.l.b16 %v2153
    %v6371 = vunpack.c.h.b16 %v2153
    %v6372 = vunpack.c.l.b16 %v2154
    %v6373 = vunpack.c.h.b16 %v2154
    %v6374 = vunpack.c.l.b16 %v2155
    %v6375 = vunpack.c.h.b16 %v2155
    %v6376 = vunpack.c.l.b16 %v2156
    %v6377 = vunpack.c.h.b16 %v2156
    %v6378 = vunpack.c.l.b16 %v2157
    %v6379 = vunpack.c.h.b16 %v2157
    %v6380 = vunpack.c.l.b16 %v2158
    %v6381 = vunpack.c.h.b16 %v2158
    %v6382 = vunpack.c.l.b16 %v2159
    %v6383 = vunpack.c.h.b16 %v2159
    %v6384 = vunpack.c.l.b16 %v2160
    %v6385 = vunpack.c.h.b16 %v2160
    %v6386 = vunpack.c.l.b16 %v2161
    %v6387 = vunpack.c.h.b16 %v2161
    %v6388 = vunpack.c.l.b16 %v2162
    %v6389 = vunpack.c.h.b16 %v2162
    %v6390 = vunpack.c.l.b16 %v2163
    %v6391 = vunpack.c.h.b16 %v2163
    %v6392 = vunpack.c.l.b16 %v2164
    %v6393 = vunpack.c.h.b16 %v2164
    %v6394 = vunpack.c.l.b16 %v2165
    %v6395 = vunpack.c.h.b16 %v2165
    %v6396 = vunpack.c.l.b16 %v2166
    %v6397 = vunpack.c.h.b16 %v2166
    %v6398 = vunpack.c.l.b16 %v2167
    %v6399 = vunpack.c.h.b16 %v2167
    %v6400 = vunpack.c.l.b16 %v2168
    %v6401 = vunpack.c.h.b16 %v2168
    %v6402 = vunpack.c.l.b16 %v2169
    %v6403 = vunpack.c.h.b16 %v2169
    %v6404 = vunpack.c.l.b16 %v2170
    %v6405 = vunpack.c.h.b16 %v2170
    %v6406 = vunpack.c.l.b16 %v2171
    %v6407 = vunpack.c.h.b16 %v2171
    %v6408 = vunpack.c.l.b16 %v2172
    %v6409 = vunpack.c.h.b16 %v2172
    %v6410 = vunpack.c.l.b16 %v2173
    %v6411 = vunpack.c.h.b16 %v2173
    %v6412 = vunpack.c.l.b16 %v2174
    %v6413 = vunpack.c.h.b16 %v2174
    %v6414 = vunpack.c.l.b16 %v2175
    %v6415 = vunpack.c.h.b16 %v2175
    %v6416 = vunpack.c.l.b16 %v2176
    %v6417 = vunpack.c.h.b16 %v2176
    %v6418 = vunpack.c.l.b16 %v2177
    %v6419 = vunpack.c.h.b16 %v2177
    %v6420 = vunpack.c.l.b16 %v2178
    %v6421 = vunpack.c.h.b16 %v2178
    %v6422 = vunpack.c.l.b16 %v2179
    %v6423 = vunpack.c.h.b16 %v2179
    %v6424 = vunpack.c.l.b16 %v2180
    %v6425 = vunpack.c.h.b16 %v2180
    %v6426 = vunpack.c.l.b16 %v2181
    %v6427 = vunpack.c.h.b16 %v2181
    %v6428 = vunpack.c.l.b16 %v2182
    %v6429 = vunpack.c.h.b16 %v2182
    %v6430 = vunpack.c.l.b16 %v2183
    %v6431 = vunpack.c.h.b16 %v2183
    %v6432 = vunpack.c.l.b16 %v2184
    %v6433 = vunpack.c.h.b16 %v2184
    %v6434 = vunpack.c.l.b16 %v2185
    %v6435 = vunpack.c.h.b16 %v2185
    %v6436 = vunpack.c.l.b16 %v2186
    %v6437 = vunpack.c.h.b16 %v2186
    %v6438 = vunpack.c.l.b16 %v2187
    %v6439 = vunpack.c.h.b16 %v2187
    %v6440 = vunpack.c.l.b16 %v2188
    %v6441 = vunpack.c.h.b16 %v2188
    %v6442 = vunpack.c.l.b16 %v2189
    %v6443 = vunpack.c.h.b16 %v2189
    %v6444 = vunpack.c.l.b16 %v2190
    %v6445 = vunpack.c.h.b16 %v2190
    %v6446 = vunpack.c.l.b16 %v2191
    %v6447 = vunpack.c.h.b16 %v2191
    %v6448 = vunpack.c.l.b16 %v2192
    %v6449 = vunpack.c.h.b16 %v2192
    %v6450 = vunpack.c.l.b16 %v2193
    %v6451 = vunpack.c.h.b16 %v2193
    %v6452 = vunpack.c.l.b16 %v2194
    %v6453 = vunpack.c.h.b16 %v2194
    %v6454 = vunpack.c.l.b16 %v2195
    %v6455 = vunpack.c.h.b16 %v2195
    %v6456 = vunpack.c.l.b16 %v2196
    %v6457 = vunpack.c.h.b16 %v2196
    %v6458 = vunpack.c.l.b16 %v2197
    %v6459 = vunpack.c.h.b16 %v2197
    %v6460 = vunpack.c.l.b16 %v2198
    %v6461 = vunpack.c.h.b16 %v2198
    %v6462 = vunpack.c.l.b16 %v2199
    %v6463 = vunpack.c.h.b16 %v2199
    %v6464 = vunpack.c.l.b16 %v2200
    %v6465 = vunpack.c.h.b16 %v2200
    %v6466 = vunpack.c.l.b16 %v2201
    %v6467 = vunpack.c.h.b16 %v2201
    %v6468 = vunpack.c.l.b16 %v2202
    %v6469 = vunpack.c.h.b16 %v2202
    %v6470 = vunpack.c.l.b16 %v2203
    %v6471 = vunpack.c.h.b16 %v2203
    %v6472 = vunpack.c.l.b16 %v2204
    %v6473 = vunpack.c.h.b16 %v2204
    %v6474 = vunpack.c.l.b16 %v2205
    %v6475 = vunpack.c.h.b16 %v2205
    %v6476 = vunpack.c.l.b16 %v2206
    %v6477 = vunpack.c.h.b16 %v2206
    %v6478 = vunpack.c.l.b16 %v2207
    %v6479 = vunpack.c.h.b16 %v2207
    %v6480 = vunpack.c.l.b16 %v2208
    %v6481 = vunpack.c.h.b16 %v2208
    %v6482 = vunpack.c.l.b16 %v2209
    %v6483 = vunpack.c.h.b16 %v2209
    %v6484 = vunpack.c.l.b16 %v2210
    %v6485 = vunpack.c.h.b16 %v2210
    %v6486 = vunpack.c.l.b16 %v2211
    %v6487 = vunpack.c.h.b16 %v2211
    %v6488 = vunpack.c.l.b16 %v2212
    %v6489 = vunpack.c.h.b16 %v2212
    %v6490 = vunpack.c.l.b16 %v2213
    %v6491 = vunpack.c.h.b16 %v2213
    %v6492 = vunpack.c.l.b16 %v2214
    %v6493 = vunpack.c.h.b16 %v2214
    %v6494 = vunpack.c.l.b16 %v2215
    %v6495 = vunpack.c.h.b16 %v2215
    %v6496 = vunpack.c.l.b16 %v2216
    %v6497 = vunpack.c.h.b16 %v2216
    %v6498 = vunpack.c.l.b16 %v2217
    %v6499 = vunpack.c.h.b16 %v2217
    %v6500 = vunpack.c.l.b16 %v2218
    %v6501 = vunpack.c.h.b16 %v2218
    %v6502 = vunpack.c.l.b16 %v2219
    %v6503 = vunpack.c.h.b16 %v2219
    %v6504 = vunpack.c.l.b16 %v2220
    %v6505 = vunpack.c.h.b16 %v2220
    %v6506 = vunpack.c.l.b16 %v2221
    %v6507 = vunpack.c.h.b16 %v2221
    %v6508 = vunpack.c.l.b16 %v2222
    %v6509 = vunpack.c.h.b16 %v2222
    %v6510 = vunpack.c.l.b16 %v2223
    %v6511 = vunpack.c.h.b16 %v2223
    %v6512 = vunpack.c.l.b16 %v2224
    %v6513 = vunpack.c.h.b16 %v2224
    %v6514 = vunpack.c.l.b16 %v2225
    %v6515 = vunpack.c.h.b16 %v2225
    %v6516 = vunpack.c.l.b16 %v2226
    %v6517 = vunpack.c.h.b16 %v2226
    %v6518 = vunpack.c.l.b16 %v2227
    %v6519 = vunpack.c.h.b16 %v2227
    %v6520 = vunpack.c.l.b16 %v2228
    %v6521 = vunpack.c.h.b16 %v2228
    %v6522 = vunpack.c.l.b16 %v2229
    %v6523 = vunpack.c.h.b16 %v2229
    %v6524 = vunpack.c.l.b16 %v2230
    %v6525 = vunpack.c.h.b16 %v2230
    %v6526 = vunpack.c.l.b16 %v2231
    %v6527 = vunpack.c.h.b16 %v2231
    %v6528 = vunpack.c.l.b16 %v2232
    %v6529 = vunpack.c.h.b16 %v2232
    %v6530 = vunpack.c.l.b16 %v2233
    %v6531 = vunpack.c.h.b16 %v2233
    %v6532 = vunpack.c.l.b16 %v2234
    %v6533 = vunpack.c.h.b16 %v2234
    %v6534 = vunpack.c.l.b16 %v2235
    %v6535 = vunpack.c.h.b16 %v2235
    %v6536 = vunpack.c.l.b16 %v2236
    %v6537 = vunpack.c.h.b16 %v2236
    %v6538 = vunpack.c.l.b16 %v2237
    %v6539 = vunpack.c.h.b16 %v2237
    %v6540 = vunpack.c.l.b16 %v2238
    %v6541 = vunpack.c.h.b16 %v2238
    %v6542 = vunpack.c.l.b16 %v2239
    %v6543 = vunpack.c.h.b16 %v2239
    %v6544 = vunpack.c.l.b16 %v2240
    %v6545 = vunpack.c.h.b16 %v2240
    %v6546 = vunpack.c.l.b16 %v2241
    %v6547 = vunpack.c.h.b16 %v2241
    %v6548 = vunpack.c.l.b16 %v2242
    %v6549 = vunpack.c.h.b16 %v2242
    %v6550 = vunpack.c.l.b16 %v2243
    %v6551 = vunpack.c.h.b16 %v2243
    %v6552 = vunpack.c.l.b16 %v2244
    %v6553 = vunpack.c.h.b16 %v2244
    %v6554 = vunpack.c.l.b16 %v2245
    %v6555 = vunpack.c.h.b16 %v2245
    %v6556 = vunpack.c.l.b16 %v2246
    %v6557 = vunpack.c.h.b16 %v2246
    %v6558 = vunpack.c.l.b16 %v2247
    %v6559 = vunpack.c.h.b16 %v2247
    %v6560 = vunpack.c.l.b16 %v2248
    %v6561 = vunpack.c.h.b16 %v2248
    %v6562 = vunpack.c.l.b16 %v2249
    %v6563 = vunpack.c.h.b16 %v2249
    %v6564 = vunpack.c.l.b16 %v2250
    %v6565 = vunpack.c.h.b16 %v2250
    %v6566 = vunpack.c.l.b16 %v2251
    %v6567 = vunpack.c.h.b16 %v2251
    %v6568 = vunpack.c.l.b16 %v2252
    %v6569 = vunpack.c.h.b16 %v2252
    %v6570 = vunpack.c.l.b16 %v2253
    %v6571 = vunpack.c.h.b16 %v2253
    %v6572 = vunpack.c.l.b16 %v2254
    %v6573 = vunpack.c.h.b16 %v2254
    %v6574 = vunpack.c.l.b16 %v2255
    %v6575 = vunpack.c.h.b16 %v2255
    %v6576 = vunpack.c.l.b16 %v2256
    %v6577 = vunpack.c.h.b16 %v2256
    %v6578 = vunpack.c.l.b16 %v2257
    %v6579 = vunpack.c.h.b16 %v2257
    %v6580 = vunpack.c.l.b16 %v2258
    %v6581 = vunpack.c.h.b16 %v2258
    %v6582 = vunpack.c.l.b16 %v2259
    %v6583 = vunpack.c.h.b16 %v2259
    %v6584 = vunpack.c.l.b16 %v2260
    %v6585 = vunpack.c.h.b16 %v2260
    %v6586 = vunpack.c.l.b16 %v2261
    %v6587 = vunpack.c.h.b16 %v2261
    %v6588 = vunpack.c.l.b16 %v2262
    %v6589 = vunpack.c.h.b16 %v2262
    %v6590 = vunpack.c.l.b16 %v2263
    %v6591 = vunpack.c.h.b16 %v2263
    %v6592 = vunpack.c.l.b16 %v2264
    %v6593 = vunpack.c.h.b16 %v2264
    %v6594 = vunpack.c.l.b16 %v2265
    %v6595 = vunpack.c.h.b16 %v2265
    %v6596 = vunpack.c.l.b16 %v2266
    %v6597 = vunpack.c.h.b16 %v2266
    %v6598 = vunpack.c.l.b16 %v2267
    %v6599 = vunpack.c.h.b16 %v2267
    %v6600 = vunpack.c.l.b16 %v2268
    %v6601 = vunpack.c.h.b16 %v2268
    %v6602 = vunpack.c.l.b16 %v2269
    %v6603 = vunpack.c.h.b16 %v2269
    %v6604 = vunpack.c.l.b16 %v2270
    %v6605 = vunpack.c.h.b16 %v2270
    %v6606 = vunpack.c.l.b16 %v2271
    %v6607 = vunpack.c.h.b16 %v2271
    %v6608 = vunpack.c.l.b16 %v2272
    %v6609 = vunpack.c.h.b16 %v2272
    %v6610 = vunpack.c.l.b16 %v2273
    %v6611 = vunpack.c.h.b16 %v2273
    %v6612 = vunpack.c.l.b16 %v2274
    %v6613 = vunpack.c.h.b16 %v2274
    %v6614 = vunpack.c.l.b16 %v2275
    %v6615 = vunpack.c.h.b16 %v2275
    %v6616 = vunpack.c.l.b16 %v2276
    %v6617 = vunpack.c.h.b16 %v2276
    %v6618 = vunpack.c.l.b16 %v2277
    %v6619 = vunpack.c.h.b16 %v2277
    %v6620 = vunpack.c.l.b16 %v2278
    %v6621 = vunpack.c.h.b16 %v2278
    %v6622 = vunpack.c.l.b16 %v2279
    %v6623 = vunpack.c.h.b16 %v2279
    %v6624 = vunpack.c.l.b16 %v2280
    %v6625 = vunpack.c.h.b16 %v2280
    %v6626 = vunpack.c.l.b16 %v2281
    %v6627 = vunpack.c.h.b16 %v2281
    %v6628 = vunpack.c.l.b16 %v2282
    %v6629 = vunpack.c.h.b16 %v2282
    %v6630 = vunpack.c.l.b16 %v2283
    %v6631 = vunpack.c.h.b16 %v2283
    %v6632 = vunpack.c.l.b16 %v2284
    %v6633 = vunpack.c.h.b16 %v2284
    %v6634 = vunpack.c.l.b16 %v2285
    %v6635 = vunpack.c.h.b16 %v2285
    %v6636 = vunpack.c.l.b16 %v2286
    %v6637 = vunpack.c.h.b16 %v2286
    %v6638 = vunpack.c.l.b16 %v2287
    %v6639 = vunpack.c.h.b16 %v2287
    %v6640 = vunpack.c.l.b16 %v2288
    %v6641 = vunpack.c.h.b16 %v2288
    %v6642 = vunpack.c.l.b16 %v2289
    %v6643 = vunpack.c.h.b16 %v2289
    %v6644 = vunpack.c.l.b16 %v2290
    %v6645 = vunpack.c.h.b16 %v2290
    %v6646 = vunpack.c.l.b16 %v2291
    %v6647 = vunpack.c.h.b16 %v2291
    %v6648 = vunpack.c.l.b16 %v2292
    %v6649 = vunpack.c.h.b16 %v2292
    %v6650 = vunpack.c.l.b16 %v2293
    %v6651 = vunpack.c.h.b16 %v2293
    %v6652 = vunpack.c.l.b16 %v2294
    %v6653 = vunpack.c.h.b16 %v2294
    %v6654 = vunpack.c.l.b16 %v2295
    %v6655 = vunpack.c.h.b16 %v2295
    %v6656 = vunpack.c.l.b16 %v2296
    %v6657 = vunpack.c.h.b16 %v2296
    %v6658 = vunpack.c.l.b16 %v2297
    %v6659 = vunpack.c.h.b16 %v2297
    %v6660 = vunpack.c.l.b16 %v2298
    %v6661 = vunpack.c.h.b16 %v2298
    %v6662 = vunpack.c.l.b16 %v2299
    %v6663 = vunpack.c.h.b16 %v2299
    %v6664 = vunpack.c.l.b16 %v2300
    %v6665 = vunpack.c.h.b16 %v2300
    %v6666 = vunpack.c.l.b16 %v2301
    %v6667 = vunpack.c.h.b16 %v2301
    %v6668 = vunpack.c.l.b16 %v2302
    %v6669 = vunpack.c.h.b16 %v2302
    %v6670 = vunpack.c.l.b16 %v2303
    %v6671 = vunpack.c.h.b16 %v2303
    %v6672 = vunpack.c.l.b16 %v2304
    %v6673 = vunpack.c.h.b16 %v2304
    %v6674 = vunpack.c.l.b16 %v2305
    %v6675 = vunpack.c.h.b16 %v2305
    %v6676 = vunpack.c.l.b16 %v2306
    %v6677 = vunpack.c.h.b16 %v2306
    %v6678 = vunpack.c.l.b16 %v2307
    %v6679 = vunpack.c.h.b16 %v2307
    %v6680 = vunpack.c.l.b16 %v2308
    %v6681 = vunpack.c.h.b16 %v2308
    %v6682 = vunpack.c.l.b16 %v2309
    %v6683 = vunpack.c.h.b16 %v2309
    %v6684 = vunpack.c.l.b16 %v2310
    %v6685 = vunpack.c.h.b16 %v2310
    %v6686 = vunpack.c.l.b16 %v2311
    %v6687 = vunpack.c.h.b16 %v2311
    %v6688 = vunpack.c.l.b16 %v2312
    %v6689 = vunpack.c.h.b16 %v2312
    %v6690 = vunpack.c.l.b16 %v2313
    %v6691 = vunpack.c.h.b16 %v2313
    %v6692 = vunpack.c.l.b16 %v2314
    %v6693 = vunpack.c.h.b16 %v2314
    %v6694 = vunpack.c.l.b16 %v2315
    %v6695 = vunpack.c.h.b16 %v2315
    %v6696 = vunpack.c.l.b16 %v2316
    %v6697 = vunpack.c.h.b16 %v2316
    %v6698 = vunpack.c.l.b16 %v2317
    %v6699 = vunpack.c.h.b16 %v2317
    %v6700 = vunpack.c.l.b16 %v2318
    %v6701 = vunpack.c.h.b16 %v2318
    %v6702 = vunpack.c.l.b16 %v2319
    %v6703 = vunpack.c.h.b16 %v2319
    %v6704 = vunpack.c.l.b16 %v2320
    %v6705 = vunpack.c.h.b16 %v2320
    %v6706 = vunpack.c.l.b16 %v2321
    %v6707 = vunpack.c.h.b16 %v2321
    %v6708 = vunpack.c.l.b16 %v2322
    %v6709 = vunpack.c.h.b16 %v2322
    %v6710 = vunpack.c.l.b16 %v2323
    %v6711 = vunpack.c.h.b16 %v2323
    %v6712 = vunpack.c.l.b16 %v2324
    %v6713 = vunpack.c.h.b16 %v2324
    %v6714 = vunpack.c.l.b16 %v2325
    %v6715 = vunpack.c.h.b16 %v2325
    %v6716 = vunpack.c.l.b16 %v2326
    %v6717 = vunpack.c.h.b16 %v2326
    %v6718 = vunpack.c.l.b16 %v2327
    %v6719 = vunpack.c.h.b16 %v2327
    %v6720 = vunpack.c.l.b16 %v2328
    %v6721 = vunpack.c.h.b16 %v2328
    %v6722 = vunpack.c.l.b16 %v2329
    %v6723 = vunpack.c.h.b16 %v2329
    %v6724 = vunpack.c.l.b16 %v2330
    %v6725 = vunpack.c.h.b16 %v2330
    %v6726 = vunpack.c.l.b16 %v2331
    %v6727 = vunpack.c.h.b16 %v2331
    %v6728 = vunpack.c.l.b16 %v2332
    %v6729 = vunpack.c.h.b16 %v2332
    %v6730 = vunpack.c.l.b16 %v2333
    %v6731 = vunpack.c.h.b16 %v2333
    %v6732 = vunpack.c.l.b16 %v2334
    %v6733 = vunpack.c.h.b16 %v2334
    %v6734 = vunpack.c.l.b16 %v2335
    %v6735 = vunpack.c.h.b16 %v2335
    %v6736 = vunpack.c.l.b16 %v2336
    %v6737 = vunpack.c.h.b16 %v2336
    %v6738 = vunpack.c.l.b16 %v2337
    %v6739 = vunpack.c.h.b16 %v2337
    %v6740 = vunpack.c.l.b16 %v2338
    %v6741 = vunpack.c.h.b16 %v2338
    %v6742 = vunpack.c.l.b16 %v2339
    %v6743 = vunpack.c.h.b16 %v2339
    %v6744 = vunpack.c.l.b16 %v2340
    %v6745 = vunpack.c.h.b16 %v2340
    %v6746 = vunpack.c.l.b16 %v2341
    %v6747 = vunpack.c.h.b16 %v2341
    %v6748 = vunpack.c.l.b16 %v2342
    %v6749 = vunpack.c.h.b16 %v2342
    %v6750 = vunpack.c.l.b16 %v2343
    %v6751 = vunpack.c.h.b16 %v2343
    %v6752 = vunpack.c.l.b16 %v2344
    %v6753 = vunpack.c.h.b16 %v2344
    %v6754 = vunpack.c.l.b16 %v2345
    %v6755 = vunpack.c.h.b16 %v2345
    %v6756 = vunpack.c.l.b16 %v2346
    %v6757 = vunpack.c.h.b16 %v2346
    %v6758 = vunpack.c.l.b16 %v2347
    %v6759 = vunpack.c.h.b16 %v2347
    %v6760 = vunpack.c.l.b16 %v2348
    %v6761 = vunpack.c.h.b16 %v2348
    %v6762 = vunpack.c.l.b16 %v2349
    %v6763 = vunpack.c.h.b16 %v2349
    %v6764 = vunpack.c.l.b16 %v2350
    %v6765 = vunpack.c.h.b16 %v2350
    %v6766 = vunpack.c.l.b16 %v2351
    %v6767 = vunpack.c.h.b16 %v2351
    %v6768 = vunpack.c.l.b16 %v2352
    %v6769 = vunpack.c.h.b16 %v2352
    %v6770 = vunpack.c.l.b16 %v2353
    %v6771 = vunpack.c.h.b16 %v2353
    %v6772 = vunpack.c.l.b16 %v2354
    %v6773 = vunpack.c.h.b16 %v2354
    %v6774 = vunpack.c.l.b16 %v2355
    %v6775 = vunpack.c.h.b16 %v2355
    %v6776 = vunpack.c.l.b16 %v2356
    %v6777 = vunpack.c.h.b16 %v2356
    %v6778 = vunpack.c.l.b16 %v2357
    %v6779 = vunpack.c.h.b16 %v2357
    %v6780 = vunpack.c.l.b16 %v2358
    %v6781 = vunpack.c.h.b16 %v2358
    %v6782 = vunpack.c.l.b16 %v2359
    %v6783 = vunpack.c.h.b16 %v2359
    %v6784 = vunpack.c.l.b16 %v2360
    %v6785 = vunpack.c.h.b16 %v2360
    %v6786 = vunpack.c.l.b16 %v2361
    %v6787 = vunpack.c.h.b16 %v2361
    %v6788 = vunpack.c.l.b16 %v2362
    %v6789 = vunpack.c.h.b16 %v2362
    %v6790 = vunpack.c.l.b16 %v2363
    %v6791 = vunpack.c.h.b16 %v2363
    %v6792 = vunpack.c.l.b16 %v2364
    %v6793 = vunpack.c.h.b16 %v2364
    %v6794 = vunpack.c.l.b16 %v2365
    %v6795 = vunpack.c.h.b16 %v2365
    %v6796 = vunpack.c.l.b16 %v2366
    %v6797 = vunpack.c.h.b16 %v2366
    %v6798 = vunpack.c.l.b16 %v2367
    %v6799 = vunpack.c.h.b16 %v2367
    %v6800 = vunpack.c.l.b16 %v2368
    %v6801 = vunpack.c.h.b16 %v2368
    %v6802 = vunpack.c.l.b16 %v2369
    %v6803 = vunpack.c.h.b16 %v2369
    %v6804 = vunpack.c.l.b16 %v2370
    %v6805 = vunpack.c.h.b16 %v2370
    %v6806 = vunpack.c.l.b16 %v2371
    %v6807 = vunpack.c.h.b16 %v2371
    %v6808 = vunpack.c.l.b16 %v2372
    %v6809 = vunpack.c.h.b16 %v2372
    %v6810 = vunpack.c.l.b16 %v2373
    %v6811 = vunpack.c.h.b16 %v2373
    %v6812 = vunpack.c.l.b16 %v2374
    %v6813 = vunpack.c.h.b16 %v2374
    %v6814 = vunpack.c.l.b16 %v2375
    %v6815 = vunpack.c.h.b16 %v2375
    %v6816 = vunpack.c.l.b16 %v2376
    %v6817 = vunpack.c.h.b16 %v2376
    %v6818 = vunpack.c.l.b16 %v2377
    %v6819 = vunpack.c.h.b16 %v2377
    %v6820 = vunpack.c.l.b16 %v2378
    %v6821 = vunpack.c.h.b16 %v2378
    %v6822 = vunpack.c.l.b16 %v2379
    %v6823 = vunpack.c.h.b16 %v2379
    %v6824 = vunpack.c.l.b16 %v2380
    %v6825 = vunpack.c.h.b16 %v2380
    %v6826 = vunpack.c.l.b16 %v2381
    %v6827 = vunpack.c.h.b16 %v2381
    %v6828 = vunpack.c.l.b16 %v2382
    %v6829 = vunpack.c.h.b16 %v2382
    %v6830 = vunpack.c.l.b16 %v2383
    %v6831 = vunpack.c.h.b16 %v2383
    %v6832 = vunpack.c.l.b16 %v2384
    %v6833 = vunpack.c.h.b16 %v2384
    %v6834 = vunpack.c.l.b16 %v2385
    %v6835 = vunpack.c.h.b16 %v2385
    %v6836 = vunpack.c.l.b16 %v2386
    %v6837 = vunpack.c.h.b16 %v2386
    %v6838 = vunpack.c.l.b16 %v2387
    %v6839 = vunpack.c.h.b16 %v2387
    %v6840 = vunpack.c.l.b16 %v2388
    %v6841 = vunpack.c.h.b16 %v2388
    %v6842 = vunpack.c.l.b16 %v2389
    %v6843 = vunpack.c.h.b16 %v2389
    %v6844 = vunpack.c.l.b16 %v2390
    %v6845 = vunpack.c.h.b16 %v2390
    %v6846 = vunpack.c.l.b16 %v2391
    %v6847 = vunpack.c.h.b16 %v2391
    %v6848 = vunpack.c.l.b16 %v2392
    %v6849 = vunpack.c.h.b16 %v2392
    %v6850 = vunpack.c.l.b16 %v2393
    %v6851 = vunpack.c.h.b16 %v2393
    %v6852 = vunpack.c.l.b16 %v2394
    %v6853 = vunpack.c.h.b16 %v2394
    %v6854 = vunpack.c.l.b16 %v2395
    %v6855 = vunpack.c.h.b16 %v2395
    %v6856 = vunpack.c.l.b16 %v2396
    %v6857 = vunpack.c.h.b16 %v2396
    %v6858 = vunpack.c.l.b16 %v2397
    %v6859 = vunpack.c.h.b16 %v2397
    %v6860 = vunpack.c.l.b16 %v2398
    %v6861 = vunpack.c.h.b16 %v2398
    %v6862 = vunpack.c.l.b16 %v2399
    %v6863 = vunpack.c.h.b16 %v2399
    %v6864 = vunpack.c.l.b16 %v2400
    %v6865 = vunpack.c.h.b16 %v2400
    %v6866 = vunpack.c.l.b16 %v2401
    %v6867 = vunpack.c.h.b16 %v2401
    %v6868 = vunpack.c.l.b16 %v2402
    %v6869 = vunpack.c.h.b16 %v2402
    %v6870 = vunpack.c.l.b16 %v2403
    %v6871 = vunpack.c.h.b16 %v2403
    %v6872 = vunpack.c.l.b16 %v2404
    %v6873 = vunpack.c.h.b16 %v2404
    %v6874 = vunpack.c.l.b16 %v2405
    %v6875 = vunpack.c.h.b16 %v2405
    %v6876 = vunpack.c.l.b16 %v2406
    %v6877 = vunpack.c.h.b16 %v2406
    %v6878 = vunpack.c.l.b16 %v2407
    %v6879 = vunpack.c.h.b16 %v2407
    %v6880 = vunpack.c.l.b16 %v2408
    %v6881 = vunpack.c.h.b16 %v2408
    %v6882 = vunpack.c.l.b16 %v2409
    %v6883 = vunpack.c.h.b16 %v2409
    %v6884 = vunpack.c.l.b16 %v2410
    %v6885 = vunpack.c.h.b16 %v2410
    %v6886 = vunpack.c.l.b16 %v2411
    %v6887 = vunpack.c.h.b16 %v2411
    %v6888 = vunpack.c.l.b16 %v2412
    %v6889 = vunpack.c.h.b16 %v2412
    %v6890 = vunpack.c.l.b16 %v2413
    %v6891 = vunpack.c.h.b16 %v2413
    %v6892 = vunpack.c.l.b16 %v2414
    %v6893 = vunpack.c.h.b16 %v2414
    %v6894 = vunpack.c.l.b16 %v2415
    %v6895 = vunpack.c.h.b16 %v2415
    %v6896 = vunpack.c.l.b16 %v2416
    %v6897 = vunpack.c.h.b16 %v2416
    %v6898 = vunpack.c.l.b16 %v2417
    %v6899 = vunpack.c.h.b16 %v2417
    %v6900 = vunpack.c.l.b16 %v2418
    %v6901 = vunpack.c.h.b16 %v2418
    %v6902 = vunpack.c.l.b16 %v2419
    %v6903 = vunpack.c.h.b16 %v2419
    %v6904 = vunpack.c.l.b16 %v2420
    %v6905 = vunpack.c.h.b16 %v2420
    %v6906 = vunpack.c.l.b16 %v2421
    %v6907 = vunpack.c.h.b16 %v2421
    %v6908 = vunpack.c.l.b16 %v2422
    %v6909 = vunpack.c.h.b16 %v2422
    %v6910 = vunpack.c.l.b16 %v2423
    %v6911 = vunpack.c.h.b16 %v2423
    %v6912 = vunpack.c.l.b16 %v2424
    %v6913 = vunpack.c.h.b16 %v2424
    %v6914 = vunpack.c.l.b16 %v2425
    %v6915 = vunpack.c.h.b16 %v2425
    %v6916 = vunpack.c.l.b16 %v2426
    %v6917 = vunpack.c.h.b16 %v2426
    %v6918 = vunpack.c.l.b16 %v2427
    %v6919 = vunpack.c.h.b16 %v2427
    %v6920 = vunpack.c.l.b16 %v2428
    %v6921 = vunpack.c.h.b16 %v2428
    %v6922 = vunpack.c.l.b16 %v2429
    %v6923 = vunpack.c.h.b16 %v2429
    %v6924 = vunpack.c.l.b16 %v2430
    %v6925 = vunpack.c.h.b16 %v2430
    %v6926 = vunpack.c.l.b16 %v2431
    %v6927 = vunpack.c.h.b16 %v2431
    %v6928 = vunpack.c.l.b16 %v2432
    %v6929 = vunpack.c.h.b16 %v2432
    %v6930 = vunpack.c.l.b16 %v2433
    %v6931 = vunpack.c.h.b16 %v2433
    %v6932 = vunpack.c.l.b16 %v2434
    %v6933 = vunpack.c.h.b16 %v2434
    %v6934 = vunpack.c.l.b16 %v2435
    %v6935 = vunpack.c.h.b16 %v2435
    %v6936 = vunpack.c.l.b16 %v2436
    %v6937 = vunpack.c.h.b16 %v2436
    %v6938 = vunpack.c.l.b16 %v2437
    %v6939 = vunpack.c.h.b16 %v2437
    %v6940 = vunpack.c.l.b16 %v2438
    %v6941 = vunpack.c.h.b16 %v2438
    %v6942 = vunpack.c.l.b16 %v2439
    %v6943 = vunpack.c.h.b16 %v2439
    %v6944 = vunpack.c.l.b16 %v2440
    %v6945 = vunpack.c.h.b16 %v2440
    %v6946 = vunpack.c.l.b16 %v2441
    %v6947 = vunpack.c.h.b16 %v2441
    %v6948 = vunpack.c.l.b16 %v2442
    %v6949 = vunpack.c.h.b16 %v2442
    %v6950 = vunpack.c.l.b16 %v2443
    %v6951 = vunpack.c.h.b16 %v2443
    %v6952 = vunpack.c.l.b16 %v2444
    %v6953 = vunpack.c.h.b16 %v2444
    %v6954 = vunpack.c.l.b16 %v2445
    %v6955 = vunpack.c.h.b16 %v2445
    %v6956 = vunpack.c.l.b16 %v2446
    %v6957 = vunpack.c.h.b16 %v2446
    %v6958 = vunpack.c.l.b16 %v2447
    %v6959 = vunpack.c.h.b16 %v2447
    %v6960 = vunpack.c.l.b16 %v2448
    %v6961 = vunpack.c.h.b16 %v2448
    %v6962 = vunpack.c.l.b16 %v2449
    %v6963 = vunpack.c.h.b16 %v2449
    %v6964 = vunpack.c.l.b16 %v2450
    %v6965 = vunpack.c.h.b16 %v2450
    %v6966 = vunpack.c.l.b16 %v2451
    %v6967 = vunpack.c.h.b16 %v2451
    %v6968 = vunpack.c.l.b16 %v2452
    %v6969 = vunpack.c.h.b16 %v2452
    %v6970 = vunpack.c.l.b16 %v2453
    %v6971 = vunpack.c.h.b16 %v2453
    %v6972 = vunpack.c.l.b16 %v2454
    %v6973 = vunpack.c.h.b16 %v2454
    %v6974 = vunpack.c.l.b16 %v2455
    %v6975 = vunpack.c.h.b16 %v2455
    %v6976 = vunpack.c.l.b16 %v2456
    %v6977 = vunpack.c.h.b16 %v2456
    %v6978 = vunpack.c.l.b16 %v2457
    %v6979 = vunpack.c.h.b16 %v2457
    %v6980 = vunpack.c.l.b16 %v2458
    %v6981 = vunpack.c.h.b16 %v2458
    %v6982 = vunpack.c.l.b16 %v2459
    %v6983 = vunpack.c.h.b16 %v2459
    %v6984 = vunpack.c.l.b16 %v2460
    %v6985 = vunpack.c.h.b16 %v2460
    %v6986 = vunpack.c.l.b16 %v2461
    %v6987 = vunpack.c.h.b16 %v2461
    %v6988 = vunpack.c.l.b16 %v2462
    %v6989 = vunpack.c.h.b16 %v2462
    %v6990 = vunpack.c.l.b16 %v2463
    %v6991 = vunpack.c.h.b16 %v2463
    %v6992 = vunpack.c.l.b16 %v2464
    %v6993 = vunpack.c.h.b16 %v2464
    %v6994 = vunpack.c.l.b16 %v2465
    %v6995 = vunpack.c.h.b16 %v2465
    %v6996 = vunpack.c.l.b16 %v2466
    %v6997 = vunpack.c.h.b16 %v2466
    %v6998 = vunpack.c.l.b16 %v2467
    %v6999 = vunpack.c.h.b16 %v2467
    %v7000 = vunpack.c.l.b16 %v2468
    %v7001 = vunpack.c.h.b16 %v2468
    %v7002 = vunpack.c.l.b16 %v2469
    %v7003 = vunpack.c.h.b16 %v2469
    %v7004 = vunpack.c.l.b16 %v2470
    %v7005 = vunpack.c.h.b16 %v2470
    %v7006 = vunpack.c.l.b16 %v2471
    %v7007 = vunpack.c.h.b16 %v2471
    %v7008 = vunpack.c.l.b16 %v2472
    %v7009 = vunpack.c.h.b16 %v2472
    %v7010 = vunpack.c.l.b16 %v2473
    %v7011 = vunpack.c.h.b16 %v2473
    %v7012 = vunpack.c.l.b16 %v2474
    %v7013 = vunpack.c.h.b16 %v2474
    %v7014 = vunpack.c.l.b16 %v2475
    %v7015 = vunpack.c.h.b16 %v2475
    %v7016 = vunpack.c.l.b16 %v2476
    %v7017 = vunpack.c.h.b16 %v2476
    %v7018 = vunpack.c.l.b16 %v2477
    %v7019 = vunpack.c.h.b16 %v2477
    %v7020 = vunpack.c.l.b16 %v2478
    %v7021 = vunpack.c.h.b16 %v2478
    %v7022 = vunpack.c.l.b16 %v2479
    %v7023 = vunpack.c.h.b16 %v2479
    %v7024 = vunpack.c.l.b16 %v2480
    %v7025 = vunpack.c.h.b16 %v2480
    %v7026 = vunpack.c.l.b16 %v2481
    %v7027 = vunpack.c.h.b16 %v2481
    %v7028 = vunpack.c.l.b16 %v2482
    %v7029 = vunpack.c.h.b16 %v2482
    %v7030 = vunpack.c.l.b16 %v2483
    %v7031 = vunpack.c.h.b16 %v2483
    %v7032 = vunpack.c.l.b16 %v2484
    %v7033 = vunpack.c.h.b16 %v2484
    %v7034 = vunpack.c.l.b16 %v2485
    %v7035 = vunpack.c.h.b16 %v2485
    %v7036 = vunpack.c.l.b16 %v2486
    %v7037 = vunpack.c.h.b16 %v2486
    %v7038 = vunpack.c.l.b16 %v2487
    %v7039 = vunpack.c.h.b16 %v2487
    %v7040 = vunpack.c.l.b16 %v2488
    %v7041 = vunpack.c.h.b16 %v2488
    %v7042 = vunpack.c.l.b16 %v2489
    %v7043 = vunpack.c.h.b16 %v2489
    %v7044 = vunpack.c.l.b16 %v2490
    %v7045 = vunpack.c.h.b16 %v2490
    %v7046 = vunpack.c.l.b16 %v2491
    %v7047 = vunpack.c.h.b16 %v2491
    %v7048 = vunpack.c.l.b16 %v2492
    %v7049 = vunpack.c.h.b16 %v2492
    %v7050 = vunpack.c.l.b16 %v2493
    %v7051 = vunpack.c.h.b16 %v2493
    %v7052 = vunpack.c.l.b16 %v2494
    %v7053 = vunpack.c.h.b16 %v2494
    %v7054 = vunpack.c.l.b16 %v2495
    %v7055 = vunpack.c.h.b16 %v2495
    %v7056 = vunpack.c.l.b16 %v2496
    %v7057 = vunpack.c.h.b16 %v2496
    %v7058 = vunpack.c.l.b16 %v2497
    %v7059 = vunpack.c.h.b16 %v2497
    %v7060 = vunpack.c.l.b16 %v2498
    %v7061 = vunpack.c.h.b16 %v2498
    %v7062 = vunpack.c.l.b16 %v2499
    %v7063 = vunpack.c.h.b16 %v2499
    %v7064 = vunpack.c.l.b16 %v2500
    %v7065 = vunpack.c.h.b16 %v2500
    %v7066 = vunpack.c.l.b16 %v2501
    %v7067 = vunpack.c.h.b16 %v2501
    %v7068 = vunpack.c.l.b16 %v2502
    %v7069 = vunpack.c.h.b16 %v2502
    %v7070 = vunpack.c.l.b16 %v2503
    %v7071 = vunpack.c.h.b16 %v2503
    %v7072 = vunpack.c.l.b16 %v2504
    %v7073 = vunpack.c.h.b16 %v2504
    %v7074 = vunpack.c.l.b16 %v2505
    %v7075 = vunpack.c.h.b16 %v2505
    %v7076 = vunpack.c.l.b16 %v2506
    %v7077 = vunpack.c.h.b16 %v2506
    %v7078 = vunpack.c.l.b16 %v2507
    %v7079 = vunpack.c.h.b16 %v2507
    %v7080 = vunpack.c.l.b16 %v2508
    %v7081 = vunpack.c.h.b16 %v2508
    %v7082 = vunpack.c.l.b16 %v2509
    %v7083 = vunpack.c.h.b16 %v2509
    %v7084 = vunpack.c.l.b16 %v2510
    %v7085 = vunpack.c.h.b16 %v2510
    %v7086 = vunpack.c.l.b16 %v2511
    %v7087 = vunpack.c.h.b16 %v2511
    %v7088 = vunpack.c.l.b16 %v2512
    %v7089 = vunpack.c.h.b16 %v2512
    %v7090 = vunpack.c.l.b16 %v2513
    %v7091 = vunpack.c.h.b16 %v2513
    %v7092 = vunpack.c.l.b16 %v2514
    %v7093 = vunpack.c.h.b16 %v2514
    %v7094 = vunpack.c.l.b16 %v2515
    %v7095 = vunpack.c.h.b16 %v2515
    %v7096 = vunpack.c.l.b16 %v2516
    %v7097 = vunpack.c.h.b16 %v2516
    %v7098 = vunpack.c.l.b16 %v2517
    %v7099 = vunpack.c.h.b16 %v2517
    %v7100 = vunpack.c.l.b16 %v2518
    %v7101 = vunpack.c.h.b16 %v2518
    %v7102 = vunpack.c.l.b16 %v2519
    %v7103 = vunpack.c.h.b16 %v2519
    %v7104 = vunpack.c.l.b16 %v2520
    %v7105 = vunpack.c.h.b16 %v2520
    %v7106 = vunpack.c.l.b16 %v2521
    %v7107 = vunpack.c.h.b16 %v2521
    %v7108 = vunpack.c.l.b16 %v2522
    %v7109 = vunpack.c.h.b16 %v2522
    %v7110 = vunpack.c.l.b16 %v2523
    %v7111 = vunpack.c.h.b16 %v2523
    %v7112 = vunpack.c.l.b16 %v2524
    %v7113 = vunpack.c.h.b16 %v2524
    %v7114 = vunpack.c.l.b16 %v2525
    %v7115 = vunpack.c.h.b16 %v2525
    %v7116 = vunpack.c.l.b16 %v2526
    %v7117 = vunpack.c.h.b16 %v2526
    %v7118 = vunpack.c.l.b16 %v2527
    %v7119 = vunpack.c.h.b16 %v2527
    %v7120 = vunpack.c.l.b16 %v2528
    %v7121 = vunpack.c.h.b16 %v2528
    %v7122 = vunpack.c.l.b16 %v2529
    %v7123 = vunpack.c.h.b16 %v2529
    %v7124 = vunpack.c.l.b16 %v2530
    %v7125 = vunpack.c.h.b16 %v2530
    %v7126 = vunpack.c.l.b16 %v2531
    %v7127 = vunpack.c.h.b16 %v2531
    %v7128 = vunpack.c.l.b16 %v2532
    %v7129 = vunpack.c.h.b16 %v2532
    %v7130 = vunpack.c.l.b16 %v2533
    %v7131 = vunpack.c.h.b16 %v2533
    %v7132 = vunpack.c.l.b16 %v2534
    %v7133 = vunpack.c.h.b16 %v2534
    %v7134 = vunpack.c.l.b16 %v2535
    %v7135 = vunpack.c.h.b16 %v2535
    %v7136 = vunpack.c.l.b16 %v2536
    %v7137 = vunpack.c.h.b16 %v2536
    %v7138 = vunpack.c.l.b16 %v2537
    %v7139 = vunpack.c.h.b16 %v2537
    %v7140 = vunpack.c.l.b16 %v2538
    %v7141 = vunpack.c.h.b16 %v2538
    %v7142 = vunpack.c.l.b16 %v2539
    %v7143 = vunpack.c.h.b16 %v2539
    %v7144 = vunpack.c.l.b16 %v2540
    %v7145 = vunpack.c.h.b16 %v2540
    %v7146 = vunpack.c.l.b16 %v2541
    %v7147 = vunpack.c.h.b16 %v2541
    %v7148 = vunpack.c.l.b16 %v2542
    %v7149 = vunpack.c.h.b16 %v2542
    %v7150 = vunpack.c.l.b16 %v2543
    %v7151 = vunpack.c.h.b16 %v2543
    %v7152 = vpack.c.b16 %v4096, %v4080
    %v7153 = vpack.c.b16 %v4097, %v4081
    %v7154 = vpack.c.b16 %v4098, %v4082
    %v7155 = vpack.c.b16 %v4099, %v4083
    %v7156 = vpack.c.b16 %v4100, %v4084
    %v7157 = vpack.c.b16 %v4101, %v4085
    %v7158 = vpack.c.b16 %v4102, %v4086
    %v7159 = vpack.c.b16 %v4103, %v4087
    %v7160 = vpack.c.b16 %v4104, %v4088
    %v7161 = vpack.c.b16 %v4105, %v4089
    %v7162 = vpack.c.b16 %v4106, %v4090
    %v7163 = vpack.c.b16 %v4107, %v4091
    %v7164 = vpack.c.b16 %v4108, %v4092
    %v7165 = vpack.c.b16 %v4109, %v4093
    %v7166 = vpack.c.b16 %v4110, %v4094
    %v7167 = vpack.c.b16 %v4111, %v4095
    %v7168 = vpack.c.b16 %v4128, %v4112
    %v7169 = vpack.c.b16 %v4129, %v4113
    %v7170 = vpack.c.b16 %v4130, %v4114
    %v7171 = vpack.c.b16 %v4131, %v4115
    %v7172 = vpack.c.b16 %v4132, %v4116
    %v7173 = vpack.c.b16 %v4133, %v4117
    %v7174 = vpack.c.b16 %v4134, %v4118
    %v7175 = vpack.c.b16 %v4135, %v4119
    %v7176 = vpack.c.b16 %v4136, %v4120
    %v7177 = vpack.c.b16 %v4137, %v4121
    %v7178 = vpack.c.b16 %v4138, %v4122
    %v7179 = vpack.c.b16 %v4139, %v4123
    %v7180 = vpack.c.b16 %v4140, %v4124
    %v7181 = vpack.c.b16 %v4141, %v4125
    %v7182 = vpack.c.b16 %v4142, %v4126
    %v7183 = vpack.c.b16 %v4143, %v4127
    %v7184 = vpack.c.b16 %v4160, %v4144
    %v7185 = vpack.c.b16 %v4161, %v4145
    %v7186 = vpack.c.b16 %v4162, %v4146
    %v7187 = vpack.c.b16 %v4163, %v4147
    %v7188 = vpack.c.b16 %v4164, %v4148
    %v7189 = vpack.c.b16 %v4165, %v4149
    %v7190 = vpack.c.b16 %v4166, %v4150
    %v7191 = vpack.c.b16 %v4167, %v4151
    %v7192 = vpack.c.b16 %v4168, %v4152
    %v7193 = vpack.c.b16 %v4169, %v4153
    %v7194 = vpack.c.b16 %v4170, %v4154
    %v7195 = vpack.c.b16 %v4171, %v4155
    %v7196 = vpack.c.b16 %v4172, %v4156
    %v7197 = vpack.c.b16 %v4173, %v4157
    %v7198 = vpack.c.b16 %v4174, %v4158
    %v7199 = vpack.c.b16 %v4175, %v4159
    %v7200 = vpack.c.b16 %v4192, %v4176
    %v7201 = vpack.c.b16 %v4193, %v4177
    %v7202 = vpack.c.b16 %v4194, %v4178
    %v7203 = vpack.c.b16 %v4195, %v4179
    %v7204 = vpack.c.b16 %v4196, %v4180
    %v7205 = vpack.c.b16 %v4197, %v4181
    %v7206 = vpack.c.b16 %v4198, %v4182
    %v7207 = vpack.c.b16 %v4199, %v4183
    %v7208 = vpack.c.b16 %v4200, %v4184
    %v7209 = vpack.c.b16 %v4201, %v4185
    %v7210 = vpack.c.b16 %v4202, %v4186
    %v7211 = vpack.c.b16 %v4203, %v4187
    %v7212 = vpack.c.b16 %v4204, %v4188
    %v7213 = vpack.c.b16 %v4205, %v4189
    %v7214 = vpack.c.b16 %v4206, %v4190
    %v7215 = vpack.c.b16 %v4207, %v4191
    %v7216 = vpack.c.b16 %v4224, %v4208
    %v7217 = vpack.c.b16 %v4225, %v4209
    %v7218 = vpack.c.b16 %v4226, %v4210
    %v7219 = vpack.c.b16 %v4227, %v4211
    %v7220 = vpack.c.b16 %v4228, %v4212
    %v7221 = vpack.c.b16 %v4229, %v4213
    %v7222 = vpack.c.b16 %v4230, %v4214
    %v7223 = vpack.c.b16 %v4231, %v4215
    %v7224 = vpack.c.b16 %v4232, %v4216
    %v7225 = vpack.c.b16 %v4233, %v4217
    %v7226 = vpack.c.b16 %v4234, %v4218
    %v7227 = vpack.c.b16 %v4235, %v4219
    %v7228 = vpack.c.b16 %v4236, %v4220
    %v7229 = vpack.c.b16 %v4237, %v4221
    %v7230 = vpack.c.b16 %v4238, %v4222
    %v7231 = vpack.c.b16 %v4239, %v4223
    %v7232 = vpack.c.b16 %v4256, %v4240
    %v7233 = vpack.c.b16 %v4257, %v4241
    %v7234 = vpack.c.b16 %v4258, %v4242
    %v7235 = vpack.c.b16 %v4259, %v4243
    %v7236 = vpack.c.b16 %v4260, %v4244
    %v7237 = vpack.c.b16 %v4261, %v4245
    %v7238 = vpack.c.b16 %v4262, %v4246
    %v7239 = vpack.c.b16 %v4263, %v4247
    %v7240 = vpack.c.b16 %v4264, %v4248
    %v7241 = vpack.c.b16 %v4265, %v4249
    %v7242 = vpack.c.b16 %v4266, %v4250
    %v7243 = vpack.c.b16 %v4267, %v4251
    %v7244 = vpack.c.b16 %v4268, %v4252
    %v7245 = vpack.c.b16 %v4269, %v4253
    %v7246 = vpack.c.b16 %v4270, %v4254
    %v7247 = vpack.c.b16 %v4271, %v4255
    %v7248 = vpack.c.b16 %v4288, %v4272
    %v7249 = vpack.c.b16 %v4289, %v4273
    %v7250 = vpack.c.b16 %v4290, %v4274
    %v7251 = vpack.c.b16 %v4291, %v4275
    %v7252 = vpack.c.b16 %v4292, %v4276
    %v7253 = vpack.c.b16 %v4293, %v4277
    %v7254 = vpack.c.b16 %v4294, %v4278
    %v7255 = vpack.c.b16 %v4295, %v4279
    %v7256 = vpack.c.b16 %v4296, %v4280
    %v7257 = vpack.c.b16 %v4297, %v4281
    %v7258 = vpack.c.b16 %v4298, %v4282
    %v7259 = vpack.c.b16 %v4299, %v4283
    %v7260 = vpack.c.b16 %v4300, %v4284
    %v7261 = vpack.c.b16 %v4301, %v4285
    %v7262 = vpack.c.b16 %v4302, %v4286
    %v7263 = vpack.c.b16 %v4303, %v4287
    %v7264 = vpack.c.b16 %v4320, %v4304
    %v7265 = vpack.c.b16 %v4321, %v4305
    %v7266 = vpack.c.b16 %v4322, %v4306
    %v7267 = vpack.c.b16 %v4323, %v4307
    %v7268 = vpack.c.b16 %v4324, %v4308
    %v7269 = vpack.c.b16 %v4325, %v4309
    %v7270 = vpack.c.b16 %v4326, %v4310
    %v7271 = vpack.c.b16 %v4327, %v4311
    %v7272 = vpack.c.b16 %v4328, %v4312
    %v7273 = vpack.c.b16 %v4329, %v4313
    %v7274 = vpack.c.b16 %v4330, %v4314
    %v7275 = vpack.c.b16 %v4331, %v4315
    %v7276 = vpack.c.b16 %v4332, %v4316
    %v7277 = vpack.c.b16 %v4333, %v4317
    %v7278 = vpack.c.b16 %v4334, %v4318
    %v7279 = vpack.c.b16 %v4335, %v4319
    %v7280 = vpack.c.b16 %v4352, %v4336
    %v7281 = vpack.c.b16 %v4353, %v4337
    %v7282 = vpack.c.b16 %v4354, %v4338
    %v7283 = vpack.c.b16 %v4355, %v4339
    %v7284 = vpack.c.b16 %v4356, %v4340
    %v7285 = vpack.c.b16 %v4357, %v4341
    %v7286 = vpack.c.b16 %v4358, %v4342
    %v7287 = vpack.c.b16 %v4359, %v4343
    %v7288 = vpack.c.b16 %v4360, %v4344
    %v7289 = vpack.c.b16 %v4361, %v4345
    %v7290 = vpack.c.b16 %v4362, %v4346
    %v7291 = vpack.c.b16 %v4363, %v4347
    %v7292 = vpack.c.b16 %v4364, %v4348
    %v7293 = vpack.c.b16 %v4365, %v4349
    %v7294 = vpack.c.b16 %v4366, %v4350
    %v7295 = vpack.c.b16 %v4367, %v4351
    %v7296 = vpack.c.b16 %v4384, %v4368
    %v7297 = vpack.c.b16 %v4385, %v4369
    %v7298 = vpack.c.b16 %v4386, %v4370
    %v7299 = vpack.c.b16 %v4387, %v4371
    %v7300 = vpack.c.b16 %v4388, %v4372
    %v7301 = vpack.c.b16 %v4389, %v4373
    %v7302 = vpack.c.b16 %v4390, %v4374
    %v7303 = vpack.c.b16 %v4391, %v4375
    %v7304 = vpack.c.b16 %v4392, %v4376
    %v7305 = vpack.c.b16 %v4393, %v4377
    %v7306 = vpack.c.b16 %v4394, %v4378
    %v7307 = vpack.c.b16 %v4395, %v4379
    %v7308 = vpack.c.b16 %v4396, %v4380
    %v7309 = vpack.c.b16 %v4397, %v4381
    %v7310 = vpack.c.b16 %v4398, %v4382
    %v7311 = vpack.c.b16 %v4399, %v4383
    %v7312 = vpack.c.b16 %v4416, %v4400
    %v7313 = vpack.c.b16 %v4417, %v4401
    %v7314 = vpack.c.b16 %v4418, %v4402
    %v7315 = vpack.c.b16 %v4419, %v4403
    %v7316 = vpack.c.b16 %v4420, %v4404
    %v7317 = vpack.c.b16 %v4421, %v4405
    %v7318 = vpack.c.b16 %v4422, %v4406
    %v7319 = vpack.c.b16 %v4423, %v4407
    %v7320 = vpack.c.b16 %v4424, %v4408
    %v7321 = vpack.c.b16 %v4425, %v4409
    %v7322 = vpack.c.b16 %v4426, %v4410
    %v7323 = vpack.c.b16 %v4427, %v4411
    %v7324 = vpack.c.b16 %v4428, %v4412
    %v7325 = vpack.c.b16 %v4429, %v4413
    %v7326 = vpack.c.b16 %v4430, %v4414
    %v7327 = vpack.c.b16 %v4431, %v4415
    %v7328 = vpack.c.b16 %v4448, %v4432
    %v7329 = vpack.c.b16 %v4449, %v4433
    %v7330 = vpack.c.b16 %v4450, %v4434
    %v7331 = vpack.c.b16 %v4451, %v4435
    %v7332 = vpack.c.b16 %v4452, %v4436
    %v7333 = vpack.c.b16 %v4453, %v4437
    %v7334 = vpack.c.b16 %v4454, %v4438
    %v7335 = vpack.c.b16 %v4455, %v4439
    %v7336 = vpack.c.b16 %v4456, %v4440
    %v7337 = vpack.c.b16 %v4457, %v4441
    %v7338 = vpack.c.b16 %v4458, %v4442
    %v7339 = vpack.c.b16 %v4459, %v4443
    %v7340 = vpack.c.b16 %v4460, %v4444
    %v7341 = vpack.c.b16 %v4461, %v4445
    %v7342 = vpack.c.b16 %v4462, %v4446
    %v7343 = vpack.c.b16 %v4463, %v4447
    %v7344 = vpack.c.b16 %v4480, %v4464
    %v7345 = vpack.c.b16 %v4481, %v4465
    %v7346 = vpack.c.b16 %v4482, %v4466
    %v7347 = vpack.c.b16 %v4483, %v4467
    %v7348 = vpack.c.b16 %v4484, %v4468
    %v7349 = vpack.c.b16 %v4485, %v4469
    %v7350 = vpack.c.b16 %v4486, %v4470
    %v7351 = vpack.c.b16 %v4487, %v4471
    %v7352 = vpack.c.b16 %v4488, %v4472
    %v7353 = vpack.c.b16 %v4489, %v4473
    %v7354 = vpack.c.b16 %v4490, %v4474
    %v7355 = vpack.c.b16 %v4491, %v4475
    %v7356 = vpack.c.b16 %v4492, %v4476
    %v7357 = vpack.c.b16 %v4493, %v4477
    %v7358 = vpack.c.b16 %v4494, %v4478
    %v7359 = vpack.c.b16 %v4495, %v4479
    %v7360 = vpack.c.b16 %v4512, %v4496
    %v7361 = vpack.c.b16 %v4513, %v4497
    %v7362 = vpack.c.b16 %v4514, %v4498
    %v7363 = vpack.c.b16 %v4515, %v4499
    %v7364 = vpack.c.b16 %v4516, %v4500
    %v7365 = vpack.c.b16 %v4517, %v4501
    %v7366 = vpack.c.b16 %v4518, %v4502
    %v7367 = vpack.c.b16 %v4519, %v4503
    %v7368 = vpack.c.b16 %v4520, %v4504
    %v7369 = vpack.c.b16 %v4521, %v4505
    %v7370 = vpack.c.b16 %v4522, %v4506
    %v7371 = vpack.c.b16 %v4523, %v4507
    %v7372 = vpack.c.b16 %v4524, %v4508
    %v7373 = vpack.c.b16 %v4525, %v4509
    %v7374 = vpack.c.b16 %v4526, %v4510
    %v7375 = vpack.c.b16 %v4527, %v4511
    %v7376 = vpack.c.b16 %v4544, %v4528
    %v7377 = vpack.c.b16 %v4545, %v4529
    %v7378 = vpack.c.b16 %v4546, %v4530
    %v7379 = vpack.c.b16 %v4547, %v4531
    %v7380 = vpack.c.b16 %v4548, %v4532
    %v7381 = vpack.c.b16 %v4549, %v4533
    %v7382 = vpack.c.b16 %v4550, %v4534
    %v7383 = vpack.c.b16 %v4551, %v4535
    %v7384 = vpack.c.b16 %v4552, %v4536
    %v7385 = vpack.c.b16 %v4553, %v4537
    %v7386 = vpack.c.b16 %v4554, %v4538
    %v7387 = vpack.c.b16 %v4555, %v4539
    %v7388 = vpack.c.b16 %v4556, %v4540
    %v7389 = vpack.c.b16 %v4557, %v4541
    %v7390 = vpack.c.b16 %v4558, %v4542
    %v7391 = vpack.c.b16 %v4559, %v4543
    %v7392 = vpack.c.b16 %v4576, %v4560
    %v7393 = vpack.c.b16 %v4577, %v4561
    %v7394 = vpack.c.b16 %v4578, %v4562
    %v7395 = vpack.c.b16 %v4579, %v4563
    %v7396 = vpack.c.b16 %v4580, %v4564
    %v7397 = vpack.c.b16 %v4581, %v4565
    %v7398 = vpack.c.b16 %v4582, %v4566
    %v7399 = vpack.c.b16 %v4583, %v4567
    %v7400 = vpack.c.b16 %v4584, %v4568
    %v7401 = vpack.c.b16 %v4585, %v4569
    %v7402 = vpack.c.b16 %v4586, %v4570
    %v7403 = vpack.c.b16 %v4587, %v4571
    %v7404 = vpack.c.b16 %v4588, %v4572
    %v7405 = vpack.c.b16 %v4589, %v4573
    %v7406 = vpack.c.b16 %v4590, %v4574
    %v7407 = vpack.c.b16 %v4591, %v4575
    %v7408 = vpack.c.b16 %v4608, %v4592
    %v7409 = vpack.c.b16 %v4609, %v4593
    %v7410 = vpack.c.b16 %v4610, %v4594
    %v7411 = vpack.c.b16 %v4611, %v4595
    %v7412 = vpack.c.b16 %v4612, %v4596
    %v7413 = vpack.c.b16 %v4613, %v4597
    %v7414 = vpack.c.b16 %v4614, %v4598
    %v7415 = vpack.c.b16 %v4615, %v4599
    %v7416 = vpack.c.b16 %v4616, %v4600
    %v7417 = vpack.c.b16 %v4617, %v4601
    %v7418 = vpack.c.b16 %v4618, %v4602
    %v7419 = vpack.c.b16 %v4619, %v4603
    %v7420 = vpack.c.b16 %v4620, %v4604
    %v7421 = vpack.c.b16 %v4621, %v4605
    %v7422 = vpack.c.b16 %v4622, %v4606
    %v7423 = vpack.c.b16 %v4623, %v4607
    %v7424 = vpack.c.b16 %v4640, %v4624
    %v7425 = vpack.c.b16 %v4641, %v4625
    %v7426 = vpack.c.b16 %v4642, %v4626
    %v7427 = vpack.c.b16 %v4643, %v4627
    %v7428 = vpack.c.b16 %v4644, %v4628
    %v7429 = vpack.c.b16 %v4645, %v4629
    %v7430 = vpack.c.b16 %v4646, %v4630
    %v7431 = vpack.c.b16 %v4647, %v4631
    %v7432 = vpack.c.b16 %v4648, %v4632
    %v7433 = vpack.c.b16 %v4649, %v4633
    %v7434 = vpack.c.b16 %v4650, %v4634
    %v7435 = vpack.c.b16 %v4651, %v4635
    %v7436 = vpack.c.b16 %v4652, %v4636
    %v7437 = vpack.c.b16 %v4653, %v4637
    %v7438 = vpack.c.b16 %v4654, %v4638
    %v7439 = vpack.c.b16 %v4655, %v4639
    %v7440 = vpack.c.b16 %v4672, %v4656
    %v7441 = vpack.c.b16 %v4673, %v4657
    %v7442 = vpack.c.b16 %v4674, %v4658
    %v7443 = vpack.c.b16 %v4675, %v4659
    %v7444 = vpack.c.b16 %v4676, %v4660
    %v7445 = vpack.c.b16 %v4677, %v4661
    %v7446 = vpack.c.b16 %v4678, %v4662
    %v7447 = vpack.c.b16 %v4679, %v4663
    %v7448 = vpack.c.b16 %v4680, %v4664
    %v7449 = vpack.c.b16 %v4681, %v4665
    %v7450 = vpack.c.b16 %v4682, %v4666
    %v7451 = vpack.c.b16 %v4683, %v4667
    %v7452 = vpack.c.b16 %v4684, %v4668
    %v7453 = vpack.c.b16 %v4685, %v4669
    %v7454 = vpack.c.b16 %v4686, %v4670
    %v7455 = vpack.c.b16 %v4687, %v4671
    %v7456 = vpack.c.b16 %v4704, %v4688
    %v7457 = vpack.c.b16 %v4705, %v4689
    %v7458 = vpack.c.b16 %v4706, %v4690
    %v7459 = vpack.c.b16 %v4707, %v4691
    %v7460 = vpack.c.b16 %v4708, %v4692
    %v7461 = vpack.c.b16 %v4709, %v4693
    %v7462 = vpack.c.b16 %v4710, %v4694
    %v7463 = vpack.c.b16 %v4711, %v4695
    %v7464 = vpack.c.b16 %v4712, %v4696
    %v7465 = vpack.c.b16 %v4713, %v4697
    %v7466 = vpack.c.b16 %v4714, %v4698
    %v7467 = vpack.c.b16 %v4715, %v4699
    %v7468 = vpack.c.b16 %v4716, %v4700
    %v7469 = vpack.c.b16 %v4717, %v4701
    %v7470 = vpack.c.b16 %v4718, %v4702
    %v7471 = vpack.c.b16 %v4719, %v4703
    %v7472 = vpack.c.b16 %v4736, %v4720
    %v7473 = vpack.c.b16 %v4737, %v4721
    %v7474 = vpack.c.b16 %v4738, %v4722
    %v7475 = vpack.c.b16 %v4739, %v4723
    %v7476 = vpack.c.b16 %v4740, %v4724
    %v7477 = vpack.c.b16 %v4741, %v4725
    %v7478 = vpack.c.b16 %v4742, %v4726
    %v7479 = vpack.c.b16 %v4743, %v4727
    %v7480 = vpack.c.b16 %v4744, %v4728
    %v7481 = vpack.c.b16 %v4745, %v4729
    %v7482 = vpack.c.b16 %v4746, %v4730
    %v7483 = vpack.c.b16 %v4747, %v4731
    %v7484 = vpack.c.b16 %v4748, %v4732
    %v7485 = vpack.c.b16 %v4749, %v4733
    %v7486 = vpack.c.b16 %v4750, %v4734
    %v7487 = vpack.c.b16 %v4751, %v4735
    %v7488 = vpack.c.b16 %v4768, %v4752
    %v7489 = vpack.c.b16 %v4769, %v4753
    %v7490 = vpack.c.b16 %v4770, %v4754
    %v7491 = vpack.c.b16 %v4771, %v4755
    %v7492 = vpack.c.b16 %v4772, %v4756
    %v7493 = vpack.c.b16 %v4773, %v4757
    %v7494 = vpack.c.b16 %v4774, %v4758
    %v7495 = vpack.c.b16 %v4775, %v4759
    %v7496 = vpack.c.b16 %v4776, %v4760
    %v7497 = vpack.c.b16 %v4777, %v4761
    %v7498 = vpack.c.b16 %v4778, %v4762
    %v7499 = vpack.c.b16 %v4779, %v4763
    %v7500 = vpack.c.b16 %v4780, %v4764
    %v7501 = vpack.c.b16 %v4781, %v4765
    %v7502 = vpack.c.b16 %v4782, %v4766
    %v7503 = vpack.c.b16 %v4783, %v4767
    %v7504 = vpack.c.b16 %v4800, %v4784
    %v7505 = vpack.c.b16 %v4801, %v4785
    %v7506 = vpack.c.b16 %v4802, %v4786
    %v7507 = vpack.c.b16 %v4803, %v4787
    %v7508 = vpack.c.b16 %v4804, %v4788
    %v7509 = vpack.c.b16 %v4805, %v4789
    %v7510 = vpack.c.b16 %v4806, %v4790
    %v7511 = vpack.c.b16 %v4807, %v4791
    %v7512 = vpack.c.b16 %v4808, %v4792
    %v7513 = vpack.c.b16 %v4809, %v4793
    %v7514 = vpack.c.b16 %v4810, %v4794
    %v7515 = vpack.c.b16 %v4811, %v4795
    %v7516 = vpack.c.b16 %v4812, %v4796
    %v7517 = vpack.c.b16 %v4813, %v4797
    %v7518 = vpack.c.b16 %v4814, %v4798
    %v7519 = vpack.c.b16 %v4815, %v4799
    %v7520 = vpack.c.b16 %v4832, %v4816
    %v7521 = vpack.c.b16 %v4833, %v4817
    %v7522 = vpack.c.b16 %v4834, %v4818
    %v7523 = vpack.c.b16 %v4835, %v4819
    %v7524 = vpack.c.b16 %v4836, %v4820
    %v7525 = vpack.c.b16 %v4837, %v4821
    %v7526 = vpack.c.b16 %v4838, %v4822
    %v7527 = vpack.c.b16 %v4839, %v4823
    %v7528 = vpack.c.b16 %v4840, %v4824
    %v7529 = vpack.c.b16 %v4841, %v4825
    %v7530 = vpack.c.b16 %v4842, %v4826
    %v7531 = vpack.c.b16 %v4843, %v4827
    %v7532 = vpack.c.b16 %v4844, %v4828
    %v7533 = vpack.c.b16 %v4845, %v4829
    %v7534 = vpack.c.b16 %v4846, %v4830
    %v7535 = vpack.c.b16 %v4847, %v4831
    %v7536 = vpack.c.b16 %v4864, %v4848
    %v7537 = vpack.c.b16 %v4865, %v4849
    %v7538 = vpack.c.b16 %v4866, %v4850
    %v7539 = vpack.c.b16 %v4867, %v4851
    %v7540 = vpack.c.b16 %v4868, %v4852
    %v7541 = vpack.c.b16 %v4869, %v4853
    %v7542 = vpack.c.b16 %v4870, %v4854
    %v7543 = vpack.c.b16 %v4871, %v4855
    %v7544 = vpack.c.b16 %v4872, %v4856
    %v7545 = vpack.c.b16 %v4873, %v4857
    %v7546 = vpack.c.b16 %v4874, %v4858
    %v7547 = vpack.c.b16 %v4875, %v4859
    %v7548 = vpack.c.b16 %v4876, %v4860
    %v7549 = vpack.c.b16 %v4877, %v4861
    %v7550 = vpack.c.b16 %v4878, %v4862
    %v7551 = vpack.c.b16 %v4879, %v4863
    %v7552 = vpack.c.b16 %v4896, %v4880
    %v7553 = vpack.c.b16 %v4897, %v4881
    %v7554 = vpack.c.b16 %v4898, %v4882
    %v7555 = vpack.c.b16 %v4899, %v4883
    %v7556 = vpack.c.b16 %v4900, %v4884
    %v7557 = vpack.c.b16 %v4901, %v4885
    %v7558 = vpack.c.b16 %v4902, %v4886
    %v7559 = vpack.c.b16 %v4903, %v4887
    %v7560 = vpack.c.b16 %v4904, %v4888
    %v7561 = vpack.c.b16 %v4905, %v4889
    %v7562 = vpack.c.b16 %v4906, %v4890
    %v7563 = vpack.c.b16 %v4907, %v4891
    %v7564 = vpack.c.b16 %v4908, %v4892
    %v7565 = vpack.c.b16 %v4909, %v4893
    %v7566 = vpack.c.b16 %v4910, %v4894
    %v7567 = vpack.c.b16 %v4911, %v4895
    %v7568 = vpack.c.b16 %v4928, %v4912
    %v7569 = vpack.c.b16 %v4929, %v4913
    %v7570 = vpack.c.b16 %v4930, %v4914
    %v7571 = vpack.c.b16 %v4931, %v4915
    %v7572 = vpack.c.b16 %v4932, %v4916
    %v7573 = vpack.c.b16 %v4933, %v4917
    %v7574 = vpack.c.b16 %v4934, %v4918
    %v7575 = vpack.c.b16 %v4935, %v4919
    %v7576 = vpack.c.b16 %v4936, %v4920
    %v7577 = vpack.c.b16 %v4937, %v4921
    %v7578 = vpack.c.b16 %v4938, %v4922
    %v7579 = vpack.c.b16 %v4939, %v4923
    %v7580 = vpack.c.b16 %v4940, %v4924
    %v7581 = vpack.c.b16 %v4941, %v4925
    %v7582 = vpack.c.b16 %v4942, %v4926
    %v7583 = vpack.c.b16 %v4943, %v4927
    %v7584 = vpack.c.b16 %v4960, %v4944
    %v7585 = vpack.c.b16 %v4961, %v4945
    %v7586 = vpack.c.b16 %v4962, %v4946
    %v7587 = vpack.c.b16 %v4963, %v4947
    %v7588 = vpack.c.b16 %v4964, %v4948
    %v7589 = vpack.c.b16 %v4965, %v4949
    %v7590 = vpack.c.b16 %v4966, %v4950
    %v7591 = vpack.c.b16 %v4967, %v4951
    %v7592 = vpack.c.b16 %v4968, %v4952
    %v7593 = vpack.c.b16 %v4969, %v4953
    %v7594 = vpack.c.b16 %v4970, %v4954
    %v7595 = vpack.c.b16 %v4971, %v4955
    %v7596 = vpack.c.b16 %v4972, %v4956
    %v7597 = vpack.c.b16 %v4973, %v4957
    %v7598 = vpack.c.b16 %v4974, %v4958
    %v7599 = vpack.c.b16 %v4975, %v4959
    %v7600 = vpack.c.b16 %v4992, %v4976
    %v7601 = vpack.c.b16 %v4993, %v4977
    %v7602 = vpack.c.b16 %v4994, %v4978
    %v7603 = vpack.c.b16 %v4995, %v4979
    %v7604 = vpack.c.b16 %v4996, %v4980
    %v7605 = vpack.c.b16 %v4997, %v4981
    %v7606 = vpack.c.b16 %v4998, %v4982
    %v7607 = vpack.c.b16 %v4999, %v4983
    %v7608 = vpack.c.b16 %v5000, %v4984
    %v7609 = vpack.c.b16 %v5001, %v4985
    %v7610 = vpack.c.b16 %v5002, %v4986
    %v7611 = vpack.c.b16 %v5003, %v4987
    %v7612 = vpack.c.b16 %v5004, %v4988
    %v7613 = vpack.c.b16 %v5005, %v4989
    %v7614 = vpack.c.b16 %v5006, %v4990
    %v7615 = vpack.c.b16 %v5007, %v4991
    %v7616 = vpack.c.b16 %v5024, %v5008
    %v7617 = vpack.c.b16 %v5025, %v5009
    %v7618 = vpack.c.b16 %v5026, %v5010
    %v7619 = vpack.c.b16 %v5027, %v5011
    %v7620 = vpack.c.b16 %v5028, %v5012
    %v7621 = vpack.c.b16 %v5029, %v5013
    %v7622 = vpack.c.b16 %v5030, %v5014
    %v7623 = vpack.c.b16 %v5031, %v5015
    %v7624 = vpack.c.b16 %v5032, %v5016
    %v7625 = vpack.c.b16 %v5033, %v5017
    %v7626 = vpack.c.b16 %v5034, %v5018
    %v7627 = vpack.c.b16 %v5035, %v5019
    %v7628 = vpack.c.b16 %v5036, %v5020
    %v7629 = vpack.c.b16 %v5037, %v5021
    %v7630 = vpack.c.b16 %v5038, %v5022
    %v7631 = vpack.c.b16 %v5039, %v5023
    %v7632 = vpack.c.b16 %v5056, %v5040
    %v7633 = vpack.c.b16 %v5057, %v5041
    %v7634 = vpack.c.b16 %v5058, %v5042
    %v7635 = vpack.c.b16 %v5059, %v5043
    %v7636 = vpack.c.b16 %v5060, %v5044
    %v7637 = vpack.c.b16 %v5061, %v5045
    %v7638 = vpack.c.b16 %v5062, %v5046
    %v7639 = vpack.c.b16 %v5063, %v5047
    %v7640 = vpack.c.b16 %v5064, %v5048
    %v7641 = vpack.c.b16 %v5065, %v5049
    %v7642 = vpack.c.b16 %v5066, %v5050
    %v7643 = vpack.c.b16 %v5067, %v5051
    %v7644 = vpack.c.b16 %v5068, %v5052
    %v7645 = vpack.c.b16 %v5069, %v5053
    %v7646 = vpack.c.b16 %v5070, %v5054
    %v7647 = vpack.c.b16 %v5071, %v5055
    %v7648 = vpack.c.b16 %v5088, %v5072
    %v7649 = vpack.c.b16 %v5089, %v5073
    %v7650 = vpack.c.b16 %v5090, %v5074
    %v7651 = vpack.c.b16 %v5091, %v5075
    %v7652 = vpack.c.b16 %v5092, %v5076
    %v7653 = vpack.c.b16 %v5093, %v5077
    %v7654 = vpack.c.b16 %v5094, %v5078
    %v7655 = vpack.c.b16 %v5095, %v5079
    %v7656 = vpack.c.b16 %v5096, %v5080
    %v7657 = vpack.c.b16 %v5097, %v5081
    %v7658 = vpack.c.b16 %v5098, %v5082
    %v7659 = vpack.c.b16 %v5099, %v5083
    %v7660 = vpack.c.b16 %v5100, %v5084
    %v7661 = vpack.c.b16 %v5101, %v5085
    %v7662 = vpack.c.b16 %v5102, %v5086
    %v7663 = vpack.c.b16 %v5103, %v5087
    %v7664 = vpack.c.b16 %v5120, %v5104
    %v7665 = vpack.c.b16 %v5121, %v5105
    %v7666 = vpack.c.b16 %v5122, %v5106
    %v7667 = vpack.c.b16 %v5123, %v5107
    %v7668 = vpack.c.b16 %v5124, %v5108
    %v7669 = vpack.c.b16 %v5125, %v5109
    %v7670 = vpack.c.b16 %v5126, %v5110
    %v7671 = vpack.c.b16 %v5127, %v5111
    %v7672 = vpack.c.b16 %v5128, %v5112
    %v7673 = vpack.c.b16 %v5129, %v5113
    %v7674 = vpack.c.b16 %v5130, %v5114
    %v7675 = vpack.c.b16 %v5131, %v5115
    %v7676 = vpack.c.b16 %v5132, %v5116
    %v7677 = vpack.c.b16 %v5133, %v5117
    %v7678 = vpack.c.b16 %v5134, %v5118
    %v7679 = vpack.c.b16 %v5135, %v5119
    %v7680 = vpack.c.b16 %v5152, %v5136
    %v7681 = vpack.c.b16 %v5153, %v5137
    %v7682 = vpack.c.b16 %v5154, %v5138
    %v7683 = vpack.c.b16 %v5155, %v5139
    %v7684 = vpack.c.b16 %v5156, %v5140
    %v7685 = vpack.c.b16 %v5157, %v5141
    %v7686 = vpack.c.b16 %v5158, %v5142
    %v7687 = vpack.c.b16 %v5159, %v5143
    %v7688 = vpack.c.b16 %v5160, %v5144
    %v7689 = vpack.c.b16 %v5161, %v5145
    %v7690 = vpack.c.b16 %v5162, %v5146
    %v7691 = vpack.c.b16 %v5163, %v5147
    %v7692 = vpack.c.b16 %v5164, %v5148
    %v7693 = vpack.c.b16 %v5165, %v5149
    %v7694 = vpack.c.b16 %v5166, %v5150
    %v7695 = vpack.c.b16 %v5167, %v5151
    %v7696 = vpack.c.b16 %v5184, %v5168
    %v7697 = vpack.c.b16 %v5185, %v5169
    %v7698 = vpack.c.b16 %v5186, %v5170
    %v7699 = vpack.c.b16 %v5187, %v5171
    %v7700 = vpack.c.b16 %v5188, %v5172
    %v7701 = vpack.c.b16 %v5189, %v5173
    %v7702 = vpack.c.b16 %v5190, %v5174
    %v7703 = vpack.c.b16 %v5191, %v5175
    %v7704 = vpack.c.b16 %v5192, %v5176
    %v7705 = vpack.c.b16 %v5193, %v5177
    %v7706 = vpack.c.b16 %v5194, %v5178
    %v7707 = vpack.c.b16 %v5195, %v5179
    %v7708 = vpack.c.b16 %v5196, %v5180
    %v7709 = vpack.c.b16 %v5197, %v5181
    %v7710 = vpack.c.b16 %v5198, %v5182
    %v7711 = vpack.c.b16 %v5199, %v5183
    %v7712 = vpack.c.b16 %v5216, %v5200
    %v7713 = vpack.c.b16 %v5217, %v5201
    %v7714 = vpack.c.b16 %v5218, %v5202
    %v7715 = vpack.c.b16 %v5219, %v5203
    %v7716 = vpack.c.b16 %v5220, %v5204
    %v7717 = vpack.c.b16 %v5221, %v5205
    %v7718 = vpack.c.b16 %v5222, %v5206
    %v7719 = vpack.c.b16 %v5223, %v5207
    %v7720 = vpack.c.b16 %v5224, %v5208
    %v7721 = vpack.c.b16 %v5225, %v5209
    %v7722 = vpack.c.b16 %v5226, %v5210
    %v7723 = vpack.c.b16 %v5227, %v5211
    %v7724 = vpack.c.b16 %v5228, %v5212
    %v7725 = vpack.c.b16 %v5229, %v5213
    %v7726 = vpack.c.b16 %v5230, %v5214
    %v7727 = vpack.c.b16 %v5231, %v5215
    %v7728 = vpack.c.b16 %v5248, %v5232
    %v7729 = vpack.c.b16 %v5249, %v5233
    %v7730 = vpack.c.b16 %v5250, %v5234
    %v7731 = vpack.c.b16 %v5251, %v5235
    %v7732 = vpack.c.b16 %v5252, %v5236
    %v7733 = vpack.c.b16 %v5253, %v5237
    %v7734 = vpack.c.b16 %v5254, %v5238
    %v7735 = vpack.c.b16 %v5255, %v5239
    %v7736 = vpack.c.b16 %v5256, %v5240
    %v7737 = vpack.c.b16 %v5257, %v5241
    %v7738 = vpack.c.b16 %v5258, %v5242
    %v7739 = vpack.c.b16 %v5259, %v5243
    %v7740 = vpack.c.b16 %v5260, %v5244
    %v7741 = vpack.c.b16 %v5261, %v5245
    %v7742 = vpack.c.b16 %v5262, %v5246
    %v7743 = vpack.c.b16 %v5263, %v5247
    %v7744 = vpack.c.b16 %v5280, %v5264
    %v7745 = vpack.c.b16 %v5281, %v5265
    %v7746 = vpack.c.b16 %v5282, %v5266
    %v7747 = vpack.c.b16 %v5283, %v5267
    %v7748 = vpack.c.b16 %v5284, %v5268
    %v7749 = vpack.c.b16 %v5285, %v5269
    %v7750 = vpack.c.b16 %v5286, %v5270
    %v7751 = vpack.c.b16 %v5287, %v5271
    %v7752 = vpack.c.b16 %v5288, %v5272
    %v7753 = vpack.c.b16 %v5289, %v5273
    %v7754 = vpack.c.b16 %v5290, %v5274
    %v7755 = vpack.c.b16 %v5291, %v5275
    %v7756 = vpack.c.b16 %v5292, %v5276
    %v7757 = vpack.c.b16 %v5293, %v5277
    %v7758 = vpack.c.b16 %v5294, %v5278
    %v7759 = vpack.c.b16 %v5295, %v5279
    %v7760 = vpack.c.b16 %v5312, %v5296
    %v7761 = vpack.c.b16 %v5313, %v5297
    %v7762 = vpack.c.b16 %v5314, %v5298
    %v7763 = vpack.c.b16 %v5315, %v5299
    %v7764 = vpack.c.b16 %v5316, %v5300
    %v7765 = vpack.c.b16 %v5317, %v5301
    %v7766 = vpack.c.b16 %v5318, %v5302
    %v7767 = vpack.c.b16 %v5319, %v5303
    %v7768 = vpack.c.b16 %v5320, %v5304
    %v7769 = vpack.c.b16 %v5321, %v5305
    %v7770 = vpack.c.b16 %v5322, %v5306
    %v7771 = vpack.c.b16 %v5323, %v5307
    %v7772 = vpack.c.b16 %v5324, %v5308
    %v7773 = vpack.c.b16 %v5325, %v5309
    %v7774 = vpack.c.b16 %v5326, %v5310
    %v7775 = vpack.c.b16 %v5327, %v5311
    %v7776 = vpack.c.b16 %v5344, %v5328
    %v7777 = vpack.c.b16 %v5345, %v5329
    %v7778 = vpack.c.b16 %v5346, %v5330
    %v7779 = vpack.c.b16 %v5347, %v5331
    %v7780 = vpack.c.b16 %v5348, %v5332
    %v7781 = vpack.c.b16 %v5349, %v5333
    %v7782 = vpack.c.b16 %v5350, %v5334
    %v7783 = vpack.c.b16 %v5351, %v5335
    %v7784 = vpack.c.b16 %v5352, %v5336
    %v7785 = vpack.c.b16 %v5353, %v5337
    %v7786 = vpack.c.b16 %v5354, %v5338
    %v7787 = vpack.c.b16 %v5355, %v5339
    %v7788 = vpack.c.b16 %v5356, %v5340
    %v7789 = vpack.c.b16 %v5357, %v5341
    %v7790 = vpack.c.b16 %v5358, %v5342
    %v7791 = vpack.c.b16 %v5359, %v5343
    %v7792 = vpack.c.b16 %v5376, %v5360
    %v7793 = vpack.c.b16 %v5377, %v5361
    %v7794 = vpack.c.b16 %v5378, %v5362
    %v7795 = vpack.c.b16 %v5379, %v5363
    %v7796 = vpack.c.b16 %v5380, %v5364
    %v7797 = vpack.c.b16 %v5381, %v5365
    %v7798 = vpack.c.b16 %v5382, %v5366
    %v7799 = vpack.c.b16 %v5383, %v5367
    %v7800 = vpack.c.b16 %v5384, %v5368
    %v7801 = vpack.c.b16 %v5385, %v5369
    %v7802 = vpack.c.b16 %v5386, %v5370
    %v7803 = vpack.c.b16 %v5387, %v5371
    %v7804 = vpack.c.b16 %v5388, %v5372
    %v7805 = vpack.c.b16 %v5389, %v5373
    %v7806 = vpack.c.b16 %v5390, %v5374
    %v7807 = vpack.c.b16 %v5391, %v5375
    %v7808 = vpack.c.b16 %v5408, %v5392
    %v7809 = vpack.c.b16 %v5409, %v5393
    %v7810 = vpack.c.b16 %v5410, %v5394
    %v7811 = vpack.c.b16 %v5411, %v5395
    %v7812 = vpack.c.b16 %v5412, %v5396
    %v7813 = vpack.c.b16 %v5413, %v5397
    %v7814 = vpack.c.b16 %v5414, %v5398
    %v7815 = vpack.c.b16 %v5415, %v5399
    %v7816 = vpack.c.b16 %v5416, %v5400
    %v7817 = vpack.c.b16 %v5417, %v5401
    %v7818 = vpack.c.b16 %v5418, %v5402
    %v7819 = vpack.c.b16 %v5419, %v5403
    %v7820 = vpack.c.b16 %v5420, %v5404
    %v7821 = vpack.c.b16 %v5421, %v5405
    %v7822 = vpack.c.b16 %v5422, %v5406
    %v7823 = vpack.c.b16 %v5423, %v5407
    %v7824 = vpack.c.b16 %v5440, %v5424
    %v7825 = vpack.c.b16 %v5441, %v5425
    %v7826 = vpack.c.b16 %v5442, %v5426
    %v7827 = vpack.c.b16 %v5443, %v5427
    %v7828 = vpack.c.b16 %v5444, %v5428
    %v7829 = vpack.c.b16 %v5445, %v5429
    %v7830 = vpack.c.b16 %v5446, %v5430
    %v7831 = vpack.c.b16 %v5447, %v5431
    %v7832 = vpack.c.b16 %v5448, %v5432
    %v7833 = vpack.c.b16 %v5449, %v5433
    %v7834 = vpack.c.b16 %v5450, %v5434
    %v7835 = vpack.c.b16 %v5451, %v5435
    %v7836 = vpack.c.b16 %v5452, %v5436
    %v7837 = vpack.c.b16 %v5453, %v5437
    %v7838 = vpack.c.b16 %v5454, %v5438
    %v7839 = vpack.c.b16 %v5455, %v5439
    %v7840 = vpack.c.b16 %v5472, %v5456
    %v7841 = vpack.c.b16 %v5473, %v5457
    %v7842 = vpack.c.b16 %v5474, %v5458
    %v7843 = vpack.c.b16 %v5475, %v5459
    %v7844 = vpack.c.b16 %v5476, %v5460
    %v7845 = vpack.c.b16 %v5477, %v5461
    %v7846 = vpack.c.b16 %v5478, %v5462
    %v7847 = vpack.c.b16 %v5479, %v5463
    %v7848 = vpack.c.b16 %v5480, %v5464
    %v7849 = vpack.c.b16 %v5481, %v5465
    %v7850 = vpack.c.b16 %v5482, %v5466
    %v7851 = vpack.c.b16 %v5483, %v5467
    %v7852 = vpack.c.b16 %v5484, %v5468
    %v7853 = vpack.c.b16 %v5485, %v5469
    %v7854 = vpack.c.b16 %v5486, %v5470
    %v7855 = vpack.c.b16 %v5487, %v5471
    %v7856 = vpack.c.b16 %v5504, %v5488
    %v7857 = vpack.c.b16 %v5505, %v5489
    %v7858 = vpack.c.b16 %v5506, %v5490
    %v7859 = vpack.c.b16 %v5507, %v5491
    %v7860 = vpack.c.b16 %v5508, %v5492
    %v7861 = vpack.c.b16 %v5509, %v5493
    %v7862 = vpack.c.b16 %v5510, %v5494
    %v7863 = vpack.c.b16 %v5511, %v5495
    %v7864 = vpack.c.b16 %v5512, %v5496
    %v7865 = vpack.c.b16 %v5513, %v5497
    %v7866 = vpack.c.b16 %v5514, %v5498
    %v7867 = vpack.c.b16 %v5515, %v5499
    %v7868 = vpack.c.b16 %v5516, %v5500
    %v7869 = vpack.c.b16 %v5517, %v5501
    %v7870 = vpack.c.b16 %v5518, %v5502
    %v7871 = vpack.c.b16 %v5519, %v5503
    %v7872 = vpack.c.b16 %v5536, %v5520
    %v7873 = vpack.c.b16 %v5537, %v5521
    %v7874 = vpack.c.b16 %v5538, %v5522
    %v7875 = vpack.c.b16 %v5539, %v5523
    %v7876 = vpack.c.b16 %v5540, %v5524
    %v7877 = vpack.c.b16 %v5541, %v5525
    %v7878 = vpack.c.b16 %v5542, %v5526
    %v7879 = vpack.c.b16 %v5543, %v5527
    %v7880 = vpack.c.b16 %v5544, %v5528
    %v7881 = vpack.c.b16 %v5545, %v5529
    %v7882 = vpack.c.b16 %v5546, %v5530
    %v7883 = vpack.c.b16 %v5547, %v5531
    %v7884 = vpack.c.b16 %v5548, %v5532
    %v7885 = vpack.c.b16 %v5549, %v5533
    %v7886 = vpack.c.b16 %v5550, %v5534
    %v7887 = vpack.c.b16 %v5551, %v5535
    %v7888 = vpack.c.b16 %v5568, %v5552
    %v7889 = vpack.c.b16 %v5569, %v5553
    %v7890 = vpack.c.b16 %v5570, %v5554
    %v7891 = vpack.c.b16 %v5571, %v5555
    %v7892 = vpack.c.b16 %v5572, %v5556
    %v7893 = vpack.c.b16 %v5573, %v5557
    %v7894 = vpack.c.b16 %v5574, %v5558
    %v7895 = vpack.c.b16 %v5575, %v5559
    %v7896 = vpack.c.b16 %v5576, %v5560
    %v7897 = vpack.c.b16 %v5577, %v5561
    %v7898 = vpack.c.b16 %v5578, %v5562
    %v7899 = vpack.c.b16 %v5579, %v5563
    %v7900 = vpack.c.b16 %v5580, %v5564
    %v7901 = vpack.c.b16 %v5581, %v5565
    %v7902 = vpack.c.b16 %v5582, %v5566
    %v7903 = vpack.c.b16 %v5583, %v5567
    %v7904 = vpack.c.b16 %v5600, %v5584
    %v7905 = vpack.c.b16 %v5601, %v5585
    %v7906 = vpack.c.b16 %v5602, %v5586
    %v7907 = vpack.c.b16 %v5603, %v5587
    %v7908 = vpack.c.b16 %v5604, %v5588
    %v7909 = vpack.c.b16 %v5605, %v5589
    %v7910 = vpack.c.b16 %v5606, %v5590
    %v7911 = vpack.c.b16 %v5607, %v5591
    %v7912 = vpack.c.b16 %v5608, %v5592
    %v7913 = vpack.c.b16 %v5609, %v5593
    %v7914 = vpack.c.b16 %v5610, %v5594
    %v7915 = vpack.c.b16 %v5611, %v5595
    %v7916 = vpack.c.b16 %v5612, %v5596
    %v7917 = vpack.c.b16 %v5613, %v5597
    %v7918 = vpack.c.b16 %v5614, %v5598
    %v7919 = vpack.c.b16 %v5615, %v5599
    %v7920 = vpack.c.b16 %v5632, %v5616
    %v7921 = vpack.c.b16 %v5633, %v5617
    %v7922 = vpack.c.b16 %v5634, %v5618
    %v7923 = vpack.c.b16 %v5635, %v5619
    %v7924 = vpack.c.b16 %v5636, %v5620
    %v7925 = vpack.c.b16 %v5637, %v5621
    %v7926 = vpack.c.b16 %v5638, %v5622
    %v7927 = vpack.c.b16 %v5639, %v5623
    %v7928 = vpack.c.b16 %v5640, %v5624
    %v7929 = vpack.c.b16 %v5641, %v5625
    %v7930 = vpack.c.b16 %v5642, %v5626
    %v7931 = vpack.c.b16 %v5643, %v5627
    %v7932 = vpack.c.b16 %v5644, %v5628
    %v7933 = vpack.c.b16 %v5645, %v5629
    %v7934 = vpack.c.b16 %v5646, %v5630
    %v7935 = vpack.c.b16 %v5647, %v5631
    %v7936 = vpack.c.b16 %v5664, %v5648
    %v7937 = vpack.c.b16 %v5665, %v5649
    %v7938 = vpack.c.b16 %v5666, %v5650
    %v7939 = vpack.c.b16 %v5667, %v5651
    %v7940 = vpack.c.b16 %v5668, %v5652
    %v7941 = vpack.c.b16 %v5669, %v5653
    %v7942 = vpack.c.b16 %v5670, %v5654
    %v7943 = vpack.c.b16 %v5671, %v5655
    %v7944 = vpack.c.b16 %v5672, %v5656
    %v7945 = vpack.c.b16 %v5673, %v5657
    %v7946 = vpack.c.b16 %v5674, %v5658
    %v7947 = vpack.c.b16 %v5675, %v5659
    %v7948 = vpack.c.b16 %v5676, %v5660
    %v7949 = vpack.c.b16 %v5677, %v5661
    %v7950 = vpack.c.b16 %v5678, %v5662
    %v7951 = vpack.c.b16 %v5679, %v5663
    %v7952 = vpack.c.b16 %v5696, %v5680
    %v7953 = vpack.c.b16 %v5697, %v5681
    %v7954 = vpack.c.b16 %v5698, %v5682
    %v7955 = vpack.c.b16 %v5699, %v5683
    %v7956 = vpack.c.b16 %v5700, %v5684
    %v7957 = vpack.c.b16 %v5701, %v5685
    %v7958 = vpack.c.b16 %v5702, %v5686
    %v7959 = vpack.c.b16 %v5703, %v5687
    %v7960 = vpack.c.b16 %v5704, %v5688
    %v7961 = vpack.c.b16 %v5705, %v5689
    %v7962 = vpack.c.b16 %v5706, %v5690
    %v7963 = vpack.c.b16 %v5707, %v5691
    %v7964 = vpack.c.b16 %v5708, %v5692
    %v7965 = vpack.c.b16 %v5709, %v5693
    %v7966 = vpack.c.b16 %v5710, %v5694
    %v7967 = vpack.c.b16 %v5711, %v5695
    %v7968 = vpack.c.b16 %v5728, %v5712
    %v7969 = vpack.c.b16 %v5729, %v5713
    %v7970 = vpack.c.b16 %v5730, %v5714
    %v7971 = vpack.c.b16 %v5731, %v5715
    %v7972 = vpack.c.b16 %v5732, %v5716
    %v7973 = vpack.c.b16 %v5733, %v5717
    %v7974 = vpack.c.b16 %v5734, %v5718
    %v7975 = vpack.c.b16 %v5735, %v5719
    %v7976 = vpack.c.b16 %v5736, %v5720
    %v7977 = vpack.c.b16 %v5737, %v5721
    %v7978 = vpack.c.b16 %v5738, %v5722
    %v7979 = vpack.c.b16 %v5739, %v5723
    %v7980 = vpack.c.b16 %v5740, %v5724
    %v7981 = vpack.c.b16 %v5741, %v5725
    %v7982 = vpack.c.b16 %v5742, %v5726
    %v7983 = vpack.c.b16 %v5743, %v5727
    %v7984 = vpack.c.b16 %v5760, %v5744
    %v7985 = vpack.c.b16 %v5761, %v5745
    %v7986 = vpack.c.b16 %v5762, %v5746
    %v7987 = vpack.c.b16 %v5763, %v5747
    %v7988 = vpack.c.b16 %v5764, %v5748
    %v7989 = vpack.c.b16 %v5765, %v5749
    %v7990 = vpack.c.b16 %v5766, %v5750
    %v7991 = vpack.c.b16 %v5767, %v5751
    %v7992 = vpack.c.b16 %v5768, %v5752
    %v7993 = vpack.c.b16 %v5769, %v5753
    %v7994 = vpack.c.b16 %v5770, %v5754
    %v7995 = vpack.c.b16 %v5771, %v5755
    %v7996 = vpack.c.b16 %v5772, %v5756
    %v7997 = vpack.c.b16 %v5773, %v5757
    %v7998 = vpack.c.b16 %v5774, %v5758
    %v7999 = vpack.c.b16 %v5775, %v5759
    %v8000 = vpack.c.b16 %v5792, %v5776
    %v8001 = vpack.c.b16 %v5793, %v5777
    %v8002 = vpack.c.b16 %v5794, %v5778
    %v8003 = vpack.c.b16 %v5795, %v5779
    %v8004 = vpack.c.b16 %v5796, %v5780
    %v8005 = vpack.c.b16 %v5797, %v5781
    %v8006 = vpack.c.b16 %v5798, %v5782
    %v8007 = vpack.c.b16 %v5799, %v5783
    %v8008 = vpack.c.b16 %v5800, %v5784
    %v8009 = vpack.c.b16 %v5801, %v5785
    %v8010 = vpack.c.b16 %v5802, %v5786
    %v8011 = vpack.c.b16 %v5803, %v5787
    %v8012 = vpack.c.b16 %v5804, %v5788
    %v8013 = vpack.c.b16 %v5805, %v5789
    %v8014 = vpack.c.b16 %v5806, %v5790
    %v8015 = vpack.c.b16 %v5807, %v5791
    %v8016 = vpack.c.b16 %v5824, %v5808
    %v8017 = vpack.c.b16 %v5825, %v5809
    %v8018 = vpack.c.b16 %v5826, %v5810
    %v8019 = vpack.c.b16 %v5827, %v5811
    %v8020 = vpack.c.b16 %v5828, %v5812
    %v8021 = vpack.c.b16 %v5829, %v5813
    %v8022 = vpack.c.b16 %v5830, %v5814
    %v8023 = vpack.c.b16 %v5831, %v5815
    %v8024 = vpack.c.b16 %v5832, %v5816
    %v8025 = vpack.c.b16 %v5833, %v5817
    %v8026 = vpack.c.b16 %v5834, %v5818
    %v8027 = vpack.c.b16 %v5835, %v5819
    %v8028 = vpack.c.b16 %v5836, %v5820
    %v8029 = vpack.c.b16 %v5837, %v5821
    %v8030 = vpack.c.b16 %v5838, %v5822
    %v8031 = vpack.c.b16 %v5839, %v5823
    %v8032 = vpack.c.b16 %v5856, %v5840
    %v8033 = vpack.c.b16 %v5857, %v5841
    %v8034 = vpack.c.b16 %v5858, %v5842
    %v8035 = vpack.c.b16 %v5859, %v5843
    %v8036 = vpack.c.b16 %v5860, %v5844
    %v8037 = vpack.c.b16 %v5861, %v5845
    %v8038 = vpack.c.b16 %v5862, %v5846
    %v8039 = vpack.c.b16 %v5863, %v5847
    %v8040 = vpack.c.b16 %v5864, %v5848
    %v8041 = vpack.c.b16 %v5865, %v5849
    %v8042 = vpack.c.b16 %v5866, %v5850
    %v8043 = vpack.c.b16 %v5867, %v5851
    %v8044 = vpack.c.b16 %v5868, %v5852
    %v8045 = vpack.c.b16 %v5869, %v5853
    %v8046 = vpack.c.b16 %v5870, %v5854
    %v8047 = vpack.c.b16 %v5871, %v5855
    %v8048 = vpack.c.b16 %v5888, %v5872
    %v8049 = vpack.c.b16 %v5889, %v5873
    %v8050 = vpack.c.b16 %v5890, %v5874
    %v8051 = vpack.c.b16 %v5891, %v5875
    %v8052 = vpack.c.b16 %v5892, %v5876
    %v8053 = vpack.c.b16 %v5893, %v5877
    %v8054 = vpack.c.b16 %v5894, %v5878
    %v8055 = vpack.c.b16 %v5895, %v5879
    %v8056 = vpack.c.b16 %v5896, %v5880
    %v8057 = vpack.c.b16 %v5897, %v5881
    %v8058 = vpack.c.b16 %v5898, %v5882
    %v8059 = vpack.c.b16 %v5899, %v5883
    %v8060 = vpack.c.b16 %v5900, %v5884
    %v8061 = vpack.c.b16 %v5901, %v5885
    %v8062 = vpack.c.b16 %v5902, %v5886
    %v8063 = vpack.c.b16 %v5903, %v5887
    %v8064 = vpack.c.b16 %v5920, %v5904
    %v8065 = vpack.c.b16 %v5921, %v5905
    %v8066 = vpack.c.b16 %v5922, %v5906
    %v8067 = vpack.c.b16 %v5923, %v5907
    %v8068 = vpack.c.b16 %v5924, %v5908
    %v8069 = vpack.c.b16 %v5925, %v5909
    %v8070 = vpack.c.b16 %v5926, %v5910
    %v8071 = vpack.c.b16 %v5927, %v5911
    %v8072 = vpack.c.b16 %v5928, %v5912
    %v8073 = vpack.c.b16 %v5929, %v5913
    %v8074 = vpack.c.b16 %v5930, %v5914
    %v8075 = vpack.c.b16 %v5931, %v5915
    %v8076 = vpack.c.b16 %v5932, %v5916
    %v8077 = vpack.c.b16 %v5933, %v5917
    %v8078 = vpack.c.b16 %v5934, %v5918
    %v8079 = vpack.c.b16 %v5935, %v5919
    %v8080 = vpack.c.b16 %v5952, %v5936
    %v8081 = vpack.c.b16 %v5953, %v5937
    %v8082 = vpack.c.b16 %v5954, %v5938
    %v8083 = vpack.c.b16 %v5955, %v5939
    %v8084 = vpack.c.b16 %v5956, %v5940
    %v8085 = vpack.c.b16 %v5957, %v5941
    %v8086 = vpack.c.b16 %v5958, %v5942
    %v8087 = vpack.c.b16 %v5959, %v5943
    %v8088 = vpack.c.b16 %v5960, %v5944
    %v8089 = vpack.c.b16 %v5961, %v5945
    %v8090 = vpack.c.b16 %v5962, %v5946
    %v8091 = vpack.c.b16 %v5963, %v5947
    %v8092 = vpack.c.b16 %v5964, %v5948
    %v8093 = vpack.c.b16 %v5965, %v5949
    %v8094 = vpack.c.b16 %v5966, %v5950
    %v8095 = vpack.c.b16 %v5967, %v5951
    %v8096 = vpack.c.b16 %v5984, %v5968
    %v8097 = vpack.c.b16 %v5985, %v5969
    %v8098 = vpack.c.b16 %v5986, %v5970
    %v8099 = vpack.c.b16 %v5987, %v5971
    %v8100 = vpack.c.b16 %v5988, %v5972
    %v8101 = vpack.c.b16 %v5989, %v5973
    %v8102 = vpack.c.b16 %v5990, %v5974
    %v8103 = vpack.c.b16 %v5991, %v5975
    %v8104 = vpack.c.b16 %v5992, %v5976
    %v8105 = vpack.c.b16 %v5993, %v5977
    %v8106 = vpack.c.b16 %v5994, %v5978
    %v8107 = vpack.c.b16 %v5995, %v5979
    %v8108 = vpack.c.b16 %v5996, %v5980
    %v8109 = vpack.c.b16 %v5997, %v5981
    %v8110 = vpack.c.b16 %v5998, %v5982
    %v8111 = vpack.c.b16 %v5999, %v5983
    %v8112 = vpack.c.b16 %v6016, %v6000
    %v8113 = vpack.c.b16 %v6017, %v6001
    %v8114 = vpack.c.b16 %v6018, %v6002
    %v8115 = vpack.c.b16 %v6019, %v6003
    %v8116 = vpack.c.b16 %v6020, %v6004
    %v8117 = vpack.c.b16 %v6021, %v6005
    %v8118 = vpack.c.b16 %v6022, %v6006
    %v8119 = vpack.c.b16 %v6023, %v6007
    %v8120 = vpack.c.b16 %v6024, %v6008
    %v8121 = vpack.c.b16 %v6025, %v6009
    %v8122 = vpack.c.b16 %v6026, %v6010
    %v8123 = vpack.c.b16 %v6027, %v6011
    %v8124 = vpack.c.b16 %v6028, %v6012
    %v8125 = vpack.c.b16 %v6029, %v6013
    %v8126 = vpack.c.b16 %v6030, %v6014
    %v8127 = vpack.c.b16 %v6031, %v6015
    %v8128 = vpack.c.b16 %v6048, %v6032
    %v8129 = vpack.c.b16 %v6049, %v6033
    %v8130 = vpack.c.b16 %v6050, %v6034
    %v8131 = vpack.c.b16 %v6051, %v6035
    %v8132 = vpack.c.b16 %v6052, %v6036
    %v8133 = vpack.c.b16 %v6053, %v6037
    %v8134 = vpack.c.b16 %v6054, %v6038
    %v8135 = vpack.c.b16 %v6055, %v6039
    %v8136 = vpack.c.b16 %v6056, %v6040
    %v8137 = vpack.c.b16 %v6057, %v6041
    %v8138 = vpack.c.b16 %v6058, %v6042
    %v8139 = vpack.c.b16 %v6059, %v6043
    %v8140 = vpack.c.b16 %v6060, %v6044
    %v8141 = vpack.c.b16 %v6061, %v6045
    %v8142 = vpack.c.b16 %v6062, %v6046
    %v8143 = vpack.c.b16 %v6063, %v6047
    %v8144 = vpack.c.b16 %v6080, %v6064
    %v8145 = vpack.c.b16 %v6081, %v6065
    %v8146 = vpack.c.b16 %v6082, %v6066
    %v8147 = vpack.c.b16 %v6083, %v6067
    %v8148 = vpack.c.b16 %v6084, %v6068
    %v8149 = vpack.c.b16 %v6085, %v6069
    %v8150 = vpack.c.b16 %v6086, %v6070
    %v8151 = vpack.c.b16 %v6087, %v6071
    %v8152 = vpack.c.b16 %v6088, %v6072
    %v8153 = vpack.c.b16 %v6089, %v6073
    %v8154 = vpack.c.b16 %v6090, %v6074
    %v8155 = vpack.c.b16 %v6091, %v6075
    %v8156 = vpack.c.b16 %v6092, %v6076
    %v8157 = vpack.c.b16 %v6093, %v6077
    %v8158 = vpack.c.b16 %v6094, %v6078
    %v8159 = vpack.c.b16 %v6095, %v6079
    %v8160 = vpack.c.b16 %v6112, %v6096
    %v8161 = vpack.c.b16 %v6113, %v6097
    %v8162 = vpack.c.b16 %v6114, %v6098
    %v8163 = vpack.c.b16 %v6115, %v6099
    %v8164 = vpack.c.b16 %v6116, %v6100
    %v8165 = vpack.c.b16 %v6117, %v6101
    %v8166 = vpack.c.b16 %v6118, %v6102
    %v8167 = vpack.c.b16 %v6119, %v6103
    %v8168 = vpack.c.b16 %v6120, %v6104
    %v8169 = vpack.c.b16 %v6121, %v6105
    %v8170 = vpack.c.b16 %v6122, %v6106
    %v8171 = vpack.c.b16 %v6123, %v6107
    %v8172 = vpack.c.b16 %v6124, %v6108
    %v8173 = vpack.c.b16 %v6125, %v6109
    %v8174 = vpack.c.b16 %v6126, %v6110
    %v8175 = vpack.c.b16 %v6127, %v6111
    %v8176 = vpack.c.b16 %v6144, %v6128
    %v8177 = vpack.c.b16 %v6145, %v6129
    %v8178 = vpack.c.b16 %v6146, %v6130
    %v8179 = vpack.c.b16 %v6147, %v6131
    %v8180 = vpack.c.b16 %v6148, %v6132
    %v8181 = vpack.c.b16 %v6149, %v6133
    %v8182 = vpack.c.b16 %v6150, %v6134
    %v8183 = vpack.c.b16 %v6151, %v6135
    %v8184 = vpack.c.b16 %v6152, %v6136
    %v8185 = vpack.c.b16 %v6153, %v6137
    %v8186 = vpack.c.b16 %v6154, %v6138
    %v8187 = vpack.c.b16 %v6155, %v6139
    %v8188 = vpack.c.b16 %v6156, %v6140
    %v8189 = vpack.c.b16 %v6157, %v6141
    %v8190 = vpack.c.b16 %v6158, %v6142
    %v8191 = vpack.c.b16 %v6159, %v6143
    %v8192 = vpack.c.b16 %v6176, %v6160
    %v8193 = vpack.c.b16 %v6177, %v6161
    %v8194 = vpack.c.b16 %v6178, %v6162
    %v8195 = vpack.c.b16 %v6179, %v6163
    %v8196 = vpack.c.b16 %v6180, %v6164
    %v8197 = vpack.c.b16 %v6181, %v6165
    %v8198 = vpack.c.b16 %v6182, %v6166
    %v8199 = vpack.c.b16 %v6183, %v6167
    %v8200 = vpack.c.b16 %v6184, %v6168
    %v8201 = vpack.c.b16 %v6185, %v6169
    %v8202 = vpack.c.b16 %v6186, %v6170
    %v8203 = vpack.c.b16 %v6187, %v6171
    %v8204 = vpack.c.b16 %v6188, %v6172
    %v8205 = vpack.c.b16 %v6189, %v6173
    %v8206 = vpack.c.b16 %v6190, %v6174
    %v8207 = vpack.c.b16 %v6191, %v6175
    %v8208 = vpack.c.b16 %v6208, %v6192
    %v8209 = vpack.c.b16 %v6209, %v6193
    %v8210 = vpack.c.b16 %v6210, %v6194
    %v8211 = vpack.c.b16 %v6211, %v6195
    %v8212 = vpack.c.b16 %v6212, %v6196
    %v8213 = vpack.c.b16 %v6213, %v6197
    %v8214 = vpack.c.b16 %v6214, %v6198
    %v8215 = vpack.c.b16 %v6215, %v6199
    %v8216 = vpack.c.b16 %v6216, %v6200
    %v8217 = vpack.c.b16 %v6217, %v6201
    %v8218 = vpack.c.b16 %v6218, %v6202
    %v8219 = vpack.c.b16 %v6219, %v6203
    %v8220 = vpack.c.b16 %v6220, %v6204
    %v8221 = vpack.c.b16 %v6221, %v6205
    %v8222 = vpack.c.b16 %v6222, %v6206
    %v8223 = vpack.c.b16 %v6223, %v6207
    %v8224 = vpack.c.b16 %v6240, %v6224
    %v8225 = vpack.c.b16 %v6241, %v6225
    %v8226 = vpack.c.b16 %v6242, %v6226
    %v8227 = vpack.c.b16 %v6243, %v6227
    %v8228 = vpack.c.b16 %v6244, %v6228
    %v8229 = vpack.c.b16 %v6245, %v6229
    %v8230 = vpack.c.b16 %v6246, %v6230
    %v8231 = vpack.c.b16 %v6247, %v6231
    %v8232 = vpack.c.b16 %v6248, %v6232
    %v8233 = vpack.c.b16 %v6249, %v6233
    %v8234 = vpack.c.b16 %v6250, %v6234
    %v8235 = vpack.c.b16 %v6251, %v6235
    %v8236 = vpack.c.b16 %v6252, %v6236
    %v8237 = vpack.c.b16 %v6253, %v6237
    %v8238 = vpack.c.b16 %v6254, %v6238
    %v8239 = vpack.c.b16 %v6255, %v6239
    %v8240 = vpack.c.b16 %v6272, %v6256
    %v8241 = vpack.c.b16 %v6273, %v6257
    %v8242 = vpack.c.b16 %v6274, %v6258
    %v8243 = vpack.c.b16 %v6275, %v6259
    %v8244 = vpack.c.b16 %v6276, %v6260
    %v8245 = vpack.c.b16 %v6277, %v6261
    %v8246 = vpack.c.b16 %v6278, %v6262
    %v8247 = vpack.c.b16 %v6279, %v6263
    %v8248 = vpack.c.b16 %v6280, %v6264
    %v8249 = vpack.c.b16 %v6281, %v6265
    %v8250 = vpack.c.b16 %v6282, %v6266
    %v8251 = vpack.c.b16 %v6283, %v6267
    %v8252 = vpack.c.b16 %v6284, %v6268
    %v8253 = vpack.c.b16 %v6285, %v6269
    %v8254 = vpack.c.b16 %v6286, %v6270
    %v8255 = vpack.c.b16 %v6287, %v6271
    %v8256 = vpack.c.b16 %v6304, %v6288
    %v8257 = vpack.c.b16 %v6305, %v6289
    %v8258 = vpack.c.b16 %v6306, %v6290
    %v8259 = vpack.c.b16 %v6307, %v6291
    %v8260 = vpack.c.b16 %v6308, %v6292
    %v8261 = vpack.c.b16 %v6309, %v6293
    %v8262 = vpack.c.b16 %v6310, %v6294
    %v8263 = vpack.c.b16 %v6311, %v6295
    %v8264 = vpack.c.b16 %v6312, %v6296
    %v8265 = vpack.c.b16 %v6313, %v6297
    %v8266 = vpack.c.b16 %v6314, %v6298
    %v8267 = vpack.c.b16 %v6315, %v6299
    %v8268 = vpack.c.b16 %v6316, %v6300
    %v8269 = vpack.c.b16 %v6317, %v6301
    %v8270 = vpack.c.b16 %v6318, %v6302
    %v8271 = vpack.c.b16 %v6319, %v6303
    %v8272 = vpack.c.b16 %v6336, %v6320
    %v8273 = vpack.c.b16 %v6337, %v6321
    %v8274 = vpack.c.b16 %v6338, %v6322
    %v8275 = vpack.c.b16 %v6339, %v6323
    %v8276 = vpack.c.b16 %v6340, %v6324
    %v8277 = vpack.c.b16 %v6341, %v6325
    %v8278 = vpack.c.b16 %v6342, %v6326
    %v8279 = vpack.c.b16 %v6343, %v6327
    %v8280 = vpack.c.b16 %v6344, %v6328
    %v8281 = vpack.c.b16 %v6345, %v6329
    %v8282 = vpack.c.b16 %v6346, %v6330
    %v8283 = vpack.c.b16 %v6347, %v6331
    %v8284 = vpack.c.b16 %v6348, %v6332
    %v8285 = vpack.c.b16 %v6349, %v6333
    %v8286 = vpack.c.b16 %v6350, %v6334
    %v8287 = vpack.c.b16 %v6351, %v6335
    %v8288 = vpack.c.b16 %v6368, %v6352
    %v8289 = vpack.c.b16 %v6369, %v6353
    %v8290 = vpack.c.b16 %v6370, %v6354
    %v8291 = vpack.c.b16 %v6371, %v6355
    %v8292 = vpack.c.b16 %v6372, %v6356
    %v8293 = vpack.c.b16 %v6373, %v6357
    %v8294 = vpack.c.b16 %v6374, %v6358
    %v8295 = vpack.c.b16 %v6375, %v6359
    %v8296 = vpack.c.b16 %v6376, %v6360
    %v8297 = vpack.c.b16 %v6377, %v6361
    %v8298 = vpack.c.b16 %v6378, %v6362
    %v8299 = vpack.c.b16 %v6379, %v6363
    %v8300 = vpack.c.b16 %v6380, %v6364
    %v8301 = vpack.c.b16 %v6381, %v6365
    %v8302 = vpack.c.b16 %v6382, %v6366
    %v8303 = vpack.c.b16 %v6383, %v6367
    %v8304 = vpack.c.b16 %v6400, %v6384
    %v8305 = vpack.c.b16 %v6401, %v6385
    %v8306 = vpack.c.b16 %v6402, %v6386
    %v8307 = vpack.c.b16 %v6403, %v6387
    %v8308 = vpack.c.b16 %v6404, %v6388
    %v8309 = vpack.c.b16 %v6405, %v6389
    %v8310 = vpack.c.b16 %v6406, %v6390
    %v8311 = vpack.c.b16 %v6407, %v6391
    %v8312 = vpack.c.b16 %v6408, %v6392
    %v8313 = vpack.c.b16 %v6409, %v6393
    %v8314 = vpack.c.b16 %v6410, %v6394
    %v8315 = vpack.c.b16 %v6411, %v6395
    %v8316 = vpack.c.b16 %v6412, %v6396
    %v8317 = vpack.c.b16 %v6413, %v6397
    %v8318 = vpack.c.b16 %v6414, %v6398
    %v8319 = vpack.c.b16 %v6415, %v6399
    %v8320 = vpack.c.b16 %v6432, %v6416
    %v8321 = vpack.c.b16 %v6433, %v6417
    %v8322 = vpack.c.b16 %v6434, %v6418
    %v8323 = vpack.c.b16 %v6435, %v6419
    %v8324 = vpack.c.b16 %v6436, %v6420
    %v8325 = vpack.c.b16 %v6437, %v6421
    %v8326 = vpack.c.b16 %v6438, %v6422
    %v8327 = vpack.c.b16 %v6439, %v6423
    %v8328 = vpack.c.b16 %v6440, %v6424
    %v8329 = vpack.c.b16 %v6441, %v6425
    %v8330 = vpack.c.b16 %v6442, %v6426
    %v8331 = vpack.c.b16 %v6443, %v6427
    %v8332 = vpack.c.b16 %v6444, %v6428
    %v8333 = vpack.c.b16 %v6445, %v6429
    %v8334 = vpack.c.b16 %v6446, %v6430
    %v8335 = vpack.c.b16 %v6447, %v6431
    %v8336 = vpack.c.b16 %v6464, %v6448
    %v8337 = vpack.c.b16 %v6465, %v6449
    %v8338 = vpack.c.b16 %v6466, %v6450
    %v8339 = vpack.c.b16 %v6467, %v6451
    %v8340 = vpack.c.b16 %v6468, %v6452
    %v8341 = vpack.c.b16 %v6469, %v6453
    %v8342 = vpack.c.b16 %v6470, %v6454
    %v8343 = vpack.c.b16 %v6471, %v6455
    %v8344 = vpack.c.b16 %v6472, %v6456
    %v8345 = vpack.c.b16 %v6473, %v6457
    %v8346 = vpack.c.b16 %v6474, %v6458
    %v8347 = vpack.c.b16 %v6475, %v6459
    %v8348 = vpack.c.b16 %v6476, %v6460
    %v8349 = vpack.c.b16 %v6477, %v6461
    %v8350 = vpack.c.b16 %v6478, %v6462
    %v8351 = vpack.c.b16 %v6479, %v6463
    %v8352 = vpack.c.b16 %v6496, %v6480
    %v8353 = vpack.c.b16 %v6497, %v6481
    %v8354 = vpack.c.b16 %v6498, %v6482
    %v8355 = vpack.c.b16 %v6499, %v6483
    %v8356 = vpack.c.b16 %v6500, %v6484
    %v8357 = vpack.c.b16 %v6501, %v6485
    %v8358 = vpack.c.b16 %v6502, %v6486
    %v8359 = vpack.c.b16 %v6503, %v6487
    %v8360 = vpack.c.b16 %v6504, %v6488
    %v8361 = vpack.c.b16 %v6505, %v6489
    %v8362 = vpack.c.b16 %v6506, %v6490
    %v8363 = vpack.c.b16 %v6507, %v6491
    %v8364 = vpack.c.b16 %v6508, %v6492
    %v8365 = vpack.c.b16 %v6509, %v6493
    %v8366 = vpack.c.b16 %v6510, %v6494
    %v8367 = vpack.c.b16 %v6511, %v6495
    %v8368 = vpack.c.b16 %v6528, %v6512
    %v8369 = vpack.c.b16 %v6529, %v6513
    %v8370 = vpack.c.b16 %v6530, %v6514
    %v8371 = vpack.c.b16 %v6531, %v6515
    %v8372 = vpack.c.b16 %v6532, %v6516
    %v8373 = vpack.c.b16 %v6533, %v6517
    %v8374 = vpack.c.b16 %v6534, %v6518
    %v8375 = vpack.c.b16 %v6535, %v6519
    %v8376 = vpack.c.b16 %v6536, %v6520
    %v8377 = vpack.c.b16 %v6537, %v6521
    %v8378 = vpack.c.b16 %v6538, %v6522
    %v8379 = vpack.c.b16 %v6539, %v6523
    %v8380 = vpack.c.b16 %v6540, %v6524
    %v8381 = vpack.c.b16 %v6541, %v6525
    %v8382 = vpack.c.b16 %v6542, %v6526
    %v8383 = vpack.c.b16 %v6543, %v6527
    %v8384 = vpack.c.b16 %v6560, %v6544
    %v8385 = vpack.c.b16 %v6561, %v6545
    %v8386 = vpack.c.b16 %v6562, %v6546
    %v8387 = vpack.c.b16 %v6563, %v6547
    %v8388 = vpack.c.b16 %v6564, %v6548
    %v8389 = vpack.c.b16 %v6565, %v6549
    %v8390 = vpack.c.b16 %v6566, %v6550
    %v8391 = vpack.c.b16 %v6567, %v6551
    %v8392 = vpack.c.b16 %v6568, %v6552
    %v8393 = vpack.c.b16 %v6569, %v6553
    %v8394 = vpack.c.b16 %v6570, %v6554
    %v8395 = vpack.c.b16 %v6571, %v6555
    %v8396 = vpack.c.b16 %v6572, %v6556
    %v8397 = vpack.c.b16 %v6573, %v6557
    %v8398 = vpack.c.b16 %v6574, %v6558
    %v8399 = vpack.c.b16 %v6575, %v6559
    %v8400 = vpack.c.b16 %v6592, %v6576
    %v8401 = vpack.c.b16 %v6593, %v6577
    %v8402 = vpack.c.b16 %v6594, %v6578
    %v8403 = vpack.c.b16 %v6595, %v6579
    %v8404 = vpack.c.b16 %v6596, %v6580
    %v8405 = vpack.c.b16 %v6597, %v6581
    %v8406 = vpack.c.b16 %v6598, %v6582
    %v8407 = vpack.c.b16 %v6599, %v6583
    %v8408 = vpack.c.b16 %v6600, %v6584
    %v8409 = vpack.c.b16 %v6601, %v6585
    %v8410 = vpack.c.b16 %v6602, %v6586
    %v8411 = vpack.c.b16 %v6603, %v6587
    %v8412 = vpack.c.b16 %v6604, %v6588
    %v8413 = vpack.c.b16 %v6605, %v6589
    %v8414 = vpack.c.b16 %v6606, %v6590
    %v8415 = vpack.c.b16 %v6607, %v6591
    %v8416 = vpack.c.b16 %v6624, %v6608
    %v8417 = vpack.c.b16 %v6625, %v6609
    %v8418 = vpack.c.b16 %v6626, %v6610
    %v8419 = vpack.c.b16 %v6627, %v6611
    %v8420 = vpack.c.b16 %v6628, %v6612
    %v8421 = vpack.c.b16 %v6629, %v6613
    %v8422 = vpack.c.b16 %v6630, %v6614
    %v8423 = vpack.c.b16 %v6631, %v6615
    %v8424 = vpack.c.b16 %v6632, %v6616
    %v8425 = vpack.c.b16 %v6633, %v6617
    %v8426 = vpack.c.b16 %v6634, %v6618
    %v8427 = vpack.c.b16 %v6635, %v6619
    %v8428 = vpack.c.b16 %v6636, %v6620
    %v8429 = vpack.c.b16 %v6637, %v6621
    %v8430 = vpack.c.b16 %v6638, %v6622
    %v8431 = vpack.c.b16 %v6639, %v6623
    %v8432 = vpack.c.b16 %v6656, %v6640
    %v8433 = vpack.c.b16 %v6657, %v6641
    %v8434 = vpack.c.b16 %v6658, %v6642
    %v8435 = vpack.c.b16 %v6659, %v6643
    %v8436 = vpack.c.b16 %v6660, %v6644
    %v8437 = vpack.c.b16 %v6661, %v6645
    %v8438 = vpack.c.b16 %v6662, %v6646
    %v8439 = vpack.c.b16 %v6663, %v6647
    %v8440 = vpack.c.b16 %v6664, %v6648
    %v8441 = vpack.c.b16 %v6665, %v6649
    %v8442 = vpack.c.b16 %v6666, %v6650
    %v8443 = vpack.c.b16 %v6667, %v6651
    %v8444 = vpack.c.b16 %v6668, %v6652
    %v8445 = vpack.c.b16 %v6669, %v6653
    %v8446 = vpack.c.b16 %v6670, %v6654
    %v8447 = vpack.c.b16 %v6671, %v6655
    %v8448 = vpack.c.b16 %v6688, %v6672
    %v8449 = vpack.c.b16 %v6689, %v6673
    %v8450 = vpack.c.b16 %v6690, %v6674
    %v8451 = vpack.c.b16 %v6691, %v6675
    %v8452 = vpack.c.b16 %v6692, %v6676
    %v8453 = vpack.c.b16 %v6693, %v6677
    %v8454 = vpack.c.b16 %v6694, %v6678
    %v8455 = vpack.c.b16 %v6695, %v6679
    %v8456 = vpack.c.b16 %v6696, %v6680
    %v8457 = vpack.c.b16 %v6697, %v6681
    %v8458 = vpack.c.b16 %v6698, %v6682
    %v8459 = vpack.c.b16 %v6699, %v6683
    %v8460 = vpack.c.b16 %v6700, %v6684
    %v8461 = vpack.c.b16 %v6701, %v6685
    %v8462 = vpack.c.b16 %v6702, %v6686
    %v8463 = vpack.c.b16 %v6703, %v6687
    %v8464 = vpack.c.b16 %v6720, %v6704
    %v8465 = vpack.c.b16 %v6721, %v6705
    %v8466 = vpack.c.b16 %v6722, %v6706
    %v8467 = vpack.c.b16 %v6723, %v6707
    %v8468 = vpack.c.b16 %v6724, %v6708
    %v8469 = vpack.c.b16 %v6725, %v6709
    %v8470 = vpack.c.b16 %v6726, %v6710
    %v8471 = vpack.c.b16 %v6727, %v6711
    %v8472 = vpack.c.b16 %v6728, %v6712
    %v8473 = vpack.c.b16 %v6729, %v6713
    %v8474 = vpack.c.b16 %v6730, %v6714
    %v8475 = vpack.c.b16 %v6731, %v6715
    %v8476 = vpack.c.b16 %v6732, %v6716
    %v8477 = vpack.c.b16 %v6733, %v6717
    %v8478 = vpack.c.b16 %v6734, %v6718
    %v8479 = vpack.c.b16 %v6735, %v6719
    %v8480 = vpack.c.b16 %v6752, %v6736
    %v8481 = vpack.c.b16 %v6753, %v6737
    %v8482 = vpack.c.b16 %v6754, %v6738
    %v8483 = vpack.c.b16 %v6755, %v6739
    %v8484 = vpack.c.b16 %v6756, %v6740
    %v8485 = vpack.c.b16 %v6757, %v6741
    %v8486 = vpack.c.b16 %v6758, %v6742
    %v8487 = vpack.c.b16 %v6759, %v6743
    %v8488 = vpack.c.b16 %v6760, %v6744
    %v8489 = vpack.c.b16 %v6761, %v6745
    %v8490 = vpack.c.b16 %v6762, %v6746
    %v8491 = vpack.c.b16 %v6763, %v6747
    %v8492 = vpack.c.b16 %v6764, %v6748
    %v8493 = vpack.c.b16 %v6765, %v6749
    %v8494 = vpack.c.b16 %v6766, %v6750
    %v8495 = vpack.c.b16 %v6767, %v6751
    %v8496 = vpack.c.b16 %v6784, %v6768
    %v8497 = vpack.c.b16 %v6785, %v6769
    %v8498 = vpack.c.b16 %v6786, %v6770
    %v8499 = vpack.c.b16 %v6787, %v6771
    %v8500 = vpack.c.b16 %v6788, %v6772
    %v8501 = vpack.c.b16 %v6789, %v6773
    %v8502 = vpack.c.b16 %v6790, %v6774
    %v8503 = vpack.c.b16 %v6791, %v6775
    %v8504 = vpack.c.b16 %v6792, %v6776
    %v8505 = vpack.c.b16 %v6793, %v6777
    %v8506 = vpack.c.b16 %v6794, %v6778
    %v8507 = vpack.c.b16 %v6795, %v6779
    %v8508 = vpack.c.b16 %v6796, %v6780
    %v8509 = vpack.c.b16 %v6797, %v6781
    %v8510 = vpack.c.b16 %v6798, %v6782
    %v8511 = vpack.c.b16 %v6799, %v6783
    %v8512 = vpack.c.b16 %v6816, %v6800
    %v8513 = vpack.c.b16 %v6817, %v6801
    %v8514 = vpack.c.b16 %v6818, %v6802
    %v8515 = vpack.c.b16 %v6819, %v6803
    %v8516 = vpack.c.b16 %v6820, %v6804
    %v8517 = vpack.c.b16 %v6821, %v6805
    %v8518 = vpack.c.b16 %v6822, %v6806
    %v8519 = vpack.c.b16 %v6823, %v6807
    %v8520 = vpack.c.b16 %v6824, %v6808
    %v8521 = vpack.c.b16 %v6825, %v6809
    %v8522 = vpack.c.b16 %v6826, %v6810
    %v8523 = vpack.c.b16 %v6827, %v6811
    %v8524 = vpack.c.b16 %v6828, %v6812
    %v8525 = vpack.c.b16 %v6829, %v6813
    %v8526 = vpack.c.b16 %v6830, %v6814
    %v8527 = vpack.c.b16 %v6831, %v6815
    %v8528 = vpack.c.b16 %v6848, %v6832
    %v8529 = vpack.c.b16 %v6849, %v6833
    %v8530 = vpack.c.b16 %v6850, %v6834
    %v8531 = vpack.c.b16 %v6851, %v6835
    %v8532 = vpack.c.b16 %v6852, %v6836
    %v8533 = vpack.c.b16 %v6853, %v6837
    %v8534 = vpack.c.b16 %v6854, %v6838
    %v8535 = vpack.c.b16 %v6855, %v6839
    %v8536 = vpack.c.b16 %v6856, %v6840
    %v8537 = vpack.c.b16 %v6857, %v6841
    %v8538 = vpack.c.b16 %v6858, %v6842
    %v8539 = vpack.c.b16 %v6859, %v6843
    %v8540 = vpack.c.b16 %v6860, %v6844
    %v8541 = vpack.c.b16 %v6861, %v6845
    %v8542 = vpack.c.b16 %v6862, %v6846
    %v8543 = vpack.c.b16 %v6863, %v6847
    %v8544 = vpack.c.b16 %v6880, %v6864
    %v8545 = vpack.c.b16 %v6881, %v6865
    %v8546 = vpack.c.b16 %v6882, %v6866
    %v8547 = vpack.c.b16 %v6883, %v6867
    %v8548 = vpack.c.b16 %v6884, %v6868
    %v8549 = vpack.c.b16 %v6885, %v6869
    %v8550 = vpack.c.b16 %v6886, %v6870
    %v8551 = vpack.c.b16 %v6887, %v6871
    %v8552 = vpack.c.b16 %v6888, %v6872
    %v8553 = vpack.c.b16 %v6889, %v6873
    %v8554 = vpack.c.b16 %v6890, %v6874
    %v8555 = vpack.c.b16 %v6891, %v6875
    %v8556 = vpack.c.b16 %v6892, %v6876
    %v8557 = vpack.c.b16 %v6893, %v6877
    %v8558 = vpack.c.b16 %v6894, %v6878
    %v8559 = vpack.c.b16 %v6895, %v6879
    %v8560 = vpack.c.b16 %v6912, %v6896
    %v8561 = vpack.c.b16 %v6913, %v6897
    %v8562 = vpack.c.b16 %v6914, %v6898
    %v8563 = vpack.c.b16 %v6915, %v6899
    %v8564 = vpack.c.b16 %v6916, %v6900
    %v8565 = vpack.c.b16 %v6917, %v6901
    %v8566 = vpack.c.b16 %v6918, %v6902
    %v8567 = vpack.c.b16 %v6919, %v6903
    %v8568 = vpack.c.b16 %v6920, %v6904
    %v8569 = vpack.c.b16 %v6921, %v6905
    %v8570 = vpack.c.b16 %v6922, %v6906
    %v8571 = vpack.c.b16 %v6923, %v6907
    %v8572 = vpack.c.b16 %v6924, %v6908
    %v8573 = vpack.c.b16 %v6925, %v6909
    %v8574 = vpack.c.b16 %v6926, %v6910
    %v8575 = vpack.c.b16 %v6927, %v6911
    %v8576 = vpack.c.b16 %v6944, %v6928
    %v8577 = vpack.c.b16 %v6945, %v6929
    %v8578 = vpack.c.b16 %v6946, %v6930
    %v8579 = vpack.c.b16 %v6947, %v6931
    %v8580 = vpack.c.b16 %v6948, %v6932
    %v8581 = vpack.c.b16 %v6949, %v6933
    %v8582 = vpack.c.b16 %v6950, %v6934
    %v8583 = vpack.c.b16 %v6951, %v6935
    %v8584 = vpack.c.b16 %v6952, %v6936
    %v8585 = vpack.c.b16 %v6953, %v6937
    %v8586 = vpack.c.b16 %v6954, %v6938
    %v8587 = vpack.c.b16 %v6955, %v6939
    %v8588 = vpack.c.b16 %v6956, %v6940
    %v8589 = vpack.c.b16 %v6957, %v6941
    %v8590 = vpack.c.b16 %v6958, %v6942
    %v8591 = vpack.c.b16 %v6959, %v6943
    %v8592 = vpack.c.b16 %v6976, %v6960
    %v8593 = vpack.c.b16 %v6977, %v6961
    %v8594 = vpack.c.b16 %v6978, %v6962
    %v8595 = vpack.c.b16 %v6979, %v6963
    %v8596 = vpack.c.b16 %v6980, %v6964
    %v8597 = vpack.c.b16 %v6981, %v6965
    %v8598 = vpack.c.b16 %v6982, %v6966
    %v8599 = vpack.c.b16 %v6983, %v6967
    %v8600 = vpack.c.b16 %v6984, %v6968
    %v8601 = vpack.c.b16 %v6985, %v6969
    %v8602 = vpack.c.b16 %v6986, %v6970
    %v8603 = vpack.c.b16 %v6987, %v6971
    %v8604 = vpack.c.b16 %v6988, %v6972
    %v8605 = vpack.c.b16 %v6989, %v6973
    %v8606 = vpack.c.b16 %v6990, %v6974
    %v8607 = vpack.c.b16 %v6991, %v6975
    %v8608 = vpack.c.b16 %v7008, %v6992
    %v8609 = vpack.c.b16 %v7009, %v6993
    %v8610 = vpack.c.b16 %v7010, %v6994
    %v8611 = vpack.c.b16 %v7011, %v6995
    %v8612 = vpack.c.b16 %v7012, %v6996
    %v8613 = vpack.c.b16 %v7013, %v6997
    %v8614 = vpack.c.b16 %v7014, %v6998
    %v8615 = vpack.c.b16 %v7015, %v6999
    %v8616 = vpack.c.b16 %v7016, %v7000
    %v8617 = vpack.c.b16 %v7017, %v7001
    %v8618 = vpack.c.b16 %v7018, %v7002
    %v8619 = vpack.c.b16 %v7019, %v7003
    %v8620 = vpack.c.b16 %v7020, %v7004
    %v8621 = vpack.c.b16 %v7021, %v7005
    %v8622 = vpack.c.b16 %v7022, %v7006
    %v8623 = vpack.c.b16 %v7023, %v7007
    %v8624 = vpack.c.b16 %v7040, %v7024
    %v8625 = vpack.c.b16 %v7041, %v7025
    %v8626 = vpack.c.b16 %v7042, %v7026
    %v8627 = vpack.c.b16 %v7043, %v7027
    %v8628 = vpack.c.b16 %v7044, %v7028
    %v8629 = vpack.c.b16 %v7045, %v7029
    %v8630 = vpack.c.b16 %v7046, %v7030
    %v8631 = vpack.c.b16 %v7047, %v7031
    %v8632 = vpack.c.b16 %v7048, %v7032
    %v8633 = vpack.c.b16 %v7049, %v7033
    %v8634 = vpack.c.b16 %v7050, %v7034
    %v8635 = vpack.c.b16 %v7051, %v7035
    %v8636 = vpack.c.b16 %v7052, %v7036
    %v8637 = vpack.c.b16 %v7053, %v7037
    %v8638 = vpack.c.b16 %v7054, %v7038
    %v8639 = vpack.c.b16 %v7055, %v7039
    %v8640 = vpack.c.b16 %v7072, %v7056
    %v8641 = vpack.c.b16 %v7073, %v7057
    %v8642 = vpack.c.b16 %v7074, %v7058
    %v8643 = vpack.c.b16 %v7075, %v7059
    %v8644 = vpack.c.b16 %v7076, %v7060
    %v8645 = vpack.c.b16 %v7077, %v7061
    %v8646 = vpack.c.b16 %v7078, %v7062
    %v8647 = vpack.c.b16 %v7079, %v7063
    %v8648 = vpack.c.b16 %v7080, %v7064
    %v8649 = vpack.c.b16 %v7081, %v7065
    %v8650 = vpack.c.b16 %v7082, %v7066
    %v8651 = vpack.c.b16 %v7083, %v7067
    %v8652 = vpack.c.b16 %v7084, %v7068
    %v8653 = vpack.c.b16 %v7085, %v7069
    %v8654 = vpack.c.b16 %v7086, %v7070
    %v8655 = vpack.c.b16 %v7087, %v7071
    %v8656 = vpack.c.b16 %v7104, %v7088
    %v8657 = vpack.c.b16 %v7105, %v7089
    %v8658 = vpack.c.b16 %v7106, %v7090
    %v8659 = vpack.c.b16 %v7107, %v7091
    %v8660 = vpack.c.b16 %v7108, %v7092
    %v8661 = vpack.c.b16 %v7109, %v7093
    %v8662 = vpack.c.b16 %v7110, %v7094
    %v8663 = vpack.c.b16 %v7111, %v7095
    %v8664 = vpack.c.b16 %v7112, %v7096
    %v8665 = vpack.c.b16 %v7113, %v7097
    %v8666 = vpack.c.b16 %v7114, %v7098
    %v8667 = vpack.c.b16 %v7115, %v7099
    %v8668 = vpack.c.b16 %v7116, %v7100
    %v8669 = vpack.c.b16 %v7117, %v7101
    %v8670 = vpack.c.b16 %v7118, %v7102
    %v8671 = vpack.c.b16 %v7119, %v7103
    %v8672 = vpack.c.b16 %v7136, %v7120
    %v8673 = vpack.c.b16 %v7137, %v7121
    %v8674 = vpack.c.b16 %v7138, %v7122
    %v8675 = vpack.c.b16 %v7139, %v7123
    %v8676 = vpack.c.b16 %v7140, %v7124
    %v8677 = vpack.c.b16 %v7141, %v7125
    %v8678 = vpack.c.b16 %v7142, %v7126
    %v8679 = vpack.c.b16 %v7143, %v7127
    %v8680 = vpack.c.b16 %v7144, %v7128
    %v8681 = vpack.c.b16 %v7145, %v7129
    %v8682 = vpack.c.b16 %v7146, %v7130
    %v8683 = vpack.c.b16 %v7147, %v7131
    %v8684 = vpack.c.b16 %v7148, %v7132
    %v8685 = vpack.c.b16 %v7149, %v7133
    %v8686 = vpack.c.b16 %v7150, %v7134
    %v8687 = vpack.c.b16 %v7151, %v7135
    %10224 = vmatpush.bf16.msra.mxu0 %v7264
    %10225 = vmatpush.bf16.msra.mxu0 %v7248
    %10226 = vmatpush.bf16.msra.mxu0 %v7232
    %10227 = vmatpush.bf16.msra.mxu0 %v7216
    %10228 = vmatpush.bf16.msra.mxu0 %v7200
    %10229 = vmatpush.bf16.msra.mxu0 %v7184
    %10230 = vmatpush.bf16.msra.mxu0 %v7168
    %10231 = vmatpush.bf16.msra.mxu0 %v7152
    %10232 = vmatmul.bf16.gmra.mxu0 %v996
    %v10233 = vpop.f32.mrf.mxu0
    %v10234 = vadd.f32 0.0, %v10233
    %v10235 = vpop.f32.mrf.mxu0
    %10236 = vdwg.mxu0
    %10237 = vmatpush.bf16.msra.mxu0 %v7392
    %10238 = vmatpush.bf16.msra.mxu0 %v7376
    %10239 = vmatpush.bf16.msra.mxu0 %v7360
    %10240 = vmatpush.bf16.msra.mxu0 %v7344
    %10241 = vmatpush.bf16.msra.mxu0 %v7328
    %10242 = vmatpush.bf16.msra.mxu0 %v7312
    %10243 = vmatpush.bf16.msra.mxu0 %v7296
    %10244 = vmatpush.bf16.msra.mxu0 %v7280
    %10245 = vmatmul.bf16.gmra.mxu0 %v997
    %v10246 = vpop.f32.mrf.mxu0
    %v10247 = vadd.f32 %v10234, %v10246
    %v10248 = vpop.f32.mrf.mxu0
    %10249 = vdwg.mxu0
    %10250 = vmatpush.bf16.msra.mxu0 %v7520
    %10251 = vmatpush.bf16.msra.mxu0 %v7504
    %10252 = vmatpush.bf16.msra.mxu0 %v7488
    %10253 = vmatpush.bf16.msra.mxu0 %v7472
    %10254 = vmatpush.bf16.msra.mxu0 %v7456
    %10255 = vmatpush.bf16.msra.mxu0 %v7440
    %10256 = vmatpush.bf16.msra.mxu0 %v7424
    %10257 = vmatpush.bf16.msra.mxu0 %v7408
    %10258 = vmatmul.bf16.gmra.mxu0 %v998
    %v10259 = vpop.f32.mrf.mxu0
    %v10260 = vadd.f32 %v10247, %v10259
    %v10261 = vpop.f32.mrf.mxu0
    %10262 = vdwg.mxu0
    %10263 = vmatpush.bf16.msra.mxu0 %v7648
    %10264 = vmatpush.bf16.msra.mxu0 %v7632
    %10265 = vmatpush.bf16.msra.mxu0 %v7616
    %10266 = vmatpush.bf16.msra.mxu0 %v7600
    %10267 = vmatpush.bf16.msra.mxu0 %v7584
    %10268 = vmatpush.bf16.msra.mxu0 %v7568
    %10269 = vmatpush.bf16.msra.mxu0 %v7552
    %10270 = vmatpush.bf16.msra.mxu0 %v7536
    %10271 = vmatmul.bf16.gmra.mxu0 %v999
    %v10272 = vpop.f32.mrf.mxu0
    %v10273 = vadd.f32 %v10260, %v10272
    %v10274 = vpop.f32.mrf.mxu0
    %10275 = vdwg.mxu0
    %10276 = vmatpush.bf16.msra.mxu0 %v7776
    %10277 = vmatpush.bf16.msra.mxu0 %v7760
    %10278 = vmatpush.bf16.msra.mxu0 %v7744
    %10279 = vmatpush.bf16.msra.mxu0 %v7728
    %10280 = vmatpush.bf16.msra.mxu0 %v7712
    %10281 = vmatpush.bf16.msra.mxu0 %v7696
    %10282 = vmatpush.bf16.msra.mxu0 %v7680
    %10283 = vmatpush.bf16.msra.mxu0 %v7664
    %10284 = vmatmul.bf16.gmra.mxu0 %v1000
    %v10285 = vpop.f32.mrf.mxu0
    %v10286 = vadd.f32 %v10273, %v10285
    %v10287 = vpop.f32.mrf.mxu0
    %10288 = vdwg.mxu0
    %10289 = vmatpush.bf16.msra.mxu0 %v7904
    %10290 = vmatpush.bf16.msra.mxu0 %v7888
    %10291 = vmatpush.bf16.msra.mxu0 %v7872
    %10292 = vmatpush.bf16.msra.mxu0 %v7856
    %10293 = vmatpush.bf16.msra.mxu0 %v7840
    %10294 = vmatpush.bf16.msra.mxu0 %v7824
    %10295 = vmatpush.bf16.msra.mxu0 %v7808
    %10296 = vmatpush.bf16.msra.mxu0 %v7792
    %10297 = vmatmul.bf16.gmra.mxu0 %v1001
    %v10298 = vpop.f32.mrf.mxu0
    %v10299 = vadd.f32 %v10286, %v10298
    %v10300 = vpop.f32.mrf.mxu0
    %10301 = vdwg.mxu0
    %10302 = vmatpush.bf16.msra.mxu0 %v8032
    %10303 = vmatpush.bf16.msra.mxu0 %v8016
    %10304 = vmatpush.bf16.msra.mxu0 %v8000
    %10305 = vmatpush.bf16.msra.mxu0 %v7984
    %10306 = vmatpush.bf16.msra.mxu0 %v7968
    %10307 = vmatpush.bf16.msra.mxu0 %v7952
    %10308 = vmatpush.bf16.msra.mxu0 %v7936
    %10309 = vmatpush.bf16.msra.mxu0 %v7920
    %10310 = vmatmul.bf16.gmra.mxu0 %v1002
    %v10311 = vpop.f32.mrf.mxu0
    %v10312 = vadd.f32 %v10299, %v10311
    %v10313 = vpop.f32.mrf.mxu0
    %10314 = vdwg.mxu0
    %10315 = vmatpush.bf16.msra.mxu0 %v8160
    %10316 = vmatpush.bf16.msra.mxu0 %v8144
    %10317 = vmatpush.bf16.msra.mxu0 %v8128
    %10318 = vmatpush.bf16.msra.mxu0 %v8112
    %10319 = vmatpush.bf16.msra.mxu0 %v8096
    %10320 = vmatpush.bf16.msra.mxu0 %v8080
    %10321 = vmatpush.bf16.msra.mxu0 %v8064
    %10322 = vmatpush.bf16.msra.mxu0 %v8048
    %10323 = vmatmul.bf16.gmra.mxu0 %v1003
    %v10324 = vpop.f32.mrf.mxu0
    %v10325 = vadd.f32 %v10312, %v10324
    %v10326 = vpop.f32.mrf.mxu0
    %10327 = vdwg.mxu0
    %10328 = vmatpush.bf16.msra.mxu0 %v8288
    %10329 = vmatpush.bf16.msra.mxu0 %v8272
    %10330 = vmatpush.bf16.msra.mxu0 %v8256
    %10331 = vmatpush.bf16.msra.mxu0 %v8240
    %10332 = vmatpush.bf16.msra.mxu0 %v8224
    %10333 = vmatpush.bf16.msra.mxu0 %v8208
    %10334 = vmatpush.bf16.msra.mxu0 %v8192
    %10335 = vmatpush.bf16.msra.mxu0 %v8176
    %10336 = vmatmul.bf16.gmra.mxu0 %v1004
    %v10337 = vpop.f32.mrf.mxu0
    %v10338 = vadd.f32 %v10325, %v10337
    %v10339 = vpop.f32.mrf.mxu0
    %10340 = vdwg.mxu0
    %10341 = vmatpush.bf16.msra.mxu0 %v8416
    %10342 = vmatpush.bf16.msra.mxu0 %v8400
    %10343 = vmatpush.bf16.msra.mxu0 %v8384
    %10344 = vmatpush.bf16.msra.mxu0 %v8368
    %10345 = vmatpush.bf16.msra.mxu0 %v8352
    %10346 = vmatpush.bf16.msra.mxu0 %v8336
    %10347 = vmatpush.bf16.msra.mxu0 %v8320
    %10348 = vmatpush.bf16.msra.mxu0 %v8304
    %10349 = vmatmul.bf16.gmra.mxu0 %v1005
    %v10350 = vpop.f32.mrf.mxu0
    %v10351 = vadd.f32 %v10338, %v10350
    %v10352 = vpop.f32.mrf.mxu0
    %10353 = vdwg.mxu0
    %10354 = vmatpush.bf16.msra.mxu0 %v8544
    %10355 = vmatpush.bf16.msra.mxu0 %v8528
    %10356 = vmatpush.bf16.msra.mxu0 %v8512
    %10357 = vmatpush.bf16.msra.mxu0 %v8496
    %10358 = vmatpush.bf16.msra.mxu0 %v8480
    %10359 = vmatpush.bf16.msra.mxu0 %v8464
    %10360 = vmatpush.bf16.msra.mxu0 %v8448
    %10361 = vmatpush.bf16.msra.mxu0 %v8432
    %10362 = vmatmul.bf16.gmra.mxu0 %v1006
    %v10363 = vpop.f32.mrf.mxu0
    %v10364 = vadd.f32 %v10351, %v10363
    %v10365 = vpop.f32.mrf.mxu0
    %10366 = vdwg.mxu0
    %10367 = vmatpush.bf16.msra.mxu0 %v8672
    %10368 = vmatpush.bf16.msra.mxu0 %v8656
    %10369 = vmatpush.bf16.msra.mxu0 %v8640
    %10370 = vmatpush.bf16.msra.mxu0 %v8624
    %10371 = vmatpush.bf16.msra.mxu0 %v8608
    %10372 = vmatpush.bf16.msra.mxu0 %v8592
    %10373 = vmatpush.bf16.msra.mxu0 %v8576
    %10374 = vmatpush.bf16.msra.mxu0 %v8560
    %10375 = vmatmul.bf16.gmra.mxu0 %v1007
    %v10376 = vpop.f32.mrf.mxu0
    %v10377 = vadd.f32 %v10364, %v10376
    %v10378 = vpop.f32.mrf.mxu0
    %10379 = vdwg.mxu0
    %10380 = vmatpush.bf16.msra.mxu0 %v7265
    %10381 = vmatpush.bf16.msra.mxu0 %v7249
    %10382 = vmatpush.bf16.msra.mxu0 %v7233
    %10383 = vmatpush.bf16.msra.mxu0 %v7217
    %10384 = vmatpush.bf16.msra.mxu0 %v7201
    %10385 = vmatpush.bf16.msra.mxu0 %v7185
    %10386 = vmatpush.bf16.msra.mxu0 %v7169
    %10387 = vmatpush.bf16.msra.mxu0 %v7153
    %10388 = vmatmul.bf16.gmra.mxu0 %v996
    %v10389 = vpop.f32.mrf.mxu0
    %v10390 = vadd.f32 0.0, %v10389
    %v10391 = vpop.f32.mrf.mxu0
    %10392 = vdwg.mxu0
    %10393 = vmatpush.bf16.msra.mxu0 %v7393
    %10394 = vmatpush.bf16.msra.mxu0 %v7377
    %10395 = vmatpush.bf16.msra.mxu0 %v7361
    %10396 = vmatpush.bf16.msra.mxu0 %v7345
    %10397 = vmatpush.bf16.msra.mxu0 %v7329
    %10398 = vmatpush.bf16.msra.mxu0 %v7313
    %10399 = vmatpush.bf16.msra.mxu0 %v7297
    %10400 = vmatpush.bf16.msra.mxu0 %v7281
    %10401 = vmatmul.bf16.gmra.mxu0 %v997
    %v10402 = vpop.f32.mrf.mxu0
    %v10403 = vadd.f32 %v10390, %v10402
    %v10404 = vpop.f32.mrf.mxu0
    %10405 = vdwg.mxu0
    %10406 = vmatpush.bf16.msra.mxu0 %v7521
    %10407 = vmatpush.bf16.msra.mxu0 %v7505
    %10408 = vmatpush.bf16.msra.mxu0 %v7489
    %10409 = vmatpush.bf16.msra.mxu0 %v7473
    %10410 = vmatpush.bf16.msra.mxu0 %v7457
    %10411 = vmatpush.bf16.msra.mxu0 %v7441
    %10412 = vmatpush.bf16.msra.mxu0 %v7425
    %10413 = vmatpush.bf16.msra.mxu0 %v7409
    %10414 = vmatmul.bf16.gmra.mxu0 %v998
    %v10415 = vpop.f32.mrf.mxu0
    %v10416 = vadd.f32 %v10403, %v10415
    %v10417 = vpop.f32.mrf.mxu0
    %10418 = vdwg.mxu0
    %10419 = vmatpush.bf16.msra.mxu0 %v7649
    %10420 = vmatpush.bf16.msra.mxu0 %v7633
    %10421 = vmatpush.bf16.msra.mxu0 %v7617
    %10422 = vmatpush.bf16.msra.mxu0 %v7601
    %10423 = vmatpush.bf16.msra.mxu0 %v7585
    %10424 = vmatpush.bf16.msra.mxu0 %v7569
    %10425 = vmatpush.bf16.msra.mxu0 %v7553
    %10426 = vmatpush.bf16.msra.mxu0 %v7537
    %10427 = vmatmul.bf16.gmra.mxu0 %v999
    %v10428 = vpop.f32.mrf.mxu0
    %v10429 = vadd.f32 %v10416, %v10428
    %v10430 = vpop.f32.mrf.mxu0
    %10431 = vdwg.mxu0
    %10432 = vmatpush.bf16.msra.mxu0 %v7777
    %10433 = vmatpush.bf16.msra.mxu0 %v7761
    %10434 = vmatpush.bf16.msra.mxu0 %v7745
    %10435 = vmatpush.bf16.msra.mxu0 %v7729
    %10436 = vmatpush.bf16.msra.mxu0 %v7713
    %10437 = vmatpush.bf16.msra.mxu0 %v7697
    %10438 = vmatpush.bf16.msra.mxu0 %v7681
    %10439 = vmatpush.bf16.msra.mxu0 %v7665
    %10440 = vmatmul.bf16.gmra.mxu0 %v1000
    %v10441 = vpop.f32.mrf.mxu0
    %v10442 = vadd.f32 %v10429, %v10441
    %v10443 = vpop.f32.mrf.mxu0
    %10444 = vdwg.mxu0
    %10445 = vmatpush.bf16.msra.mxu0 %v7905
    %10446 = vmatpush.bf16.msra.mxu0 %v7889
    %10447 = vmatpush.bf16.msra.mxu0 %v7873
    %10448 = vmatpush.bf16.msra.mxu0 %v7857
    %10449 = vmatpush.bf16.msra.mxu0 %v7841
    %10450 = vmatpush.bf16.msra.mxu0 %v7825
    %10451 = vmatpush.bf16.msra.mxu0 %v7809
    %10452 = vmatpush.bf16.msra.mxu0 %v7793
    %10453 = vmatmul.bf16.gmra.mxu0 %v1001
    %v10454 = vpop.f32.mrf.mxu0
    %v10455 = vadd.f32 %v10442, %v10454
    %v10456 = vpop.f32.mrf.mxu0
    %10457 = vdwg.mxu0
    %10458 = vmatpush.bf16.msra.mxu0 %v8033
    %10459 = vmatpush.bf16.msra.mxu0 %v8017
    %10460 = vmatpush.bf16.msra.mxu0 %v8001
    %10461 = vmatpush.bf16.msra.mxu0 %v7985
    %10462 = vmatpush.bf16.msra.mxu0 %v7969
    %10463 = vmatpush.bf16.msra.mxu0 %v7953
    %10464 = vmatpush.bf16.msra.mxu0 %v7937
    %10465 = vmatpush.bf16.msra.mxu0 %v7921
    %10466 = vmatmul.bf16.gmra.mxu0 %v1002
    %v10467 = vpop.f32.mrf.mxu0
    %v10468 = vadd.f32 %v10455, %v10467
    %v10469 = vpop.f32.mrf.mxu0
    %10470 = vdwg.mxu0
    %10471 = vmatpush.bf16.msra.mxu0 %v8161
    %10472 = vmatpush.bf16.msra.mxu0 %v8145
    %10473 = vmatpush.bf16.msra.mxu0 %v8129
    %10474 = vmatpush.bf16.msra.mxu0 %v8113
    %10475 = vmatpush.bf16.msra.mxu0 %v8097
    %10476 = vmatpush.bf16.msra.mxu0 %v8081
    %10477 = vmatpush.bf16.msra.mxu0 %v8065
    %10478 = vmatpush.bf16.msra.mxu0 %v8049
    %10479 = vmatmul.bf16.gmra.mxu0 %v1003
    %v10480 = vpop.f32.mrf.mxu0
    %v10481 = vadd.f32 %v10468, %v10480
    %v10482 = vpop.f32.mrf.mxu0
    %10483 = vdwg.mxu0
    %10484 = vmatpush.bf16.msra.mxu0 %v8289
    %10485 = vmatpush.bf16.msra.mxu0 %v8273
    %10486 = vmatpush.bf16.msra.mxu0 %v8257
    %10487 = vmatpush.bf16.msra.mxu0 %v8241
    %10488 = vmatpush.bf16.msra.mxu0 %v8225
    %10489 = vmatpush.bf16.msra.mxu0 %v8209
    %10490 = vmatpush.bf16.msra.mxu0 %v8193
    %10491 = vmatpush.bf16.msra.mxu0 %v8177
    %10492 = vmatmul.bf16.gmra.mxu0 %v1004
    %v10493 = vpop.f32.mrf.mxu0
    %v10494 = vadd.f32 %v10481, %v10493
    %v10495 = vpop.f32.mrf.mxu0
    %10496 = vdwg.mxu0
    %10497 = vmatpush.bf16.msra.mxu0 %v8417
    %10498 = vmatpush.bf16.msra.mxu0 %v8401
    %10499 = vmatpush.bf16.msra.mxu0 %v8385
    %10500 = vmatpush.bf16.msra.mxu0 %v8369
    %10501 = vmatpush.bf16.msra.mxu0 %v8353
    %10502 = vmatpush.bf16.msra.mxu0 %v8337
    %10503 = vmatpush.bf16.msra.mxu0 %v8321
    %10504 = vmatpush.bf16.msra.mxu0 %v8305
    %10505 = vmatmul.bf16.gmra.mxu0 %v1005
    %v10506 = vpop.f32.mrf.mxu0
    %v10507 = vadd.f32 %v10494, %v10506
    %v10508 = vpop.f32.mrf.mxu0
    %10509 = vdwg.mxu0
    %10510 = vmatpush.bf16.msra.mxu0 %v8545
    %10511 = vmatpush.bf16.msra.mxu0 %v8529
    %10512 = vmatpush.bf16.msra.mxu0 %v8513
    %10513 = vmatpush.bf16.msra.mxu0 %v8497
    %10514 = vmatpush.bf16.msra.mxu0 %v8481
    %10515 = vmatpush.bf16.msra.mxu0 %v8465
    %10516 = vmatpush.bf16.msra.mxu0 %v8449
    %10517 = vmatpush.bf16.msra.mxu0 %v8433
    %10518 = vmatmul.bf16.gmra.mxu0 %v1006
    %v10519 = vpop.f32.mrf.mxu0
    %v10520 = vadd.f32 %v10507, %v10519
    %v10521 = vpop.f32.mrf.mxu0
    %10522 = vdwg.mxu0
    %10523 = vmatpush.bf16.msra.mxu0 %v8673
    %10524 = vmatpush.bf16.msra.mxu0 %v8657
    %10525 = vmatpush.bf16.msra.mxu0 %v8641
    %10526 = vmatpush.bf16.msra.mxu0 %v8625
    %10527 = vmatpush.bf16.msra.mxu0 %v8609
    %10528 = vmatpush.bf16.msra.mxu0 %v8593
    %10529 = vmatpush.bf16.msra.mxu0 %v8577
    %10530 = vmatpush.bf16.msra.mxu0 %v8561
    %10531 = vmatmul.bf16.gmra.mxu0 %v1007
    %v10532 = vpop.f32.mrf.mxu0
    %v10533 = vadd.f32 %v10520, %v10532
    %v10534 = vpop.f32.mrf.mxu0
    %10535 = vdwg.mxu0
    %10536 = vmatpush.bf16.msra.mxu0 %v7266
    %10537 = vmatpush.bf16.msra.mxu0 %v7250
    %10538 = vmatpush.bf16.msra.mxu0 %v7234
    %10539 = vmatpush.bf16.msra.mxu0 %v7218
    %10540 = vmatpush.bf16.msra.mxu0 %v7202
    %10541 = vmatpush.bf16.msra.mxu0 %v7186
    %10542 = vmatpush.bf16.msra.mxu0 %v7170
    %10543 = vmatpush.bf16.msra.mxu0 %v7154
    %10544 = vmatmul.bf16.gmra.mxu0 %v996
    %v10545 = vpop.f32.mrf.mxu0
    %v10546 = vadd.f32 0.0, %v10545
    %v10547 = vpop.f32.mrf.mxu0
    %10548 = vdwg.mxu0
    %10549 = vmatpush.bf16.msra.mxu0 %v7394
    %10550 = vmatpush.bf16.msra.mxu0 %v7378
    %10551 = vmatpush.bf16.msra.mxu0 %v7362
    %10552 = vmatpush.bf16.msra.mxu0 %v7346
    %10553 = vmatpush.bf16.msra.mxu0 %v7330
    %10554 = vmatpush.bf16.msra.mxu0 %v7314
    %10555 = vmatpush.bf16.msra.mxu0 %v7298
    %10556 = vmatpush.bf16.msra.mxu0 %v7282
    %10557 = vmatmul.bf16.gmra.mxu0 %v997
    %v10558 = vpop.f32.mrf.mxu0
    %v10559 = vadd.f32 %v10546, %v10558
    %v10560 = vpop.f32.mrf.mxu0
    %10561 = vdwg.mxu0
    %10562 = vmatpush.bf16.msra.mxu0 %v7522
    %10563 = vmatpush.bf16.msra.mxu0 %v7506
    %10564 = vmatpush.bf16.msra.mxu0 %v7490
    %10565 = vmatpush.bf16.msra.mxu0 %v7474
    %10566 = vmatpush.bf16.msra.mxu0 %v7458
    %10567 = vmatpush.bf16.msra.mxu0 %v7442
    %10568 = vmatpush.bf16.msra.mxu0 %v7426
    %10569 = vmatpush.bf16.msra.mxu0 %v7410
    %10570 = vmatmul.bf16.gmra.mxu0 %v998
    %v10571 = vpop.f32.mrf.mxu0
    %v10572 = vadd.f32 %v10559, %v10571
    %v10573 = vpop.f32.mrf.mxu0
    %10574 = vdwg.mxu0
    %10575 = vmatpush.bf16.msra.mxu0 %v7650
    %10576 = vmatpush.bf16.msra.mxu0 %v7634
    %10577 = vmatpush.bf16.msra.mxu0 %v7618
    %10578 = vmatpush.bf16.msra.mxu0 %v7602
    %10579 = vmatpush.bf16.msra.mxu0 %v7586
    %10580 = vmatpush.bf16.msra.mxu0 %v7570
    %10581 = vmatpush.bf16.msra.mxu0 %v7554
    %10582 = vmatpush.bf16.msra.mxu0 %v7538
    %10583 = vmatmul.bf16.gmra.mxu0 %v999
    %v10584 = vpop.f32.mrf.mxu0
    %v10585 = vadd.f32 %v10572, %v10584
    %v10586 = vpop.f32.mrf.mxu0
    %10587 = vdwg.mxu0
    %10588 = vmatpush.bf16.msra.mxu0 %v7778
    %10589 = vmatpush.bf16.msra.mxu0 %v7762
    %10590 = vmatpush.bf16.msra.mxu0 %v7746
    %10591 = vmatpush.bf16.msra.mxu0 %v7730
    %10592 = vmatpush.bf16.msra.mxu0 %v7714
    %10593 = vmatpush.bf16.msra.mxu0 %v7698
    %10594 = vmatpush.bf16.msra.mxu0 %v7682
    %10595 = vmatpush.bf16.msra.mxu0 %v7666
    %10596 = vmatmul.bf16.gmra.mxu0 %v1000
    %v10597 = vpop.f32.mrf.mxu0
    %v10598 = vadd.f32 %v10585, %v10597
    %v10599 = vpop.f32.mrf.mxu0
    %10600 = vdwg.mxu0
    %10601 = vmatpush.bf16.msra.mxu0 %v7906
    %10602 = vmatpush.bf16.msra.mxu0 %v7890
    %10603 = vmatpush.bf16.msra.mxu0 %v7874
    %10604 = vmatpush.bf16.msra.mxu0 %v7858
    %10605 = vmatpush.bf16.msra.mxu0 %v7842
    %10606 = vmatpush.bf16.msra.mxu0 %v7826
    %10607 = vmatpush.bf16.msra.mxu0 %v7810
    %10608 = vmatpush.bf16.msra.mxu0 %v7794
    %10609 = vmatmul.bf16.gmra.mxu0 %v1001
    %v10610 = vpop.f32.mrf.mxu0
    %v10611 = vadd.f32 %v10598, %v10610
    %v10612 = vpop.f32.mrf.mxu0
    %10613 = vdwg.mxu0
    %10614 = vmatpush.bf16.msra.mxu0 %v8034
    %10615 = vmatpush.bf16.msra.mxu0 %v8018
    %10616 = vmatpush.bf16.msra.mxu0 %v8002
    %10617 = vmatpush.bf16.msra.mxu0 %v7986
    %10618 = vmatpush.bf16.msra.mxu0 %v7970
    %10619 = vmatpush.bf16.msra.mxu0 %v7954
    %10620 = vmatpush.bf16.msra.mxu0 %v7938
    %10621 = vmatpush.bf16.msra.mxu0 %v7922
    %10622 = vmatmul.bf16.gmra.mxu0 %v1002
    %v10623 = vpop.f32.mrf.mxu0
    %v10624 = vadd.f32 %v10611, %v10623
    %v10625 = vpop.f32.mrf.mxu0
    %10626 = vdwg.mxu0
    %10627 = vmatpush.bf16.msra.mxu0 %v8162
    %10628 = vmatpush.bf16.msra.mxu0 %v8146
    %10629 = vmatpush.bf16.msra.mxu0 %v8130
    %10630 = vmatpush.bf16.msra.mxu0 %v8114
    %10631 = vmatpush.bf16.msra.mxu0 %v8098
    %10632 = vmatpush.bf16.msra.mxu0 %v8082
    %10633 = vmatpush.bf16.msra.mxu0 %v8066
    %10634 = vmatpush.bf16.msra.mxu0 %v8050
    %10635 = vmatmul.bf16.gmra.mxu0 %v1003
    %v10636 = vpop.f32.mrf.mxu0
    %v10637 = vadd.f32 %v10624, %v10636
    %v10638 = vpop.f32.mrf.mxu0
    %10639 = vdwg.mxu0
    %10640 = vmatpush.bf16.msra.mxu0 %v8290
    %10641 = vmatpush.bf16.msra.mxu0 %v8274
    %10642 = vmatpush.bf16.msra.mxu0 %v8258
    %10643 = vmatpush.bf16.msra.mxu0 %v8242
    %10644 = vmatpush.bf16.msra.mxu0 %v8226
    %10645 = vmatpush.bf16.msra.mxu0 %v8210
    %10646 = vmatpush.bf16.msra.mxu0 %v8194
    %10647 = vmatpush.bf16.msra.mxu0 %v8178
    %10648 = vmatmul.bf16.gmra.mxu0 %v1004
    %v10649 = vpop.f32.mrf.mxu0
    %v10650 = vadd.f32 %v10637, %v10649
    %v10651 = vpop.f32.mrf.mxu0
    %10652 = vdwg.mxu0
    %10653 = vmatpush.bf16.msra.mxu0 %v8418
    %10654 = vmatpush.bf16.msra.mxu0 %v8402
    %10655 = vmatpush.bf16.msra.mxu0 %v8386
    %10656 = vmatpush.bf16.msra.mxu0 %v8370
    %10657 = vmatpush.bf16.msra.mxu0 %v8354
    %10658 = vmatpush.bf16.msra.mxu0 %v8338
    %10659 = vmatpush.bf16.msra.mxu0 %v8322
    %10660 = vmatpush.bf16.msra.mxu0 %v8306
    %10661 = vmatmul.bf16.gmra.mxu0 %v1005
    %v10662 = vpop.f32.mrf.mxu0
    %v10663 = vadd.f32 %v10650, %v10662
    %v10664 = vpop.f32.mrf.mxu0
    %10665 = vdwg.mxu0
    %10666 = vmatpush.bf16.msra.mxu0 %v8546
    %10667 = vmatpush.bf16.msra.mxu0 %v8530
    %10668 = vmatpush.bf16.msra.mxu0 %v8514
    %10669 = vmatpush.bf16.msra.mxu0 %v8498
    %10670 = vmatpush.bf16.msra.mxu0 %v8482
    %10671 = vmatpush.bf16.msra.mxu0 %v8466
    %10672 = vmatpush.bf16.msra.mxu0 %v8450
    %10673 = vmatpush.bf16.msra.mxu0 %v8434
    %10674 = vmatmul.bf16.gmra.mxu0 %v1006
    %v10675 = vpop.f32.mrf.mxu0
    %v10676 = vadd.f32 %v10663, %v10675
    %v10677 = vpop.f32.mrf.mxu0
    %10678 = vdwg.mxu0
    %10679 = vmatpush.bf16.msra.mxu0 %v8674
    %10680 = vmatpush.bf16.msra.mxu0 %v8658
    %10681 = vmatpush.bf16.msra.mxu0 %v8642
    %10682 = vmatpush.bf16.msra.mxu0 %v8626
    %10683 = vmatpush.bf16.msra.mxu0 %v8610
    %10684 = vmatpush.bf16.msra.mxu0 %v8594
    %10685 = vmatpush.bf16.msra.mxu0 %v8578
    %10686 = vmatpush.bf16.msra.mxu0 %v8562
    %10687 = vmatmul.bf16.gmra.mxu0 %v1007
    %v10688 = vpop.f32.mrf.mxu0
    %v10689 = vadd.f32 %v10676, %v10688
    %v10690 = vpop.f32.mrf.mxu0
    %10691 = vdwg.mxu0
    %10692 = vmatpush.bf16.msra.mxu0 %v7267
    %10693 = vmatpush.bf16.msra.mxu0 %v7251
    %10694 = vmatpush.bf16.msra.mxu0 %v7235
    %10695 = vmatpush.bf16.msra.mxu0 %v7219
    %10696 = vmatpush.bf16.msra.mxu0 %v7203
    %10697 = vmatpush.bf16.msra.mxu0 %v7187
    %10698 = vmatpush.bf16.msra.mxu0 %v7171
    %10699 = vmatpush.bf16.msra.mxu0 %v7155
    %10700 = vmatmul.bf16.gmra.mxu0 %v996
    %v10701 = vpop.f32.mrf.mxu0
    %v10702 = vadd.f32 0.0, %v10701
    %v10703 = vpop.f32.mrf.mxu0
    %10704 = vdwg.mxu0
    %10705 = vmatpush.bf16.msra.mxu0 %v7395
    %10706 = vmatpush.bf16.msra.mxu0 %v7379
    %10707 = vmatpush.bf16.msra.mxu0 %v7363
    %10708 = vmatpush.bf16.msra.mxu0 %v7347
    %10709 = vmatpush.bf16.msra.mxu0 %v7331
    %10710 = vmatpush.bf16.msra.mxu0 %v7315
    %10711 = vmatpush.bf16.msra.mxu0 %v7299
    %10712 = vmatpush.bf16.msra.mxu0 %v7283
    %10713 = vmatmul.bf16.gmra.mxu0 %v997
    %v10714 = vpop.f32.mrf.mxu0
    %v10715 = vadd.f32 %v10702, %v10714
    %v10716 = vpop.f32.mrf.mxu0
    %10717 = vdwg.mxu0
    %10718 = vmatpush.bf16.msra.mxu0 %v7523
    %10719 = vmatpush.bf16.msra.mxu0 %v7507
    %10720 = vmatpush.bf16.msra.mxu0 %v7491
    %10721 = vmatpush.bf16.msra.mxu0 %v7475
    %10722 = vmatpush.bf16.msra.mxu0 %v7459
    %10723 = vmatpush.bf16.msra.mxu0 %v7443
    %10724 = vmatpush.bf16.msra.mxu0 %v7427
    %10725 = vmatpush.bf16.msra.mxu0 %v7411
    %10726 = vmatmul.bf16.gmra.mxu0 %v998
    %v10727 = vpop.f32.mrf.mxu0
    %v10728 = vadd.f32 %v10715, %v10727
    %v10729 = vpop.f32.mrf.mxu0
    %10730 = vdwg.mxu0
    %10731 = vmatpush.bf16.msra.mxu0 %v7651
    %10732 = vmatpush.bf16.msra.mxu0 %v7635
    %10733 = vmatpush.bf16.msra.mxu0 %v7619
    %10734 = vmatpush.bf16.msra.mxu0 %v7603
    %10735 = vmatpush.bf16.msra.mxu0 %v7587
    %10736 = vmatpush.bf16.msra.mxu0 %v7571
    %10737 = vmatpush.bf16.msra.mxu0 %v7555
    %10738 = vmatpush.bf16.msra.mxu0 %v7539
    %10739 = vmatmul.bf16.gmra.mxu0 %v999
    %v10740 = vpop.f32.mrf.mxu0
    %v10741 = vadd.f32 %v10728, %v10740
    %v10742 = vpop.f32.mrf.mxu0
    %10743 = vdwg.mxu0
    %10744 = vmatpush.bf16.msra.mxu0 %v7779
    %10745 = vmatpush.bf16.msra.mxu0 %v7763
    %10746 = vmatpush.bf16.msra.mxu0 %v7747
    %10747 = vmatpush.bf16.msra.mxu0 %v7731
    %10748 = vmatpush.bf16.msra.mxu0 %v7715
    %10749 = vmatpush.bf16.msra.mxu0 %v7699
    %10750 = vmatpush.bf16.msra.mxu0 %v7683
    %10751 = vmatpush.bf16.msra.mxu0 %v7667
    %10752 = vmatmul.bf16.gmra.mxu0 %v1000
    %v10753 = vpop.f32.mrf.mxu0
    %v10754 = vadd.f32 %v10741, %v10753
    %v10755 = vpop.f32.mrf.mxu0
    %10756 = vdwg.mxu0
    %10757 = vmatpush.bf16.msra.mxu0 %v7907
    %10758 = vmatpush.bf16.msra.mxu0 %v7891
    %10759 = vmatpush.bf16.msra.mxu0 %v7875
    %10760 = vmatpush.bf16.msra.mxu0 %v7859
    %10761 = vmatpush.bf16.msra.mxu0 %v7843
    %10762 = vmatpush.bf16.msra.mxu0 %v7827
    %10763 = vmatpush.bf16.msra.mxu0 %v7811
    %10764 = vmatpush.bf16.msra.mxu0 %v7795
    %10765 = vmatmul.bf16.gmra.mxu0 %v1001
    %v10766 = vpop.f32.mrf.mxu0
    %v10767 = vadd.f32 %v10754, %v10766
    %v10768 = vpop.f32.mrf.mxu0
    %10769 = vdwg.mxu0
    %10770 = vmatpush.bf16.msra.mxu0 %v8035
    %10771 = vmatpush.bf16.msra.mxu0 %v8019
    %10772 = vmatpush.bf16.msra.mxu0 %v8003
    %10773 = vmatpush.bf16.msra.mxu0 %v7987
    %10774 = vmatpush.bf16.msra.mxu0 %v7971
    %10775 = vmatpush.bf16.msra.mxu0 %v7955
    %10776 = vmatpush.bf16.msra.mxu0 %v7939
    %10777 = vmatpush.bf16.msra.mxu0 %v7923
    %10778 = vmatmul.bf16.gmra.mxu0 %v1002
    %v10779 = vpop.f32.mrf.mxu0
    %v10780 = vadd.f32 %v10767, %v10779
    %v10781 = vpop.f32.mrf.mxu0
    %10782 = vdwg.mxu0
    %10783 = vmatpush.bf16.msra.mxu0 %v8163
    %10784 = vmatpush.bf16.msra.mxu0 %v8147
    %10785 = vmatpush.bf16.msra.mxu0 %v8131
    %10786 = vmatpush.bf16.msra.mxu0 %v8115
    %10787 = vmatpush.bf16.msra.mxu0 %v8099
    %10788 = vmatpush.bf16.msra.mxu0 %v8083
    %10789 = vmatpush.bf16.msra.mxu0 %v8067
    %10790 = vmatpush.bf16.msra.mxu0 %v8051
    %10791 = vmatmul.bf16.gmra.mxu0 %v1003
    %v10792 = vpop.f32.mrf.mxu0
    %v10793 = vadd.f32 %v10780, %v10792
    %v10794 = vpop.f32.mrf.mxu0
    %10795 = vdwg.mxu0
    %10796 = vmatpush.bf16.msra.mxu0 %v8291
    %10797 = vmatpush.bf16.msra.mxu0 %v8275
    %10798 = vmatpush.bf16.msra.mxu0 %v8259
    %10799 = vmatpush.bf16.msra.mxu0 %v8243
    %10800 = vmatpush.bf16.msra.mxu0 %v8227
    %10801 = vmatpush.bf16.msra.mxu0 %v8211
    %10802 = vmatpush.bf16.msra.mxu0 %v8195
    %10803 = vmatpush.bf16.msra.mxu0 %v8179
    %10804 = vmatmul.bf16.gmra.mxu0 %v1004
    %v10805 = vpop.f32.mrf.mxu0
    %v10806 = vadd.f32 %v10793, %v10805
    %v10807 = vpop.f32.mrf.mxu0
    %10808 = vdwg.mxu0
    %10809 = vmatpush.bf16.msra.mxu0 %v8419
    %10810 = vmatpush.bf16.msra.mxu0 %v8403
    %10811 = vmatpush.bf16.msra.mxu0 %v8387
    %10812 = vmatpush.bf16.msra.mxu0 %v8371
    %10813 = vmatpush.bf16.msra.mxu0 %v8355
    %10814 = vmatpush.bf16.msra.mxu0 %v8339
    %10815 = vmatpush.bf16.msra.mxu0 %v8323
    %10816 = vmatpush.bf16.msra.mxu0 %v8307
    %10817 = vmatmul.bf16.gmra.mxu0 %v1005
    %v10818 = vpop.f32.mrf.mxu0
    %v10819 = vadd.f32 %v10806, %v10818
    %v10820 = vpop.f32.mrf.mxu0
    %10821 = vdwg.mxu0
    %10822 = vmatpush.bf16.msra.mxu0 %v8547
    %10823 = vmatpush.bf16.msra.mxu0 %v8531
    %10824 = vmatpush.bf16.msra.mxu0 %v8515
    %10825 = vmatpush.bf16.msra.mxu0 %v8499
    %10826 = vmatpush.bf16.msra.mxu0 %v8483
    %10827 = vmatpush.bf16.msra.mxu0 %v8467
    %10828 = vmatpush.bf16.msra.mxu0 %v8451
    %10829 = vmatpush.bf16.msra.mxu0 %v8435
    %10830 = vmatmul.bf16.gmra.mxu0 %v1006
    %v10831 = vpop.f32.mrf.mxu0
    %v10832 = vadd.f32 %v10819, %v10831
    %v10833 = vpop.f32.mrf.mxu0
    %10834 = vdwg.mxu0
    %10835 = vmatpush.bf16.msra.mxu0 %v8675
    %10836 = vmatpush.bf16.msra.mxu0 %v8659
    %10837 = vmatpush.bf16.msra.mxu0 %v8643
    %10838 = vmatpush.bf16.msra.mxu0 %v8627
    %10839 = vmatpush.bf16.msra.mxu0 %v8611
    %10840 = vmatpush.bf16.msra.mxu0 %v8595
    %10841 = vmatpush.bf16.msra.mxu0 %v8579
    %10842 = vmatpush.bf16.msra.mxu0 %v8563
    %10843 = vmatmul.bf16.gmra.mxu0 %v1007
    %v10844 = vpop.f32.mrf.mxu0
    %v10845 = vadd.f32 %v10832, %v10844
    %v10846 = vpop.f32.mrf.mxu0
    %10847 = vdwg.mxu0
    %10848 = vmatpush.bf16.msra.mxu0 %v7268
    %10849 = vmatpush.bf16.msra.mxu0 %v7252
    %10850 = vmatpush.bf16.msra.mxu0 %v7236
    %10851 = vmatpush.bf16.msra.mxu0 %v7220
    %10852 = vmatpush.bf16.msra.mxu0 %v7204
    %10853 = vmatpush.bf16.msra.mxu0 %v7188
    %10854 = vmatpush.bf16.msra.mxu0 %v7172
    %10855 = vmatpush.bf16.msra.mxu0 %v7156
    %10856 = vmatmul.bf16.gmra.mxu0 %v996
    %v10857 = vpop.f32.mrf.mxu0
    %v10858 = vadd.f32 0.0, %v10857
    %v10859 = vpop.f32.mrf.mxu0
    %10860 = vdwg.mxu0
    %10861 = vmatpush.bf16.msra.mxu0 %v7396
    %10862 = vmatpush.bf16.msra.mxu0 %v7380
    %10863 = vmatpush.bf16.msra.mxu0 %v7364
    %10864 = vmatpush.bf16.msra.mxu0 %v7348
    %10865 = vmatpush.bf16.msra.mxu0 %v7332
    %10866 = vmatpush.bf16.msra.mxu0 %v7316
    %10867 = vmatpush.bf16.msra.mxu0 %v7300
    %10868 = vmatpush.bf16.msra.mxu0 %v7284
    %10869 = vmatmul.bf16.gmra.mxu0 %v997
    %v10870 = vpop.f32.mrf.mxu0
    %v10871 = vadd.f32 %v10858, %v10870
    %v10872 = vpop.f32.mrf.mxu0
    %10873 = vdwg.mxu0
    %10874 = vmatpush.bf16.msra.mxu0 %v7524
    %10875 = vmatpush.bf16.msra.mxu0 %v7508
    %10876 = vmatpush.bf16.msra.mxu0 %v7492
    %10877 = vmatpush.bf16.msra.mxu0 %v7476
    %10878 = vmatpush.bf16.msra.mxu0 %v7460
    %10879 = vmatpush.bf16.msra.mxu0 %v7444
    %10880 = vmatpush.bf16.msra.mxu0 %v7428
    %10881 = vmatpush.bf16.msra.mxu0 %v7412
    %10882 = vmatmul.bf16.gmra.mxu0 %v998
    %v10883 = vpop.f32.mrf.mxu0
    %v10884 = vadd.f32 %v10871, %v10883
    %v10885 = vpop.f32.mrf.mxu0
    %10886 = vdwg.mxu0
    %10887 = vmatpush.bf16.msra.mxu0 %v7652
    %10888 = vmatpush.bf16.msra.mxu0 %v7636
    %10889 = vmatpush.bf16.msra.mxu0 %v7620
    %10890 = vmatpush.bf16.msra.mxu0 %v7604
    %10891 = vmatpush.bf16.msra.mxu0 %v7588
    %10892 = vmatpush.bf16.msra.mxu0 %v7572
    %10893 = vmatpush.bf16.msra.mxu0 %v7556
    %10894 = vmatpush.bf16.msra.mxu0 %v7540
    %10895 = vmatmul.bf16.gmra.mxu0 %v999
    %v10896 = vpop.f32.mrf.mxu0
    %v10897 = vadd.f32 %v10884, %v10896
    %v10898 = vpop.f32.mrf.mxu0
    %10899 = vdwg.mxu0
    %10900 = vmatpush.bf16.msra.mxu0 %v7780
    %10901 = vmatpush.bf16.msra.mxu0 %v7764
    %10902 = vmatpush.bf16.msra.mxu0 %v7748
    %10903 = vmatpush.bf16.msra.mxu0 %v7732
    %10904 = vmatpush.bf16.msra.mxu0 %v7716
    %10905 = vmatpush.bf16.msra.mxu0 %v7700
    %10906 = vmatpush.bf16.msra.mxu0 %v7684
    %10907 = vmatpush.bf16.msra.mxu0 %v7668
    %10908 = vmatmul.bf16.gmra.mxu0 %v1000
    %v10909 = vpop.f32.mrf.mxu0
    %v10910 = vadd.f32 %v10897, %v10909
    %v10911 = vpop.f32.mrf.mxu0
    %10912 = vdwg.mxu0
    %10913 = vmatpush.bf16.msra.mxu0 %v7908
    %10914 = vmatpush.bf16.msra.mxu0 %v7892
    %10915 = vmatpush.bf16.msra.mxu0 %v7876
    %10916 = vmatpush.bf16.msra.mxu0 %v7860
    %10917 = vmatpush.bf16.msra.mxu0 %v7844
    %10918 = vmatpush.bf16.msra.mxu0 %v7828
    %10919 = vmatpush.bf16.msra.mxu0 %v7812
    %10920 = vmatpush.bf16.msra.mxu0 %v7796
    %10921 = vmatmul.bf16.gmra.mxu0 %v1001
    %v10922 = vpop.f32.mrf.mxu0
    %v10923 = vadd.f32 %v10910, %v10922
    %v10924 = vpop.f32.mrf.mxu0
    %10925 = vdwg.mxu0
    %10926 = vmatpush.bf16.msra.mxu0 %v8036
    %10927 = vmatpush.bf16.msra.mxu0 %v8020
    %10928 = vmatpush.bf16.msra.mxu0 %v8004
    %10929 = vmatpush.bf16.msra.mxu0 %v7988
    %10930 = vmatpush.bf16.msra.mxu0 %v7972
    %10931 = vmatpush.bf16.msra.mxu0 %v7956
    %10932 = vmatpush.bf16.msra.mxu0 %v7940
    %10933 = vmatpush.bf16.msra.mxu0 %v7924
    %10934 = vmatmul.bf16.gmra.mxu0 %v1002
    %v10935 = vpop.f32.mrf.mxu0
    %v10936 = vadd.f32 %v10923, %v10935
    %v10937 = vpop.f32.mrf.mxu0
    %10938 = vdwg.mxu0
    %10939 = vmatpush.bf16.msra.mxu0 %v8164
    %10940 = vmatpush.bf16.msra.mxu0 %v8148
    %10941 = vmatpush.bf16.msra.mxu0 %v8132
    %10942 = vmatpush.bf16.msra.mxu0 %v8116
    %10943 = vmatpush.bf16.msra.mxu0 %v8100
    %10944 = vmatpush.bf16.msra.mxu0 %v8084
    %10945 = vmatpush.bf16.msra.mxu0 %v8068
    %10946 = vmatpush.bf16.msra.mxu0 %v8052
    %10947 = vmatmul.bf16.gmra.mxu0 %v1003
    %v10948 = vpop.f32.mrf.mxu0
    %v10949 = vadd.f32 %v10936, %v10948
    %v10950 = vpop.f32.mrf.mxu0
    %10951 = vdwg.mxu0
    %10952 = vmatpush.bf16.msra.mxu0 %v8292
    %10953 = vmatpush.bf16.msra.mxu0 %v8276
    %10954 = vmatpush.bf16.msra.mxu0 %v8260
    %10955 = vmatpush.bf16.msra.mxu0 %v8244
    %10956 = vmatpush.bf16.msra.mxu0 %v8228
    %10957 = vmatpush.bf16.msra.mxu0 %v8212
    %10958 = vmatpush.bf16.msra.mxu0 %v8196
    %10959 = vmatpush.bf16.msra.mxu0 %v8180
    %10960 = vmatmul.bf16.gmra.mxu0 %v1004
    %v10961 = vpop.f32.mrf.mxu0
    %v10962 = vadd.f32 %v10949, %v10961
    %v10963 = vpop.f32.mrf.mxu0
    %10964 = vdwg.mxu0
    %10965 = vmatpush.bf16.msra.mxu0 %v8420
    %10966 = vmatpush.bf16.msra.mxu0 %v8404
    %10967 = vmatpush.bf16.msra.mxu0 %v8388
    %10968 = vmatpush.bf16.msra.mxu0 %v8372
    %10969 = vmatpush.bf16.msra.mxu0 %v8356
    %10970 = vmatpush.bf16.msra.mxu0 %v8340
    %10971 = vmatpush.bf16.msra.mxu0 %v8324
    %10972 = vmatpush.bf16.msra.mxu0 %v8308
    %10973 = vmatmul.bf16.gmra.mxu0 %v1005
    %v10974 = vpop.f32.mrf.mxu0
    %v10975 = vadd.f32 %v10962, %v10974
    %v10976 = vpop.f32.mrf.mxu0
    %10977 = vdwg.mxu0
    %10978 = vmatpush.bf16.msra.mxu0 %v8548
    %10979 = vmatpush.bf16.msra.mxu0 %v8532
    %10980 = vmatpush.bf16.msra.mxu0 %v8516
    %10981 = vmatpush.bf16.msra.mxu0 %v8500
    %10982 = vmatpush.bf16.msra.mxu0 %v8484
    %10983 = vmatpush.bf16.msra.mxu0 %v8468
    %10984 = vmatpush.bf16.msra.mxu0 %v8452
    %10985 = vmatpush.bf16.msra.mxu0 %v8436
    %10986 = vmatmul.bf16.gmra.mxu0 %v1006
    %v10987 = vpop.f32.mrf.mxu0
    %v10988 = vadd.f32 %v10975, %v10987
    %v10989 = vpop.f32.mrf.mxu0
    %10990 = vdwg.mxu0
    %10991 = vmatpush.bf16.msra.mxu0 %v8676
    %10992 = vmatpush.bf16.msra.mxu0 %v8660
    %10993 = vmatpush.bf16.msra.mxu0 %v8644
    %10994 = vmatpush.bf16.msra.mxu0 %v8628
    %10995 = vmatpush.bf16.msra.mxu0 %v8612
    %10996 = vmatpush.bf16.msra.mxu0 %v8596
    %10997 = vmatpush.bf16.msra.mxu0 %v8580
    %10998 = vmatpush.bf16.msra.mxu0 %v8564
    %10999 = vmatmul.bf16.gmra.mxu0 %v1007
    %v11000 = vpop.f32.mrf.mxu0
    %v11001 = vadd.f32 %v10988, %v11000
    %v11002 = vpop.f32.mrf.mxu0
    %11003 = vdwg.mxu0
    %11004 = vmatpush.bf16.msra.mxu0 %v7269
    %11005 = vmatpush.bf16.msra.mxu0 %v7253
    %11006 = vmatpush.bf16.msra.mxu0 %v7237
    %11007 = vmatpush.bf16.msra.mxu0 %v7221
    %11008 = vmatpush.bf16.msra.mxu0 %v7205
    %11009 = vmatpush.bf16.msra.mxu0 %v7189
    %11010 = vmatpush.bf16.msra.mxu0 %v7173
    %11011 = vmatpush.bf16.msra.mxu0 %v7157
    %11012 = vmatmul.bf16.gmra.mxu0 %v996
    %v11013 = vpop.f32.mrf.mxu0
    %v11014 = vadd.f32 0.0, %v11013
    %v11015 = vpop.f32.mrf.mxu0
    %11016 = vdwg.mxu0
    %11017 = vmatpush.bf16.msra.mxu0 %v7397
    %11018 = vmatpush.bf16.msra.mxu0 %v7381
    %11019 = vmatpush.bf16.msra.mxu0 %v7365
    %11020 = vmatpush.bf16.msra.mxu0 %v7349
    %11021 = vmatpush.bf16.msra.mxu0 %v7333
    %11022 = vmatpush.bf16.msra.mxu0 %v7317
    %11023 = vmatpush.bf16.msra.mxu0 %v7301
    %11024 = vmatpush.bf16.msra.mxu0 %v7285
    %11025 = vmatmul.bf16.gmra.mxu0 %v997
    %v11026 = vpop.f32.mrf.mxu0
    %v11027 = vadd.f32 %v11014, %v11026
    %v11028 = vpop.f32.mrf.mxu0
    %11029 = vdwg.mxu0
    %11030 = vmatpush.bf16.msra.mxu0 %v7525
    %11031 = vmatpush.bf16.msra.mxu0 %v7509
    %11032 = vmatpush.bf16.msra.mxu0 %v7493
    %11033 = vmatpush.bf16.msra.mxu0 %v7477
    %11034 = vmatpush.bf16.msra.mxu0 %v7461
    %11035 = vmatpush.bf16.msra.mxu0 %v7445
    %11036 = vmatpush.bf16.msra.mxu0 %v7429
    %11037 = vmatpush.bf16.msra.mxu0 %v7413
    %11038 = vmatmul.bf16.gmra.mxu0 %v998
    %v11039 = vpop.f32.mrf.mxu0
    %v11040 = vadd.f32 %v11027, %v11039
    %v11041 = vpop.f32.mrf.mxu0
    %11042 = vdwg.mxu0
    %11043 = vmatpush.bf16.msra.mxu0 %v7653
    %11044 = vmatpush.bf16.msra.mxu0 %v7637
    %11045 = vmatpush.bf16.msra.mxu0 %v7621
    %11046 = vmatpush.bf16.msra.mxu0 %v7605
    %11047 = vmatpush.bf16.msra.mxu0 %v7589
    %11048 = vmatpush.bf16.msra.mxu0 %v7573
    %11049 = vmatpush.bf16.msra.mxu0 %v7557
    %11050 = vmatpush.bf16.msra.mxu0 %v7541
    %11051 = vmatmul.bf16.gmra.mxu0 %v999
    %v11052 = vpop.f32.mrf.mxu0
    %v11053 = vadd.f32 %v11040, %v11052
    %v11054 = vpop.f32.mrf.mxu0
    %11055 = vdwg.mxu0
    %11056 = vmatpush.bf16.msra.mxu0 %v7781
    %11057 = vmatpush.bf16.msra.mxu0 %v7765
    %11058 = vmatpush.bf16.msra.mxu0 %v7749
    %11059 = vmatpush.bf16.msra.mxu0 %v7733
    %11060 = vmatpush.bf16.msra.mxu0 %v7717
    %11061 = vmatpush.bf16.msra.mxu0 %v7701
    %11062 = vmatpush.bf16.msra.mxu0 %v7685
    %11063 = vmatpush.bf16.msra.mxu0 %v7669
    %11064 = vmatmul.bf16.gmra.mxu0 %v1000
    %v11065 = vpop.f32.mrf.mxu0
    %v11066 = vadd.f32 %v11053, %v11065
    %v11067 = vpop.f32.mrf.mxu0
    %11068 = vdwg.mxu0
    %11069 = vmatpush.bf16.msra.mxu0 %v7909
    %11070 = vmatpush.bf16.msra.mxu0 %v7893
    %11071 = vmatpush.bf16.msra.mxu0 %v7877
    %11072 = vmatpush.bf16.msra.mxu0 %v7861
    %11073 = vmatpush.bf16.msra.mxu0 %v7845
    %11074 = vmatpush.bf16.msra.mxu0 %v7829
    %11075 = vmatpush.bf16.msra.mxu0 %v7813
    %11076 = vmatpush.bf16.msra.mxu0 %v7797
    %11077 = vmatmul.bf16.gmra.mxu0 %v1001
    %v11078 = vpop.f32.mrf.mxu0
    %v11079 = vadd.f32 %v11066, %v11078
    %v11080 = vpop.f32.mrf.mxu0
    %11081 = vdwg.mxu0
    %11082 = vmatpush.bf16.msra.mxu0 %v8037
    %11083 = vmatpush.bf16.msra.mxu0 %v8021
    %11084 = vmatpush.bf16.msra.mxu0 %v8005
    %11085 = vmatpush.bf16.msra.mxu0 %v7989
    %11086 = vmatpush.bf16.msra.mxu0 %v7973
    %11087 = vmatpush.bf16.msra.mxu0 %v7957
    %11088 = vmatpush.bf16.msra.mxu0 %v7941
    %11089 = vmatpush.bf16.msra.mxu0 %v7925
    %11090 = vmatmul.bf16.gmra.mxu0 %v1002
    %v11091 = vpop.f32.mrf.mxu0
    %v11092 = vadd.f32 %v11079, %v11091
    %v11093 = vpop.f32.mrf.mxu0
    %11094 = vdwg.mxu0
    %11095 = vmatpush.bf16.msra.mxu0 %v8165
    %11096 = vmatpush.bf16.msra.mxu0 %v8149
    %11097 = vmatpush.bf16.msra.mxu0 %v8133
    %11098 = vmatpush.bf16.msra.mxu0 %v8117
    %11099 = vmatpush.bf16.msra.mxu0 %v8101
    %11100 = vmatpush.bf16.msra.mxu0 %v8085
    %11101 = vmatpush.bf16.msra.mxu0 %v8069
    %11102 = vmatpush.bf16.msra.mxu0 %v8053
    %11103 = vmatmul.bf16.gmra.mxu0 %v1003
    %v11104 = vpop.f32.mrf.mxu0
    %v11105 = vadd.f32 %v11092, %v11104
    %v11106 = vpop.f32.mrf.mxu0
    %11107 = vdwg.mxu0
    %11108 = vmatpush.bf16.msra.mxu0 %v8293
    %11109 = vmatpush.bf16.msra.mxu0 %v8277
    %11110 = vmatpush.bf16.msra.mxu0 %v8261
    %11111 = vmatpush.bf16.msra.mxu0 %v8245
    %11112 = vmatpush.bf16.msra.mxu0 %v8229
    %11113 = vmatpush.bf16.msra.mxu0 %v8213
    %11114 = vmatpush.bf16.msra.mxu0 %v8197
    %11115 = vmatpush.bf16.msra.mxu0 %v8181
    %11116 = vmatmul.bf16.gmra.mxu0 %v1004
    %v11117 = vpop.f32.mrf.mxu0
    %v11118 = vadd.f32 %v11105, %v11117
    %v11119 = vpop.f32.mrf.mxu0
    %11120 = vdwg.mxu0
    %11121 = vmatpush.bf16.msra.mxu0 %v8421
    %11122 = vmatpush.bf16.msra.mxu0 %v8405
    %11123 = vmatpush.bf16.msra.mxu0 %v8389
    %11124 = vmatpush.bf16.msra.mxu0 %v8373
    %11125 = vmatpush.bf16.msra.mxu0 %v8357
    %11126 = vmatpush.bf16.msra.mxu0 %v8341
    %11127 = vmatpush.bf16.msra.mxu0 %v8325
    %11128 = vmatpush.bf16.msra.mxu0 %v8309
    %11129 = vmatmul.bf16.gmra.mxu0 %v1005
    %v11130 = vpop.f32.mrf.mxu0
    %v11131 = vadd.f32 %v11118, %v11130
    %v11132 = vpop.f32.mrf.mxu0
    %11133 = vdwg.mxu0
    %11134 = vmatpush.bf16.msra.mxu0 %v8549
    %11135 = vmatpush.bf16.msra.mxu0 %v8533
    %11136 = vmatpush.bf16.msra.mxu0 %v8517
    %11137 = vmatpush.bf16.msra.mxu0 %v8501
    %11138 = vmatpush.bf16.msra.mxu0 %v8485
    %11139 = vmatpush.bf16.msra.mxu0 %v8469
    %11140 = vmatpush.bf16.msra.mxu0 %v8453
    %11141 = vmatpush.bf16.msra.mxu0 %v8437
    %11142 = vmatmul.bf16.gmra.mxu0 %v1006
    %v11143 = vpop.f32.mrf.mxu0
    %v11144 = vadd.f32 %v11131, %v11143
    %v11145 = vpop.f32.mrf.mxu0
    %11146 = vdwg.mxu0
    %11147 = vmatpush.bf16.msra.mxu0 %v8677
    %11148 = vmatpush.bf16.msra.mxu0 %v8661
    %11149 = vmatpush.bf16.msra.mxu0 %v8645
    %11150 = vmatpush.bf16.msra.mxu0 %v8629
    %11151 = vmatpush.bf16.msra.mxu0 %v8613
    %11152 = vmatpush.bf16.msra.mxu0 %v8597
    %11153 = vmatpush.bf16.msra.mxu0 %v8581
    %11154 = vmatpush.bf16.msra.mxu0 %v8565
    %11155 = vmatmul.bf16.gmra.mxu0 %v1007
    %v11156 = vpop.f32.mrf.mxu0
    %v11157 = vadd.f32 %v11144, %v11156
    %v11158 = vpop.f32.mrf.mxu0
    %11159 = vdwg.mxu0
    %11160 = vmatpush.bf16.msra.mxu0 %v7270
    %11161 = vmatpush.bf16.msra.mxu0 %v7254
    %11162 = vmatpush.bf16.msra.mxu0 %v7238
    %11163 = vmatpush.bf16.msra.mxu0 %v7222
    %11164 = vmatpush.bf16.msra.mxu0 %v7206
    %11165 = vmatpush.bf16.msra.mxu0 %v7190
    %11166 = vmatpush.bf16.msra.mxu0 %v7174
    %11167 = vmatpush.bf16.msra.mxu0 %v7158
    %11168 = vmatmul.bf16.gmra.mxu0 %v996
    %v11169 = vpop.f32.mrf.mxu0
    %v11170 = vadd.f32 0.0, %v11169
    %v11171 = vpop.f32.mrf.mxu0
    %11172 = vdwg.mxu0
    %11173 = vmatpush.bf16.msra.mxu0 %v7398
    %11174 = vmatpush.bf16.msra.mxu0 %v7382
    %11175 = vmatpush.bf16.msra.mxu0 %v7366
    %11176 = vmatpush.bf16.msra.mxu0 %v7350
    %11177 = vmatpush.bf16.msra.mxu0 %v7334
    %11178 = vmatpush.bf16.msra.mxu0 %v7318
    %11179 = vmatpush.bf16.msra.mxu0 %v7302
    %11180 = vmatpush.bf16.msra.mxu0 %v7286
    %11181 = vmatmul.bf16.gmra.mxu0 %v997
    %v11182 = vpop.f32.mrf.mxu0
    %v11183 = vadd.f32 %v11170, %v11182
    %v11184 = vpop.f32.mrf.mxu0
    %11185 = vdwg.mxu0
    %11186 = vmatpush.bf16.msra.mxu0 %v7526
    %11187 = vmatpush.bf16.msra.mxu0 %v7510
    %11188 = vmatpush.bf16.msra.mxu0 %v7494
    %11189 = vmatpush.bf16.msra.mxu0 %v7478
    %11190 = vmatpush.bf16.msra.mxu0 %v7462
    %11191 = vmatpush.bf16.msra.mxu0 %v7446
    %11192 = vmatpush.bf16.msra.mxu0 %v7430
    %11193 = vmatpush.bf16.msra.mxu0 %v7414
    %11194 = vmatmul.bf16.gmra.mxu0 %v998
    %v11195 = vpop.f32.mrf.mxu0
    %v11196 = vadd.f32 %v11183, %v11195
    %v11197 = vpop.f32.mrf.mxu0
    %11198 = vdwg.mxu0
    %11199 = vmatpush.bf16.msra.mxu0 %v7654
    %11200 = vmatpush.bf16.msra.mxu0 %v7638
    %11201 = vmatpush.bf16.msra.mxu0 %v7622
    %11202 = vmatpush.bf16.msra.mxu0 %v7606
    %11203 = vmatpush.bf16.msra.mxu0 %v7590
    %11204 = vmatpush.bf16.msra.mxu0 %v7574
    %11205 = vmatpush.bf16.msra.mxu0 %v7558
    %11206 = vmatpush.bf16.msra.mxu0 %v7542
    %11207 = vmatmul.bf16.gmra.mxu0 %v999
    %v11208 = vpop.f32.mrf.mxu0
    %v11209 = vadd.f32 %v11196, %v11208
    %v11210 = vpop.f32.mrf.mxu0
    %11211 = vdwg.mxu0
    %11212 = vmatpush.bf16.msra.mxu0 %v7782
    %11213 = vmatpush.bf16.msra.mxu0 %v7766
    %11214 = vmatpush.bf16.msra.mxu0 %v7750
    %11215 = vmatpush.bf16.msra.mxu0 %v7734
    %11216 = vmatpush.bf16.msra.mxu0 %v7718
    %11217 = vmatpush.bf16.msra.mxu0 %v7702
    %11218 = vmatpush.bf16.msra.mxu0 %v7686
    %11219 = vmatpush.bf16.msra.mxu0 %v7670
    %11220 = vmatmul.bf16.gmra.mxu0 %v1000
    %v11221 = vpop.f32.mrf.mxu0
    %v11222 = vadd.f32 %v11209, %v11221
    %v11223 = vpop.f32.mrf.mxu0
    %11224 = vdwg.mxu0
    %11225 = vmatpush.bf16.msra.mxu0 %v7910
    %11226 = vmatpush.bf16.msra.mxu0 %v7894
    %11227 = vmatpush.bf16.msra.mxu0 %v7878
    %11228 = vmatpush.bf16.msra.mxu0 %v7862
    %11229 = vmatpush.bf16.msra.mxu0 %v7846
    %11230 = vmatpush.bf16.msra.mxu0 %v7830
    %11231 = vmatpush.bf16.msra.mxu0 %v7814
    %11232 = vmatpush.bf16.msra.mxu0 %v7798
    %11233 = vmatmul.bf16.gmra.mxu0 %v1001
    %v11234 = vpop.f32.mrf.mxu0
    %v11235 = vadd.f32 %v11222, %v11234
    %v11236 = vpop.f32.mrf.mxu0
    %11237 = vdwg.mxu0
    %11238 = vmatpush.bf16.msra.mxu0 %v8038
    %11239 = vmatpush.bf16.msra.mxu0 %v8022
    %11240 = vmatpush.bf16.msra.mxu0 %v8006
    %11241 = vmatpush.bf16.msra.mxu0 %v7990
    %11242 = vmatpush.bf16.msra.mxu0 %v7974
    %11243 = vmatpush.bf16.msra.mxu0 %v7958
    %11244 = vmatpush.bf16.msra.mxu0 %v7942
    %11245 = vmatpush.bf16.msra.mxu0 %v7926
    %11246 = vmatmul.bf16.gmra.mxu0 %v1002
    %v11247 = vpop.f32.mrf.mxu0
    %v11248 = vadd.f32 %v11235, %v11247
    %v11249 = vpop.f32.mrf.mxu0
    %11250 = vdwg.mxu0
    %11251 = vmatpush.bf16.msra.mxu0 %v8166
    %11252 = vmatpush.bf16.msra.mxu0 %v8150
    %11253 = vmatpush.bf16.msra.mxu0 %v8134
    %11254 = vmatpush.bf16.msra.mxu0 %v8118
    %11255 = vmatpush.bf16.msra.mxu0 %v8102
    %11256 = vmatpush.bf16.msra.mxu0 %v8086
    %11257 = vmatpush.bf16.msra.mxu0 %v8070
    %11258 = vmatpush.bf16.msra.mxu0 %v8054
    %11259 = vmatmul.bf16.gmra.mxu0 %v1003
    %v11260 = vpop.f32.mrf.mxu0
    %v11261 = vadd.f32 %v11248, %v11260
    %v11262 = vpop.f32.mrf.mxu0
    %11263 = vdwg.mxu0
    %11264 = vmatpush.bf16.msra.mxu0 %v8294
    %11265 = vmatpush.bf16.msra.mxu0 %v8278
    %11266 = vmatpush.bf16.msra.mxu0 %v8262
    %11267 = vmatpush.bf16.msra.mxu0 %v8246
    %11268 = vmatpush.bf16.msra.mxu0 %v8230
    %11269 = vmatpush.bf16.msra.mxu0 %v8214
    %11270 = vmatpush.bf16.msra.mxu0 %v8198
    %11271 = vmatpush.bf16.msra.mxu0 %v8182
    %11272 = vmatmul.bf16.gmra.mxu0 %v1004
    %v11273 = vpop.f32.mrf.mxu0
    %v11274 = vadd.f32 %v11261, %v11273
    %v11275 = vpop.f32.mrf.mxu0
    %11276 = vdwg.mxu0
    %11277 = vmatpush.bf16.msra.mxu0 %v8422
    %11278 = vmatpush.bf16.msra.mxu0 %v8406
    %11279 = vmatpush.bf16.msra.mxu0 %v8390
    %11280 = vmatpush.bf16.msra.mxu0 %v8374
    %11281 = vmatpush.bf16.msra.mxu0 %v8358
    %11282 = vmatpush.bf16.msra.mxu0 %v8342
    %11283 = vmatpush.bf16.msra.mxu0 %v8326
    %11284 = vmatpush.bf16.msra.mxu0 %v8310
    %11285 = vmatmul.bf16.gmra.mxu0 %v1005
    %v11286 = vpop.f32.mrf.mxu0
    %v11287 = vadd.f32 %v11274, %v11286
    %v11288 = vpop.f32.mrf.mxu0
    %11289 = vdwg.mxu0
    %11290 = vmatpush.bf16.msra.mxu0 %v8550
    %11291 = vmatpush.bf16.msra.mxu0 %v8534
    %11292 = vmatpush.bf16.msra.mxu0 %v8518
    %11293 = vmatpush.bf16.msra.mxu0 %v8502
    %11294 = vmatpush.bf16.msra.mxu0 %v8486
    %11295 = vmatpush.bf16.msra.mxu0 %v8470
    %11296 = vmatpush.bf16.msra.mxu0 %v8454
    %11297 = vmatpush.bf16.msra.mxu0 %v8438
    %11298 = vmatmul.bf16.gmra.mxu0 %v1006
    %v11299 = vpop.f32.mrf.mxu0
    %v11300 = vadd.f32 %v11287, %v11299
    %v11301 = vpop.f32.mrf.mxu0
    %11302 = vdwg.mxu0
    %11303 = vmatpush.bf16.msra.mxu0 %v8678
    %11304 = vmatpush.bf16.msra.mxu0 %v8662
    %11305 = vmatpush.bf16.msra.mxu0 %v8646
    %11306 = vmatpush.bf16.msra.mxu0 %v8630
    %11307 = vmatpush.bf16.msra.mxu0 %v8614
    %11308 = vmatpush.bf16.msra.mxu0 %v8598
    %11309 = vmatpush.bf16.msra.mxu0 %v8582
    %11310 = vmatpush.bf16.msra.mxu0 %v8566
    %11311 = vmatmul.bf16.gmra.mxu0 %v1007
    %v11312 = vpop.f32.mrf.mxu0
    %v11313 = vadd.f32 %v11300, %v11312
    %v11314 = vpop.f32.mrf.mxu0
    %11315 = vdwg.mxu0
    %11316 = vmatpush.bf16.msra.mxu0 %v7271
    %11317 = vmatpush.bf16.msra.mxu0 %v7255
    %11318 = vmatpush.bf16.msra.mxu0 %v7239
    %11319 = vmatpush.bf16.msra.mxu0 %v7223
    %11320 = vmatpush.bf16.msra.mxu0 %v7207
    %11321 = vmatpush.bf16.msra.mxu0 %v7191
    %11322 = vmatpush.bf16.msra.mxu0 %v7175
    %11323 = vmatpush.bf16.msra.mxu0 %v7159
    %11324 = vmatmul.bf16.gmra.mxu0 %v996
    %v11325 = vpop.f32.mrf.mxu0
    %v11326 = vadd.f32 0.0, %v11325
    %v11327 = vpop.f32.mrf.mxu0
    %11328 = vdwg.mxu0
    %11329 = vmatpush.bf16.msra.mxu0 %v7399
    %11330 = vmatpush.bf16.msra.mxu0 %v7383
    %11331 = vmatpush.bf16.msra.mxu0 %v7367
    %11332 = vmatpush.bf16.msra.mxu0 %v7351
    %11333 = vmatpush.bf16.msra.mxu0 %v7335
    %11334 = vmatpush.bf16.msra.mxu0 %v7319
    %11335 = vmatpush.bf16.msra.mxu0 %v7303
    %11336 = vmatpush.bf16.msra.mxu0 %v7287
    %11337 = vmatmul.bf16.gmra.mxu0 %v997
    %v11338 = vpop.f32.mrf.mxu0
    %v11339 = vadd.f32 %v11326, %v11338
    %v11340 = vpop.f32.mrf.mxu0
    %11341 = vdwg.mxu0
    %11342 = vmatpush.bf16.msra.mxu0 %v7527
    %11343 = vmatpush.bf16.msra.mxu0 %v7511
    %11344 = vmatpush.bf16.msra.mxu0 %v7495
    %11345 = vmatpush.bf16.msra.mxu0 %v7479
    %11346 = vmatpush.bf16.msra.mxu0 %v7463
    %11347 = vmatpush.bf16.msra.mxu0 %v7447
    %11348 = vmatpush.bf16.msra.mxu0 %v7431
    %11349 = vmatpush.bf16.msra.mxu0 %v7415
    %11350 = vmatmul.bf16.gmra.mxu0 %v998
    %v11351 = vpop.f32.mrf.mxu0
    %v11352 = vadd.f32 %v11339, %v11351
    %v11353 = vpop.f32.mrf.mxu0
    %11354 = vdwg.mxu0
    %11355 = vmatpush.bf16.msra.mxu0 %v7655
    %11356 = vmatpush.bf16.msra.mxu0 %v7639
    %11357 = vmatpush.bf16.msra.mxu0 %v7623
    %11358 = vmatpush.bf16.msra.mxu0 %v7607
    %11359 = vmatpush.bf16.msra.mxu0 %v7591
    %11360 = vmatpush.bf16.msra.mxu0 %v7575
    %11361 = vmatpush.bf16.msra.mxu0 %v7559
    %11362 = vmatpush.bf16.msra.mxu0 %v7543
    %11363 = vmatmul.bf16.gmra.mxu0 %v999
    %v11364 = vpop.f32.mrf.mxu0
    %v11365 = vadd.f32 %v11352, %v11364
    %v11366 = vpop.f32.mrf.mxu0
    %11367 = vdwg.mxu0
    %11368 = vmatpush.bf16.msra.mxu0 %v7783
    %11369 = vmatpush.bf16.msra.mxu0 %v7767
    %11370 = vmatpush.bf16.msra.mxu0 %v7751
    %11371 = vmatpush.bf16.msra.mxu0 %v7735
    %11372 = vmatpush.bf16.msra.mxu0 %v7719
    %11373 = vmatpush.bf16.msra.mxu0 %v7703
    %11374 = vmatpush.bf16.msra.mxu0 %v7687
    %11375 = vmatpush.bf16.msra.mxu0 %v7671
    %11376 = vmatmul.bf16.gmra.mxu0 %v1000
    %v11377 = vpop.f32.mrf.mxu0
    %v11378 = vadd.f32 %v11365, %v11377
    %v11379 = vpop.f32.mrf.mxu0
    %11380 = vdwg.mxu0
    %11381 = vmatpush.bf16.msra.mxu0 %v7911
    %11382 = vmatpush.bf16.msra.mxu0 %v7895
    %11383 = vmatpush.bf16.msra.mxu0 %v7879
    %11384 = vmatpush.bf16.msra.mxu0 %v7863
    %11385 = vmatpush.bf16.msra.mxu0 %v7847
    %11386 = vmatpush.bf16.msra.mxu0 %v7831
    %11387 = vmatpush.bf16.msra.mxu0 %v7815
    %11388 = vmatpush.bf16.msra.mxu0 %v7799
    %11389 = vmatmul.bf16.gmra.mxu0 %v1001
    %v11390 = vpop.f32.mrf.mxu0
    %v11391 = vadd.f32 %v11378, %v11390
    %v11392 = vpop.f32.mrf.mxu0
    %11393 = vdwg.mxu0
    %11394 = vmatpush.bf16.msra.mxu0 %v8039
    %11395 = vmatpush.bf16.msra.mxu0 %v8023
    %11396 = vmatpush.bf16.msra.mxu0 %v8007
    %11397 = vmatpush.bf16.msra.mxu0 %v7991
    %11398 = vmatpush.bf16.msra.mxu0 %v7975
    %11399 = vmatpush.bf16.msra.mxu0 %v7959
    %11400 = vmatpush.bf16.msra.mxu0 %v7943
    %11401 = vmatpush.bf16.msra.mxu0 %v7927
    %11402 = vmatmul.bf16.gmra.mxu0 %v1002
    %v11403 = vpop.f32.mrf.mxu0
    %v11404 = vadd.f32 %v11391, %v11403
    %v11405 = vpop.f32.mrf.mxu0
    %11406 = vdwg.mxu0
    %11407 = vmatpush.bf16.msra.mxu0 %v8167
    %11408 = vmatpush.bf16.msra.mxu0 %v8151
    %11409 = vmatpush.bf16.msra.mxu0 %v8135
    %11410 = vmatpush.bf16.msra.mxu0 %v8119
    %11411 = vmatpush.bf16.msra.mxu0 %v8103
    %11412 = vmatpush.bf16.msra.mxu0 %v8087
    %11413 = vmatpush.bf16.msra.mxu0 %v8071
    %11414 = vmatpush.bf16.msra.mxu0 %v8055
    %11415 = vmatmul.bf16.gmra.mxu0 %v1003
    %v11416 = vpop.f32.mrf.mxu0
    %v11417 = vadd.f32 %v11404, %v11416
    %v11418 = vpop.f32.mrf.mxu0
    %11419 = vdwg.mxu0
    %11420 = vmatpush.bf16.msra.mxu0 %v8295
    %11421 = vmatpush.bf16.msra.mxu0 %v8279
    %11422 = vmatpush.bf16.msra.mxu0 %v8263
    %11423 = vmatpush.bf16.msra.mxu0 %v8247
    %11424 = vmatpush.bf16.msra.mxu0 %v8231
    %11425 = vmatpush.bf16.msra.mxu0 %v8215
    %11426 = vmatpush.bf16.msra.mxu0 %v8199
    %11427 = vmatpush.bf16.msra.mxu0 %v8183
    %11428 = vmatmul.bf16.gmra.mxu0 %v1004
    %v11429 = vpop.f32.mrf.mxu0
    %v11430 = vadd.f32 %v11417, %v11429
    %v11431 = vpop.f32.mrf.mxu0
    %11432 = vdwg.mxu0
    %11433 = vmatpush.bf16.msra.mxu0 %v8423
    %11434 = vmatpush.bf16.msra.mxu0 %v8407
    %11435 = vmatpush.bf16.msra.mxu0 %v8391
    %11436 = vmatpush.bf16.msra.mxu0 %v8375
    %11437 = vmatpush.bf16.msra.mxu0 %v8359
    %11438 = vmatpush.bf16.msra.mxu0 %v8343
    %11439 = vmatpush.bf16.msra.mxu0 %v8327
    %11440 = vmatpush.bf16.msra.mxu0 %v8311
    %11441 = vmatmul.bf16.gmra.mxu0 %v1005
    %v11442 = vpop.f32.mrf.mxu0
    %v11443 = vadd.f32 %v11430, %v11442
    %v11444 = vpop.f32.mrf.mxu0
    %11445 = vdwg.mxu0
    %11446 = vmatpush.bf16.msra.mxu0 %v8551
    %11447 = vmatpush.bf16.msra.mxu0 %v8535
    %11448 = vmatpush.bf16.msra.mxu0 %v8519
    %11449 = vmatpush.bf16.msra.mxu0 %v8503
    %11450 = vmatpush.bf16.msra.mxu0 %v8487
    %11451 = vmatpush.bf16.msra.mxu0 %v8471
    %11452 = vmatpush.bf16.msra.mxu0 %v8455
    %11453 = vmatpush.bf16.msra.mxu0 %v8439
    %11454 = vmatmul.bf16.gmra.mxu0 %v1006
    %v11455 = vpop.f32.mrf.mxu0
    %v11456 = vadd.f32 %v11443, %v11455
    %v11457 = vpop.f32.mrf.mxu0
    %11458 = vdwg.mxu0
    %11459 = vmatpush.bf16.msra.mxu0 %v8679
    %11460 = vmatpush.bf16.msra.mxu0 %v8663
    %11461 = vmatpush.bf16.msra.mxu0 %v8647
    %11462 = vmatpush.bf16.msra.mxu0 %v8631
    %11463 = vmatpush.bf16.msra.mxu0 %v8615
    %11464 = vmatpush.bf16.msra.mxu0 %v8599
    %11465 = vmatpush.bf16.msra.mxu0 %v8583
    %11466 = vmatpush.bf16.msra.mxu0 %v8567
    %11467 = vmatmul.bf16.gmra.mxu0 %v1007
    %v11468 = vpop.f32.mrf.mxu0
    %v11469 = vadd.f32 %v11456, %v11468
    %v11470 = vpop.f32.mrf.mxu0
    %11471 = vdwg.mxu0
    %11472 = vmatpush.bf16.msra.mxu0 %v7272
    %11473 = vmatpush.bf16.msra.mxu0 %v7256
    %11474 = vmatpush.bf16.msra.mxu0 %v7240
    %11475 = vmatpush.bf16.msra.mxu0 %v7224
    %11476 = vmatpush.bf16.msra.mxu0 %v7208
    %11477 = vmatpush.bf16.msra.mxu0 %v7192
    %11478 = vmatpush.bf16.msra.mxu0 %v7176
    %11479 = vmatpush.bf16.msra.mxu0 %v7160
    %11480 = vmatmul.bf16.gmra.mxu0 %v996
    %v11481 = vpop.f32.mrf.mxu0
    %v11482 = vadd.f32 0.0, %v11481
    %v11483 = vpop.f32.mrf.mxu0
    %11484 = vdwg.mxu0
    %11485 = vmatpush.bf16.msra.mxu0 %v7400
    %11486 = vmatpush.bf16.msra.mxu0 %v7384
    %11487 = vmatpush.bf16.msra.mxu0 %v7368
    %11488 = vmatpush.bf16.msra.mxu0 %v7352
    %11489 = vmatpush.bf16.msra.mxu0 %v7336
    %11490 = vmatpush.bf16.msra.mxu0 %v7320
    %11491 = vmatpush.bf16.msra.mxu0 %v7304
    %11492 = vmatpush.bf16.msra.mxu0 %v7288
    %11493 = vmatmul.bf16.gmra.mxu0 %v997
    %v11494 = vpop.f32.mrf.mxu0
    %v11495 = vadd.f32 %v11482, %v11494
    %v11496 = vpop.f32.mrf.mxu0
    %11497 = vdwg.mxu0
    %11498 = vmatpush.bf16.msra.mxu0 %v7528
    %11499 = vmatpush.bf16.msra.mxu0 %v7512
    %11500 = vmatpush.bf16.msra.mxu0 %v7496
    %11501 = vmatpush.bf16.msra.mxu0 %v7480
    %11502 = vmatpush.bf16.msra.mxu0 %v7464
    %11503 = vmatpush.bf16.msra.mxu0 %v7448
    %11504 = vmatpush.bf16.msra.mxu0 %v7432
    %11505 = vmatpush.bf16.msra.mxu0 %v7416
    %11506 = vmatmul.bf16.gmra.mxu0 %v998
    %v11507 = vpop.f32.mrf.mxu0
    %v11508 = vadd.f32 %v11495, %v11507
    %v11509 = vpop.f32.mrf.mxu0
    %11510 = vdwg.mxu0
    %11511 = vmatpush.bf16.msra.mxu0 %v7656
    %11512 = vmatpush.bf16.msra.mxu0 %v7640
    %11513 = vmatpush.bf16.msra.mxu0 %v7624
    %11514 = vmatpush.bf16.msra.mxu0 %v7608
    %11515 = vmatpush.bf16.msra.mxu0 %v7592
    %11516 = vmatpush.bf16.msra.mxu0 %v7576
    %11517 = vmatpush.bf16.msra.mxu0 %v7560
    %11518 = vmatpush.bf16.msra.mxu0 %v7544
    %11519 = vmatmul.bf16.gmra.mxu0 %v999
    %v11520 = vpop.f32.mrf.mxu0
    %v11521 = vadd.f32 %v11508, %v11520
    %v11522 = vpop.f32.mrf.mxu0
    %11523 = vdwg.mxu0
    %11524 = vmatpush.bf16.msra.mxu0 %v7784
    %11525 = vmatpush.bf16.msra.mxu0 %v7768
    %11526 = vmatpush.bf16.msra.mxu0 %v7752
    %11527 = vmatpush.bf16.msra.mxu0 %v7736
    %11528 = vmatpush.bf16.msra.mxu0 %v7720
    %11529 = vmatpush.bf16.msra.mxu0 %v7704
    %11530 = vmatpush.bf16.msra.mxu0 %v7688
    %11531 = vmatpush.bf16.msra.mxu0 %v7672
    %11532 = vmatmul.bf16.gmra.mxu0 %v1000
    %v11533 = vpop.f32.mrf.mxu0
    %v11534 = vadd.f32 %v11521, %v11533
    %v11535 = vpop.f32.mrf.mxu0
    %11536 = vdwg.mxu0
    %11537 = vmatpush.bf16.msra.mxu0 %v7912
    %11538 = vmatpush.bf16.msra.mxu0 %v7896
    %11539 = vmatpush.bf16.msra.mxu0 %v7880
    %11540 = vmatpush.bf16.msra.mxu0 %v7864
    %11541 = vmatpush.bf16.msra.mxu0 %v7848
    %11542 = vmatpush.bf16.msra.mxu0 %v7832
    %11543 = vmatpush.bf16.msra.mxu0 %v7816
    %11544 = vmatpush.bf16.msra.mxu0 %v7800
    %11545 = vmatmul.bf16.gmra.mxu0 %v1001
    %v11546 = vpop.f32.mrf.mxu0
    %v11547 = vadd.f32 %v11534, %v11546
    %v11548 = vpop.f32.mrf.mxu0
    %11549 = vdwg.mxu0
    %11550 = vmatpush.bf16.msra.mxu0 %v8040
    %11551 = vmatpush.bf16.msra.mxu0 %v8024
    %11552 = vmatpush.bf16.msra.mxu0 %v8008
    %11553 = vmatpush.bf16.msra.mxu0 %v7992
    %11554 = vmatpush.bf16.msra.mxu0 %v7976
    %11555 = vmatpush.bf16.msra.mxu0 %v7960
    %11556 = vmatpush.bf16.msra.mxu0 %v7944
    %11557 = vmatpush.bf16.msra.mxu0 %v7928
    %11558 = vmatmul.bf16.gmra.mxu0 %v1002
    %v11559 = vpop.f32.mrf.mxu0
    %v11560 = vadd.f32 %v11547, %v11559
    %v11561 = vpop.f32.mrf.mxu0
    %11562 = vdwg.mxu0
    %11563 = vmatpush.bf16.msra.mxu0 %v8168
    %11564 = vmatpush.bf16.msra.mxu0 %v8152
    %11565 = vmatpush.bf16.msra.mxu0 %v8136
    %11566 = vmatpush.bf16.msra.mxu0 %v8120
    %11567 = vmatpush.bf16.msra.mxu0 %v8104
    %11568 = vmatpush.bf16.msra.mxu0 %v8088
    %11569 = vmatpush.bf16.msra.mxu0 %v8072
    %11570 = vmatpush.bf16.msra.mxu0 %v8056
    %11571 = vmatmul.bf16.gmra.mxu0 %v1003
    %v11572 = vpop.f32.mrf.mxu0
    %v11573 = vadd.f32 %v11560, %v11572
    %v11574 = vpop.f32.mrf.mxu0
    %11575 = vdwg.mxu0
    %11576 = vmatpush.bf16.msra.mxu0 %v8296
    %11577 = vmatpush.bf16.msra.mxu0 %v8280
    %11578 = vmatpush.bf16.msra.mxu0 %v8264
    %11579 = vmatpush.bf16.msra.mxu0 %v8248
    %11580 = vmatpush.bf16.msra.mxu0 %v8232
    %11581 = vmatpush.bf16.msra.mxu0 %v8216
    %11582 = vmatpush.bf16.msra.mxu0 %v8200
    %11583 = vmatpush.bf16.msra.mxu0 %v8184
    %11584 = vmatmul.bf16.gmra.mxu0 %v1004
    %v11585 = vpop.f32.mrf.mxu0
    %v11586 = vadd.f32 %v11573, %v11585
    %v11587 = vpop.f32.mrf.mxu0
    %11588 = vdwg.mxu0
    %11589 = vmatpush.bf16.msra.mxu0 %v8424
    %11590 = vmatpush.bf16.msra.mxu0 %v8408
    %11591 = vmatpush.bf16.msra.mxu0 %v8392
    %11592 = vmatpush.bf16.msra.mxu0 %v8376
    %11593 = vmatpush.bf16.msra.mxu0 %v8360
    %11594 = vmatpush.bf16.msra.mxu0 %v8344
    %11595 = vmatpush.bf16.msra.mxu0 %v8328
    %11596 = vmatpush.bf16.msra.mxu0 %v8312
    %11597 = vmatmul.bf16.gmra.mxu0 %v1005
    %v11598 = vpop.f32.mrf.mxu0
    %v11599 = vadd.f32 %v11586, %v11598
    %v11600 = vpop.f32.mrf.mxu0
    %11601 = vdwg.mxu0
    %11602 = vmatpush.bf16.msra.mxu0 %v8552
    %11603 = vmatpush.bf16.msra.mxu0 %v8536
    %11604 = vmatpush.bf16.msra.mxu0 %v8520
    %11605 = vmatpush.bf16.msra.mxu0 %v8504
    %11606 = vmatpush.bf16.msra.mxu0 %v8488
    %11607 = vmatpush.bf16.msra.mxu0 %v8472
    %11608 = vmatpush.bf16.msra.mxu0 %v8456
    %11609 = vmatpush.bf16.msra.mxu0 %v8440
    %11610 = vmatmul.bf16.gmra.mxu0 %v1006
    %v11611 = vpop.f32.mrf.mxu0
    %v11612 = vadd.f32 %v11599, %v11611
    %v11613 = vpop.f32.mrf.mxu0
    %11614 = vdwg.mxu0
    %11615 = vmatpush.bf16.msra.mxu0 %v8680
    %11616 = vmatpush.bf16.msra.mxu0 %v8664
    %11617 = vmatpush.bf16.msra.mxu0 %v8648
    %11618 = vmatpush.bf16.msra.mxu0 %v8632
    %11619 = vmatpush.bf16.msra.mxu0 %v8616
    %11620 = vmatpush.bf16.msra.mxu0 %v8600
    %11621 = vmatpush.bf16.msra.mxu0 %v8584
    %11622 = vmatpush.bf16.msra.mxu0 %v8568
    %11623 = vmatmul.bf16.gmra.mxu0 %v1007
    %v11624 = vpop.f32.mrf.mxu0
    %v11625 = vadd.f32 %v11612, %v11624
    %v11626 = vpop.f32.mrf.mxu0
    %11627 = vdwg.mxu0
    %11628 = vmatpush.bf16.msra.mxu0 %v7273
    %11629 = vmatpush.bf16.msra.mxu0 %v7257
    %11630 = vmatpush.bf16.msra.mxu0 %v7241
    %11631 = vmatpush.bf16.msra.mxu0 %v7225
    %11632 = vmatpush.bf16.msra.mxu0 %v7209
    %11633 = vmatpush.bf16.msra.mxu0 %v7193
    %11634 = vmatpush.bf16.msra.mxu0 %v7177
    %11635 = vmatpush.bf16.msra.mxu0 %v7161
    %11636 = vmatmul.bf16.gmra.mxu0 %v996
    %v11637 = vpop.f32.mrf.mxu0
    %v11638 = vadd.f32 0.0, %v11637
    %v11639 = vpop.f32.mrf.mxu0
    %11640 = vdwg.mxu0
    %11641 = vmatpush.bf16.msra.mxu0 %v7401
    %11642 = vmatpush.bf16.msra.mxu0 %v7385
    %11643 = vmatpush.bf16.msra.mxu0 %v7369
    %11644 = vmatpush.bf16.msra.mxu0 %v7353
    %11645 = vmatpush.bf16.msra.mxu0 %v7337
    %11646 = vmatpush.bf16.msra.mxu0 %v7321
    %11647 = vmatpush.bf16.msra.mxu0 %v7305
    %11648 = vmatpush.bf16.msra.mxu0 %v7289
    %11649 = vmatmul.bf16.gmra.mxu0 %v997
    %v11650 = vpop.f32.mrf.mxu0
    %v11651 = vadd.f32 %v11638, %v11650
    %v11652 = vpop.f32.mrf.mxu0
    %11653 = vdwg.mxu0
    %11654 = vmatpush.bf16.msra.mxu0 %v7529
    %11655 = vmatpush.bf16.msra.mxu0 %v7513
    %11656 = vmatpush.bf16.msra.mxu0 %v7497
    %11657 = vmatpush.bf16.msra.mxu0 %v7481
    %11658 = vmatpush.bf16.msra.mxu0 %v7465
    %11659 = vmatpush.bf16.msra.mxu0 %v7449
    %11660 = vmatpush.bf16.msra.mxu0 %v7433
    %11661 = vmatpush.bf16.msra.mxu0 %v7417
    %11662 = vmatmul.bf16.gmra.mxu0 %v998
    %v11663 = vpop.f32.mrf.mxu0
    %v11664 = vadd.f32 %v11651, %v11663
    %v11665 = vpop.f32.mrf.mxu0
    %11666 = vdwg.mxu0
    %11667 = vmatpush.bf16.msra.mxu0 %v7657
    %11668 = vmatpush.bf16.msra.mxu0 %v7641
    %11669 = vmatpush.bf16.msra.mxu0 %v7625
    %11670 = vmatpush.bf16.msra.mxu0 %v7609
    %11671 = vmatpush.bf16.msra.mxu0 %v7593
    %11672 = vmatpush.bf16.msra.mxu0 %v7577
    %11673 = vmatpush.bf16.msra.mxu0 %v7561
    %11674 = vmatpush.bf16.msra.mxu0 %v7545
    %11675 = vmatmul.bf16.gmra.mxu0 %v999
    %v11676 = vpop.f32.mrf.mxu0
    %v11677 = vadd.f32 %v11664, %v11676
    %v11678 = vpop.f32.mrf.mxu0
    %11679 = vdwg.mxu0
    %11680 = vmatpush.bf16.msra.mxu0 %v7785
    %11681 = vmatpush.bf16.msra.mxu0 %v7769
    %11682 = vmatpush.bf16.msra.mxu0 %v7753
    %11683 = vmatpush.bf16.msra.mxu0 %v7737
    %11684 = vmatpush.bf16.msra.mxu0 %v7721
    %11685 = vmatpush.bf16.msra.mxu0 %v7705
    %11686 = vmatpush.bf16.msra.mxu0 %v7689
    %11687 = vmatpush.bf16.msra.mxu0 %v7673
    %11688 = vmatmul.bf16.gmra.mxu0 %v1000
    %v11689 = vpop.f32.mrf.mxu0
    %v11690 = vadd.f32 %v11677, %v11689
    %v11691 = vpop.f32.mrf.mxu0
    %11692 = vdwg.mxu0
    %11693 = vmatpush.bf16.msra.mxu0 %v7913
    %11694 = vmatpush.bf16.msra.mxu0 %v7897
    %11695 = vmatpush.bf16.msra.mxu0 %v7881
    %11696 = vmatpush.bf16.msra.mxu0 %v7865
    %11697 = vmatpush.bf16.msra.mxu0 %v7849
    %11698 = vmatpush.bf16.msra.mxu0 %v7833
    %11699 = vmatpush.bf16.msra.mxu0 %v7817
    %11700 = vmatpush.bf16.msra.mxu0 %v7801
    %11701 = vmatmul.bf16.gmra.mxu0 %v1001
    %v11702 = vpop.f32.mrf.mxu0
    %v11703 = vadd.f32 %v11690, %v11702
    %v11704 = vpop.f32.mrf.mxu0
    %11705 = vdwg.mxu0
    %11706 = vmatpush.bf16.msra.mxu0 %v8041
    %11707 = vmatpush.bf16.msra.mxu0 %v8025
    %11708 = vmatpush.bf16.msra.mxu0 %v8009
    %11709 = vmatpush.bf16.msra.mxu0 %v7993
    %11710 = vmatpush.bf16.msra.mxu0 %v7977
    %11711 = vmatpush.bf16.msra.mxu0 %v7961
    %11712 = vmatpush.bf16.msra.mxu0 %v7945
    %11713 = vmatpush.bf16.msra.mxu0 %v7929
    %11714 = vmatmul.bf16.gmra.mxu0 %v1002
    %v11715 = vpop.f32.mrf.mxu0
    %v11716 = vadd.f32 %v11703, %v11715
    %v11717 = vpop.f32.mrf.mxu0
    %11718 = vdwg.mxu0
    %11719 = vmatpush.bf16.msra.mxu0 %v8169
    %11720 = vmatpush.bf16.msra.mxu0 %v8153
    %11721 = vmatpush.bf16.msra.mxu0 %v8137
    %11722 = vmatpush.bf16.msra.mxu0 %v8121
    %11723 = vmatpush.bf16.msra.mxu0 %v8105
    %11724 = vmatpush.bf16.msra.mxu0 %v8089
    %11725 = vmatpush.bf16.msra.mxu0 %v8073
    %11726 = vmatpush.bf16.msra.mxu0 %v8057
    %11727 = vmatmul.bf16.gmra.mxu0 %v1003
    %v11728 = vpop.f32.mrf.mxu0
    %v11729 = vadd.f32 %v11716, %v11728
    %v11730 = vpop.f32.mrf.mxu0
    %11731 = vdwg.mxu0
    %11732 = vmatpush.bf16.msra.mxu0 %v8297
    %11733 = vmatpush.bf16.msra.mxu0 %v8281
    %11734 = vmatpush.bf16.msra.mxu0 %v8265
    %11735 = vmatpush.bf16.msra.mxu0 %v8249
    %11736 = vmatpush.bf16.msra.mxu0 %v8233
    %11737 = vmatpush.bf16.msra.mxu0 %v8217
    %11738 = vmatpush.bf16.msra.mxu0 %v8201
    %11739 = vmatpush.bf16.msra.mxu0 %v8185
    %11740 = vmatmul.bf16.gmra.mxu0 %v1004
    %v11741 = vpop.f32.mrf.mxu0
    %v11742 = vadd.f32 %v11729, %v11741
    %v11743 = vpop.f32.mrf.mxu0
    %11744 = vdwg.mxu0
    %11745 = vmatpush.bf16.msra.mxu0 %v8425
    %11746 = vmatpush.bf16.msra.mxu0 %v8409
    %11747 = vmatpush.bf16.msra.mxu0 %v8393
    %11748 = vmatpush.bf16.msra.mxu0 %v8377
    %11749 = vmatpush.bf16.msra.mxu0 %v8361
    %11750 = vmatpush.bf16.msra.mxu0 %v8345
    %11751 = vmatpush.bf16.msra.mxu0 %v8329
    %11752 = vmatpush.bf16.msra.mxu0 %v8313
    %11753 = vmatmul.bf16.gmra.mxu0 %v1005
    %v11754 = vpop.f32.mrf.mxu0
    %v11755 = vadd.f32 %v11742, %v11754
    %v11756 = vpop.f32.mrf.mxu0
    %11757 = vdwg.mxu0
    %11758 = vmatpush.bf16.msra.mxu0 %v8553
    %11759 = vmatpush.bf16.msra.mxu0 %v8537
    %11760 = vmatpush.bf16.msra.mxu0 %v8521
    %11761 = vmatpush.bf16.msra.mxu0 %v8505
    %11762 = vmatpush.bf16.msra.mxu0 %v8489
    %11763 = vmatpush.bf16.msra.mxu0 %v8473
    %11764 = vmatpush.bf16.msra.mxu0 %v8457
    %11765 = vmatpush.bf16.msra.mxu0 %v8441
    %11766 = vmatmul.bf16.gmra.mxu0 %v1006
    %v11767 = vpop.f32.mrf.mxu0
    %v11768 = vadd.f32 %v11755, %v11767
    %v11769 = vpop.f32.mrf.mxu0
    %11770 = vdwg.mxu0
    %11771 = vmatpush.bf16.msra.mxu0 %v8681
    %11772 = vmatpush.bf16.msra.mxu0 %v8665
    %11773 = vmatpush.bf16.msra.mxu0 %v8649
    %11774 = vmatpush.bf16.msra.mxu0 %v8633
    %11775 = vmatpush.bf16.msra.mxu0 %v8617
    %11776 = vmatpush.bf16.msra.mxu0 %v8601
    %11777 = vmatpush.bf16.msra.mxu0 %v8585
    %11778 = vmatpush.bf16.msra.mxu0 %v8569
    %11779 = vmatmul.bf16.gmra.mxu0 %v1007
    %v11780 = vpop.f32.mrf.mxu0
    %v11781 = vadd.f32 %v11768, %v11780
    %v11782 = vpop.f32.mrf.mxu0
    %11783 = vdwg.mxu0
    %11784 = vmatpush.bf16.msra.mxu0 %v7274
    %11785 = vmatpush.bf16.msra.mxu0 %v7258
    %11786 = vmatpush.bf16.msra.mxu0 %v7242
    %11787 = vmatpush.bf16.msra.mxu0 %v7226
    %11788 = vmatpush.bf16.msra.mxu0 %v7210
    %11789 = vmatpush.bf16.msra.mxu0 %v7194
    %11790 = vmatpush.bf16.msra.mxu0 %v7178
    %11791 = vmatpush.bf16.msra.mxu0 %v7162
    %11792 = vmatmul.bf16.gmra.mxu0 %v996
    %v11793 = vpop.f32.mrf.mxu0
    %v11794 = vadd.f32 0.0, %v11793
    %v11795 = vpop.f32.mrf.mxu0
    %11796 = vdwg.mxu0
    %11797 = vmatpush.bf16.msra.mxu0 %v7402
    %11798 = vmatpush.bf16.msra.mxu0 %v7386
    %11799 = vmatpush.bf16.msra.mxu0 %v7370
    %11800 = vmatpush.bf16.msra.mxu0 %v7354
    %11801 = vmatpush.bf16.msra.mxu0 %v7338
    %11802 = vmatpush.bf16.msra.mxu0 %v7322
    %11803 = vmatpush.bf16.msra.mxu0 %v7306
    %11804 = vmatpush.bf16.msra.mxu0 %v7290
    %11805 = vmatmul.bf16.gmra.mxu0 %v997
    %v11806 = vpop.f32.mrf.mxu0
    %v11807 = vadd.f32 %v11794, %v11806
    %v11808 = vpop.f32.mrf.mxu0
    %11809 = vdwg.mxu0
    %11810 = vmatpush.bf16.msra.mxu0 %v7530
    %11811 = vmatpush.bf16.msra.mxu0 %v7514
    %11812 = vmatpush.bf16.msra.mxu0 %v7498
    %11813 = vmatpush.bf16.msra.mxu0 %v7482
    %11814 = vmatpush.bf16.msra.mxu0 %v7466
    %11815 = vmatpush.bf16.msra.mxu0 %v7450
    %11816 = vmatpush.bf16.msra.mxu0 %v7434
    %11817 = vmatpush.bf16.msra.mxu0 %v7418
    %11818 = vmatmul.bf16.gmra.mxu0 %v998
    %v11819 = vpop.f32.mrf.mxu0
    %v11820 = vadd.f32 %v11807, %v11819
    %v11821 = vpop.f32.mrf.mxu0
    %11822 = vdwg.mxu0
    %11823 = vmatpush.bf16.msra.mxu0 %v7658
    %11824 = vmatpush.bf16.msra.mxu0 %v7642
    %11825 = vmatpush.bf16.msra.mxu0 %v7626
    %11826 = vmatpush.bf16.msra.mxu0 %v7610
    %11827 = vmatpush.bf16.msra.mxu0 %v7594
    %11828 = vmatpush.bf16.msra.mxu0 %v7578
    %11829 = vmatpush.bf16.msra.mxu0 %v7562
    %11830 = vmatpush.bf16.msra.mxu0 %v7546
    %11831 = vmatmul.bf16.gmra.mxu0 %v999
    %v11832 = vpop.f32.mrf.mxu0
    %v11833 = vadd.f32 %v11820, %v11832
    %v11834 = vpop.f32.mrf.mxu0
    %11835 = vdwg.mxu0
    %11836 = vmatpush.bf16.msra.mxu0 %v7786
    %11837 = vmatpush.bf16.msra.mxu0 %v7770
    %11838 = vmatpush.bf16.msra.mxu0 %v7754
    %11839 = vmatpush.bf16.msra.mxu0 %v7738
    %11840 = vmatpush.bf16.msra.mxu0 %v7722
    %11841 = vmatpush.bf16.msra.mxu0 %v7706
    %11842 = vmatpush.bf16.msra.mxu0 %v7690
    %11843 = vmatpush.bf16.msra.mxu0 %v7674
    %11844 = vmatmul.bf16.gmra.mxu0 %v1000
    %v11845 = vpop.f32.mrf.mxu0
    %v11846 = vadd.f32 %v11833, %v11845
    %v11847 = vpop.f32.mrf.mxu0
    %11848 = vdwg.mxu0
    %11849 = vmatpush.bf16.msra.mxu0 %v7914
    %11850 = vmatpush.bf16.msra.mxu0 %v7898
    %11851 = vmatpush.bf16.msra.mxu0 %v7882
    %11852 = vmatpush.bf16.msra.mxu0 %v7866
    %11853 = vmatpush.bf16.msra.mxu0 %v7850
    %11854 = vmatpush.bf16.msra.mxu0 %v7834
    %11855 = vmatpush.bf16.msra.mxu0 %v7818
    %11856 = vmatpush.bf16.msra.mxu0 %v7802
    %11857 = vmatmul.bf16.gmra.mxu0 %v1001
    %v11858 = vpop.f32.mrf.mxu0
    %v11859 = vadd.f32 %v11846, %v11858
    %v11860 = vpop.f32.mrf.mxu0
    %11861 = vdwg.mxu0
    %11862 = vmatpush.bf16.msra.mxu0 %v8042
    %11863 = vmatpush.bf16.msra.mxu0 %v8026
    %11864 = vmatpush.bf16.msra.mxu0 %v8010
    %11865 = vmatpush.bf16.msra.mxu0 %v7994
    %11866 = vmatpush.bf16.msra.mxu0 %v7978
    %11867 = vmatpush.bf16.msra.mxu0 %v7962
    %11868 = vmatpush.bf16.msra.mxu0 %v7946
    %11869 = vmatpush.bf16.msra.mxu0 %v7930
    %11870 = vmatmul.bf16.gmra.mxu0 %v1002
    %v11871 = vpop.f32.mrf.mxu0
    %v11872 = vadd.f32 %v11859, %v11871
    %v11873 = vpop.f32.mrf.mxu0
    %11874 = vdwg.mxu0
    %11875 = vmatpush.bf16.msra.mxu0 %v8170
    %11876 = vmatpush.bf16.msra.mxu0 %v8154
    %11877 = vmatpush.bf16.msra.mxu0 %v8138
    %11878 = vmatpush.bf16.msra.mxu0 %v8122
    %11879 = vmatpush.bf16.msra.mxu0 %v8106
    %11880 = vmatpush.bf16.msra.mxu0 %v8090
    %11881 = vmatpush.bf16.msra.mxu0 %v8074
    %11882 = vmatpush.bf16.msra.mxu0 %v8058
    %11883 = vmatmul.bf16.gmra.mxu0 %v1003
    %v11884 = vpop.f32.mrf.mxu0
    %v11885 = vadd.f32 %v11872, %v11884
    %v11886 = vpop.f32.mrf.mxu0
    %11887 = vdwg.mxu0
    %11888 = vmatpush.bf16.msra.mxu0 %v8298
    %11889 = vmatpush.bf16.msra.mxu0 %v8282
    %11890 = vmatpush.bf16.msra.mxu0 %v8266
    %11891 = vmatpush.bf16.msra.mxu0 %v8250
    %11892 = vmatpush.bf16.msra.mxu0 %v8234
    %11893 = vmatpush.bf16.msra.mxu0 %v8218
    %11894 = vmatpush.bf16.msra.mxu0 %v8202
    %11895 = vmatpush.bf16.msra.mxu0 %v8186
    %11896 = vmatmul.bf16.gmra.mxu0 %v1004
    %v11897 = vpop.f32.mrf.mxu0
    %v11898 = vadd.f32 %v11885, %v11897
    %v11899 = vpop.f32.mrf.mxu0
    %11900 = vdwg.mxu0
    %11901 = vmatpush.bf16.msra.mxu0 %v8426
    %11902 = vmatpush.bf16.msra.mxu0 %v8410
    %11903 = vmatpush.bf16.msra.mxu0 %v8394
    %11904 = vmatpush.bf16.msra.mxu0 %v8378
    %11905 = vmatpush.bf16.msra.mxu0 %v8362
    %11906 = vmatpush.bf16.msra.mxu0 %v8346
    %11907 = vmatpush.bf16.msra.mxu0 %v8330
    %11908 = vmatpush.bf16.msra.mxu0 %v8314
    %11909 = vmatmul.bf16.gmra.mxu0 %v1005
    %v11910 = vpop.f32.mrf.mxu0
    %v11911 = vadd.f32 %v11898, %v11910
    %v11912 = vpop.f32.mrf.mxu0
    %11913 = vdwg.mxu0
    %11914 = vmatpush.bf16.msra.mxu0 %v8554
    %11915 = vmatpush.bf16.msra.mxu0 %v8538
    %11916 = vmatpush.bf16.msra.mxu0 %v8522
    %11917 = vmatpush.bf16.msra.mxu0 %v8506
    %11918 = vmatpush.bf16.msra.mxu0 %v8490
    %11919 = vmatpush.bf16.msra.mxu0 %v8474
    %11920 = vmatpush.bf16.msra.mxu0 %v8458
    %11921 = vmatpush.bf16.msra.mxu0 %v8442
    %11922 = vmatmul.bf16.gmra.mxu0 %v1006
    %v11923 = vpop.f32.mrf.mxu0
    %v11924 = vadd.f32 %v11911, %v11923
    %v11925 = vpop.f32.mrf.mxu0
    %11926 = vdwg.mxu0
    %11927 = vmatpush.bf16.msra.mxu0 %v8682
    %11928 = vmatpush.bf16.msra.mxu0 %v8666
    %11929 = vmatpush.bf16.msra.mxu0 %v8650
    %11930 = vmatpush.bf16.msra.mxu0 %v8634
    %11931 = vmatpush.bf16.msra.mxu0 %v8618
    %11932 = vmatpush.bf16.msra.mxu0 %v8602
    %11933 = vmatpush.bf16.msra.mxu0 %v8586
    %11934 = vmatpush.bf16.msra.mxu0 %v8570
    %11935 = vmatmul.bf16.gmra.mxu0 %v1007
    %v11936 = vpop.f32.mrf.mxu0
    %v11937 = vadd.f32 %v11924, %v11936
    %v11938 = vpop.f32.mrf.mxu0
    %11939 = vdwg.mxu0
    %11940 = vmatpush.bf16.msra.mxu0 %v7275
    %11941 = vmatpush.bf16.msra.mxu0 %v7259
    %11942 = vmatpush.bf16.msra.mxu0 %v7243
    %11943 = vmatpush.bf16.msra.mxu0 %v7227
    %11944 = vmatpush.bf16.msra.mxu0 %v7211
    %11945 = vmatpush.bf16.msra.mxu0 %v7195
    %11946 = vmatpush.bf16.msra.mxu0 %v7179
    %11947 = vmatpush.bf16.msra.mxu0 %v7163
    %11948 = vmatmul.bf16.gmra.mxu0 %v996
    %v11949 = vpop.f32.mrf.mxu0
    %v11950 = vadd.f32 0.0, %v11949
    %v11951 = vpop.f32.mrf.mxu0
    %11952 = vdwg.mxu0
    %11953 = vmatpush.bf16.msra.mxu0 %v7403
    %11954 = vmatpush.bf16.msra.mxu0 %v7387
    %11955 = vmatpush.bf16.msra.mxu0 %v7371
    %11956 = vmatpush.bf16.msra.mxu0 %v7355
    %11957 = vmatpush.bf16.msra.mxu0 %v7339
    %11958 = vmatpush.bf16.msra.mxu0 %v7323
    %11959 = vmatpush.bf16.msra.mxu0 %v7307
    %11960 = vmatpush.bf16.msra.mxu0 %v7291
    %11961 = vmatmul.bf16.gmra.mxu0 %v997
    %v11962 = vpop.f32.mrf.mxu0
    %v11963 = vadd.f32 %v11950, %v11962
    %v11964 = vpop.f32.mrf.mxu0
    %11965 = vdwg.mxu0
    %11966 = vmatpush.bf16.msra.mxu0 %v7531
    %11967 = vmatpush.bf16.msra.mxu0 %v7515
    %11968 = vmatpush.bf16.msra.mxu0 %v7499
    %11969 = vmatpush.bf16.msra.mxu0 %v7483
    %11970 = vmatpush.bf16.msra.mxu0 %v7467
    %11971 = vmatpush.bf16.msra.mxu0 %v7451
    %11972 = vmatpush.bf16.msra.mxu0 %v7435
    %11973 = vmatpush.bf16.msra.mxu0 %v7419
    %11974 = vmatmul.bf16.gmra.mxu0 %v998
    %v11975 = vpop.f32.mrf.mxu0
    %v11976 = vadd.f32 %v11963, %v11975
    %v11977 = vpop.f32.mrf.mxu0
    %11978 = vdwg.mxu0
    %11979 = vmatpush.bf16.msra.mxu0 %v7659
    %11980 = vmatpush.bf16.msra.mxu0 %v7643
    %11981 = vmatpush.bf16.msra.mxu0 %v7627
    %11982 = vmatpush.bf16.msra.mxu0 %v7611
    %11983 = vmatpush.bf16.msra.mxu0 %v7595
    %11984 = vmatpush.bf16.msra.mxu0 %v7579
    %11985 = vmatpush.bf16.msra.mxu0 %v7563
    %11986 = vmatpush.bf16.msra.mxu0 %v7547
    %11987 = vmatmul.bf16.gmra.mxu0 %v999
    %v11988 = vpop.f32.mrf.mxu0
    %v11989 = vadd.f32 %v11976, %v11988
    %v11990 = vpop.f32.mrf.mxu0
    %11991 = vdwg.mxu0
    %11992 = vmatpush.bf16.msra.mxu0 %v7787
    %11993 = vmatpush.bf16.msra.mxu0 %v7771
    %11994 = vmatpush.bf16.msra.mxu0 %v7755
    %11995 = vmatpush.bf16.msra.mxu0 %v7739
    %11996 = vmatpush.bf16.msra.mxu0 %v7723
    %11997 = vmatpush.bf16.msra.mxu0 %v7707
    %11998 = vmatpush.bf16.msra.mxu0 %v7691
    %11999 = vmatpush.bf16.msra.mxu0 %v7675
    %12000 = vmatmul.bf16.gmra.mxu0 %v1000
    %v12001 = vpop.f32.mrf.mxu0
    %v12002 = vadd.f32 %v11989, %v12001
    %v12003 = vpop.f32.mrf.mxu0
    %12004 = vdwg.mxu0
    %12005 = vmatpush.bf16.msra.mxu0 %v7915
    %12006 = vmatpush.bf16.msra.mxu0 %v7899
    %12007 = vmatpush.bf16.msra.mxu0 %v7883
    %12008 = vmatpush.bf16.msra.mxu0 %v7867
    %12009 = vmatpush.bf16.msra.mxu0 %v7851
    %12010 = vmatpush.bf16.msra.mxu0 %v7835
    %12011 = vmatpush.bf16.msra.mxu0 %v7819
    %12012 = vmatpush.bf16.msra.mxu0 %v7803
    %12013 = vmatmul.bf16.gmra.mxu0 %v1001
    %v12014 = vpop.f32.mrf.mxu0
    %v12015 = vadd.f32 %v12002, %v12014
    %v12016 = vpop.f32.mrf.mxu0
    %12017 = vdwg.mxu0
    %12018 = vmatpush.bf16.msra.mxu0 %v8043
    %12019 = vmatpush.bf16.msra.mxu0 %v8027
    %12020 = vmatpush.bf16.msra.mxu0 %v8011
    %12021 = vmatpush.bf16.msra.mxu0 %v7995
    %12022 = vmatpush.bf16.msra.mxu0 %v7979
    %12023 = vmatpush.bf16.msra.mxu0 %v7963
    %12024 = vmatpush.bf16.msra.mxu0 %v7947
    %12025 = vmatpush.bf16.msra.mxu0 %v7931
    %12026 = vmatmul.bf16.gmra.mxu0 %v1002
    %v12027 = vpop.f32.mrf.mxu0
    %v12028 = vadd.f32 %v12015, %v12027
    %v12029 = vpop.f32.mrf.mxu0
    %12030 = vdwg.mxu0
    %12031 = vmatpush.bf16.msra.mxu0 %v8171
    %12032 = vmatpush.bf16.msra.mxu0 %v8155
    %12033 = vmatpush.bf16.msra.mxu0 %v8139
    %12034 = vmatpush.bf16.msra.mxu0 %v8123
    %12035 = vmatpush.bf16.msra.mxu0 %v8107
    %12036 = vmatpush.bf16.msra.mxu0 %v8091
    %12037 = vmatpush.bf16.msra.mxu0 %v8075
    %12038 = vmatpush.bf16.msra.mxu0 %v8059
    %12039 = vmatmul.bf16.gmra.mxu0 %v1003
    %v12040 = vpop.f32.mrf.mxu0
    %v12041 = vadd.f32 %v12028, %v12040
    %v12042 = vpop.f32.mrf.mxu0
    %12043 = vdwg.mxu0
    %12044 = vmatpush.bf16.msra.mxu0 %v8299
    %12045 = vmatpush.bf16.msra.mxu0 %v8283
    %12046 = vmatpush.bf16.msra.mxu0 %v8267
    %12047 = vmatpush.bf16.msra.mxu0 %v8251
    %12048 = vmatpush.bf16.msra.mxu0 %v8235
    %12049 = vmatpush.bf16.msra.mxu0 %v8219
    %12050 = vmatpush.bf16.msra.mxu0 %v8203
    %12051 = vmatpush.bf16.msra.mxu0 %v8187
    %12052 = vmatmul.bf16.gmra.mxu0 %v1004
    %v12053 = vpop.f32.mrf.mxu0
    %v12054 = vadd.f32 %v12041, %v12053
    %v12055 = vpop.f32.mrf.mxu0
    %12056 = vdwg.mxu0
    %12057 = vmatpush.bf16.msra.mxu0 %v8427
    %12058 = vmatpush.bf16.msra.mxu0 %v8411
    %12059 = vmatpush.bf16.msra.mxu0 %v8395
    %12060 = vmatpush.bf16.msra.mxu0 %v8379
    %12061 = vmatpush.bf16.msra.mxu0 %v8363
    %12062 = vmatpush.bf16.msra.mxu0 %v8347
    %12063 = vmatpush.bf16.msra.mxu0 %v8331
    %12064 = vmatpush.bf16.msra.mxu0 %v8315
    %12065 = vmatmul.bf16.gmra.mxu0 %v1005
    %v12066 = vpop.f32.mrf.mxu0
    %v12067 = vadd.f32 %v12054, %v12066
    %v12068 = vpop.f32.mrf.mxu0
    %12069 = vdwg.mxu0
    %12070 = vmatpush.bf16.msra.mxu0 %v8555
    %12071 = vmatpush.bf16.msra.mxu0 %v8539
    %12072 = vmatpush.bf16.msra.mxu0 %v8523
    %12073 = vmatpush.bf16.msra.mxu0 %v8507
    %12074 = vmatpush.bf16.msra.mxu0 %v8491
    %12075 = vmatpush.bf16.msra.mxu0 %v8475
    %12076 = vmatpush.bf16.msra.mxu0 %v8459
    %12077 = vmatpush.bf16.msra.mxu0 %v8443
    %12078 = vmatmul.bf16.gmra.mxu0 %v1006
    %v12079 = vpop.f32.mrf.mxu0
    %v12080 = vadd.f32 %v12067, %v12079
    %v12081 = vpop.f32.mrf.mxu0
    %12082 = vdwg.mxu0
    %12083 = vmatpush.bf16.msra.mxu0 %v8683
    %12084 = vmatpush.bf16.msra.mxu0 %v8667
    %12085 = vmatpush.bf16.msra.mxu0 %v8651
    %12086 = vmatpush.bf16.msra.mxu0 %v8635
    %12087 = vmatpush.bf16.msra.mxu0 %v8619
    %12088 = vmatpush.bf16.msra.mxu0 %v8603
    %12089 = vmatpush.bf16.msra.mxu0 %v8587
    %12090 = vmatpush.bf16.msra.mxu0 %v8571
    %12091 = vmatmul.bf16.gmra.mxu0 %v1007
    %v12092 = vpop.f32.mrf.mxu0
    %v12093 = vadd.f32 %v12080, %v12092
    %v12094 = vpop.f32.mrf.mxu0
    %12095 = vdwg.mxu0
    %12096 = vmatpush.bf16.msra.mxu0 %v7276
    %12097 = vmatpush.bf16.msra.mxu0 %v7260
    %12098 = vmatpush.bf16.msra.mxu0 %v7244
    %12099 = vmatpush.bf16.msra.mxu0 %v7228
    %12100 = vmatpush.bf16.msra.mxu0 %v7212
    %12101 = vmatpush.bf16.msra.mxu0 %v7196
    %12102 = vmatpush.bf16.msra.mxu0 %v7180
    %12103 = vmatpush.bf16.msra.mxu0 %v7164
    %12104 = vmatmul.bf16.gmra.mxu0 %v996
    %v12105 = vpop.f32.mrf.mxu0
    %v12106 = vadd.f32 0.0, %v12105
    %v12107 = vpop.f32.mrf.mxu0
    %12108 = vdwg.mxu0
    %12109 = vmatpush.bf16.msra.mxu0 %v7404
    %12110 = vmatpush.bf16.msra.mxu0 %v7388
    %12111 = vmatpush.bf16.msra.mxu0 %v7372
    %12112 = vmatpush.bf16.msra.mxu0 %v7356
    %12113 = vmatpush.bf16.msra.mxu0 %v7340
    %12114 = vmatpush.bf16.msra.mxu0 %v7324
    %12115 = vmatpush.bf16.msra.mxu0 %v7308
    %12116 = vmatpush.bf16.msra.mxu0 %v7292
    %12117 = vmatmul.bf16.gmra.mxu0 %v997
    %v12118 = vpop.f32.mrf.mxu0
    %v12119 = vadd.f32 %v12106, %v12118
    %v12120 = vpop.f32.mrf.mxu0
    %12121 = vdwg.mxu0
    %12122 = vmatpush.bf16.msra.mxu0 %v7532
    %12123 = vmatpush.bf16.msra.mxu0 %v7516
    %12124 = vmatpush.bf16.msra.mxu0 %v7500
    %12125 = vmatpush.bf16.msra.mxu0 %v7484
    %12126 = vmatpush.bf16.msra.mxu0 %v7468
    %12127 = vmatpush.bf16.msra.mxu0 %v7452
    %12128 = vmatpush.bf16.msra.mxu0 %v7436
    %12129 = vmatpush.bf16.msra.mxu0 %v7420
    %12130 = vmatmul.bf16.gmra.mxu0 %v998
    %v12131 = vpop.f32.mrf.mxu0
    %v12132 = vadd.f32 %v12119, %v12131
    %v12133 = vpop.f32.mrf.mxu0
    %12134 = vdwg.mxu0
    %12135 = vmatpush.bf16.msra.mxu0 %v7660
    %12136 = vmatpush.bf16.msra.mxu0 %v7644
    %12137 = vmatpush.bf16.msra.mxu0 %v7628
    %12138 = vmatpush.bf16.msra.mxu0 %v7612
    %12139 = vmatpush.bf16.msra.mxu0 %v7596
    %12140 = vmatpush.bf16.msra.mxu0 %v7580
    %12141 = vmatpush.bf16.msra.mxu0 %v7564
    %12142 = vmatpush.bf16.msra.mxu0 %v7548
    %12143 = vmatmul.bf16.gmra.mxu0 %v999
    %v12144 = vpop.f32.mrf.mxu0
    %v12145 = vadd.f32 %v12132, %v12144
    %v12146 = vpop.f32.mrf.mxu0
    %12147 = vdwg.mxu0
    %12148 = vmatpush.bf16.msra.mxu0 %v7788
    %12149 = vmatpush.bf16.msra.mxu0 %v7772
    %12150 = vmatpush.bf16.msra.mxu0 %v7756
    %12151 = vmatpush.bf16.msra.mxu0 %v7740
    %12152 = vmatpush.bf16.msra.mxu0 %v7724
    %12153 = vmatpush.bf16.msra.mxu0 %v7708
    %12154 = vmatpush.bf16.msra.mxu0 %v7692
    %12155 = vmatpush.bf16.msra.mxu0 %v7676
    %12156 = vmatmul.bf16.gmra.mxu0 %v1000
    %v12157 = vpop.f32.mrf.mxu0
    %v12158 = vadd.f32 %v12145, %v12157
    %v12159 = vpop.f32.mrf.mxu0
    %12160 = vdwg.mxu0
    %12161 = vmatpush.bf16.msra.mxu0 %v7916
    %12162 = vmatpush.bf16.msra.mxu0 %v7900
    %12163 = vmatpush.bf16.msra.mxu0 %v7884
    %12164 = vmatpush.bf16.msra.mxu0 %v7868
    %12165 = vmatpush.bf16.msra.mxu0 %v7852
    %12166 = vmatpush.bf16.msra.mxu0 %v7836
    %12167 = vmatpush.bf16.msra.mxu0 %v7820
    %12168 = vmatpush.bf16.msra.mxu0 %v7804
    %12169 = vmatmul.bf16.gmra.mxu0 %v1001
    %v12170 = vpop.f32.mrf.mxu0
    %v12171 = vadd.f32 %v12158, %v12170
    %v12172 = vpop.f32.mrf.mxu0
    %12173 = vdwg.mxu0
    %12174 = vmatpush.bf16.msra.mxu0 %v8044
    %12175 = vmatpush.bf16.msra.mxu0 %v8028
    %12176 = vmatpush.bf16.msra.mxu0 %v8012
    %12177 = vmatpush.bf16.msra.mxu0 %v7996
    %12178 = vmatpush.bf16.msra.mxu0 %v7980
    %12179 = vmatpush.bf16.msra.mxu0 %v7964
    %12180 = vmatpush.bf16.msra.mxu0 %v7948
    %12181 = vmatpush.bf16.msra.mxu0 %v7932
    %12182 = vmatmul.bf16.gmra.mxu0 %v1002
    %v12183 = vpop.f32.mrf.mxu0
    %v12184 = vadd.f32 %v12171, %v12183
    %v12185 = vpop.f32.mrf.mxu0
    %12186 = vdwg.mxu0
    %12187 = vmatpush.bf16.msra.mxu0 %v8172
    %12188 = vmatpush.bf16.msra.mxu0 %v8156
    %12189 = vmatpush.bf16.msra.mxu0 %v8140
    %12190 = vmatpush.bf16.msra.mxu0 %v8124
    %12191 = vmatpush.bf16.msra.mxu0 %v8108
    %12192 = vmatpush.bf16.msra.mxu0 %v8092
    %12193 = vmatpush.bf16.msra.mxu0 %v8076
    %12194 = vmatpush.bf16.msra.mxu0 %v8060
    %12195 = vmatmul.bf16.gmra.mxu0 %v1003
    %v12196 = vpop.f32.mrf.mxu0
    %v12197 = vadd.f32 %v12184, %v12196
    %v12198 = vpop.f32.mrf.mxu0
    %12199 = vdwg.mxu0
    %12200 = vmatpush.bf16.msra.mxu0 %v8300
    %12201 = vmatpush.bf16.msra.mxu0 %v8284
    %12202 = vmatpush.bf16.msra.mxu0 %v8268
    %12203 = vmatpush.bf16.msra.mxu0 %v8252
    %12204 = vmatpush.bf16.msra.mxu0 %v8236
    %12205 = vmatpush.bf16.msra.mxu0 %v8220
    %12206 = vmatpush.bf16.msra.mxu0 %v8204
    %12207 = vmatpush.bf16.msra.mxu0 %v8188
    %12208 = vmatmul.bf16.gmra.mxu0 %v1004
    %v12209 = vpop.f32.mrf.mxu0
    %v12210 = vadd.f32 %v12197, %v12209
    %v12211 = vpop.f32.mrf.mxu0
    %12212 = vdwg.mxu0
    %12213 = vmatpush.bf16.msra.mxu0 %v8428
    %12214 = vmatpush.bf16.msra.mxu0 %v8412
    %12215 = vmatpush.bf16.msra.mxu0 %v8396
    %12216 = vmatpush.bf16.msra.mxu0 %v8380
    %12217 = vmatpush.bf16.msra.mxu0 %v8364
    %12218 = vmatpush.bf16.msra.mxu0 %v8348
    %12219 = vmatpush.bf16.msra.mxu0 %v8332
    %12220 = vmatpush.bf16.msra.mxu0 %v8316
    %12221 = vmatmul.bf16.gmra.mxu0 %v1005
    %v12222 = vpop.f32.mrf.mxu0
    %v12223 = vadd.f32 %v12210, %v12222
    %v12224 = vpop.f32.mrf.mxu0
    %12225 = vdwg.mxu0
    %12226 = vmatpush.bf16.msra.mxu0 %v8556
    %12227 = vmatpush.bf16.msra.mxu0 %v8540
    %12228 = vmatpush.bf16.msra.mxu0 %v8524
    %12229 = vmatpush.bf16.msra.mxu0 %v8508
    %12230 = vmatpush.bf16.msra.mxu0 %v8492
    %12231 = vmatpush.bf16.msra.mxu0 %v8476
    %12232 = vmatpush.bf16.msra.mxu0 %v8460
    %12233 = vmatpush.bf16.msra.mxu0 %v8444
    %12234 = vmatmul.bf16.gmra.mxu0 %v1006
    %v12235 = vpop.f32.mrf.mxu0
    %v12236 = vadd.f32 %v12223, %v12235
    %v12237 = vpop.f32.mrf.mxu0
    %12238 = vdwg.mxu0
    %12239 = vmatpush.bf16.msra.mxu0 %v8684
    %12240 = vmatpush.bf16.msra.mxu0 %v8668
    %12241 = vmatpush.bf16.msra.mxu0 %v8652
    %12242 = vmatpush.bf16.msra.mxu0 %v8636
    %12243 = vmatpush.bf16.msra.mxu0 %v8620
    %12244 = vmatpush.bf16.msra.mxu0 %v8604
    %12245 = vmatpush.bf16.msra.mxu0 %v8588
    %12246 = vmatpush.bf16.msra.mxu0 %v8572
    %12247 = vmatmul.bf16.gmra.mxu0 %v1007
    %v12248 = vpop.f32.mrf.mxu0
    %v12249 = vadd.f32 %v12236, %v12248
    %v12250 = vpop.f32.mrf.mxu0
    %12251 = vdwg.mxu0
    %12252 = vmatpush.bf16.msra.mxu0 %v7277
    %12253 = vmatpush.bf16.msra.mxu0 %v7261
    %12254 = vmatpush.bf16.msra.mxu0 %v7245
    %12255 = vmatpush.bf16.msra.mxu0 %v7229
    %12256 = vmatpush.bf16.msra.mxu0 %v7213
    %12257 = vmatpush.bf16.msra.mxu0 %v7197
    %12258 = vmatpush.bf16.msra.mxu0 %v7181
    %12259 = vmatpush.bf16.msra.mxu0 %v7165
    %12260 = vmatmul.bf16.gmra.mxu0 %v996
    %v12261 = vpop.f32.mrf.mxu0
    %v12262 = vadd.f32 0.0, %v12261
    %v12263 = vpop.f32.mrf.mxu0
    %12264 = vdwg.mxu0
    %12265 = vmatpush.bf16.msra.mxu0 %v7405
    %12266 = vmatpush.bf16.msra.mxu0 %v7389
    %12267 = vmatpush.bf16.msra.mxu0 %v7373
    %12268 = vmatpush.bf16.msra.mxu0 %v7357
    %12269 = vmatpush.bf16.msra.mxu0 %v7341
    %12270 = vmatpush.bf16.msra.mxu0 %v7325
    %12271 = vmatpush.bf16.msra.mxu0 %v7309
    %12272 = vmatpush.bf16.msra.mxu0 %v7293
    %12273 = vmatmul.bf16.gmra.mxu0 %v997
    %v12274 = vpop.f32.mrf.mxu0
    %v12275 = vadd.f32 %v12262, %v12274
    %v12276 = vpop.f32.mrf.mxu0
    %12277 = vdwg.mxu0
    %12278 = vmatpush.bf16.msra.mxu0 %v7533
    %12279 = vmatpush.bf16.msra.mxu0 %v7517
    %12280 = vmatpush.bf16.msra.mxu0 %v7501
    %12281 = vmatpush.bf16.msra.mxu0 %v7485
    %12282 = vmatpush.bf16.msra.mxu0 %v7469
    %12283 = vmatpush.bf16.msra.mxu0 %v7453
    %12284 = vmatpush.bf16.msra.mxu0 %v7437
    %12285 = vmatpush.bf16.msra.mxu0 %v7421
    %12286 = vmatmul.bf16.gmra.mxu0 %v998
    %v12287 = vpop.f32.mrf.mxu0
    %v12288 = vadd.f32 %v12275, %v12287
    %v12289 = vpop.f32.mrf.mxu0
    %12290 = vdwg.mxu0
    %12291 = vmatpush.bf16.msra.mxu0 %v7661
    %12292 = vmatpush.bf16.msra.mxu0 %v7645
    %12293 = vmatpush.bf16.msra.mxu0 %v7629
    %12294 = vmatpush.bf16.msra.mxu0 %v7613
    %12295 = vmatpush.bf16.msra.mxu0 %v7597
    %12296 = vmatpush.bf16.msra.mxu0 %v7581
    %12297 = vmatpush.bf16.msra.mxu0 %v7565
    %12298 = vmatpush.bf16.msra.mxu0 %v7549
    %12299 = vmatmul.bf16.gmra.mxu0 %v999
    %v12300 = vpop.f32.mrf.mxu0
    %v12301 = vadd.f32 %v12288, %v12300
    %v12302 = vpop.f32.mrf.mxu0
    %12303 = vdwg.mxu0
    %12304 = vmatpush.bf16.msra.mxu0 %v7789
    %12305 = vmatpush.bf16.msra.mxu0 %v7773
    %12306 = vmatpush.bf16.msra.mxu0 %v7757
    %12307 = vmatpush.bf16.msra.mxu0 %v7741
    %12308 = vmatpush.bf16.msra.mxu0 %v7725
    %12309 = vmatpush.bf16.msra.mxu0 %v7709
    %12310 = vmatpush.bf16.msra.mxu0 %v7693
    %12311 = vmatpush.bf16.msra.mxu0 %v7677
    %12312 = vmatmul.bf16.gmra.mxu0 %v1000
    %v12313 = vpop.f32.mrf.mxu0
    %v12314 = vadd.f32 %v12301, %v12313
    %v12315 = vpop.f32.mrf.mxu0
    %12316 = vdwg.mxu0
    %12317 = vmatpush.bf16.msra.mxu0 %v7917
    %12318 = vmatpush.bf16.msra.mxu0 %v7901
    %12319 = vmatpush.bf16.msra.mxu0 %v7885
    %12320 = vmatpush.bf16.msra.mxu0 %v7869
    %12321 = vmatpush.bf16.msra.mxu0 %v7853
    %12322 = vmatpush.bf16.msra.mxu0 %v7837
    %12323 = vmatpush.bf16.msra.mxu0 %v7821
    %12324 = vmatpush.bf16.msra.mxu0 %v7805
    %12325 = vmatmul.bf16.gmra.mxu0 %v1001
    %v12326 = vpop.f32.mrf.mxu0
    %v12327 = vadd.f32 %v12314, %v12326
    %v12328 = vpop.f32.mrf.mxu0
    %12329 = vdwg.mxu0
    %12330 = vmatpush.bf16.msra.mxu0 %v8045
    %12331 = vmatpush.bf16.msra.mxu0 %v8029
    %12332 = vmatpush.bf16.msra.mxu0 %v8013
    %12333 = vmatpush.bf16.msra.mxu0 %v7997
    %12334 = vmatpush.bf16.msra.mxu0 %v7981
    %12335 = vmatpush.bf16.msra.mxu0 %v7965
    %12336 = vmatpush.bf16.msra.mxu0 %v7949
    %12337 = vmatpush.bf16.msra.mxu0 %v7933
    %12338 = vmatmul.bf16.gmra.mxu0 %v1002
    %v12339 = vpop.f32.mrf.mxu0
    %v12340 = vadd.f32 %v12327, %v12339
    %v12341 = vpop.f32.mrf.mxu0
    %12342 = vdwg.mxu0
    %12343 = vmatpush.bf16.msra.mxu0 %v8173
    %12344 = vmatpush.bf16.msra.mxu0 %v8157
    %12345 = vmatpush.bf16.msra.mxu0 %v8141
    %12346 = vmatpush.bf16.msra.mxu0 %v8125
    %12347 = vmatpush.bf16.msra.mxu0 %v8109
    %12348 = vmatpush.bf16.msra.mxu0 %v8093
    %12349 = vmatpush.bf16.msra.mxu0 %v8077
    %12350 = vmatpush.bf16.msra.mxu0 %v8061
    %12351 = vmatmul.bf16.gmra.mxu0 %v1003
    %v12352 = vpop.f32.mrf.mxu0
    %v12353 = vadd.f32 %v12340, %v12352
    %v12354 = vpop.f32.mrf.mxu0
    %12355 = vdwg.mxu0
    %12356 = vmatpush.bf16.msra.mxu0 %v8301
    %12357 = vmatpush.bf16.msra.mxu0 %v8285
    %12358 = vmatpush.bf16.msra.mxu0 %v8269
    %12359 = vmatpush.bf16.msra.mxu0 %v8253
    %12360 = vmatpush.bf16.msra.mxu0 %v8237
    %12361 = vmatpush.bf16.msra.mxu0 %v8221
    %12362 = vmatpush.bf16.msra.mxu0 %v8205
    %12363 = vmatpush.bf16.msra.mxu0 %v8189
    %12364 = vmatmul.bf16.gmra.mxu0 %v1004
    %v12365 = vpop.f32.mrf.mxu0
    %v12366 = vadd.f32 %v12353, %v12365
    %v12367 = vpop.f32.mrf.mxu0
    %12368 = vdwg.mxu0
    %12369 = vmatpush.bf16.msra.mxu0 %v8429
    %12370 = vmatpush.bf16.msra.mxu0 %v8413
    %12371 = vmatpush.bf16.msra.mxu0 %v8397
    %12372 = vmatpush.bf16.msra.mxu0 %v8381
    %12373 = vmatpush.bf16.msra.mxu0 %v8365
    %12374 = vmatpush.bf16.msra.mxu0 %v8349
    %12375 = vmatpush.bf16.msra.mxu0 %v8333
    %12376 = vmatpush.bf16.msra.mxu0 %v8317
    %12377 = vmatmul.bf16.gmra.mxu0 %v1005
    %v12378 = vpop.f32.mrf.mxu0
    %v12379 = vadd.f32 %v12366, %v12378
    %v12380 = vpop.f32.mrf.mxu0
    %12381 = vdwg.mxu0
    %12382 = vmatpush.bf16.msra.mxu0 %v8557
    %12383 = vmatpush.bf16.msra.mxu0 %v8541
    %12384 = vmatpush.bf16.msra.mxu0 %v8525
    %12385 = vmatpush.bf16.msra.mxu0 %v8509
    %12386 = vmatpush.bf16.msra.mxu0 %v8493
    %12387 = vmatpush.bf16.msra.mxu0 %v8477
    %12388 = vmatpush.bf16.msra.mxu0 %v8461
    %12389 = vmatpush.bf16.msra.mxu0 %v8445
    %12390 = vmatmul.bf16.gmra.mxu0 %v1006
    %v12391 = vpop.f32.mrf.mxu0
    %v12392 = vadd.f32 %v12379, %v12391
    %v12393 = vpop.f32.mrf.mxu0
    %12394 = vdwg.mxu0
    %12395 = vmatpush.bf16.msra.mxu0 %v8685
    %12396 = vmatpush.bf16.msra.mxu0 %v8669
    %12397 = vmatpush.bf16.msra.mxu0 %v8653
    %12398 = vmatpush.bf16.msra.mxu0 %v8637
    %12399 = vmatpush.bf16.msra.mxu0 %v8621
    %12400 = vmatpush.bf16.msra.mxu0 %v8605
    %12401 = vmatpush.bf16.msra.mxu0 %v8589
    %12402 = vmatpush.bf16.msra.mxu0 %v8573
    %12403 = vmatmul.bf16.gmra.mxu0 %v1007
    %v12404 = vpop.f32.mrf.mxu0
    %v12405 = vadd.f32 %v12392, %v12404
    %v12406 = vpop.f32.mrf.mxu0
    %12407 = vdwg.mxu0
    %12408 = vmatpush.bf16.msra.mxu0 %v7278
    %12409 = vmatpush.bf16.msra.mxu0 %v7262
    %12410 = vmatpush.bf16.msra.mxu0 %v7246
    %12411 = vmatpush.bf16.msra.mxu0 %v7230
    %12412 = vmatpush.bf16.msra.mxu0 %v7214
    %12413 = vmatpush.bf16.msra.mxu0 %v7198
    %12414 = vmatpush.bf16.msra.mxu0 %v7182
    %12415 = vmatpush.bf16.msra.mxu0 %v7166
    %12416 = vmatmul.bf16.gmra.mxu0 %v996
    %v12417 = vpop.f32.mrf.mxu0
    %v12418 = vadd.f32 0.0, %v12417
    %v12419 = vpop.f32.mrf.mxu0
    %12420 = vdwg.mxu0
    %12421 = vmatpush.bf16.msra.mxu0 %v7406
    %12422 = vmatpush.bf16.msra.mxu0 %v7390
    %12423 = vmatpush.bf16.msra.mxu0 %v7374
    %12424 = vmatpush.bf16.msra.mxu0 %v7358
    %12425 = vmatpush.bf16.msra.mxu0 %v7342
    %12426 = vmatpush.bf16.msra.mxu0 %v7326
    %12427 = vmatpush.bf16.msra.mxu0 %v7310
    %12428 = vmatpush.bf16.msra.mxu0 %v7294
    %12429 = vmatmul.bf16.gmra.mxu0 %v997
    %v12430 = vpop.f32.mrf.mxu0
    %v12431 = vadd.f32 %v12418, %v12430
    %v12432 = vpop.f32.mrf.mxu0
    %12433 = vdwg.mxu0
    %12434 = vmatpush.bf16.msra.mxu0 %v7534
    %12435 = vmatpush.bf16.msra.mxu0 %v7518
    %12436 = vmatpush.bf16.msra.mxu0 %v7502
    %12437 = vmatpush.bf16.msra.mxu0 %v7486
    %12438 = vmatpush.bf16.msra.mxu0 %v7470
    %12439 = vmatpush.bf16.msra.mxu0 %v7454
    %12440 = vmatpush.bf16.msra.mxu0 %v7438
    %12441 = vmatpush.bf16.msra.mxu0 %v7422
    %12442 = vmatmul.bf16.gmra.mxu0 %v998
    %v12443 = vpop.f32.mrf.mxu0
    %v12444 = vadd.f32 %v12431, %v12443
    %v12445 = vpop.f32.mrf.mxu0
    %12446 = vdwg.mxu0
    %12447 = vmatpush.bf16.msra.mxu0 %v7662
    %12448 = vmatpush.bf16.msra.mxu0 %v7646
    %12449 = vmatpush.bf16.msra.mxu0 %v7630
    %12450 = vmatpush.bf16.msra.mxu0 %v7614
    %12451 = vmatpush.bf16.msra.mxu0 %v7598
    %12452 = vmatpush.bf16.msra.mxu0 %v7582
    %12453 = vmatpush.bf16.msra.mxu0 %v7566
    %12454 = vmatpush.bf16.msra.mxu0 %v7550
    %12455 = vmatmul.bf16.gmra.mxu0 %v999
    %v12456 = vpop.f32.mrf.mxu0
    %v12457 = vadd.f32 %v12444, %v12456
    %v12458 = vpop.f32.mrf.mxu0
    %12459 = vdwg.mxu0
    %12460 = vmatpush.bf16.msra.mxu0 %v7790
    %12461 = vmatpush.bf16.msra.mxu0 %v7774
    %12462 = vmatpush.bf16.msra.mxu0 %v7758
    %12463 = vmatpush.bf16.msra.mxu0 %v7742
    %12464 = vmatpush.bf16.msra.mxu0 %v7726
    %12465 = vmatpush.bf16.msra.mxu0 %v7710
    %12466 = vmatpush.bf16.msra.mxu0 %v7694
    %12467 = vmatpush.bf16.msra.mxu0 %v7678
    %12468 = vmatmul.bf16.gmra.mxu0 %v1000
    %v12469 = vpop.f32.mrf.mxu0
    %v12470 = vadd.f32 %v12457, %v12469
    %v12471 = vpop.f32.mrf.mxu0
    %12472 = vdwg.mxu0
    %12473 = vmatpush.bf16.msra.mxu0 %v7918
    %12474 = vmatpush.bf16.msra.mxu0 %v7902
    %12475 = vmatpush.bf16.msra.mxu0 %v7886
    %12476 = vmatpush.bf16.msra.mxu0 %v7870
    %12477 = vmatpush.bf16.msra.mxu0 %v7854
    %12478 = vmatpush.bf16.msra.mxu0 %v7838
    %12479 = vmatpush.bf16.msra.mxu0 %v7822
    %12480 = vmatpush.bf16.msra.mxu0 %v7806
    %12481 = vmatmul.bf16.gmra.mxu0 %v1001
    %v12482 = vpop.f32.mrf.mxu0
    %v12483 = vadd.f32 %v12470, %v12482
    %v12484 = vpop.f32.mrf.mxu0
    %12485 = vdwg.mxu0
    %12486 = vmatpush.bf16.msra.mxu0 %v8046
    %12487 = vmatpush.bf16.msra.mxu0 %v8030
    %12488 = vmatpush.bf16.msra.mxu0 %v8014
    %12489 = vmatpush.bf16.msra.mxu0 %v7998
    %12490 = vmatpush.bf16.msra.mxu0 %v7982
    %12491 = vmatpush.bf16.msra.mxu0 %v7966
    %12492 = vmatpush.bf16.msra.mxu0 %v7950
    %12493 = vmatpush.bf16.msra.mxu0 %v7934
    %12494 = vmatmul.bf16.gmra.mxu0 %v1002
    %v12495 = vpop.f32.mrf.mxu0
    %v12496 = vadd.f32 %v12483, %v12495
    %v12497 = vpop.f32.mrf.mxu0
    %12498 = vdwg.mxu0
    %12499 = vmatpush.bf16.msra.mxu0 %v8174
    %12500 = vmatpush.bf16.msra.mxu0 %v8158
    %12501 = vmatpush.bf16.msra.mxu0 %v8142
    %12502 = vmatpush.bf16.msra.mxu0 %v8126
    %12503 = vmatpush.bf16.msra.mxu0 %v8110
    %12504 = vmatpush.bf16.msra.mxu0 %v8094
    %12505 = vmatpush.bf16.msra.mxu0 %v8078
    %12506 = vmatpush.bf16.msra.mxu0 %v8062
    %12507 = vmatmul.bf16.gmra.mxu0 %v1003
    %v12508 = vpop.f32.mrf.mxu0
    %v12509 = vadd.f32 %v12496, %v12508
    %v12510 = vpop.f32.mrf.mxu0
    %12511 = vdwg.mxu0
    %12512 = vmatpush.bf16.msra.mxu0 %v8302
    %12513 = vmatpush.bf16.msra.mxu0 %v8286
    %12514 = vmatpush.bf16.msra.mxu0 %v8270
    %12515 = vmatpush.bf16.msra.mxu0 %v8254
    %12516 = vmatpush.bf16.msra.mxu0 %v8238
    %12517 = vmatpush.bf16.msra.mxu0 %v8222
    %12518 = vmatpush.bf16.msra.mxu0 %v8206
    %12519 = vmatpush.bf16.msra.mxu0 %v8190
    %12520 = vmatmul.bf16.gmra.mxu0 %v1004
    %v12521 = vpop.f32.mrf.mxu0
    %v12522 = vadd.f32 %v12509, %v12521
    %v12523 = vpop.f32.mrf.mxu0
    %12524 = vdwg.mxu0
    %12525 = vmatpush.bf16.msra.mxu0 %v8430
    %12526 = vmatpush.bf16.msra.mxu0 %v8414
    %12527 = vmatpush.bf16.msra.mxu0 %v8398
    %12528 = vmatpush.bf16.msra.mxu0 %v8382
    %12529 = vmatpush.bf16.msra.mxu0 %v8366
    %12530 = vmatpush.bf16.msra.mxu0 %v8350
    %12531 = vmatpush.bf16.msra.mxu0 %v8334
    %12532 = vmatpush.bf16.msra.mxu0 %v8318
    %12533 = vmatmul.bf16.gmra.mxu0 %v1005
    %v12534 = vpop.f32.mrf.mxu0
    %v12535 = vadd.f32 %v12522, %v12534
    %v12536 = vpop.f32.mrf.mxu0
    %12537 = vdwg.mxu0
    %12538 = vmatpush.bf16.msra.mxu0 %v8558
    %12539 = vmatpush.bf16.msra.mxu0 %v8542
    %12540 = vmatpush.bf16.msra.mxu0 %v8526
    %12541 = vmatpush.bf16.msra.mxu0 %v8510
    %12542 = vmatpush.bf16.msra.mxu0 %v8494
    %12543 = vmatpush.bf16.msra.mxu0 %v8478
    %12544 = vmatpush.bf16.msra.mxu0 %v8462
    %12545 = vmatpush.bf16.msra.mxu0 %v8446
    %12546 = vmatmul.bf16.gmra.mxu0 %v1006
    %v12547 = vpop.f32.mrf.mxu0
    %v12548 = vadd.f32 %v12535, %v12547
    %v12549 = vpop.f32.mrf.mxu0
    %12550 = vdwg.mxu0
    %12551 = vmatpush.bf16.msra.mxu0 %v8686
    %12552 = vmatpush.bf16.msra.mxu0 %v8670
    %12553 = vmatpush.bf16.msra.mxu0 %v8654
    %12554 = vmatpush.bf16.msra.mxu0 %v8638
    %12555 = vmatpush.bf16.msra.mxu0 %v8622
    %12556 = vmatpush.bf16.msra.mxu0 %v8606
    %12557 = vmatpush.bf16.msra.mxu0 %v8590
    %12558 = vmatpush.bf16.msra.mxu0 %v8574
    %12559 = vmatmul.bf16.gmra.mxu0 %v1007
    %v12560 = vpop.f32.mrf.mxu0
    %v12561 = vadd.f32 %v12548, %v12560
    %v12562 = vpop.f32.mrf.mxu0
    %12563 = vdwg.mxu0
    %12564 = vmatpush.bf16.msra.mxu0 %v7279
    %12565 = vmatpush.bf16.msra.mxu0 %v7263
    %12566 = vmatpush.bf16.msra.mxu0 %v7247
    %12567 = vmatpush.bf16.msra.mxu0 %v7231
    %12568 = vmatpush.bf16.msra.mxu0 %v7215
    %12569 = vmatpush.bf16.msra.mxu0 %v7199
    %12570 = vmatpush.bf16.msra.mxu0 %v7183
    %12571 = vmatpush.bf16.msra.mxu0 %v7167
    %12572 = vmatmul.bf16.gmra.mxu0 %v996
    %v12573 = vpop.f32.mrf.mxu0
    %v12574 = vadd.f32 0.0, %v12573
    %v12575 = vpop.f32.mrf.mxu0
    %12576 = vdwg.mxu0
    %12577 = vmatpush.bf16.msra.mxu0 %v7407
    %12578 = vmatpush.bf16.msra.mxu0 %v7391
    %12579 = vmatpush.bf16.msra.mxu0 %v7375
    %12580 = vmatpush.bf16.msra.mxu0 %v7359
    %12581 = vmatpush.bf16.msra.mxu0 %v7343
    %12582 = vmatpush.bf16.msra.mxu0 %v7327
    %12583 = vmatpush.bf16.msra.mxu0 %v7311
    %12584 = vmatpush.bf16.msra.mxu0 %v7295
    %12585 = vmatmul.bf16.gmra.mxu0 %v997
    %v12586 = vpop.f32.mrf.mxu0
    %v12587 = vadd.f32 %v12574, %v12586
    %v12588 = vpop.f32.mrf.mxu0
    %12589 = vdwg.mxu0
    %12590 = vmatpush.bf16.msra.mxu0 %v7535
    %12591 = vmatpush.bf16.msra.mxu0 %v7519
    %12592 = vmatpush.bf16.msra.mxu0 %v7503
    %12593 = vmatpush.bf16.msra.mxu0 %v7487
    %12594 = vmatpush.bf16.msra.mxu0 %v7471
    %12595 = vmatpush.bf16.msra.mxu0 %v7455
    %12596 = vmatpush.bf16.msra.mxu0 %v7439
    %12597 = vmatpush.bf16.msra.mxu0 %v7423
    %12598 = vmatmul.bf16.gmra.mxu0 %v998
    %v12599 = vpop.f32.mrf.mxu0
    %v12600 = vadd.f32 %v12587, %v12599
    %v12601 = vpop.f32.mrf.mxu0
    %12602 = vdwg.mxu0
    %12603 = vmatpush.bf16.msra.mxu0 %v7663
    %12604 = vmatpush.bf16.msra.mxu0 %v7647
    %12605 = vmatpush.bf16.msra.mxu0 %v7631
    %12606 = vmatpush.bf16.msra.mxu0 %v7615
    %12607 = vmatpush.bf16.msra.mxu0 %v7599
    %12608 = vmatpush.bf16.msra.mxu0 %v7583
    %12609 = vmatpush.bf16.msra.mxu0 %v7567
    %12610 = vmatpush.bf16.msra.mxu0 %v7551
    %12611 = vmatmul.bf16.gmra.mxu0 %v999
    %v12612 = vpop.f32.mrf.mxu0
    %v12613 = vadd.f32 %v12600, %v12612
    %v12614 = vpop.f32.mrf.mxu0
    %12615 = vdwg.mxu0
    %12616 = vmatpush.bf16.msra.mxu0 %v7791
    %12617 = vmatpush.bf16.msra.mxu0 %v7775
    %12618 = vmatpush.bf16.msra.mxu0 %v7759
    %12619 = vmatpush.bf16.msra.mxu0 %v7743
    %12620 = vmatpush.bf16.msra.mxu0 %v7727
    %12621 = vmatpush.bf16.msra.mxu0 %v7711
    %12622 = vmatpush.bf16.msra.mxu0 %v7695
    %12623 = vmatpush.bf16.msra.mxu0 %v7679
    %12624 = vmatmul.bf16.gmra.mxu0 %v1000
    %v12625 = vpop.f32.mrf.mxu0
    %v12626 = vadd.f32 %v12613, %v12625
    %v12627 = vpop.f32.mrf.mxu0
    %12628 = vdwg.mxu0
    %12629 = vmatpush.bf16.msra.mxu0 %v7919
    %12630 = vmatpush.bf16.msra.mxu0 %v7903
    %12631 = vmatpush.bf16.msra.mxu0 %v7887
    %12632 = vmatpush.bf16.msra.mxu0 %v7871
    %12633 = vmatpush.bf16.msra.mxu0 %v7855
    %12634 = vmatpush.bf16.msra.mxu0 %v7839
    %12635 = vmatpush.bf16.msra.mxu0 %v7823
    %12636 = vmatpush.bf16.msra.mxu0 %v7807
    %12637 = vmatmul.bf16.gmra.mxu0 %v1001
    %v12638 = vpop.f32.mrf.mxu0
    %v12639 = vadd.f32 %v12626, %v12638
    %v12640 = vpop.f32.mrf.mxu0
    %12641 = vdwg.mxu0
    %12642 = vmatpush.bf16.msra.mxu0 %v8047
    %12643 = vmatpush.bf16.msra.mxu0 %v8031
    %12644 = vmatpush.bf16.msra.mxu0 %v8015
    %12645 = vmatpush.bf16.msra.mxu0 %v7999
    %12646 = vmatpush.bf16.msra.mxu0 %v7983
    %12647 = vmatpush.bf16.msra.mxu0 %v7967
    %12648 = vmatpush.bf16.msra.mxu0 %v7951
    %12649 = vmatpush.bf16.msra.mxu0 %v7935
    %12650 = vmatmul.bf16.gmra.mxu0 %v1002
    %v12651 = vpop.f32.mrf.mxu0
    %v12652 = vadd.f32 %v12639, %v12651
    %v12653 = vpop.f32.mrf.mxu0
    %12654 = vdwg.mxu0
    %12655 = vmatpush.bf16.msra.mxu0 %v8175
    %12656 = vmatpush.bf16.msra.mxu0 %v8159
    %12657 = vmatpush.bf16.msra.mxu0 %v8143
    %12658 = vmatpush.bf16.msra.mxu0 %v8127
    %12659 = vmatpush.bf16.msra.mxu0 %v8111
    %12660 = vmatpush.bf16.msra.mxu0 %v8095
    %12661 = vmatpush.bf16.msra.mxu0 %v8079
    %12662 = vmatpush.bf16.msra.mxu0 %v8063
    %12663 = vmatmul.bf16.gmra.mxu0 %v1003
    %v12664 = vpop.f32.mrf.mxu0
    %v12665 = vadd.f32 %v12652, %v12664
    %v12666 = vpop.f32.mrf.mxu0
    %12667 = vdwg.mxu0
    %12668 = vmatpush.bf16.msra.mxu0 %v8303
    %12669 = vmatpush.bf16.msra.mxu0 %v8287
    %12670 = vmatpush.bf16.msra.mxu0 %v8271
    %12671 = vmatpush.bf16.msra.mxu0 %v8255
    %12672 = vmatpush.bf16.msra.mxu0 %v8239
    %12673 = vmatpush.bf16.msra.mxu0 %v8223
    %12674 = vmatpush.bf16.msra.mxu0 %v8207
    %12675 = vmatpush.bf16.msra.mxu0 %v8191
    %12676 = vmatmul.bf16.gmra.mxu0 %v1004
    %v12677 = vpop.f32.mrf.mxu0
    %v12678 = vadd.f32 %v12665, %v12677
    %v12679 = vpop.f32.mrf.mxu0
    %12680 = vdwg.mxu0
    %12681 = vmatpush.bf16.msra.mxu0 %v8431
    %12682 = vmatpush.bf16.msra.mxu0 %v8415
    %12683 = vmatpush.bf16.msra.mxu0 %v8399
    %12684 = vmatpush.bf16.msra.mxu0 %v8383
    %12685 = vmatpush.bf16.msra.mxu0 %v8367
    %12686 = vmatpush.bf16.msra.mxu0 %v8351
    %12687 = vmatpush.bf16.msra.mxu0 %v8335
    %12688 = vmatpush.bf16.msra.mxu0 %v8319
    %12689 = vmatmul.bf16.gmra.mxu0 %v1005
    %v12690 = vpop.f32.mrf.mxu0
    %v12691 = vadd.f32 %v12678, %v12690
    %v12692 = vpop.f32.mrf.mxu0
    %12693 = vdwg.mxu0
    %12694 = vmatpush.bf16.msra.mxu0 %v8559
    %12695 = vmatpush.bf16.msra.mxu0 %v8543
    %12696 = vmatpush.bf16.msra.mxu0 %v8527
    %12697 = vmatpush.bf16.msra.mxu0 %v8511
    %12698 = vmatpush.bf16.msra.mxu0 %v8495
    %12699 = vmatpush.bf16.msra.mxu0 %v8479
    %12700 = vmatpush.bf16.msra.mxu0 %v8463
    %12701 = vmatpush.bf16.msra.mxu0 %v8447
    %12702 = vmatmul.bf16.gmra.mxu0 %v1006
    %v12703 = vpop.f32.mrf.mxu0
    %v12704 = vadd.f32 %v12691, %v12703
    %v12705 = vpop.f32.mrf.mxu0
    %12706 = vdwg.mxu0
    %12707 = vmatpush.bf16.msra.mxu0 %v8687
    %12708 = vmatpush.bf16.msra.mxu0 %v8671
    %12709 = vmatpush.bf16.msra.mxu0 %v8655
    %12710 = vmatpush.bf16.msra.mxu0 %v8639
    %12711 = vmatpush.bf16.msra.mxu0 %v8623
    %12712 = vmatpush.bf16.msra.mxu0 %v8607
    %12713 = vmatpush.bf16.msra.mxu0 %v8591
    %12714 = vmatpush.bf16.msra.mxu0 %v8575
    %12715 = vmatmul.bf16.gmra.mxu0 %v1007
    %v12716 = vpop.f32.mrf.mxu0
    %v12717 = vadd.f32 %v12704, %v12716
    %v12718 = vpop.f32.mrf.mxu0
    %12719 = vdwg.mxu0
    %v12720 = vmax.f32 %v10377, %v11001
    %v12721 = vmax.f32 %v10533, %v11157
    %v12722 = vmax.f32 %v10689, %v11313
    %v12723 = vmax.f32 %v10845, %v11469
    %v12724 = vmax.f32 %v11625, %v12249
    %v12725 = vmax.f32 %v11781, %v12405
    %v12726 = vmax.f32 %v11937, %v12561
    %v12727 = vmax.f32 %v12093, %v12717
    %v12728 = vmax.f32 %v12720, %v12724
    %v12729 = vmax.f32 %v12721, %v12725
    %v12730 = vmax.f32 %v12722, %v12726
    %v12731 = vmax.f32 %v12723, %v12727
    %v12732 = vld [vmem:[#allocation8] sm:$0xf]
    %v12734 = vperm.slane %v12732, 0
    %v12735 = vperm.slane %v12732, 1
    %v12736 = vperm.slane %v12732, 2
    %v12737 = vperm.slane %v12732, 3
    %v12742 = vadd.f32 %v12728, %v12734
    %v12743 = vadd.f32 %v12729, %v12735
    %v12744 = vadd.f32 %v12730, %v12736
    %v12745 = vadd.f32 %v12731, %v12737
    %v12746 = vmax.f32 %v12742, 0.0
    %v12747 = vmax.f32 %v12743, 0.0
    %v12748 = vmax.f32 %v12744, 0.0
    %v12749 = vmax.f32 %v12745, 0.0
    %v12750 = vpack.c.bf16 %v12746, %v12746
    %v12751 = vpack.c.bf16 %v12747, %v12747
    %v12752 = vpack.c.bf16 %v12748, %v12748
    %v12753 = vpack.c.bf16 %v12749, %v12749
    %v12754 = vld [vmem:[#allocation9] sm:$0xf]
    %v12755 = vld [vmem:[#allocation9 + $0x4] sm:$0xf]
    %v12756 = vld [vmem:[#allocation9 + $0x8] sm:$0xf]
    %v12757 = vld [vmem:[#allocation9 + $0xc] sm:$0xf]
    %v12758 = vld [vmem:[#allocation9 + $0x10] sm:$0xf]
    %v12759 = vld [vmem:[#allocation9 + $0x14] sm:$0xf]
    %v12760 = vld [vmem:[#allocation9 + $0x18] sm:$0xf]
    %v12761 = vld [vmem:[#allocation9 + $0x1c] sm:$0xf]
    %v12762 = vld [vmem:[#allocation9 + $0x20] sm:$0xf]
    %v12763 = vld [vmem:[#allocation9 + $0x24] sm:$0xf]
    %v12764 = vld [vmem:[#allocation9 + $0x28] sm:$0xf]
    %v12765 = vld [vmem:[#allocation9 + $0x2c] sm:$0xf]
    %v12766 = vld [vmem:[#allocation9 + $0x30] sm:$0xf]
    %v12767 = vld [vmem:[#allocation9 + $0x34] sm:$0xf]
    %v12768 = vld [vmem:[#allocation9 + $0x38] sm:$0xf]
    %v12769 = vld [vmem:[#allocation9 + $0x3c] sm:$0xf]
    %v12770 = vld [vmem:[#allocation9 + $0x40] sm:$0xf]
    %v12771 = vld [vmem:[#allocation9 + $0x44] sm:$0xf]
    %v12772 = vld [vmem:[#allocation9 + $0x48] sm:$0xf]
    %v12773 = vld [vmem:[#allocation9 + $0x4c] sm:$0xf]
    %v12774 = vld [vmem:[#allocation9 + $0x50] sm:$0xf]
    %v12775 = vld [vmem:[#allocation9 + $0x54] sm:$0xf]
    %v12776 = vld [vmem:[#allocation9 + $0x58] sm:$0xf]
    %v12777 = vld [vmem:[#allocation9 + $0x5c] sm:$0xf]
    %v12778 = vld [vmem:[#allocation9 + $0x60] sm:$0xf]
    %v12779 = vld [vmem:[#allocation9 + $0x64] sm:$0xf]
    %v12780 = vld [vmem:[#allocation9 + $0x68] sm:$0xf]
    %v12781 = vld [vmem:[#allocation9 + $0x6c] sm:$0xf]
    %v12782 = vld [vmem:[#allocation9 + $0x70] sm:$0xf]
    %v12783 = vld [vmem:[#allocation9 + $0x74] sm:$0xf]
    %v12784 = vld [vmem:[#allocation9 + $0x78] sm:$0xf]
    %v12785 = vld [vmem:[#allocation9 + $0x7c] sm:$0xf]
    %v12786 = vld [vmem:[#allocation9 + $0x80] sm:$0xf]
    %v12787 = vld [vmem:[#allocation9 + $0x84] sm:$0xf]
    %v12788 = vld [vmem:[#allocation9 + $0x88] sm:$0xf]
    %v12789 = vld [vmem:[#allocation9 + $0x8c] sm:$0xf]
    %v12790 = vld [vmem:[#allocation9 + $0x90] sm:$0xf]
    %v12791 = vld [vmem:[#allocation9 + $0x94] sm:$0xf]
    %v12792 = vld [vmem:[#allocation9 + $0x98] sm:$0xf]
    %v12793 = vld [vmem:[#allocation9 + $0x9c] sm:$0xf]
    %v12794 = vld [vmem:[#allocation9 + $0xa0] sm:$0xf]
    %v12795 = vld [vmem:[#allocation9 + $0xa4] sm:$0xf]
    %v12796 = vld [vmem:[#allocation9 + $0xa8] sm:$0xf]
    %v12797 = vld [vmem:[#allocation9 + $0xac] sm:$0xf]
    %v12798 = vld [vmem:[#allocation9 + $0xb0] sm:$0xf]
    %v12799 = vld [vmem:[#allocation9 + $0xb4] sm:$0xf]
    %v12800 = vld [vmem:[#allocation9 + $0xb8] sm:$0xf]
    %v12801 = vld [vmem:[#allocation9 + $0xbc] sm:$0xf]
    %v12802 = vld [vmem:[#allocation9 + $0xc0] sm:$0xf]
    %v12803 = vld [vmem:[#allocation9 + $0xc4] sm:$0xf]
    %v12804 = vld [vmem:[#allocation9 + $0xc8] sm:$0xf]
    %v12805 = vld [vmem:[#allocation9 + $0xcc] sm:$0xf]
    %v12806 = vld [vmem:[#allocation9 + $0xd0] sm:$0xf]
    %v12807 = vld [vmem:[#allocation9 + $0xd4] sm:$0xf]
    %v12808 = vld [vmem:[#allocation9 + $0xd8] sm:$0xf]
    %v12809 = vld [vmem:[#allocation9 + $0xdc] sm:$0xf]
    %v12810 = vld [vmem:[#allocation9 + $0xe0] sm:$0xf]
    %v12811 = vld [vmem:[#allocation9 + $0xe4] sm:$0xf]
    %v12812 = vld [vmem:[#allocation9 + $0xe8] sm:$0xf]
    %v12813 = vld [vmem:[#allocation9 + $0xec] sm:$0xf]
    %v12814 = vld [vmem:[#allocation9 + $0xf0] sm:$0xf]
    %v12815 = vld [vmem:[#allocation9 + $0xf4] sm:$0xf]
    %v12816 = vld [vmem:[#allocation9 + $0xf8] sm:$0xf]
    %v12817 = vld [vmem:[#allocation9 + $0xfc] sm:$0xf]
    %v12818 = vld [vmem:[#allocation11] sm:$0x1]
    %v12820 = vperm.slane %v12818, 0
    %v12886 = vunpack.c.l.b16 %v12754
    %v12887 = vunpack.c.l.b16 %v12755
    %v12888 = vunpack.c.l.b16 %v12756
    %v12889 = vunpack.c.l.b16 %v12757
    %v12890 = vunpack.c.l.b16 %v12758
    %v12891 = vunpack.c.l.b16 %v12759
    %v12892 = vunpack.c.l.b16 %v12760
    %v12893 = vunpack.c.l.b16 %v12761
    %v12894 = vunpack.c.l.b16 %v12762
    %v12895 = vunpack.c.l.b16 %v12763
    %v12896 = vunpack.c.l.b16 %v12764
    %v12897 = vunpack.c.l.b16 %v12765
    %v12898 = vunpack.c.l.b16 %v12766
    %v12899 = vunpack.c.l.b16 %v12767
    %v12900 = vunpack.c.l.b16 %v12768
    %v12901 = vunpack.c.l.b16 %v12769
    %v12902 = vunpack.c.l.b16 %v12770
    %v12903 = vunpack.c.l.b16 %v12771
    %v12904 = vunpack.c.l.b16 %v12772
    %v12905 = vunpack.c.l.b16 %v12773
    %v12906 = vunpack.c.l.b16 %v12774
    %v12907 = vunpack.c.l.b16 %v12775
    %v12908 = vunpack.c.l.b16 %v12776
    %v12909 = vunpack.c.l.b16 %v12777
    %v12910 = vunpack.c.l.b16 %v12778
    %v12911 = vunpack.c.l.b16 %v12779
    %v12912 = vunpack.c.l.b16 %v12780
    %v12913 = vunpack.c.l.b16 %v12781
    %v12914 = vunpack.c.l.b16 %v12782
    %v12915 = vunpack.c.l.b16 %v12783
    %v12916 = vunpack.c.l.b16 %v12784
    %v12917 = vunpack.c.l.b16 %v12785
    %v12918 = vunpack.c.l.b16 %v12786
    %v12919 = vunpack.c.l.b16 %v12787
    %v12920 = vunpack.c.l.b16 %v12788
    %v12921 = vunpack.c.l.b16 %v12789
    %v12922 = vunpack.c.l.b16 %v12790
    %v12923 = vunpack.c.l.b16 %v12791
    %v12924 = vunpack.c.l.b16 %v12792
    %v12925 = vunpack.c.l.b16 %v12793
    %v12926 = vunpack.c.l.b16 %v12794
    %v12927 = vunpack.c.l.b16 %v12795
    %v12928 = vunpack.c.l.b16 %v12796
    %v12929 = vunpack.c.l.b16 %v12797
    %v12930 = vunpack.c.l.b16 %v12798
    %v12931 = vunpack.c.l.b16 %v12799
    %v12932 = vunpack.c.l.b16 %v12800
    %v12933 = vunpack.c.l.b16 %v12801
    %v12934 = vunpack.c.l.b16 %v12802
    %v12935 = vunpack.c.l.b16 %v12803
    %v12936 = vunpack.c.l.b16 %v12804
    %v12937 = vunpack.c.l.b16 %v12805
    %v12938 = vunpack.c.l.b16 %v12806
    %v12939 = vunpack.c.l.b16 %v12807
    %v12940 = vunpack.c.l.b16 %v12808
    %v12941 = vunpack.c.l.b16 %v12809
    %v12942 = vunpack.c.l.b16 %v12810
    %v12943 = vunpack.c.l.b16 %v12811
    %v12944 = vunpack.c.l.b16 %v12812
    %v12945 = vunpack.c.l.b16 %v12813
    %v12946 = vunpack.c.l.b16 %v12814
    %v12947 = vunpack.c.l.b16 %v12815
    %v12948 = vunpack.c.l.b16 %v12816
    %v12949 = vunpack.c.l.b16 %v12817
    %v12950 = vpack.c.b16 %v12887, %v12886
    %v12951 = vpack.c.b16 %v12889, %v12888
    %v12952 = vpack.c.b16 %v12891, %v12890
    %v12953 = vpack.c.b16 %v12893, %v12892
    %v12954 = vpack.c.b16 %v12895, %v12894
    %v12955 = vpack.c.b16 %v12897, %v12896
    %v12956 = vpack.c.b16 %v12899, %v12898
    %v12957 = vpack.c.b16 %v12901, %v12900
    %v12958 = vpack.c.b16 %v12903, %v12902
    %v12959 = vpack.c.b16 %v12905, %v12904
    %v12960 = vpack.c.b16 %v12907, %v12906
    %v12961 = vpack.c.b16 %v12909, %v12908
    %v12962 = vpack.c.b16 %v12911, %v12910
    %v12963 = vpack.c.b16 %v12913, %v12912
    %v12964 = vpack.c.b16 %v12915, %v12914
    %v12965 = vpack.c.b16 %v12917, %v12916
    %v12966 = vpack.c.b16 %v12919, %v12918
    %v12967 = vpack.c.b16 %v12921, %v12920
    %v12968 = vpack.c.b16 %v12923, %v12922
    %v12969 = vpack.c.b16 %v12925, %v12924
    %v12970 = vpack.c.b16 %v12927, %v12926
    %v12971 = vpack.c.b16 %v12929, %v12928
    %v12972 = vpack.c.b16 %v12931, %v12930
    %v12973 = vpack.c.b16 %v12933, %v12932
    %v12974 = vpack.c.b16 %v12935, %v12934
    %v12975 = vpack.c.b16 %v12937, %v12936
    %v12976 = vpack.c.b16 %v12939, %v12938
    %v12977 = vpack.c.b16 %v12941, %v12940
    %v12978 = vpack.c.b16 %v12943, %v12942
    %v12979 = vpack.c.b16 %v12945, %v12944
    %v12980 = vpack.c.b16 %v12947, %v12946
    %v12981 = vpack.c.b16 %v12949, %v12948
    %13014 = vmatpush.bf16.msra.mxu0 %v12957
    %13015 = vmatpush.bf16.msra.mxu0 %v12956
    %13016 = vmatpush.bf16.msra.mxu0 %v12955
    %13017 = vmatpush.bf16.msra.mxu0 %v12954
    %13018 = vmatpush.bf16.msra.mxu0 %v12953
    %13019 = vmatpush.bf16.msra.mxu0 %v12952
    %13020 = vmatpush.bf16.msra.mxu0 %v12951
    %13021 = vmatpush.bf16.msra.mxu0 %v12950
    %13022 = vmatmul.bf16.gmra.mxu0 %v12750
    %v13023 = vpop.f32.mrf.mxu0
    %v13024 = vadd.f32 %v12820, %v13023
    %v13025 = vpop.f32.mrf.mxu0
    %13026 = vdwg.mxu0
    %13027 = vmatpush.bf16.msra.mxu0 %v12965
    %13028 = vmatpush.bf16.msra.mxu0 %v12964
    %13029 = vmatpush.bf16.msra.mxu0 %v12963
    %13030 = vmatpush.bf16.msra.mxu0 %v12962
    %13031 = vmatpush.bf16.msra.mxu0 %v12961
    %13032 = vmatpush.bf16.msra.mxu0 %v12960
    %13033 = vmatpush.bf16.msra.mxu0 %v12959
    %13034 = vmatpush.bf16.msra.mxu0 %v12958
    %13035 = vmatmul.bf16.gmra.mxu0 %v12751
    %v13036 = vpop.f32.mrf.mxu0
    %v13037 = vadd.f32 %v13024, %v13036
    %v13038 = vpop.f32.mrf.mxu0
    %13039 = vdwg.mxu0
    %13040 = vmatpush.bf16.msra.mxu0 %v12973
    %13041 = vmatpush.bf16.msra.mxu0 %v12972
    %13042 = vmatpush.bf16.msra.mxu0 %v12971
    %13043 = vmatpush.bf16.msra.mxu0 %v12970
    %13044 = vmatpush.bf16.msra.mxu0 %v12969
    %13045 = vmatpush.bf16.msra.mxu0 %v12968
    %13046 = vmatpush.bf16.msra.mxu0 %v12967
    %13047 = vmatpush.bf16.msra.mxu0 %v12966
    %13048 = vmatmul.bf16.gmra.mxu0 %v12752
    %v13049 = vpop.f32.mrf.mxu0
    %v13050 = vadd.f32 %v13037, %v13049
    %v13051 = vpop.f32.mrf.mxu0
    %13052 = vdwg.mxu0
    %13053 = vmatpush.bf16.msra.mxu0 %v12981
    %13054 = vmatpush.bf16.msra.mxu0 %v12980
    %13055 = vmatpush.bf16.msra.mxu0 %v12979
    %13056 = vmatpush.bf16.msra.mxu0 %v12978
    %13057 = vmatpush.bf16.msra.mxu0 %v12977
    %13058 = vmatpush.bf16.msra.mxu0 %v12976
    %13059 = vmatpush.bf16.msra.mxu0 %v12975
    %13060 = vmatpush.bf16.msra.mxu0 %v12974
    %13061 = vmatmul.bf16.gmra.mxu0 %v12753
    %v13062 = vpop.f32.mrf.mxu0
    %v13063 = vadd.f32 %v13050, %v13062
    %v13064 = vpop.f32.mrf.mxu0
    %13065 = vdwg.mxu0
    %v13066 = vmax.f32 %v13063, 0.0
    %v13067 = vpack.c.bf16 %v13066, %v13066
    %v13068 = vld [vmem:[#allocation12] sm:$0xf]
    %v13069 = vld [vmem:[#allocation12 + $0x4] sm:$0xf]
    %v13070 = vld [vmem:[#allocation12 + $0x8] sm:$0xf]
    %v13071 = vld [vmem:[#allocation12 + $0xc] sm:$0xf]
    %v13072 = vld [vmem:[#allocation12 + $0x10] sm:$0xf]
    %v13073 = vld [vmem:[#allocation12 + $0x14] sm:$0xf]
    %v13074 = vld [vmem:[#allocation12 + $0x18] sm:$0xf]
    %v13075 = vld [vmem:[#allocation12 + $0x1c] sm:$0xf]
    %v13076 = vld [vmem:[#allocation12 + $0x20] sm:$0xf]
    %v13077 = vld [vmem:[#allocation12 + $0x24] sm:$0xf]
    %v13078 = vld [vmem:[#allocation12 + $0x28] sm:$0xf]
    %v13079 = vld [vmem:[#allocation12 + $0x2c] sm:$0xf]
    %v13080 = vld [vmem:[#allocation12 + $0x30] sm:$0xf]
    %v13081 = vld [vmem:[#allocation12 + $0x34] sm:$0xf]
    %v13082 = vld [vmem:[#allocation12 + $0x38] sm:$0xf]
    %v13083 = vld [vmem:[#allocation12 + $0x3c] sm:$0xf]
    %v13084 = vld [vmem:[#allocation14] sm:$0x1]
    %v13086 = vperm.slane %v13084, 0
    %v13104 = vunpack.c.l.b16 %v13068
    %v13105 = vunpack.c.l.b16 %v13069
    %v13106 = vunpack.c.l.b16 %v13070
    %v13107 = vunpack.c.l.b16 %v13071
    %v13108 = vunpack.c.l.b16 %v13072
    %v13109 = vunpack.c.l.b16 %v13073
    %v13110 = vunpack.c.l.b16 %v13074
    %v13111 = vunpack.c.l.b16 %v13075
    %v13112 = vunpack.c.l.b16 %v13076
    %v13113 = vunpack.c.l.b16 %v13077
    %v13114 = vunpack.c.l.b16 %v13078
    %v13115 = vunpack.c.l.b16 %v13079
    %v13116 = vunpack.c.l.b16 %v13080
    %v13117 = vunpack.c.l.b16 %v13081
    %v13118 = vunpack.c.l.b16 %v13082
    %v13119 = vunpack.c.l.b16 %v13083
    %v13120 = vpack.c.b16 %v13105, %v13104
    %v13121 = vpack.c.b16 %v13107, %v13106
    %v13122 = vpack.c.b16 %v13109, %v13108
    %v13123 = vpack.c.b16 %v13111, %v13110
    %v13124 = vpack.c.b16 %v13113, %v13112
    %v13125 = vpack.c.b16 %v13115, %v13114
    %v13126 = vpack.c.b16 %v13117, %v13116
    %v13127 = vpack.c.b16 %v13119, %v13118
    %13136 = vmatpush.bf16.msra.mxu0 %v13127
    %13137 = vmatpush.bf16.msra.mxu0 %v13126
    %13138 = vmatpush.bf16.msra.mxu0 %v13125
    %13139 = vmatpush.bf16.msra.mxu0 %v13124
    %13140 = vmatpush.bf16.msra.mxu0 %v13123
    %13141 = vmatpush.bf16.msra.mxu0 %v13122
    %13142 = vmatpush.bf16.msra.mxu0 %v13121
    %13143 = vmatpush.bf16.msra.mxu0 %v13120
    %13144 = vmatmul.bf16.gmra.mxu0 %v13067
    %v13145 = vpop.f32.mrf.mxu0
    %v13146 = vadd.f32 %v13086, %v13145
    %v13147 = vpop.f32.mrf.mxu0
    %13148 = vdwg.mxu0
    %v13149 = vmax.f32 %v13146, 0.0
    %v13150 = vpack.c.bf16 %v13149, %v13149
    %v13151 = vld [vmem:[%s9] sm:$0xf]
    %v13152 = vld [vmem:[%s9 + $0x4] sm:$0xf]
    %v13153 = vld [vmem:[%s9 + $0x8] sm:$0xf]
    %v13154 = vld [vmem:[%s9 + $0xc] sm:$0xf]
    %v13155 = vld [vmem:[%s9 + $0x10] sm:$0xf]
    %v13156 = vld [vmem:[%s9 + $0x14] sm:$0xf]
    %v13157 = vld [vmem:[%s9 + $0x18] sm:$0xf]
    %v13158 = vld [vmem:[%s9 + $0x1c] sm:$0xf]
    %v13159 = vld [vmem:[%s9 + $0x20] sm:$0xf]
    %v13160 = vld [vmem:[%s9 + $0x24] sm:$0xf]
    %v13161 = vld [vmem:[%s9 + $0x28] sm:$0xf]
    %v13162 = vld [vmem:[%s9 + $0x2c] sm:$0xf]
    %v13163 = vld [vmem:[%s9 + $0x30] sm:$0xf]
    %v13164 = vld [vmem:[%s9 + $0x34] sm:$0xf]
    %v13165 = vld [vmem:[%s9 + $0x38] sm:$0xf]
    %v13166 = vld [vmem:[%s9 + $0x3c] sm:$0xf]
    %v13167 = vld [vmem:[#allocation15] sm:$0x1]
    %v13169 = vperm.slane %v13167, 0
    %v13187 = vunpack.c.l.b16 %v13151
    %v13188 = vunpack.c.l.b16 %v13152
    %v13189 = vunpack.c.l.b16 %v13153
    %v13190 = vunpack.c.l.b16 %v13154
    %v13191 = vunpack.c.l.b16 %v13155
    %v13192 = vunpack.c.l.b16 %v13156
    %v13193 = vunpack.c.l.b16 %v13157
    %v13194 = vunpack.c.l.b16 %v13158
    %v13195 = vunpack.c.l.b16 %v13159
    %v13196 = vunpack.c.l.b16 %v13160
    %v13197 = vunpack.c.l.b16 %v13161
    %v13198 = vunpack.c.l.b16 %v13162
    %v13199 = vunpack.c.l.b16 %v13163
    %v13200 = vunpack.c.l.b16 %v13164
    %v13201 = vunpack.c.l.b16 %v13165
    %v13202 = vunpack.c.l.b16 %v13166
    %v13203 = vpack.c.b16 %v13188, %v13187
    %v13204 = vpack.c.b16 %v13190, %v13189
    %v13205 = vpack.c.b16 %v13192, %v13191
    %v13206 = vpack.c.b16 %v13194, %v13193
    %v13207 = vpack.c.b16 %v13196, %v13195
    %v13208 = vpack.c.b16 %v13198, %v13197
    %v13209 = vpack.c.b16 %v13200, %v13199
    %v13210 = vpack.c.b16 %v13202, %v13201
    %13219 = vmatpush.bf16.msra.mxu0 %v13210
    %13220 = vmatpush.bf16.msra.mxu0 %v13209
    %13221 = vmatpush.bf16.msra.mxu0 %v13208
    %13222 = vmatpush.bf16.msra.mxu0 %v13207
    %13223 = vmatpush.bf16.msra.mxu0 %v13206
    %13224 = vmatpush.bf16.msra.mxu0 %v13205
    %13225 = vmatpush.bf16.msra.mxu0 %v13204
    %13226 = vmatpush.bf16.msra.mxu0 %v13203
    %13227 = vmatmul.bf16.gmra.mxu0 %v13150
    %v13228 = vpop.f32.mrf.mxu0
    %v13229 = vadd.f32 %v13169, %v13228
    %v13230 = vpop.f32.mrf.mxu0
    %13231 = vdwg.mxu0
    %vm13232 = vcmask 74752
    %13233 = vst.msk [vmem:[#allocation17] sm:$0x3] %vm13232, %v13229
    // Predicated region
    $region78: #{net_forward.1} parent=1 // pred_check
      _
    $region79: #{net_forward.1} parent=1 // pred_check_branch
      %13235 = sbr.rel (0) target = $region81
    $region80: #{net_forward.1} parent=1 // pred_region
      %13237 = vsyncadd [#allocation5], 0
      %s13239 = sshll.u32 [#allocation17], 4
      %s13240 = int_to_ptr.vmem [resolvable:$true] %s13239
      %s13241 = sshll.u32 %s11, 4
      %s13242 = int_to_ptr.hbm [resolvable:$true] %s13241
      %13244 = dma.vmem_to_hbm [thread:$0]  %s13240, 32, %s13242, [#allocation5]
    $region81: #{net_forward.1} parent=1 // pred_fallthru
      _
    // Predicated region
    $region82: #{net_forward.1} parent=1 // pred_check
      _
    $region83: #{net_forward.1} parent=1 // pred_check_branch
      %13246 = sbr.rel (0) target = $region85
    $region84: #{net_forward.1} parent=1 // pred_region
      %13248 = dma.done [#allocation5], 32
    $region85: #{net_forward.1} parent=1 // pred_fallthru
      _
    %13249 = vsyncpa [#allocation4], 1
    %13250 = vsyncpa [#allocation7], 1
    %13251 = vsyncpa [#allocation10], 1
    %13252 = vsyncpa [#allocation13], 1
    %13253 = vsyncpa [#allocation16], 1
    %13254 = vsyncpa [#allocation5], 1

</llo_original>
